<compile_context>
chip_gen: v7x
topology: tpu7x:2x2x1
jax: 0.10.0
libtpu: 0.0.40
codegen_flags: <defaults>
</compile_context>

<pallas_src>
import functools

import jax
import jax.numpy as jnp
from jax.experimental import pallas as pl
from jax.experimental.pallas import tpu as pltpu


_NEG_BIG = -1e30          # "masked out" anchor->positive distance
_ANCHOR_BLOCK = 8         # anchors per fori iteration (one sublane tile)


def _cdiv(a, b):
    return (a + b - 1) // b


def _round_up(x, m):
    return _cdiv(x, m) * m


def _triplet_kernel(x_ref, pos_ref, valid_ref, stats_ref, dist_ref, *,
                    margin, n_real, inv_nn, full_batch, precision):
    # x_ref:     (pb, n_pad, c_pad) f32  embeddings for this block of parts
    # pos_ref:   (n_pad, n_pad)     f32  1.0 where labels match (real rows only)
    # valid_ref: (1, n_pad)         f32  1.0 for real (un-padded) samples
    # stats_ref: (1, pb, 4)         f32  [loss_avg, hard_loss, loss_num, mean_dist]
    # dist_ref:  (pb, n_pad, n_pad) f32  VMEM scratch: pairwise distances
    x = x_ref[...]
    valid = valid_ref[...]                                   # (1, n_pad)

    # Pairwise euclidean distances: one batched MXU matmul per part block.
    # Keep Precision.HIGHEST: x2_i + x2_j - 2*inner cancels for near-duplicate
    # embeddings; the matmul is <1% of the anchor loop anyway.
    x2 = jnp.sum(x * x, axis=-1)                             # (pb, n_pad)
    inner = jnp.einsum('pnc,pmc->pnm', x, x,
                       preferred_element_type=jnp.float32,
                       precision=precision)                  # (pb, n_pad, n_pad)
    d2 = x2[:, :, None] + x2[:, None, :] - 2.0 * inner
    dist = jnp.sqrt(jnp.maximum(d2, 0.0))                    # (pb, n_pad, n_pad)

    # Mean distance over the real n x n block, from the in-register value.
    # Mask only when the batch is actually padded (static Python check).
    if full_batch:
        mean = dist.sum(axis=1).sum(axis=1, keepdims=True) * inv_nn
    else:
        pair_mask = valid[:, :, None] * valid[:, None, :]    # (1, n_pad, n_pad)
        mean = (dist * pair_mask).sum(axis=1).sum(axis=1, keepdims=True) * inv_nn

    dist_ref[...] = dist

    pb = x.shape[0]
    n_pad = x.shape[1]
    n_blocks = _cdiv(n_real, _ANCHOR_BLOCK)  # padded anchors in the last block
                                             # are zeroed by the pos mask.

    # Stream over anchors in blocks of 8; fused running sum / count / max so
    # the full (pb, n, n, n) triplet tensor is never built.
    def body(ib, carry):
        run_sum, run_cnt, run_max = carry                    # each (pb, n_pad) over k
        base = pl.multiple_of(ib * _ANCHOR_BLOCK, _ANCHOR_BLOCK)
        # One aligned row-tile load per part covers 8 anchors' distance rows.
        a_blk = dist_ref[:, pl.ds(base, _ANCHOR_BLOCK), :]   # (pb, 8, n_pad)
        pos_blk = pos_ref[pl.ds(base, _ANCHOR_BLOCK), :]     # (8, n_pad)
        neg_blk = valid - pos_blk                             # (8, n_pad)
        for r in range(_ANCHOR_BLOCK):                        # static unroll
            a = a_blk[:, r, :]                                # (pb, n_pad)   d(i, .)
            an = a_blk[:, r:r + 1, :]                         # (pb, 1, n_pad)
            pos_row = pos_blk[r:r + 1, :]                     # (1, n_pad)
            neg_row = neg_blk[r:r + 1, :]                     # (1, n_pad)
            # Fold margin + positive mask into the anchor->positive distances
            # (O(pb*n)): masked-out positives become -BIG so relu(...) == 0,
            # leaving the O(pb*n^2) slab as a bare sub + relu.
            ap = jnp.where(pos_row > 0.5, a + margin, _NEG_BIG)   # (pb, n_pad)
            raw = jnp.maximum(ap[:, :, None] - an, 0.0)       # (pb, n_pad, n_pad)
            # Reduce over the positive axis (axis=1): VALU tile accumulation +
            # one 8-wide sublane reduce, instead of 128-wide cross-lane reduces.
            s = raw.sum(axis=1)                               # (pb, n_pad)
            c = (raw > 0.0).astype(jnp.float32).sum(axis=1)   # (pb, n_pad)
            m = raw.max(axis=1)                               # (pb, n_pad)
            # Negative mask applied post-reduce (0/1 scale, O(pb*n) per row).
            run_sum = run_sum + s * neg_row
            run_cnt = run_cnt + c * neg_row
            run_max = jnp.maximum(run_max, m * neg_row)
        return run_sum, run_cnt, run_max

    zeros = jnp.zeros((pb, n_pad), jnp.float32)
    run_sum, run_cnt, run_max = jax.lax.fori_loop(
        0, n_blocks, body, (zeros, zeros, zeros))

    loss_sum = run_sum.sum(axis=1, keepdims=True)             # (pb, 1)
    # Per-entry counts are exact in f32 (<= n^2 < 2^24); do the final per-part
    # sum in int32 so very large batches keep an exact triplet count.
    loss_num = jnp.sum(run_cnt.astype(jnp.int32), axis=1,
                       keepdims=True).astype(jnp.float32)     # (pb, 1)
    hard = run_max.max(axis=1, keepdims=True)                 # (pb, 1)

    avg = loss_sum / (loss_num + 1e-9)
    avg = jnp.where(loss_num == 0.0, 0.0, avg)

    stats_ref[...] = jnp.concatenate([avg, hard, loss_num, mean], axis=1)[None]


def _pick_part_block(p, part_block):
    """Part-block size: no 8-rounding (leading dim), prefer a divisor of p."""
    pb = max(1, min(int(part_block), int(p)))
    # Padded parts execute the full O(n^3) anchor loop on garbage, so prefer an
    # exact divisor of p -- unless that blows up the number of grid steps.
    max_steps = 4 * _cdiv(p, pb)
    for d in range(pb, 0, -1):
        if p % d == 0 and _cdiv(p, d) <= max_steps:
            pb = d
            break
    # Keep the part-grid length >= 2 so v7x can shard across both TensorCores.
    if p > 1 and _cdiv(p, pb) < 2:
        pb = _cdiv(p, 2)
    return pb


def _vmem_bytes(pb, n_pad, c_pad):
    # x (double-buffered) + dist scratch + one slab-sized working set +
    # pos (double-buffered) + small tails, in f32.
    return 4 * (2 * pb * n_pad * c_pad
                + 2 * pb * n_pad * n_pad
                + 2 * n_pad * n_pad
                + 2 * n_pad
                + 2 * pb * 4)


def triplet_loss(embeddings, labels, margin, *, part_block=8,
                 precision=jax.lax.Precision.HIGHEST):
    """embeddings: [n, c, p] (PyTorch NCP layout), labels: [n] ints.

    Returns (loss_avg[p], info) mirroring TripletLoss.forward.
    """
    n, c, p = embeddings.shape

    # [n, c, p] -> [p, n, c]; pad c to a lane multiple (128), n to a sublane
    # multiple (8).  Zero-padding c leaves x2/inner/dist unchanged; padded n
    # rows are masked via pos/valid; padded parts are sliced off on the host.
    x = jnp.transpose(embeddings, (2, 0, 1)).astype(jnp.float32)
    n_pad = _round_up(max(n, _ANCHOR_BLOCK), _ANCHOR_BLOCK)
    c_pad = _round_up(max(c, 128), 128)

    pb = _pick_part_block(p, part_block)
    # Clamp the part block so the per-step footprint stays well under v7x's
    # 64 MiB physical VMEM (and the 16/32 MiB scoped defaults elsewhere).
    while pb > 1 and _vmem_bytes(pb, n_pad, c_pad) > 24 * 2**20:
        pb = max(1, pb // 2)
    p_pad = _round_up(p, pb)
    n_steps = p_pad // pb

    x = jnp.pad(x, ((0, p_pad - p), (0, n_pad - n), (0, c_pad - c)))

    valid = (jnp.arange(n_pad) < n).astype(jnp.float32)                 # (n_pad,)
    same = labels[:, None] == labels[None, :]
    same = jnp.pad(same, ((0, n_pad - n), (0, n_pad - n)))              # padded -> False
    pos = same.astype(jnp.float32)                                      # (n_pad, n_pad)
    valid2d = valid[None, :]                                            # (1, n_pad)

    kernel = functools.partial(
        _triplet_kernel, margin=float(margin), n_real=int(n),
        inv_nn=1.0 / float(n * n), full_batch=(n == n_pad),
        precision=precision)

    est = _vmem_bytes(pb, n_pad, c_pad)
    vmem_limit = int(min(48 * 2**20, max(2 * est + 4 * 2**20, 16 * 2**20)))

    stats = pl.pallas_call(
        kernel,
        out_shape=jax.ShapeDtypeStruct((n_steps, pb, 4), jnp.float32),
        grid=(n_steps,),
        in_specs=[
            pl.BlockSpec((pb, n_pad, c_pad), lambda i: (i, 0, 0)),
            pl.BlockSpec((n_pad, n_pad), lambda i: (0, 0)),
            pl.BlockSpec((1, n_pad), lambda i: (0, 0)),
        ],
        out_specs=pl.BlockSpec((1, pb, 4), lambda i: (i, 0, 0)),
        scratch_shapes=[pltpu.VMEM((pb, n_pad, n_pad), jnp.float32)],
        compiler_params=pltpu.CompilerParams(
            dimension_semantics=("parallel",),
            vmem_limit_bytes=vmem_limit),
    )(x, pos, valid2d)

    stats = stats.reshape(n_steps * pb, 4)[:p]
    loss_avg = stats[:, 0]
    info = {'loss': loss_avg, 'hard_loss': stats[:, 1],
            'loss_num': stats[:, 2], 'mean_dist': stats[:, 3]}
    return loss_avg, info


def triplet_loss_ref(embeddings, labels, margin):
    """Pure-JAX reference mirroring the PyTorch module exactly."""
    x = jnp.transpose(embeddings, (2, 0, 1)).astype(jnp.float32)   # (p, n, c)
    x2 = jnp.sum(x * x, axis=-1)
    inner = jnp.einsum('pnc,pmc->pnm', x, x,
                       precision=jax.lax.Precision.HIGHEST)
    dist = jnp.sqrt(jax.nn.relu(x2[:, :, None] + x2[:, None, :] - 2.0 * inner))
    mean_dist = dist.mean(axis=(1, 2))
    matches = labels[:, None] == labels[None, :]
    valid = (matches[None, :, :, None] & (~matches)[None, :, None, :]).astype(jnp.float32)
    loss = jax.nn.relu(dist[:, :, :, None] - dist[:, :, None, :] + margin) * valid
    loss_sum = loss.sum(axis=(1, 2, 3))
    loss_num = (loss > 0).sum(axis=(1, 2, 3)).astype(jnp.float32)
    hard = loss.max(axis=(1, 2, 3))
    avg = loss_sum / (loss_num + 1e-9)
    avg = jnp.where(loss_num == 0, 0.0, avg)
    return avg, hard, loss_num, mean_dist


if __name__ == "__main__":
    key = jax.random.PRNGKey(0)
    n, c, p = 8, 32, 16           # batch, embed-dim, parts
    margin = 0.2
    embeddings = jax.random.normal(key, (n, c, p), dtype=jnp.float32)
    labels = jnp.array([0, 0, 1, 1, 2, 2, 3, 3], dtype=jnp.int32)  # balanced P×K

    loss_avg, info = triplet_loss(embeddings, labels, margin)
    jax.block_until_ready((loss_avg, info))

    ref_avg, ref_hard, ref_num, ref_mean = triplet_loss_ref(embeddings, labels, margin)
    assert jnp.allclose(loss_avg, ref_avg, rtol=1e-4, atol=1e-4)
    assert jnp.allclose(info['hard_loss'], ref_hard, rtol=1e-4, atol=1e-4)
    assert jnp.allclose(info['loss_num'], ref_num, rtol=0, atol=0.5)
    assert jnp.allclose(info['mean_dist'], ref_mean, rtol=1e-4, atol=1e-4)

    print("KERNEL_OK")
</pallas_src>

<mosaic_0001>
module attributes {stable_mosaic.version = 11 : i64} {
  func.func @_triplet_kernel(%arg0: i32, %arg1: memref<8x8x128xf32, #tpu.memory_space<vmem>>, %arg2: memref<8x8xf32, #tpu.memory_space<vmem>>, %arg3: memref<1x8xf32, #tpu.memory_space<vmem>>, %arg4: memref<1x8x4xf32, #tpu.memory_space<vmem>>, %arg5: memref<8x8x8xf32, #tpu.memory_space<vmem>>) attributes {dimension_semantics = [#tpu.dimension_semantics<parallel>], iteration_bounds = array<i64: 2>, scalar_prefetch = 0 : i64, scratch_operands = 1 : i64, tpu.core_type = #tpu.core_type<tc>, window_params = [{transform_indices = @transform_0, window_bounds = array<i64: 8, 8, 128>}, {pipeline_mode = #tpu.pipeline_mode<synchronous>, transform_indices = @transform_1, window_bounds = array<i64: 8, 8>}, {pipeline_mode = #tpu.pipeline_mode<synchronous>, transform_indices = @transform_2, window_bounds = array<i64: 1, 8>}, {transform_indices = @transform_3, window_bounds = array<i64: 1, 8, 4>}]} {
    %c0 = arith.constant 0 : index
    %c0_0 = arith.constant 0 : index
    %c0_1 = arith.constant 0 : index
    %0 = vector.load %arg1[%c0, %c0_0, %c0_1] : memref<8x8x128xf32, #tpu.memory_space<vmem>>, vector<8x8x128xf32>
    %c0_2 = arith.constant 0 : index
    %c0_3 = arith.constant 0 : index
    %1 = vector.load %arg3[%c0_2, %c0_3] : memref<1x8xf32, #tpu.memory_space<vmem>>, vector<1x8xf32>
    %2 = arith.mulf %0, %0 : vector<8x8x128xf32>
    %cst = arith.constant dense<0.000000e+00> : vector<8x8xf32>
    %3 = vector.multi_reduction <add>, %2, %cst [2] : vector<8x8x128xf32> to vector<8x8xf32>
    "tpu.trace_start"() <{level = 10 : i32, message = "pnc,pmc->pnm"}> : () -> ()
    %cst_4 = arith.constant dense<0.000000e+00> : vector<8x8x8xf32>
    %4 = tpu.matmul %0, %0, %cst_4 {dimension_numbers = #tpu.dot_dimension_numbers<[2], [2], [1], [1], [0, 0, 0, 1, 1, 1], [0], [0]>, precision = #tpu.contract_precision<fp32>} : vector<8x8x128xf32>, vector<8x8x128xf32>, vector<8x8x8xf32> -> vector<8x8x8xf32>
    "tpu.trace_stop"() : () -> ()
    %5 = vector.shape_cast %3 : vector<8x8xf32> to vector<8x8x1xf32>
    %6 = vector.shape_cast %3 : vector<8x8xf32> to vector<8x1x8xf32>
    %7 = vector.broadcast %5 : vector<8x8x1xf32> to vector<8x8x8xf32>
    %8 = vector.broadcast %6 : vector<8x1x8xf32> to vector<8x8x8xf32>
    %9 = arith.addf %7, %8 : vector<8x8x8xf32>
    %cst_5 = arith.constant 2.000000e+00 : f32
    %10 = vector.broadcast %cst_5 : f32 to vector<8x8x8xf32>
    %11 = arith.mulf %10, %4 : vector<8x8x8xf32>
    %12 = arith.subf %9, %11 : vector<8x8x8xf32>
    %cst_6 = arith.constant 0.000000e+00 : f32
    %13 = vector.broadcast %cst_6 : f32 to vector<8x8x8xf32>
    %14 = arith.maximumf %12, %13 : vector<8x8x8xf32>
    %15 = math.sqrt %14 : vector<8x8x8xf32>
    %cst_7 = arith.constant dense<0.000000e+00> : vector<8x8xf32>
    %16 = vector.multi_reduction <add>, %15, %cst_7 [1] : vector<8x8x8xf32> to vector<8x8xf32>
    %cst_8 = arith.constant dense<0.000000e+00> : vector<8xf32>
    %17 = vector.multi_reduction <add>, %16, %cst_8 [1] : vector<8x8xf32> to vector<8xf32>
    %18 = vector.shape_cast %17 : vector<8xf32> to vector<8x1xf32>
    %cst_9 = arith.constant 1.562500e-02 : f32
    %19 = vector.broadcast %cst_9 : f32 to vector<8x1xf32>
    %20 = arith.mulf %18, %19 : vector<8x1xf32>
    %c0_10 = arith.constant 0 : index
    %c0_11 = arith.constant 0 : index
    %c0_12 = arith.constant 0 : index
    %21 = vector.load %arg5[%c0_10, %c0_11, %c0_12] : memref<8x8x8xf32, #tpu.memory_space<vmem>>, vector<8x8x8xf32>
    tpu.vector_store %arg5[%c0_10, %c0_11, %c0_12], %15 {strides = array<i32>} : memref<8x8x8xf32, #tpu.memory_space<vmem>>, vector<8x8x8xf32>,
    %cst_13 = arith.constant 0.000000e+00 : f32
    %22 = vector.broadcast %cst_13 : f32 to vector<8x8xf32>
    %c0_i32 = arith.constant 0 : i32
    %c8_i32 = arith.constant 8 : i32
    %23 = arith.muli %c0_i32, %c8_i32 : i32
    %24 = tpu.assume_multiple %23, 8 : i32
    %c0_14 = arith.constant 0 : index
    %25 = arith.index_cast %24 : i32 to index
    %c0_15 = arith.constant 0 : index
    %26 = vector.load %arg5[%c0_14, %25, %c0_15] : memref<8x8x8xf32, #tpu.memory_space<vmem>>, vector<8x8x8xf32>
    %27 = arith.index_cast %24 : i32 to index
    %c0_16 = arith.constant 0 : index
    %28 = vector.load %arg2[%27, %c0_16] : memref<8x8xf32, #tpu.memory_space<vmem>>, vector<8x8xf32>
    %29 = vector.broadcast %1 : vector<1x8xf32> to vector<8x8xf32>
    %30 = arith.subf %29, %28 : vector<8x8xf32>
    %31 = vector.extract_strided_slice %26 {offsets = [0, 0, 0], sizes = [8, 1, 8], strides = [1, 1, 1]} : vector<8x8x8xf32> to vector<8x1x8xf32>
    %32 = vector.shape_cast %31 : vector<8x1x8xf32> to vector<8x8xf32>
    %33 = vector.extract_strided_slice %26 {offsets = [0, 0, 0], sizes = [8, 1, 8], strides = [1, 1, 1]} : vector<8x8x8xf32> to vector<8x1x8xf32>
    %34 = vector.extract_strided_slice %28 {offsets = [0, 0], sizes = [1, 8], strides = [1, 1]} : vector<8x8xf32> to vector<1x8xf32>
    %35 = vector.extract_strided_slice %30 {offsets = [0, 0], sizes = [1, 8], strides = [1, 1]} : vector<8x8xf32> to vector<1x8xf32>
    %cst_17 = arith.constant 5.000000e-01 : f32
    %36 = vector.broadcast %cst_17 : f32 to vector<1x8xf32>
    %37 = arith.cmpf ogt, %34, %36 : vector<1x8xf32>
    %cst_18 = arith.constant 2.000000e-01 : f32
    %38 = vector.broadcast %cst_18 : f32 to vector<8x8xf32>
    %39 = arith.addf %32, %38 : vector<8x8xf32>
    %cst_19 = arith.constant -1.000000e+30 : f32
    %40 = vector.shape_cast %37 : vector<1x8xi1> to vector<1x8xi1>
    %41 = vector.broadcast %40 : vector<1x8xi1> to vector<8x8xi1>
    %42 = vector.broadcast %cst_19 : f32 to vector<8x8xf32>
    %43 = arith.select %41, %39, %42 : vector<8x8xi1>, vector<8x8xf32>
    %44 = vector.shape_cast %43 : vector<8x8xf32> to vector<8x8x1xf32>
    %45 = vector.broadcast %44 : vector<8x8x1xf32> to vector<8x8x8xf32>
    %46 = vector.broadcast %33 : vector<8x1x8xf32> to vector<8x8x8xf32>
    %47 = arith.subf %45, %46 : vector<8x8x8xf32>
    %cst_20 = arith.constant 0.000000e+00 : f32
    %48 = vector.broadcast %cst_20 : f32 to vector<8x8x8xf32>
    %49 = arith.maximumf %47, %48 : vector<8x8x8xf32>
    %cst_21 = arith.constant dense<0.000000e+00> : vector<8x8xf32>
    %50 = vector.multi_reduction <add>, %49, %cst_21 [1] : vector<8x8x8xf32> to vector<8x8xf32>
    %cst_22 = arith.constant 0.000000e+00 : f32
    %51 = vector.broadcast %cst_22 : f32 to vector<8x8x8xf32>
    %52 = arith.cmpf ogt, %49, %51 : vector<8x8x8xf32>
    %53 = arith.extui %52 : vector<8x8x8xi1> to vector<8x8x8xi32>
    %54 = arith.sitofp %53 : vector<8x8x8xi32> to vector<8x8x8xf32>
    %cst_23 = arith.constant dense<0.000000e+00> : vector<8x8xf32>
    %55 = vector.multi_reduction <add>, %54, %cst_23 [1] : vector<8x8x8xf32> to vector<8x8xf32>
    %cst_24 = arith.constant dense<0xFF800000> : vector<8x8xf32>
    %56 = vector.multi_reduction <maximumf>, %49, %cst_24 [1] : vector<8x8x8xf32> to vector<8x8xf32>
    %57 = vector.broadcast %35 : vector<1x8xf32> to vector<8x8xf32>
    %58 = arith.mulf %50, %57 : vector<8x8xf32>
    %59 = arith.addf %22, %58 : vector<8x8xf32>
    %60 = vector.broadcast %35 : vector<1x8xf32> to vector<8x8xf32>
    %61 = arith.mulf %55, %60 : vector<8x8xf32>
    %62 = arith.addf %22, %61 : vector<8x8xf32>
    %63 = vector.broadcast %35 : vector<1x8xf32> to vector<8x8xf32>
    %64 = arith.mulf %56, %63 : vector<8x8xf32>
    %65 = arith.maximumf %22, %64 : vector<8x8xf32>
    %66 = vector.extract_strided_slice %26 {offsets = [0, 1, 0], sizes = [8, 1, 8], strides = [1, 1, 1]} : vector<8x8x8xf32> to vector<8x1x8xf32>
    %67 = vector.shape_cast %66 : vector<8x1x8xf32> to vector<8x8xf32>
    %68 = vector.extract_strided_slice %26 {offsets = [0, 1, 0], sizes = [8, 1, 8], strides = [1, 1, 1]} : vector<8x8x8xf32> to vector<8x1x8xf32>
    %69 = vector.extract_strided_slice %28 {offsets = [1, 0], sizes = [1, 8], strides = [1, 1]} : vector<8x8xf32> to vector<1x8xf32>
    %70 = vector.extract_strided_slice %30 {offsets = [1, 0], sizes = [1, 8], strides = [1, 1]} : vector<8x8xf32> to vector<1x8xf32>
    %cst_25 = arith.constant 5.000000e-01 : f32
    %71 = vector.broadcast %cst_25 : f32 to vector<1x8xf32>
    %72 = arith.cmpf ogt, %69, %71 : vector<1x8xf32>
    %cst_26 = arith.constant 2.000000e-01 : f32
    %73 = vector.broadcast %cst_26 : f32 to vector<8x8xf32>
    %74 = arith.addf %67, %73 : vector<8x8xf32>
    %cst_27 = arith.constant -1.000000e+30 : f32
    %75 = vector.shape_cast %72 : vector<1x8xi1> to vector<1x8xi1>
    %76 = vector.broadcast %75 : vector<1x8xi1> to vector<8x8xi1>
    %77 = vector.broadcast %cst_27 : f32 to vector<8x8xf32>
    %78 = arith.select %76, %74, %77 : vector<8x8xi1>, vector<8x8xf32>
    %79 = vector.shape_cast %78 : vector<8x8xf32> to vector<8x8x1xf32>
    %80 = vector.broadcast %79 : vector<8x8x1xf32> to vector<8x8x8xf32>
    %81 = vector.broadcast %68 : vector<8x1x8xf32> to vector<8x8x8xf32>
    %82 = arith.subf %80, %81 : vector<8x8x8xf32>
    %cst_28 = arith.constant 0.000000e+00 : f32
    %83 = vector.broadcast %cst_28 : f32 to vector<8x8x8xf32>
    %84 = arith.maximumf %82, %83 : vector<8x8x8xf32>
    %cst_29 = arith.constant dense<0.000000e+00> : vector<8x8xf32>
    %85 = vector.multi_reduction <add>, %84, %cst_29 [1] : vector<8x8x8xf32> to vector<8x8xf32>
    %cst_30 = arith.constant 0.000000e+00 : f32
    %86 = vector.broadcast %cst_30 : f32 to vector<8x8x8xf32>
    %87 = arith.cmpf ogt, %84, %86 : vector<8x8x8xf32>
    %88 = arith.extui %87 : vector<8x8x8xi1> to vector<8x8x8xi32>
    %89 = arith.sitofp %88 : vector<8x8x8xi32> to vector<8x8x8xf32>
    %cst_31 = arith.constant dense<0.000000e+00> : vector<8x8xf32>
    %90 = vector.multi_reduction <add>, %89, %cst_31 [1] : vector<8x8x8xf32> to vector<8x8xf32>
    %cst_32 = arith.constant dense<0xFF800000> : vector<8x8xf32>
    %91 = vector.multi_reduction <maximumf>, %84, %cst_32 [1] : vector<8x8x8xf32> to vector<8x8xf32>
    %92 = vector.broadcast %70 : vector<1x8xf32> to vector<8x8xf32>
    %93 = arith.mulf %85, %92 : vector<8x8xf32>
    %94 = arith.addf %59, %93 : vector<8x8xf32>
    %95 = vector.broadcast %70 : vector<1x8xf32> to vector<8x8xf32>
    %96 = arith.mulf %90, %95 : vector<8x8xf32>
    %97 = arith.addf %62, %96 : vector<8x8xf32>
    %98 = vector.broadcast %70 : vector<1x8xf32> to vector<8x8xf32>
    %99 = arith.mulf %91, %98 : vector<8x8xf32>
    %100 = arith.maximumf %65, %99 : vector<8x8xf32>
    %101 = vector.extract_strided_slice %26 {offsets = [0, 2, 0], sizes = [8, 1, 8], strides = [1, 1, 1]} : vector<8x8x8xf32> to vector<8x1x8xf32>
    %102 = vector.shape_cast %101 : vector<8x1x8xf32> to vector<8x8xf32>
    %103 = vector.extract_strided_slice %26 {offsets = [0, 2, 0], sizes = [8, 1, 8], strides = [1, 1, 1]} : vector<8x8x8xf32> to vector<8x1x8xf32>
    %104 = vector.extract_strided_slice %28 {offsets = [2, 0], sizes = [1, 8], strides = [1, 1]} : vector<8x8xf32> to vector<1x8xf32>
    %105 = vector.extract_strided_slice %30 {offsets = [2, 0], sizes = [1, 8], strides = [1, 1]} : vector<8x8xf32> to vector<1x8xf32>
    %cst_33 = arith.constant 5.000000e-01 : f32
    %106 = vector.broadcast %cst_33 : f32 to vector<1x8xf32>
    %107 = arith.cmpf ogt, %104, %106 : vector<1x8xf32>
    %cst_34 = arith.constant 2.000000e-01 : f32
    %108 = vector.broadcast %cst_34 : f32 to vector<8x8xf32>
    %109 = arith.addf %102, %108 : vector<8x8xf32>
    %cst_35 = arith.constant -1.000000e+30 : f32
    %110 = vector.shape_cast %107 : vector<1x8xi1> to vector<1x8xi1>
    %111 = vector.broadcast %110 : vector<1x8xi1> to vector<8x8xi1>
    %112 = vector.broadcast %cst_35 : f32 to vector<8x8xf32>
    %113 = arith.select %111, %109, %112 : vector<8x8xi1>, vector<8x8xf32>
    %114 = vector.shape_cast %113 : vector<8x8xf32> to vector<8x8x1xf32>
    %115 = vector.broadcast %114 : vector<8x8x1xf32> to vector<8x8x8xf32>
    %116 = vector.broadcast %103 : vector<8x1x8xf32> to vector<8x8x8xf32>
    %117 = arith.subf %115, %116 : vector<8x8x8xf32>
    %cst_36 = arith.constant 0.000000e+00 : f32
    %118 = vector.broadcast %cst_36 : f32 to vector<8x8x8xf32>
    %119 = arith.maximumf %117, %118 : vector<8x8x8xf32>
    %cst_37 = arith.constant dense<0.000000e+00> : vector<8x8xf32>
    %120 = vector.multi_reduction <add>, %119, %cst_37 [1] : vector<8x8x8xf32> to vector<8x8xf32>
    %cst_38 = arith.constant 0.000000e+00 : f32
    %121 = vector.broadcast %cst_38 : f32 to vector<8x8x8xf32>
    %122 = arith.cmpf ogt, %119, %121 : vector<8x8x8xf32>
    %123 = arith.extui %122 : vector<8x8x8xi1> to vector<8x8x8xi32>
    %124 = arith.sitofp %123 : vector<8x8x8xi32> to vector<8x8x8xf32>
    %cst_39 = arith.constant dense<0.000000e+00> : vector<8x8xf32>
    %125 = vector.multi_reduction <add>, %124, %cst_39 [1] : vector<8x8x8xf32> to vector<8x8xf32>
    %cst_40 = arith.constant dense<0xFF800000> : vector<8x8xf32>
    %126 = vector.multi_reduction <maximumf>, %119, %cst_40 [1] : vector<8x8x8xf32> to vector<8x8xf32>
    %127 = vector.broadcast %105 : vector<1x8xf32> to vector<8x8xf32>
    %128 = arith.mulf %120, %127 : vector<8x8xf32>
    %129 = arith.addf %94, %128 : vector<8x8xf32>
    %130 = vector.broadcast %105 : vector<1x8xf32> to vector<8x8xf32>
    %131 = arith.mulf %125, %130 : vector<8x8xf32>
    %132 = arith.addf %97, %131 : vector<8x8xf32>
    %133 = vector.broadcast %105 : vector<1x8xf32> to vector<8x8xf32>
    %134 = arith.mulf %126, %133 : vector<8x8xf32>
    %135 = arith.maximumf %100, %134 : vector<8x8xf32>
    %136 = vector.extract_strided_slice %26 {offsets = [0, 3, 0], sizes = [8, 1, 8], strides = [1, 1, 1]} : vector<8x8x8xf32> to vector<8x1x8xf32>
    %137 = vector.shape_cast %136 : vector<8x1x8xf32> to vector<8x8xf32>
    %138 = vector.extract_strided_slice %26 {offsets = [0, 3, 0], sizes = [8, 1, 8], strides = [1, 1, 1]} : vector<8x8x8xf32> to vector<8x1x8xf32>
    %139 = vector.extract_strided_slice %28 {offsets = [3, 0], sizes = [1, 8], strides = [1, 1]} : vector<8x8xf32> to vector<1x8xf32>
    %140 = vector.extract_strided_slice %30 {offsets = [3, 0], sizes = [1, 8], strides = [1, 1]} : vector<8x8xf32> to vector<1x8xf32>
    %cst_41 = arith.constant 5.000000e-01 : f32
    %141 = vector.broadcast %cst_41 : f32 to vector<1x8xf32>
    %142 = arith.cmpf ogt, %139, %141 : vector<1x8xf32>
    %cst_42 = arith.constant 2.000000e-01 : f32
    %143 = vector.broadcast %cst_42 : f32 to vector<8x8xf32>
    %144 = arith.addf %137, %143 : vector<8x8xf32>
    %cst_43 = arith.constant -1.000000e+30 : f32
    %145 = vector.shape_cast %142 : vector<1x8xi1> to vector<1x8xi1>
    %146 = vector.broadcast %145 : vector<1x8xi1> to vector<8x8xi1>
    %147 = vector.broadcast %cst_43 : f32 to vector<8x8xf32>
    %148 = arith.select %146, %144, %147 : vector<8x8xi1>, vector<8x8xf32>
    %149 = vector.shape_cast %148 : vector<8x8xf32> to vector<8x8x1xf32>
    %150 = vector.broadcast %149 : vector<8x8x1xf32> to vector<8x8x8xf32>
    %151 = vector.broadcast %138 : vector<8x1x8xf32> to vector<8x8x8xf32>
    %152 = arith.subf %150, %151 : vector<8x8x8xf32>
    %cst_44 = arith.constant 0.000000e+00 : f32
    %153 = vector.broadcast %cst_44 : f32 to vector<8x8x8xf32>
    %154 = arith.maximumf %152, %153 : vector<8x8x8xf32>
    %cst_45 = arith.constant dense<0.000000e+00> : vector<8x8xf32>
    %155 = vector.multi_reduction <add>, %154, %cst_45 [1] : vector<8x8x8xf32> to vector<8x8xf32>
    %cst_46 = arith.constant 0.000000e+00 : f32
    %156 = vector.broadcast %cst_46 : f32 to vector<8x8x8xf32>
    %157 = arith.cmpf ogt, %154, %156 : vector<8x8x8xf32>
    %158 = arith.extui %157 : vector<8x8x8xi1> to vector<8x8x8xi32>
    %159 = arith.sitofp %158 : vector<8x8x8xi32> to vector<8x8x8xf32>
    %cst_47 = arith.constant dense<0.000000e+00> : vector<8x8xf32>
    %160 = vector.multi_reduction <add>, %159, %cst_47 [1] : vector<8x8x8xf32> to vector<8x8xf32>
    %cst_48 = arith.constant dense<0xFF800000> : vector<8x8xf32>
    %161 = vector.multi_reduction <maximumf>, %154, %cst_48 [1] : vector<8x8x8xf32> to vector<8x8xf32>
    %162 = vector.broadcast %140 : vector<1x8xf32> to vector<8x8xf32>
    %163 = arith.mulf %155, %162 : vector<8x8xf32>
    %164 = arith.addf %129, %163 : vector<8x8xf32>
    %165 = vector.broadcast %140 : vector<1x8xf32> to vector<8x8xf32>
    %166 = arith.mulf %160, %165 : vector<8x8xf32>
    %167 = arith.addf %132, %166 : vector<8x8xf32>
    %168 = vector.broadcast %140 : vector<1x8xf32> to vector<8x8xf32>
    %169 = arith.mulf %161, %168 : vector<8x8xf32>
    %170 = arith.maximumf %135, %169 : vector<8x8xf32>
    %171 = vector.extract_strided_slice %26 {offsets = [0, 4, 0], sizes = [8, 1, 8], strides = [1, 1, 1]} : vector<8x8x8xf32> to vector<8x1x8xf32>
    %172 = vector.shape_cast %171 : vector<8x1x8xf32> to vector<8x8xf32>
    %173 = vector.extract_strided_slice %26 {offsets = [0, 4, 0], sizes = [8, 1, 8], strides = [1, 1, 1]} : vector<8x8x8xf32> to vector<8x1x8xf32>
    %174 = vector.extract_strided_slice %28 {offsets = [4, 0], sizes = [1, 8], strides = [1, 1]} : vector<8x8xf32> to vector<1x8xf32>
    %175 = vector.extract_strided_slice %30 {offsets = [4, 0], sizes = [1, 8], strides = [1, 1]} : vector<8x8xf32> to vector<1x8xf32>
    %cst_49 = arith.constant 5.000000e-01 : f32
    %176 = vector.broadcast %cst_49 : f32 to vector<1x8xf32>
    %177 = arith.cmpf ogt, %174, %176 : vector<1x8xf32>
    %cst_50 = arith.constant 2.000000e-01 : f32
    %178 = vector.broadcast %cst_50 : f32 to vector<8x8xf32>
    %179 = arith.addf %172, %178 : vector<8x8xf32>
    %cst_51 = arith.constant -1.000000e+30 : f32
    %180 = vector.shape_cast %177 : vector<1x8xi1> to vector<1x8xi1>
    %181 = vector.broadcast %180 : vector<1x8xi1> to vector<8x8xi1>
    %182 = vector.broadcast %cst_51 : f32 to vector<8x8xf32>
    %183 = arith.select %181, %179, %182 : vector<8x8xi1>, vector<8x8xf32>
    %184 = vector.shape_cast %183 : vector<8x8xf32> to vector<8x8x1xf32>
    %185 = vector.broadcast %184 : vector<8x8x1xf32> to vector<8x8x8xf32>
    %186 = vector.broadcast %173 : vector<8x1x8xf32> to vector<8x8x8xf32>
    %187 = arith.subf %185, %186 : vector<8x8x8xf32>
    %cst_52 = arith.constant 0.000000e+00 : f32
    %188 = vector.broadcast %cst_52 : f32 to vector<8x8x8xf32>
    %189 = arith.maximumf %187, %188 : vector<8x8x8xf32>
    %cst_53 = arith.constant dense<0.000000e+00> : vector<8x8xf32>
    %190 = vector.multi_reduction <add>, %189, %cst_53 [1] : vector<8x8x8xf32> to vector<8x8xf32>
    %cst_54 = arith.constant 0.000000e+00 : f32
    %191 = vector.broadcast %cst_54 : f32 to vector<8x8x8xf32>
    %192 = arith.cmpf ogt, %189, %191 : vector<8x8x8xf32>
    %193 = arith.extui %192 : vector<8x8x8xi1> to vector<8x8x8xi32>
    %194 = arith.sitofp %193 : vector<8x8x8xi32> to vector<8x8x8xf32>
    %cst_55 = arith.constant dense<0.000000e+00> : vector<8x8xf32>
    %195 = vector.multi_reduction <add>, %194, %cst_55 [1] : vector<8x8x8xf32> to vector<8x8xf32>
    %cst_56 = arith.constant dense<0xFF800000> : vector<8x8xf32>
    %196 = vector.multi_reduction <maximumf>, %189, %cst_56 [1] : vector<8x8x8xf32> to vector<8x8xf32>
    %197 = vector.broadcast %175 : vector<1x8xf32> to vector<8x8xf32>
    %198 = arith.mulf %190, %197 : vector<8x8xf32>
    %199 = arith.addf %164, %198 : vector<8x8xf32>
    %200 = vector.broadcast %175 : vector<1x8xf32> to vector<8x8xf32>
    %201 = arith.mulf %195, %200 : vector<8x8xf32>
    %202 = arith.addf %167, %201 : vector<8x8xf32>
    %203 = vector.broadcast %175 : vector<1x8xf32> to vector<8x8xf32>
    %204 = arith.mulf %196, %203 : vector<8x8xf32>
    %205 = arith.maximumf %170, %204 : vector<8x8xf32>
    %206 = vector.extract_strided_slice %26 {offsets = [0, 5, 0], sizes = [8, 1, 8], strides = [1, 1, 1]} : vector<8x8x8xf32> to vector<8x1x8xf32>
    %207 = vector.shape_cast %206 : vector<8x1x8xf32> to vector<8x8xf32>
    %208 = vector.extract_strided_slice %26 {offsets = [0, 5, 0], sizes = [8, 1, 8], strides = [1, 1, 1]} : vector<8x8x8xf32> to vector<8x1x8xf32>
    %209 = vector.extract_strided_slice %28 {offsets = [5, 0], sizes = [1, 8], strides = [1, 1]} : vector<8x8xf32> to vector<1x8xf32>
    %210 = vector.extract_strided_slice %30 {offsets = [5, 0], sizes = [1, 8], strides = [1, 1]} : vector<8x8xf32> to vector<1x8xf32>
    %cst_57 = arith.constant 5.000000e-01 : f32
    %211 = vector.broadcast %cst_57 : f32 to vector<1x8xf32>
    %212 = arith.cmpf ogt, %209, %211 : vector<1x8xf32>
    %cst_58 = arith.constant 2.000000e-01 : f32
    %213 = vector.broadcast %cst_58 : f32 to vector<8x8xf32>
    %214 = arith.addf %207, %213 : vector<8x8xf32>
    %cst_59 = arith.constant -1.000000e+30 : f32
    %215 = vector.shape_cast %212 : vector<1x8xi1> to vector<1x8xi1>
    %216 = vector.broadcast %215 : vector<1x8xi1> to vector<8x8xi1>
    %217 = vector.broadcast %cst_59 : f32 to vector<8x8xf32>
    %218 = arith.select %216, %214, %217 : vector<8x8xi1>, vector<8x8xf32>
    %219 = vector.shape_cast %218 : vector<8x8xf32> to vector<8x8x1xf32>
    %220 = vector.broadcast %219 : vector<8x8x1xf32> to vector<8x8x8xf32>
    %221 = vector.broadcast %208 : vector<8x1x8xf32> to vector<8x8x8xf32>
    %222 = arith.subf %220, %221 : vector<8x8x8xf32>
    %cst_60 = arith.constant 0.000000e+00 : f32
    %223 = vector.broadcast %cst_60 : f32 to vector<8x8x8xf32>
    %224 = arith.maximumf %222, %223 : vector<8x8x8xf32>
    %cst_61 = arith.constant dense<0.000000e+00> : vector<8x8xf32>
    %225 = vector.multi_reduction <add>, %224, %cst_61 [1] : vector<8x8x8xf32> to vector<8x8xf32>
    %cst_62 = arith.constant 0.000000e+00 : f32
    %226 = vector.broadcast %cst_62 : f32 to vector<8x8x8xf32>
    %227 = arith.cmpf ogt, %224, %226 : vector<8x8x8xf32>
    %228 = arith.extui %227 : vector<8x8x8xi1> to vector<8x8x8xi32>
    %229 = arith.sitofp %228 : vector<8x8x8xi32> to vector<8x8x8xf32>
    %cst_63 = arith.constant dense<0.000000e+00> : vector<8x8xf32>
    %230 = vector.multi_reduction <add>, %229, %cst_63 [1] : vector<8x8x8xf32> to vector<8x8xf32>
    %cst_64 = arith.constant dense<0xFF800000> : vector<8x8xf32>
    %231 = vector.multi_reduction <maximumf>, %224, %cst_64 [1] : vector<8x8x8xf32> to vector<8x8xf32>
    %232 = vector.broadcast %210 : vector<1x8xf32> to vector<8x8xf32>
    %233 = arith.mulf %225, %232 : vector<8x8xf32>
    %234 = arith.addf %199, %233 : vector<8x8xf32>
    %235 = vector.broadcast %210 : vector<1x8xf32> to vector<8x8xf32>
    %236 = arith.mulf %230, %235 : vector<8x8xf32>
    %237 = arith.addf %202, %236 : vector<8x8xf32>
    %238 = vector.broadcast %210 : vector<1x8xf32> to vector<8x8xf32>
    %239 = arith.mulf %231, %238 : vector<8x8xf32>
    %240 = arith.maximumf %205, %239 : vector<8x8xf32>
    %241 = vector.extract_strided_slice %26 {offsets = [0, 6, 0], sizes = [8, 1, 8], strides = [1, 1, 1]} : vector<8x8x8xf32> to vector<8x1x8xf32>
    %242 = vector.shape_cast %241 : vector<8x1x8xf32> to vector<8x8xf32>
    %243 = vector.extract_strided_slice %26 {offsets = [0, 6, 0], sizes = [8, 1, 8], strides = [1, 1, 1]} : vector<8x8x8xf32> to vector<8x1x8xf32>
    %244 = vector.extract_strided_slice %28 {offsets = [6, 0], sizes = [1, 8], strides = [1, 1]} : vector<8x8xf32> to vector<1x8xf32>
    %245 = vector.extract_strided_slice %30 {offsets = [6, 0], sizes = [1, 8], strides = [1, 1]} : vector<8x8xf32> to vector<1x8xf32>
    %cst_65 = arith.constant 5.000000e-01 : f32
    %246 = vector.broadcast %cst_65 : f32 to vector<1x8xf32>
    %247 = arith.cmpf ogt, %244, %246 : vector<1x8xf32>
    %cst_66 = arith.constant 2.000000e-01 : f32
    %248 = vector.broadcast %cst_66 : f32 to vector<8x8xf32>
    %249 = arith.addf %242, %248 : vector<8x8xf32>
    %cst_67 = arith.constant -1.000000e+30 : f32
    %250 = vector.shape_cast %247 : vector<1x8xi1> to vector<1x8xi1>
    %251 = vector.broadcast %250 : vector<1x8xi1> to vector<8x8xi1>
    %252 = vector.broadcast %cst_67 : f32 to vector<8x8xf32>
    %253 = arith.select %251, %249, %252 : vector<8x8xi1>, vector<8x8xf32>
    %254 = vector.shape_cast %253 : vector<8x8xf32> to vector<8x8x1xf32>
    %255 = vector.broadcast %254 : vector<8x8x1xf32> to vector<8x8x8xf32>
    %256 = vector.broadcast %243 : vector<8x1x8xf32> to vector<8x8x8xf32>
    %257 = arith.subf %255, %256 : vector<8x8x8xf32>
    %cst_68 = arith.constant 0.000000e+00 : f32
    %258 = vector.broadcast %cst_68 : f32 to vector<8x8x8xf32>
    %259 = arith.maximumf %257, %258 : vector<8x8x8xf32>
    %cst_69 = arith.constant dense<0.000000e+00> : vector<8x8xf32>
    %260 = vector.multi_reduction <add>, %259, %cst_69 [1] : vector<8x8x8xf32> to vector<8x8xf32>
    %cst_70 = arith.constant 0.000000e+00 : f32
    %261 = vector.broadcast %cst_70 : f32 to vector<8x8x8xf32>
    %262 = arith.cmpf ogt, %259, %261 : vector<8x8x8xf32>
    %263 = arith.extui %262 : vector<8x8x8xi1> to vector<8x8x8xi32>
    %264 = arith.sitofp %263 : vector<8x8x8xi32> to vector<8x8x8xf32>
    %cst_71 = arith.constant dense<0.000000e+00> : vector<8x8xf32>
    %265 = vector.multi_reduction <add>, %264, %cst_71 [1] : vector<8x8x8xf32> to vector<8x8xf32>
    %cst_72 = arith.constant dense<0xFF800000> : vector<8x8xf32>
    %266 = vector.multi_reduction <maximumf>, %259, %cst_72 [1] : vector<8x8x8xf32> to vector<8x8xf32>
    %267 = vector.broadcast %245 : vector<1x8xf32> to vector<8x8xf32>
    %268 = arith.mulf %260, %267 : vector<8x8xf32>
    %269 = arith.addf %234, %268 : vector<8x8xf32>
    %270 = vector.broadcast %245 : vector<1x8xf32> to vector<8x8xf32>
    %271 = arith.mulf %265, %270 : vector<8x8xf32>
    %272 = arith.addf %237, %271 : vector<8x8xf32>
    %273 = vector.broadcast %245 : vector<1x8xf32> to vector<8x8xf32>
    %274 = arith.mulf %266, %273 : vector<8x8xf32>
    %275 = arith.maximumf %240, %274 : vector<8x8xf32>
    %276 = vector.extract_strided_slice %26 {offsets = [0, 7, 0], sizes = [8, 1, 8], strides = [1, 1, 1]} : vector<8x8x8xf32> to vector<8x1x8xf32>
    %277 = vector.shape_cast %276 : vector<8x1x8xf32> to vector<8x8xf32>
    %278 = vector.extract_strided_slice %26 {offsets = [0, 7, 0], sizes = [8, 1, 8], strides = [1, 1, 1]} : vector<8x8x8xf32> to vector<8x1x8xf32>
    %279 = vector.extract_strided_slice %28 {offsets = [7, 0], sizes = [1, 8], strides = [1, 1]} : vector<8x8xf32> to vector<1x8xf32>
    %280 = vector.extract_strided_slice %30 {offsets = [7, 0], sizes = [1, 8], strides = [1, 1]} : vector<8x8xf32> to vector<1x8xf32>
    %cst_73 = arith.constant 5.000000e-01 : f32
    %281 = vector.broadcast %cst_73 : f32 to vector<1x8xf32>
    %282 = arith.cmpf ogt, %279, %281 : vector<1x8xf32>
    %cst_74 = arith.constant 2.000000e-01 : f32
    %283 = vector.broadcast %cst_74 : f32 to vector<8x8xf32>
    %284 = arith.addf %277, %283 : vector<8x8xf32>
    %cst_75 = arith.constant -1.000000e+30 : f32
    %285 = vector.shape_cast %282 : vector<1x8xi1> to vector<1x8xi1>
    %286 = vector.broadcast %285 : vector<1x8xi1> to vector<8x8xi1>
    %287 = vector.broadcast %cst_75 : f32 to vector<8x8xf32>
    %288 = arith.select %286, %284, %287 : vector<8x8xi1>, vector<8x8xf32>
    %289 = vector.shape_cast %288 : vector<8x8xf32> to vector<8x8x1xf32>
    %290 = vector.broadcast %289 : vector<8x8x1xf32> to vector<8x8x8xf32>
    %291 = vector.broadcast %278 : vector<8x1x8xf32> to vector<8x8x8xf32>
    %292 = arith.subf %290, %291 : vector<8x8x8xf32>
    %cst_76 = arith.constant 0.000000e+00 : f32
    %293 = vector.broadcast %cst_76 : f32 to vector<8x8x8xf32>
    %294 = arith.maximumf %292, %293 : vector<8x8x8xf32>
    %cst_77 = arith.constant dense<0.000000e+00> : vector<8x8xf32>
    %295 = vector.multi_reduction <add>, %294, %cst_77 [1] : vector<8x8x8xf32> to vector<8x8xf32>
    %cst_78 = arith.constant 0.000000e+00 : f32
    %296 = vector.broadcast %cst_78 : f32 to vector<8x8x8xf32>
    %297 = arith.cmpf ogt, %294, %296 : vector<8x8x8xf32>
    %298 = arith.extui %297 : vector<8x8x8xi1> to vector<8x8x8xi32>
    %299 = arith.sitofp %298 : vector<8x8x8xi32> to vector<8x8x8xf32>
    %cst_79 = arith.constant dense<0.000000e+00> : vector<8x8xf32>
    %300 = vector.multi_reduction <add>, %299, %cst_79 [1] : vector<8x8x8xf32> to vector<8x8xf32>
    %cst_80 = arith.constant dense<0xFF800000> : vector<8x8xf32>
    %301 = vector.multi_reduction <maximumf>, %294, %cst_80 [1] : vector<8x8x8xf32> to vector<8x8xf32>
    %302 = vector.broadcast %280 : vector<1x8xf32> to vector<8x8xf32>
    %303 = arith.mulf %295, %302 : vector<8x8xf32>
    %304 = arith.addf %269, %303 : vector<8x8xf32>
    %305 = vector.broadcast %280 : vector<1x8xf32> to vector<8x8xf32>
    %306 = arith.mulf %300, %305 : vector<8x8xf32>
    %307 = arith.addf %272, %306 : vector<8x8xf32>
    %308 = vector.broadcast %280 : vector<1x8xf32> to vector<8x8xf32>
    %309 = arith.mulf %301, %308 : vector<8x8xf32>
    %310 = arith.maximumf %275, %309 : vector<8x8xf32>
    %c1_i32 = arith.constant 1 : i32
    %cst_81 = arith.constant dense<0.000000e+00> : vector<8xf32>
    %311 = vector.multi_reduction <add>, %304, %cst_81 [1] : vector<8x8xf32> to vector<8xf32>
    %312 = vector.shape_cast %311 : vector<8xf32> to vector<8x1xf32>
    %313 = arith.fptosi %307 : vector<8x8xf32> to vector<8x8xi32>
    %cst_82 = arith.constant dense<0> : vector<8xi32>
    %314 = vector.multi_reduction <add>, %313, %cst_82 [1] : vector<8x8xi32> to vector<8xi32>
    %315 = vector.shape_cast %314 : vector<8xi32> to vector<8x1xi32>
    %316 = arith.sitofp %315 : vector<8x1xi32> to vector<8x1xf32>
    %cst_83 = arith.constant dense<0xFF800000> : vector<8xf32>
    %317 = vector.multi_reduction <maximumf>, %310, %cst_83 [1] : vector<8x8xf32> to vector<8xf32>
    %318 = vector.shape_cast %317 : vector<8xf32> to vector<8x1xf32>
    %cst_84 = arith.constant 9.99999971E-10 : f32
    %319 = vector.broadcast %cst_84 : f32 to vector<8x1xf32>
    %320 = arith.addf %316, %319 : vector<8x1xf32>
    %321 = arith.divf %312, %320 : vector<8x1xf32>
    %cst_85 = arith.constant 0.000000e+00 : f32
    %322 = vector.broadcast %cst_85 : f32 to vector<8x1xf32>
    %323 = arith.cmpf oeq, %316, %322 : vector<8x1xf32>
    %cst_86 = arith.constant 0.000000e+00 : f32
    %324 = vector.broadcast %cst_86 : f32 to vector<8x1xf32>
    %325 = arith.select %323, %324, %321 : vector<8x1xi1>, vector<8x1xf32>
    %326 = tpu.concatenate %325, %318, %316, %20 in 1 : vector<8x1xf32>, vector<8x1xf32>, vector<8x1xf32>, vector<8x1xf32> -> vector<8x4xf32>
    %327 = vector.shape_cast %326 : vector<8x4xf32> to vector<1x8x4xf32>
    %c0_87 = arith.constant 0 : index
    %c0_88 = arith.constant 0 : index
    %c0_89 = arith.constant 0 : index
    %328 = vector.load %arg4[%c0_87, %c0_88, %c0_89] : memref<1x8x4xf32, #tpu.memory_space<vmem>>, vector<1x8x4xf32>
    tpu.vector_store %arg4[%c0_87, %c0_88, %c0_89], %327 {strides = array<i32>} : memref<1x8x4xf32, #tpu.memory_space<vmem>>, vector<1x8x4xf32>,
    return
  }
  func.func @transform_0(%arg0: i32) -> (i32, i32, i32) {
    %c0_i32 = arith.constant 0 : i32
    %c0_i32_0 = arith.constant 0 : i32
    %c0_i32_1 = arith.constant 0 : i32
    return %arg0, %c0_i32, %c0_i32_0 : i32, i32, i32
  }
  func.func @transform_1(%arg0: i32) -> (i32, i32) {
    %c0_i32 = arith.constant 0 : i32
    %c0_i32_0 = arith.constant 0 : i32
    %c0_i32_1 = arith.constant 0 : i32
    return %c0_i32, %c0_i32_0 : i32, i32
  }
  func.func @transform_2(%arg0: i32) -> (i32, i32) {
    %c0_i32 = arith.constant 0 : i32
    %c0_i32_0 = arith.constant 0 : i32
    %c0_i32_1 = arith.constant 0 : i32
    return %c0_i32, %c0_i32_0 : i32, i32
  }
  func.func @transform_3(%arg0: i32) -> (i32, i32, i32) {
    %c0_i32 = arith.constant 0 : i32
    %c0_i32_0 = arith.constant 0 : i32
    %c0_i32_1 = arith.constant 0 : i32
    return %arg0, %c0_i32, %c0_i32_0 : i32, i32, i32
  }
}

</mosaic_0001>

<llo_original>
// kernel: tpu_custom_call.1
$region0: #{tpu_custom_call.1}
  #allocation0 [shape = 'u32[]', space=smem, size = 0x4, offset = 0x4, fixed_abs, tag = 'smem constant byte address 0x4 - core index']
  #allocation1 [shape = 'u32[144,128]{1,0:T(1,128)}', space=vmem, size = 0x12000, scoped, tag = 'internal scratch']
  #allocation2 [shape = 'f32[8,8,8]{2,1,0:T(8,128)}', space=vmem, size = 0x8000, scoped, tag = 'scratch operand']
  %s0 = inlined_call_operand.hbm [shape: f32[16,8,128], index: 0, kind: input, shape index: {}]
  %s1 = inlined_call_operand.hbm [shape: f32[8,8], index: 1, kind: input, shape index: {}]
  %s2 = inlined_call_operand.vmem [shape: f32[1,8], index: 2, kind: input, shape index: {}]
  %s3 = inlined_call_operand.vmem [shape: f32[2,8,4], index: 3, kind: output, shape index: {}]
  %s4 = sld [smem:[#allocation0]]
  $region53: #{tpu_custom_call.1} parent=0
    _
  %s6 = ssub.s32 1, %s4
  %s7 = scalar_select 0, %s6, %s4
  $region1: #{tpu_custom_call.1} parent=0
    #allocation3 [shape = 'u8[65536]{0}', space=vmem, size = 0x10000, scoped, tag = 'input window, operand 0']
    #allocation4 [shape = 's32[2]{0}', space=sflag, size = 0x8, scoped, tag = 'scoped memory for tpu_custom_call.1']
    #allocation5 [shape = 'u8[4096]{0}', space=vmem, size = 0x1000, scoped, tag = 'input window, operand 1, single buffered']
    #allocation6 [shape = 's32[1]{0}', space=sflag, size = 0x4, scoped, tag = 'scoped memory for tpu_custom_call.1']
    %8 = vsyncpa [#allocation4], 0
    %s9 = scalar_lea.sflag [#allocation4], 1
    %10 = vsyncpa %s9, 0
    %11 = vsyncpa [#allocation6], 0
    loop: start=0, step=1, limit=4
    $region2: #{tpu_custom_call.1} parent=1 // loop_pre_header
      _
    $region3: #{tpu_custom_call.1} parent=1 // loop_header
      %s13 = sphi 0, %s17
      %p14 = scmp.ge.s32.totalorder %s13, 4
      %s23 = sphi 0, %s25
      %s26 = sphi 0, %s23
      %s27 = sphi 0, %s26
      %s43 = sphi 0, %s27
      %s47 = sphi 0, %s47
      %s49 = sphi 0, %s47
      %s50 = sphi 0, %s49
      %s64 = sphi 0, %s50
      %s68 = sphi 0, %s68
      %s70 = sphi 0, %s68
      %s71 = sphi 0, %s70
      %s85 = sphi 0, %s71
      %s91 = sphi 0, %s93
      %s94 = sphi 0, %s91
      %s95 = sphi 0, %s94
      %s111 = sphi 0, %s95
    $region4: #{tpu_custom_call.1} parent=1 // loop_header_branch
      %16 = sbr.rel (%p14) target = $region8
    $region5: #{tpu_custom_call.1} parent=1 // loop_body
      %s18 = ssub.s32 %s13, 1
      %s19 = ssub.s32 %s13, 2
      %s20 = sadd.s32 %s13, 1
      %s21 = ssub.s32 %s13, %s20
      %p22 = scmp.eq.s32.totalorder %s21, 0
      %s24 = sadd.s32 %s23, 1
      %s25 = scalar_select %p22, %s23, %s24
      %p28 = pneg %p22
      %p29 = scmp.eq.s32.totalorder %s13, 1
      %p30 = por %p28, %p29
      %p31 = scmp.ne.s32.totalorder %s23, %s26
      %p32 = scmp.eq.s32.totalorder %s13, 0
      %p33 = por %p31, %p32
      %p34 = scmp.ne.s32.totalorder %s23, %s26
      %p35 = scmp.eq.s32.totalorder %s18, 1
      %p36 = por %p34, %p35
      %p37 = scmp.ne.s32.totalorder %s26, %s27
      %p38 = scmp.eq.s32.totalorder %s18, 0
      %p39 = por %p37, %p38
      %p40 = scmp.ne.s32.totalorder %s26, %s27
      %p41 = scmp.eq.s32.totalorder %s19, 1
      %p42 = por %p40, %p41
      %p44 = scmp.ne.s32.totalorder %s27, %s43
      %p45 = scmp.eq.s32.totalorder %s19, 0
      %p46 = por %p44, %p45
      %s48 = sadd.s32 %s47, 1
      %p51 = scmp.eq.s32.totalorder %s13, 1
      %p52 = scmp.ne.s32.totalorder %s47, %s49
      %p53 = scmp.eq.s32.totalorder %s13, 0
      %p54 = por %p52, %p53
      %p55 = scmp.ne.s32.totalorder %s47, %s49
      %p56 = scmp.eq.s32.totalorder %s18, 1
      %p57 = por %p55, %p56
      %p58 = scmp.ne.s32.totalorder %s49, %s50
      %p59 = scmp.eq.s32.totalorder %s18, 0
      %p60 = por %p58, %p59
      %p61 = scmp.ne.s32.totalorder %s49, %s50
      %p62 = scmp.eq.s32.totalorder %s19, 1
      %p63 = por %p61, %p62
      %p65 = scmp.ne.s32.totalorder %s50, %s64
      %p66 = scmp.eq.s32.totalorder %s19, 0
      %p67 = por %p65, %p66
      %s69 = sadd.s32 %s68, 1
      %p72 = scmp.eq.s32.totalorder %s13, 1
      %p73 = scmp.ne.s32.totalorder %s68, %s70
      %p74 = scmp.eq.s32.totalorder %s13, 0
      %p75 = por %p73, %p74
      %p76 = scmp.ne.s32.totalorder %s68, %s70
      %p77 = scmp.eq.s32.totalorder %s18, 1
      %p78 = por %p76, %p77
      %p79 = scmp.ne.s32.totalorder %s70, %s71
      %p80 = scmp.eq.s32.totalorder %s18, 0
      %p81 = por %p79, %p80
      %p82 = scmp.ne.s32.totalorder %s70, %s71
      %p83 = scmp.eq.s32.totalorder %s19, 1
      %p84 = por %p82, %p83
      %p86 = scmp.ne.s32.totalorder %s71, %s85
      %p87 = scmp.eq.s32.totalorder %s19, 0
      %p88 = por %p86, %p87
      %s89 = ssub.s32 %s13, %s20
      %p90 = scmp.eq.s32.totalorder %s89, 0
      %s92 = sadd.s32 %s91, 1
      %s93 = scalar_select %p90, %s91, %s92
      %p96 = pneg %p90
      %p97 = scmp.eq.s32.totalorder %s13, 1
      %p98 = por %p96, %p97
      %p99 = scmp.ne.s32.totalorder %s91, %s94
      %p100 = scmp.eq.s32.totalorder %s13, 0
      %p101 = por %p99, %p100
      %p102 = scmp.ne.s32.totalorder %s91, %s94
      %p103 = scmp.eq.s32.totalorder %s18, 1
      %p104 = por %p102, %p103
      %p105 = scmp.ne.s32.totalorder %s94, %s95
      %p106 = scmp.eq.s32.totalorder %s18, 0
      %p107 = por %p105, %p106
      %p108 = scmp.ne.s32.totalorder %s94, %s95
      %p109 = scmp.eq.s32.totalorder %s19, 1
      %p110 = por %p108, %p109
      %p112 = scmp.ne.s32.totalorder %s95, %s111
      %p113 = scmp.eq.s32.totalorder %s19, 0
      %p114 = por %p112, %p113
      %p115 = scmp.le.s32.totalorder 1, %s13
      %p116 = scmp.lt.s32.totalorder %s13, 3
      %p117 = pnand %p115, %p116
      %p118 = pneg %p117
      // Predicated region
      $region9: #{tpu_custom_call.1} parent=5 // pred_check
        _
      $region10: #{tpu_custom_call.1} parent=5 // pred_check_branch
        %120 = sbr.rel (%p117) target = $region12
      $region11: #{tpu_custom_call.1} parent=5 // pred_region
        %s121 = ssub.s32 %s13, 1
        // Predicated region
        $region13: #{tpu_custom_call.1} parent=11 // pred_check
          %p122 = pneg %p60
        $region14: #{tpu_custom_call.1} parent=11 // pred_check_branch
          %124 = sbr.rel (%p122) target = $region16
        $region15: #{tpu_custom_call.1} parent=11 // pred_region
          %s126 = ssub.s32 128, 128
          %127 = vsyncadd [#allocation6], %s126
          %s129 = sshll.u32 [#allocation5], 4
          %s130 = int_to_ptr.vmem [resolvable:$true] %s129
          %132 = dma.hbm_to_vmem [thread:$0]  %s1, 128, %s130, [#allocation6]
        $region16: #{tpu_custom_call.1} parent=11 // pred_fallthru
          _
        // Predicated region
        $region17: #{tpu_custom_call.1} parent=11 // pred_check
          %p133 = pneg %p81
        $region18: #{tpu_custom_call.1} parent=11 // pred_check_branch
          %135 = sbr.rel (%p133) target = $region20
        $region19: #{tpu_custom_call.1} parent=11 // pred_region
          _
        $region20: #{tpu_custom_call.1} parent=11 // pred_fallthru
          _
      $region12: #{tpu_custom_call.1} parent=5 // pred_fallthru
        _
      %p136 = scmp.lt.s32.totalorder %s13, 2
      // Predicated region
      $region21: #{tpu_custom_call.1} parent=5 // pred_check
        %p137 = pneg %p136
      $region22: #{tpu_custom_call.1} parent=5 // pred_check_branch
        %139 = sbr.rel (%p137) target = $region24
      $region23: #{tpu_custom_call.1} parent=5 // pred_region
        // Predicated region
        $region25: #{tpu_custom_call.1} parent=23 // pred_check
          %p140 = pneg %p33
        $region26: #{tpu_custom_call.1} parent=23 // pred_check_branch
          %142 = sbr.rel (%p140) target = $region28
        $region27: #{tpu_custom_call.1} parent=23 // pred_region
          %s143 = sand.u32 %s23, 1
          %s144 = scalar_lea.sflag [#allocation4], %s143
          %s145 = sand.u32 %s23, 1
          %s146 = smul.addr %s145, 64
          %s147 = scalar_lea.vmem [#allocation3], %s146
          %s148 = smul.u32 8, %s13
          %s150 = ssub.s32 1024, 1024
          %151 = vsyncadd %s144, %s150
          %s152 = smul.addr %s148, 128
          %s153 = scalar_lea.hbm %s0, %s152
          %s154 = sshll.u32 %s147, 4
          %s155 = int_to_ptr.vmem [resolvable:$true] %s154
          %160 = dma.hbm_to_vmem [thread:$0]  %s153, 1024, %s155, %s144, 128, 128, 8
        $region28: #{tpu_custom_call.1} parent=23 // pred_fallthru
          _
      $region24: #{tpu_custom_call.1} parent=5 // pred_fallthru
        _
      %p161 = scmp.le.s32.totalorder 1, %s13
      %p162 = scmp.lt.s32.totalorder %s13, 3
      %p163 = pnand %p161, %p162
      %p164 = pneg %p163
      // Predicated region
      $region29: #{tpu_custom_call.1} parent=5 // pred_check
        _
      $region30: #{tpu_custom_call.1} parent=5 // pred_check_branch
        %166 = sbr.rel (%p163) target = $region32
      $region31: #{tpu_custom_call.1} parent=5 // pred_region
        %s167 = ssub.s32 %s13, 1
        %s168 = sand.u32 %s26, 1
        %s169 = scalar_lea.sflag [#allocation4], %s168
        %s170 = sand.u32 %s26, 1
        %s171 = smul.addr %s170, 64
        %s172 = scalar_lea.vmem [#allocation3], %s171
        // Predicated region
        $region33: #{tpu_custom_call.1} parent=31 // pred_check
          %p173 = pneg %p39
        $region34: #{tpu_custom_call.1} parent=31 // pred_check_branch
          %175 = sbr.rel (%p173) target = $region36
        $region35: #{tpu_custom_call.1} parent=31 // pred_region
          %176 = dma.done %s169, 1024
        $region36: #{tpu_custom_call.1} parent=31 // pred_fallthru
          _
        // Predicated region
        $region37: #{tpu_custom_call.1} parent=31 // pred_check
          %p177 = pneg %p60
        $region38: #{tpu_custom_call.1} parent=31 // pred_check_branch
          %179 = sbr.rel (%p177) target = $region40
        $region39: #{tpu_custom_call.1} parent=31 // pred_region
          %180 = dma.done [#allocation6], 128
        $region40: #{tpu_custom_call.1} parent=31 // pred_fallthru
          _
        %s181 = sand.u32 %s26, 1
        %s182 = scalar_lea.sflag [#allocation4], %s181
        %s183 = sand.u32 %s26, 1
        %s184 = smul.addr %s183, 64
        %s185 = scalar_lea.vmem [#allocation3], %s184
        %p186 = pneg %p39
        %p187 = pneg %p36
        %p188 = pneg %p60
        %p189 = pneg %p57
        %p190 = pneg %p81
        %p191 = pneg %p78
        %p192 = pneg %p107
        %p193 = pneg %p104
        %p194 = scmp.lt.s32.totalorder %s18, 1
        %s195 = scalar_select %p194, %s18, 1
        %s196 = smul.addr %s195, 8
        %s197 = scalar_lea.vmem %s3, %s196
        %s198 = smul.u32 8, %s18
        %p199 = scmp.lt.s32.totalorder %s18, 1
        %s200 = scalar_select %p199, %s18, 1
        %s201 = smul.addr %s200, 8
        %s202 = scalar_lea.vmem %s3, %s201
        %v203 = vld [vmem:[%s172] sm:$0xff]
        %v204 = vld [vmem:[%s172 + $0x8] sm:$0xff]
        %v205 = vld [vmem:[%s172 + $0x10] sm:$0xff]
        %v206 = vld [vmem:[%s172 + $0x18] sm:$0xff]
        %v207 = vld [vmem:[%s172 + $0x20] sm:$0xff]
        %v208 = vld [vmem:[%s172 + $0x28] sm:$0xff]
        %v209 = vld [vmem:[%s172 + $0x30] sm:$0xff]
        %v210 = vld [vmem:[%s172 + $0x38] sm:$0xff]
        %v211 = vld [vmem:[%s2] sm:$0x1]
        %v212 = vmul.f32 %v203, %v203
        %v213 = vmul.f32 %v204, %v204
        %v214 = vmul.f32 %v205, %v205
        %v215 = vmul.f32 %v206, %v206
        %v216 = vmul.f32 %v207, %v207
        %v217 = vmul.f32 %v208, %v208
        %v218 = vmul.f32 %v209, %v209
        %v219 = vmul.f32 %v210, %v210
        %220 = vadd.xlane.f32.xlu0 %v212
        %v221 = vpop.xlane.xlu0 %220
        %222 = vadd.xlane.f32.xlu0 %v213
        %v223 = vpop.xlane.xlu0 %222
        %224 = vadd.xlane.f32.xlu0 %v214
        %v225 = vpop.xlane.xlu0 %224
        %226 = vadd.xlane.f32.xlu0 %v215
        %v227 = vpop.xlane.xlu0 %226
        %228 = vadd.xlane.f32.xlu0 %v216
        %v229 = vpop.xlane.xlu0 %228
        %230 = vadd.xlane.f32.xlu0 %v217
        %v231 = vpop.xlane.xlu0 %230
        %232 = vadd.xlane.f32.xlu0 %v218
        %v233 = vpop.xlane.xlu0 %232
        %234 = vadd.xlane.f32.xlu0 %v219
        %v235 = vpop.xlane.xlu0 %234
        %236 = vmatprep.subr.mxu0 0.0
        %v237 = vand.u32 %v203, 4294901760
        %238 = vmatpush1.xpose.msra.mxu0 %v237
        %239 = vmatprep.subr.mxu0 0.0
        %240 = vmatpush1.xpose.msra.mxu0 0.0
        %241 = vmatprep.subr.mxu0 0.0
        %242 = vmatpush1.xpose.msra.mxu0 0.0
        %243 = vmatprep.subr.mxu0 0.0
        %244 = vmatpush1.xpose.msra.mxu0 0.0
        %245 = vmatprep.subr.mxu0 0.0
        %246 = vmatpush1.xpose.msra.mxu0 0.0
        %247 = vmatprep.subr.mxu0 0.0
        %248 = vmatpush1.xpose.msra.mxu0 0.0
        %249 = vmatprep.subr.mxu0 0.0
        %250 = vmatpush1.xpose.msra.mxu0 0.0
        %251 = vmatprep.subr.mxu0 0.0
        %252 = vmatpush1.xpose.msra.mxu0 0.0
        %253 = vmatprep.subr.mxu0 0.0
        %254 = vmatpush1.xpose.msra.mxu0 0.0
        %255 = vmatprep.subr.mxu0 0.0
        %256 = vmatpush1.xpose.msra.mxu0 0.0
        %257 = vmatprep.subr.mxu0 0.0
        %258 = vmatpush1.xpose.msra.mxu0 0.0
        %259 = vmatprep.subr.mxu0 0.0
        %260 = vmatpush1.xpose.msra.mxu0 0.0
        %261 = vmatprep.subr.mxu0 0.0
        %262 = vmatpush1.xpose.msra.mxu0 0.0
        %263 = vmatprep.subr.mxu0 0.0
        %264 = vmatpush1.xpose.msra.mxu0 0.0
        %265 = vmatprep.subr.mxu0 0.0
        %266 = vmatpush1.xpose.msra.mxu0 0.0
        %267 = vmatprep.subr.mxu0 0.0
        %268 = vmatpush1.xpose.msra.mxu0 0.0
        %269 = vmatprep.subr.mxu0 0.0
        %270 = vmatpush1.xpose.msra.mxu0 0.0
        %271 = vmatprep.subr.mxu0 0.0
        %272 = vmatpush1.xpose.msra.mxu0 0.0
        %273 = vmatprep.subr.mxu0 0.0
        %274 = vmatpush1.xpose.msra.mxu0 0.0
        %275 = vmatprep.subr.mxu0 0.0
        %276 = vmatpush1.xpose.msra.mxu0 0.0
        %277 = vmatprep.subr.mxu0 0.0
        %278 = vmatpush1.xpose.msra.mxu0 0.0
        %279 = vmatprep.subr.mxu0 0.0
        %280 = vmatpush1.xpose.msra.mxu0 0.0
        %281 = vmatprep.subr.mxu0 0.0
        %282 = vmatpush1.xpose.msra.mxu0 0.0
        %283 = vmatprep.subr.mxu0 0.0
        %284 = vmatpush1.xpose.msra.mxu0 0.0
        %285 = vmatprep.subr.mxu0 0.0
        %286 = vmatpush1.xpose.msra.mxu0 0.0
        %287 = vmatprep.subr.mxu0 0.0
        %288 = vmatpush1.xpose.msra.mxu0 0.0
        %289 = vmatprep.subr.mxu0 0.0
        %290 = vmatpush1.xpose.msra.mxu0 0.0
        %291 = vmatprep.subr.mxu0 0.0
        %292 = vmatpush1.xpose.msra.mxu0 0.0
        %293 = vmatprep.subr.mxu0 0.0
        %294 = vmatpush1.xpose.msra.mxu0 0.0
        %295 = vmatprep.subr.mxu0 0.0
        %296 = vmatpush1.xpose.msra.mxu0 0.0
        %297 = vmatprep.subr.mxu0 0.0
        %298 = vmatpush1.xpose.msra.mxu0 0.0
        %299 = vmatprep.subr.mxu0 0.0
        %300 = vmatpush1.xpose.msra.mxu0 0.0
        %301 = vmatprep.mubr.f32.mxu0 0.0
        %v302 = vand.u32 %v203, 4294901760
        %v303 = vsub.f32 %v203, %v302
        %v304 = vand.u32 %v303, 4294901760
        %v305 = vsub.f32 %v303, %v304
        %v306 = vand.u32 %v305, 4294901760
        %307 = vmatmul.mubr.f32.gmra.mrb[0].mxu0 %v306
        %v308 = vpop.f32.mrb[0].mxu0
        %v309 = vadd.f32 0.0, %v308
        %v310 = vpop.f32.mrb[0].mxu0
        %311 = vdwg.mxu0
        %312 = vmatprep.subr.mxu0 0.0
        %v313 = vand.u32 %v203, 4294901760
        %v314 = vsub.f32 %v203, %v313
        %v315 = vand.u32 %v314, 4294901760
        %v316 = vsub.f32 %v314, %v315
        %v317 = vand.u32 %v316, 4294901760
        %318 = vmatpush1.xpose.msra.mxu0 %v317
        %319 = vmatprep.subr.mxu0 0.0
        %320 = vmatpush1.xpose.msra.mxu0 0.0
        %321 = vmatprep.subr.mxu0 0.0
        %322 = vmatpush1.xpose.msra.mxu0 0.0
        %323 = vmatprep.subr.mxu0 0.0
        %324 = vmatpush1.xpose.msra.mxu0 0.0
        %325 = vmatprep.subr.mxu0 0.0
        %326 = vmatpush1.xpose.msra.mxu0 0.0
        %327 = vmatprep.subr.mxu0 0.0
        %328 = vmatpush1.xpose.msra.mxu0 0.0
        %329 = vmatprep.subr.mxu0 0.0
        %330 = vmatpush1.xpose.msra.mxu0 0.0
        %331 = vmatprep.subr.mxu0 0.0
        %332 = vmatpush1.xpose.msra.mxu0 0.0
        %333 = vmatprep.subr.mxu0 0.0
        %334 = vmatpush1.xpose.msra.mxu0 0.0
        %335 = vmatprep.subr.mxu0 0.0
        %336 = vmatpush1.xpose.msra.mxu0 0.0
        %337 = vmatprep.subr.mxu0 0.0
        %338 = vmatpush1.xpose.msra.mxu0 0.0
        %339 = vmatprep.subr.mxu0 0.0
        %340 = vmatpush1.xpose.msra.mxu0 0.0
        %341 = vmatprep.subr.mxu0 0.0
        %342 = vmatpush1.xpose.msra.mxu0 0.0
        %343 = vmatprep.subr.mxu0 0.0
        %344 = vmatpush1.xpose.msra.mxu0 0.0
        %345 = vmatprep.subr.mxu0 0.0
        %346 = vmatpush1.xpose.msra.mxu0 0.0
        %347 = vmatprep.subr.mxu0 0.0
        %348 = vmatpush1.xpose.msra.mxu0 0.0
        %349 = vmatprep.subr.mxu0 0.0
        %350 = vmatpush1.xpose.msra.mxu0 0.0
        %351 = vmatprep.subr.mxu0 0.0
        %352 = vmatpush1.xpose.msra.mxu0 0.0
        %353 = vmatprep.subr.mxu0 0.0
        %354 = vmatpush1.xpose.msra.mxu0 0.0
        %355 = vmatprep.subr.mxu0 0.0
        %356 = vmatpush1.xpose.msra.mxu0 0.0
        %357 = vmatprep.subr.mxu0 0.0
        %358 = vmatpush1.xpose.msra.mxu0 0.0
        %359 = vmatprep.subr.mxu0 0.0
        %360 = vmatpush1.xpose.msra.mxu0 0.0
        %361 = vmatprep.subr.mxu0 0.0
        %362 = vmatpush1.xpose.msra.mxu0 0.0
        %363 = vmatprep.subr.mxu0 0.0
        %364 = vmatpush1.xpose.msra.mxu0 0.0
        %365 = vmatprep.subr.mxu0 0.0
        %366 = vmatpush1.xpose.msra.mxu0 0.0
        %367 = vmatprep.subr.mxu0 0.0
        %368 = vmatpush1.xpose.msra.mxu0 0.0
        %369 = vmatprep.subr.mxu0 0.0
        %370 = vmatpush1.xpose.msra.mxu0 0.0
        %371 = vmatprep.subr.mxu0 0.0
        %372 = vmatpush1.xpose.msra.mxu0 0.0
        %373 = vmatprep.subr.mxu0 0.0
        %374 = vmatpush1.xpose.msra.mxu0 0.0
        %375 = vmatprep.subr.mxu0 0.0
        %376 = vmatpush1.xpose.msra.mxu0 0.0
        %377 = vmatprep.subr.mxu0 0.0
        %378 = vmatpush1.xpose.msra.mxu0 0.0
        %379 = vmatprep.subr.mxu0 0.0
        %380 = vmatpush1.xpose.msra.mxu0 0.0
        %381 = vmatprep.mubr.f32.mxu0 0.0
        %v382 = vand.u32 %v203, 4294901760
        %383 = vmatmul.mubr.f32.gmra.mrb[0].mxu0 %v382
        %v384 = vpop.f32.mrb[0].mxu0
        %v385 = vadd.f32 %v309, %v384
        %v386 = vpop.f32.mrb[0].mxu0
        %387 = vdwg.mxu0
        %388 = vmatprep.subr.mxu0 0.0
        %v389 = vand.u32 %v203, 4294901760
        %v390 = vsub.f32 %v203, %v389
        %391 = vmatpush1.xpose.msra.mxu0 %v390
        %392 = vmatprep.subr.mxu0 0.0
        %393 = vmatpush1.xpose.msra.mxu0 0.0
        %394 = vmatprep.subr.mxu0 0.0
        %395 = vmatpush1.xpose.msra.mxu0 0.0
        %396 = vmatprep.subr.mxu0 0.0
        %397 = vmatpush1.xpose.msra.mxu0 0.0
        %398 = vmatprep.subr.mxu0 0.0
        %399 = vmatpush1.xpose.msra.mxu0 0.0
        %400 = vmatprep.subr.mxu0 0.0
        %401 = vmatpush1.xpose.msra.mxu0 0.0
        %402 = vmatprep.subr.mxu0 0.0
        %403 = vmatpush1.xpose.msra.mxu0 0.0
        %404 = vmatprep.subr.mxu0 0.0
        %405 = vmatpush1.xpose.msra.mxu0 0.0
        %406 = vmatprep.subr.mxu0 0.0
        %407 = vmatpush1.xpose.msra.mxu0 0.0
        %408 = vmatprep.subr.mxu0 0.0
        %409 = vmatpush1.xpose.msra.mxu0 0.0
        %410 = vmatprep.subr.mxu0 0.0
        %411 = vmatpush1.xpose.msra.mxu0 0.0
        %412 = vmatprep.subr.mxu0 0.0
        %413 = vmatpush1.xpose.msra.mxu0 0.0
        %414 = vmatprep.subr.mxu0 0.0
        %415 = vmatpush1.xpose.msra.mxu0 0.0
        %416 = vmatprep.subr.mxu0 0.0
        %417 = vmatpush1.xpose.msra.mxu0 0.0
        %418 = vmatprep.subr.mxu0 0.0
        %419 = vmatpush1.xpose.msra.mxu0 0.0
        %420 = vmatprep.subr.mxu0 0.0
        %421 = vmatpush1.xpose.msra.mxu0 0.0
        %422 = vmatprep.subr.mxu0 0.0
        %423 = vmatpush1.xpose.msra.mxu0 0.0
        %424 = vmatprep.subr.mxu0 0.0
        %425 = vmatpush1.xpose.msra.mxu0 0.0
        %426 = vmatprep.subr.mxu0 0.0
        %427 = vmatpush1.xpose.msra.mxu0 0.0
        %428 = vmatprep.subr.mxu0 0.0
        %429 = vmatpush1.xpose.msra.mxu0 0.0
        %430 = vmatprep.subr.mxu0 0.0
        %431 = vmatpush1.xpose.msra.mxu0 0.0
        %432 = vmatprep.subr.mxu0 0.0
        %433 = vmatpush1.xpose.msra.mxu0 0.0
        %434 = vmatprep.subr.mxu0 0.0
        %435 = vmatpush1.xpose.msra.mxu0 0.0
        %436 = vmatprep.subr.mxu0 0.0
        %437 = vmatpush1.xpose.msra.mxu0 0.0
        %438 = vmatprep.subr.mxu0 0.0
        %439 = vmatpush1.xpose.msra.mxu0 0.0
        %440 = vmatprep.subr.mxu0 0.0
        %441 = vmatpush1.xpose.msra.mxu0 0.0
        %442 = vmatprep.subr.mxu0 0.0
        %443 = vmatpush1.xpose.msra.mxu0 0.0
        %444 = vmatprep.subr.mxu0 0.0
        %445 = vmatpush1.xpose.msra.mxu0 0.0
        %446 = vmatprep.subr.mxu0 0.0
        %447 = vmatpush1.xpose.msra.mxu0 0.0
        %448 = vmatprep.subr.mxu0 0.0
        %449 = vmatpush1.xpose.msra.mxu0 0.0
        %450 = vmatprep.subr.mxu0 0.0
        %451 = vmatpush1.xpose.msra.mxu0 0.0
        %452 = vmatprep.subr.mxu0 0.0
        %453 = vmatpush1.xpose.msra.mxu0 0.0
        %454 = vmatprep.mubr.f32.mxu0 0.0
        %v455 = vand.u32 %v203, 4294901760
        %v456 = vsub.f32 %v203, %v455
        %457 = vmatmul.mubr.f32.gmra.mrb[0].mxu0 %v456
        %v458 = vpop.f32.mrb[0].mxu0
        %v459 = vadd.f32 %v385, %v458
        %v460 = vpop.f32.mrb[0].mxu0
        %461 = vdwg.mxu0
        %462 = vmatprep.subr.mxu0 0.0
        %v463 = vand.u32 %v203, 4294901760
        %464 = vmatpush1.xpose.msra.mxu0 %v463
        %465 = vmatprep.subr.mxu0 0.0
        %466 = vmatpush1.xpose.msra.mxu0 0.0
        %467 = vmatprep.subr.mxu0 0.0
        %468 = vmatpush1.xpose.msra.mxu0 0.0
        %469 = vmatprep.subr.mxu0 0.0
        %470 = vmatpush1.xpose.msra.mxu0 0.0
        %471 = vmatprep.subr.mxu0 0.0
        %472 = vmatpush1.xpose.msra.mxu0 0.0
        %473 = vmatprep.subr.mxu0 0.0
        %474 = vmatpush1.xpose.msra.mxu0 0.0
        %475 = vmatprep.subr.mxu0 0.0
        %476 = vmatpush1.xpose.msra.mxu0 0.0
        %477 = vmatprep.subr.mxu0 0.0
        %478 = vmatpush1.xpose.msra.mxu0 0.0
        %479 = vmatprep.subr.mxu0 0.0
        %480 = vmatpush1.xpose.msra.mxu0 0.0
        %481 = vmatprep.subr.mxu0 0.0
        %482 = vmatpush1.xpose.msra.mxu0 0.0
        %483 = vmatprep.subr.mxu0 0.0
        %484 = vmatpush1.xpose.msra.mxu0 0.0
        %485 = vmatprep.subr.mxu0 0.0
        %486 = vmatpush1.xpose.msra.mxu0 0.0
        %487 = vmatprep.subr.mxu0 0.0
        %488 = vmatpush1.xpose.msra.mxu0 0.0
        %489 = vmatprep.subr.mxu0 0.0
        %490 = vmatpush1.xpose.msra.mxu0 0.0
        %491 = vmatprep.subr.mxu0 0.0
        %492 = vmatpush1.xpose.msra.mxu0 0.0
        %493 = vmatprep.subr.mxu0 0.0
        %494 = vmatpush1.xpose.msra.mxu0 0.0
        %495 = vmatprep.subr.mxu0 0.0
        %496 = vmatpush1.xpose.msra.mxu0 0.0
        %497 = vmatprep.subr.mxu0 0.0
        %498 = vmatpush1.xpose.msra.mxu0 0.0
        %499 = vmatprep.subr.mxu0 0.0
        %500 = vmatpush1.xpose.msra.mxu0 0.0
        %501 = vmatprep.subr.mxu0 0.0
        %502 = vmatpush1.xpose.msra.mxu0 0.0
        %503 = vmatprep.subr.mxu0 0.0
        %504 = vmatpush1.xpose.msra.mxu0 0.0
        %505 = vmatprep.subr.mxu0 0.0
        %506 = vmatpush1.xpose.msra.mxu0 0.0
        %507 = vmatprep.subr.mxu0 0.0
        %508 = vmatpush1.xpose.msra.mxu0 0.0
        %509 = vmatprep.subr.mxu0 0.0
        %510 = vmatpush1.xpose.msra.mxu0 0.0
        %511 = vmatprep.subr.mxu0 0.0
        %512 = vmatpush1.xpose.msra.mxu0 0.0
        %513 = vmatprep.subr.mxu0 0.0
        %514 = vmatpush1.xpose.msra.mxu0 0.0
        %515 = vmatprep.subr.mxu0 0.0
        %516 = vmatpush1.xpose.msra.mxu0 0.0
        %517 = vmatprep.subr.mxu0 0.0
        %518 = vmatpush1.xpose.msra.mxu0 0.0
        %519 = vmatprep.subr.mxu0 0.0
        %520 = vmatpush1.xpose.msra.mxu0 0.0
        %521 = vmatprep.subr.mxu0 0.0
        %522 = vmatpush1.xpose.msra.mxu0 0.0
        %523 = vmatprep.subr.mxu0 0.0
        %524 = vmatpush1.xpose.msra.mxu0 0.0
        %525 = vmatprep.subr.mxu0 0.0
        %526 = vmatpush1.xpose.msra.mxu0 0.0
        %527 = vmatprep.mubr.f32.mxu0 0.0
        %v528 = vand.u32 %v203, 4294901760
        %v529 = vsub.f32 %v203, %v528
        %v530 = vand.u32 %v529, 4294901760
        %531 = vmatmul.mubr.f32.gmra.mrb[0].mxu0 %v530
        %v532 = vpop.f32.mrb[0].mxu0
        %v533 = vadd.f32 %v459, %v532
        %v534 = vpop.f32.mrb[0].mxu0
        %535 = vdwg.mxu0
        %536 = vmatprep.subr.mxu0 0.0
        %v537 = vand.u32 %v203, 4294901760
        %v538 = vsub.f32 %v203, %v537
        %v539 = vand.u32 %v538, 4294901760
        %540 = vmatpush1.xpose.msra.mxu0 %v539
        %541 = vmatprep.subr.mxu0 0.0
        %542 = vmatpush1.xpose.msra.mxu0 0.0
        %543 = vmatprep.subr.mxu0 0.0
        %544 = vmatpush1.xpose.msra.mxu0 0.0
        %545 = vmatprep.subr.mxu0 0.0
        %546 = vmatpush1.xpose.msra.mxu0 0.0
        %547 = vmatprep.subr.mxu0 0.0
        %548 = vmatpush1.xpose.msra.mxu0 0.0
        %549 = vmatprep.subr.mxu0 0.0
        %550 = vmatpush1.xpose.msra.mxu0 0.0
        %551 = vmatprep.subr.mxu0 0.0
        %552 = vmatpush1.xpose.msra.mxu0 0.0
        %553 = vmatprep.subr.mxu0 0.0
        %554 = vmatpush1.xpose.msra.mxu0 0.0
        %555 = vmatprep.subr.mxu0 0.0
        %556 = vmatpush1.xpose.msra.mxu0 0.0
        %557 = vmatprep.subr.mxu0 0.0
        %558 = vmatpush1.xpose.msra.mxu0 0.0
        %559 = vmatprep.subr.mxu0 0.0
        %560 = vmatpush1.xpose.msra.mxu0 0.0
        %561 = vmatprep.subr.mxu0 0.0
        %562 = vmatpush1.xpose.msra.mxu0 0.0
        %563 = vmatprep.subr.mxu0 0.0
        %564 = vmatpush1.xpose.msra.mxu0 0.0
        %565 = vmatprep.subr.mxu0 0.0
        %566 = vmatpush1.xpose.msra.mxu0 0.0
        %567 = vmatprep.subr.mxu0 0.0
        %568 = vmatpush1.xpose.msra.mxu0 0.0
        %569 = vmatprep.subr.mxu0 0.0
        %570 = vmatpush1.xpose.msra.mxu0 0.0
        %571 = vmatprep.subr.mxu0 0.0
        %572 = vmatpush1.xpose.msra.mxu0 0.0
        %573 = vmatprep.subr.mxu0 0.0
        %574 = vmatpush1.xpose.msra.mxu0 0.0
        %575 = vmatprep.subr.mxu0 0.0
        %576 = vmatpush1.xpose.msra.mxu0 0.0
        %577 = vmatprep.subr.mxu0 0.0
        %578 = vmatpush1.xpose.msra.mxu0 0.0
        %579 = vmatprep.subr.mxu0 0.0
        %580 = vmatpush1.xpose.msra.mxu0 0.0
        %581 = vmatprep.subr.mxu0 0.0
        %582 = vmatpush1.xpose.msra.mxu0 0.0
        %583 = vmatprep.subr.mxu0 0.0
        %584 = vmatpush1.xpose.msra.mxu0 0.0
        %585 = vmatprep.subr.mxu0 0.0
        %586 = vmatpush1.xpose.msra.mxu0 0.0
        %587 = vmatprep.subr.mxu0 0.0
        %588 = vmatpush1.xpose.msra.mxu0 0.0
        %589 = vmatprep.subr.mxu0 0.0
        %590 = vmatpush1.xpose.msra.mxu0 0.0
        %591 = vmatprep.subr.mxu0 0.0
        %592 = vmatpush1.xpose.msra.mxu0 0.0
        %593 = vmatprep.subr.mxu0 0.0
        %594 = vmatpush1.xpose.msra.mxu0 0.0
        %595 = vmatprep.subr.mxu0 0.0
        %596 = vmatpush1.xpose.msra.mxu0 0.0
        %597 = vmatprep.subr.mxu0 0.0
        %598 = vmatpush1.xpose.msra.mxu0 0.0
        %599 = vmatprep.subr.mxu0 0.0
        %600 = vmatpush1.xpose.msra.mxu0 0.0
        %601 = vmatprep.subr.mxu0 0.0
        %602 = vmatpush1.xpose.msra.mxu0 0.0
        %603 = vmatprep.mubr.f32.mxu0 0.0
        %v604 = vand.u32 %v203, 4294901760
        %605 = vmatmul.mubr.f32.gmra.mrb[0].mxu0 %v604
        %v606 = vpop.f32.mrb[0].mxu0
        %v607 = vadd.f32 %v533, %v606
        %v608 = vpop.f32.mrb[0].mxu0
        %609 = vdwg.mxu0
        %610 = vmatprep.subr.mxu0 0.0
        %v611 = vand.u32 %v203, 4294901760
        %612 = vmatpush1.xpose.msra.mxu0 %v611
        %613 = vmatprep.subr.mxu0 0.0
        %614 = vmatpush1.xpose.msra.mxu0 0.0
        %615 = vmatprep.subr.mxu0 0.0
        %616 = vmatpush1.xpose.msra.mxu0 0.0
        %617 = vmatprep.subr.mxu0 0.0
        %618 = vmatpush1.xpose.msra.mxu0 0.0
        %619 = vmatprep.subr.mxu0 0.0
        %620 = vmatpush1.xpose.msra.mxu0 0.0
        %621 = vmatprep.subr.mxu0 0.0
        %622 = vmatpush1.xpose.msra.mxu0 0.0
        %623 = vmatprep.subr.mxu0 0.0
        %624 = vmatpush1.xpose.msra.mxu0 0.0
        %625 = vmatprep.subr.mxu0 0.0
        %626 = vmatpush1.xpose.msra.mxu0 0.0
        %627 = vmatprep.subr.mxu0 0.0
        %628 = vmatpush1.xpose.msra.mxu0 0.0
        %629 = vmatprep.subr.mxu0 0.0
        %630 = vmatpush1.xpose.msra.mxu0 0.0
        %631 = vmatprep.subr.mxu0 0.0
        %632 = vmatpush1.xpose.msra.mxu0 0.0
        %633 = vmatprep.subr.mxu0 0.0
        %634 = vmatpush1.xpose.msra.mxu0 0.0
        %635 = vmatprep.subr.mxu0 0.0
        %636 = vmatpush1.xpose.msra.mxu0 0.0
        %637 = vmatprep.subr.mxu0 0.0
        %638 = vmatpush1.xpose.msra.mxu0 0.0
        %639 = vmatprep.subr.mxu0 0.0
        %640 = vmatpush1.xpose.msra.mxu0 0.0
        %641 = vmatprep.subr.mxu0 0.0
        %642 = vmatpush1.xpose.msra.mxu0 0.0
        %643 = vmatprep.subr.mxu0 0.0
        %644 = vmatpush1.xpose.msra.mxu0 0.0
        %645 = vmatprep.subr.mxu0 0.0
        %646 = vmatpush1.xpose.msra.mxu0 0.0
        %647 = vmatprep.subr.mxu0 0.0
        %648 = vmatpush1.xpose.msra.mxu0 0.0
        %649 = vmatprep.subr.mxu0 0.0
        %650 = vmatpush1.xpose.msra.mxu0 0.0
        %651 = vmatprep.subr.mxu0 0.0
        %652 = vmatpush1.xpose.msra.mxu0 0.0
        %653 = vmatprep.subr.mxu0 0.0
        %654 = vmatpush1.xpose.msra.mxu0 0.0
        %655 = vmatprep.subr.mxu0 0.0
        %656 = vmatpush1.xpose.msra.mxu0 0.0
        %657 = vmatprep.subr.mxu0 0.0
        %658 = vmatpush1.xpose.msra.mxu0 0.0
        %659 = vmatprep.subr.mxu0 0.0
        %660 = vmatpush1.xpose.msra.mxu0 0.0
        %661 = vmatprep.subr.mxu0 0.0
        %662 = vmatpush1.xpose.msra.mxu0 0.0
        %663 = vmatprep.subr.mxu0 0.0
        %664 = vmatpush1.xpose.msra.mxu0 0.0
        %665 = vmatprep.subr.mxu0 0.0
        %666 = vmatpush1.xpose.msra.mxu0 0.0
        %667 = vmatprep.subr.mxu0 0.0
        %668 = vmatpush1.xpose.msra.mxu0 0.0
        %669 = vmatprep.subr.mxu0 0.0
        %670 = vmatpush1.xpose.msra.mxu0 0.0
        %671 = vmatprep.subr.mxu0 0.0
        %672 = vmatpush1.xpose.msra.mxu0 0.0
        %673 = vmatprep.subr.mxu0 0.0
        %674 = vmatpush1.xpose.msra.mxu0 0.0
        %675 = vmatprep.mubr.f32.mxu0 0.0
        %v676 = vand.u32 %v203, 4294901760
        %677 = vmatmul.mubr.f32.gmra.mrb[0].mxu0 %v676
        %v678 = vpop.f32.mrb[0].mxu0
        %v679 = vadd.f32 %v607, %v678
        %v680 = vpop.f32.mrb[0].mxu0
        %681 = vdwg.mxu0
        %682 = vmatprep.subr.mxu0 0.0
        %v683 = vand.u32 %v204, 4294901760
        %684 = vmatpush1.xpose.msra.mxu0 %v683
        %685 = vmatprep.subr.mxu0 0.0
        %686 = vmatpush1.xpose.msra.mxu0 0.0
        %687 = vmatprep.subr.mxu0 0.0
        %688 = vmatpush1.xpose.msra.mxu0 0.0
        %689 = vmatprep.subr.mxu0 0.0
        %690 = vmatpush1.xpose.msra.mxu0 0.0
        %691 = vmatprep.subr.mxu0 0.0
        %692 = vmatpush1.xpose.msra.mxu0 0.0
        %693 = vmatprep.subr.mxu0 0.0
        %694 = vmatpush1.xpose.msra.mxu0 0.0
        %695 = vmatprep.subr.mxu0 0.0
        %696 = vmatpush1.xpose.msra.mxu0 0.0
        %697 = vmatprep.subr.mxu0 0.0
        %698 = vmatpush1.xpose.msra.mxu0 0.0
        %699 = vmatprep.subr.mxu0 0.0
        %700 = vmatpush1.xpose.msra.mxu0 0.0
        %701 = vmatprep.subr.mxu0 0.0
        %702 = vmatpush1.xpose.msra.mxu0 0.0
        %703 = vmatprep.subr.mxu0 0.0
        %704 = vmatpush1.xpose.msra.mxu0 0.0
        %705 = vmatprep.subr.mxu0 0.0
        %706 = vmatpush1.xpose.msra.mxu0 0.0
        %707 = vmatprep.subr.mxu0 0.0
        %708 = vmatpush1.xpose.msra.mxu0 0.0
        %709 = vmatprep.subr.mxu0 0.0
        %710 = vmatpush1.xpose.msra.mxu0 0.0
        %711 = vmatprep.subr.mxu0 0.0
        %712 = vmatpush1.xpose.msra.mxu0 0.0
        %713 = vmatprep.subr.mxu0 0.0
        %714 = vmatpush1.xpose.msra.mxu0 0.0
        %715 = vmatprep.subr.mxu0 0.0
        %716 = vmatpush1.xpose.msra.mxu0 0.0
        %717 = vmatprep.subr.mxu0 0.0
        %718 = vmatpush1.xpose.msra.mxu0 0.0
        %719 = vmatprep.subr.mxu0 0.0
        %720 = vmatpush1.xpose.msra.mxu0 0.0
        %721 = vmatprep.subr.mxu0 0.0
        %722 = vmatpush1.xpose.msra.mxu0 0.0
        %723 = vmatprep.subr.mxu0 0.0
        %724 = vmatpush1.xpose.msra.mxu0 0.0
        %725 = vmatprep.subr.mxu0 0.0
        %726 = vmatpush1.xpose.msra.mxu0 0.0
        %727 = vmatprep.subr.mxu0 0.0
        %728 = vmatpush1.xpose.msra.mxu0 0.0
        %729 = vmatprep.subr.mxu0 0.0
        %730 = vmatpush1.xpose.msra.mxu0 0.0
        %731 = vmatprep.subr.mxu0 0.0
        %732 = vmatpush1.xpose.msra.mxu0 0.0
        %733 = vmatprep.subr.mxu0 0.0
        %734 = vmatpush1.xpose.msra.mxu0 0.0
        %735 = vmatprep.subr.mxu0 0.0
        %736 = vmatpush1.xpose.msra.mxu0 0.0
        %737 = vmatprep.subr.mxu0 0.0
        %738 = vmatpush1.xpose.msra.mxu0 0.0
        %739 = vmatprep.subr.mxu0 0.0
        %740 = vmatpush1.xpose.msra.mxu0 0.0
        %741 = vmatprep.subr.mxu0 0.0
        %742 = vmatpush1.xpose.msra.mxu0 0.0
        %743 = vmatprep.subr.mxu0 0.0
        %744 = vmatpush1.xpose.msra.mxu0 0.0
        %745 = vmatprep.subr.mxu0 0.0
        %746 = vmatpush1.xpose.msra.mxu0 0.0
        %747 = vmatprep.mubr.f32.mxu0 0.0
        %v748 = vand.u32 %v204, 4294901760
        %v749 = vsub.f32 %v204, %v748
        %v750 = vand.u32 %v749, 4294901760
        %v751 = vsub.f32 %v749, %v750
        %v752 = vand.u32 %v751, 4294901760
        %753 = vmatmul.mubr.f32.gmra.mrb[0].mxu0 %v752
        %v754 = vpop.f32.mrb[0].mxu0
        %v755 = vadd.f32 0.0, %v754
        %v756 = vpop.f32.mrb[0].mxu0
        %757 = vdwg.mxu0
        %758 = vmatprep.subr.mxu0 0.0
        %v759 = vand.u32 %v204, 4294901760
        %v760 = vsub.f32 %v204, %v759
        %v761 = vand.u32 %v760, 4294901760
        %v762 = vsub.f32 %v760, %v761
        %v763 = vand.u32 %v762, 4294901760
        %764 = vmatpush1.xpose.msra.mxu0 %v763
        %765 = vmatprep.subr.mxu0 0.0
        %766 = vmatpush1.xpose.msra.mxu0 0.0
        %767 = vmatprep.subr.mxu0 0.0
        %768 = vmatpush1.xpose.msra.mxu0 0.0
        %769 = vmatprep.subr.mxu0 0.0
        %770 = vmatpush1.xpose.msra.mxu0 0.0
        %771 = vmatprep.subr.mxu0 0.0
        %772 = vmatpush1.xpose.msra.mxu0 0.0
        %773 = vmatprep.subr.mxu0 0.0
        %774 = vmatpush1.xpose.msra.mxu0 0.0
        %775 = vmatprep.subr.mxu0 0.0
        %776 = vmatpush1.xpose.msra.mxu0 0.0
        %777 = vmatprep.subr.mxu0 0.0
        %778 = vmatpush1.xpose.msra.mxu0 0.0
        %779 = vmatprep.subr.mxu0 0.0
        %780 = vmatpush1.xpose.msra.mxu0 0.0
        %781 = vmatprep.subr.mxu0 0.0
        %782 = vmatpush1.xpose.msra.mxu0 0.0
        %783 = vmatprep.subr.mxu0 0.0
        %784 = vmatpush1.xpose.msra.mxu0 0.0
        %785 = vmatprep.subr.mxu0 0.0
        %786 = vmatpush1.xpose.msra.mxu0 0.0
        %787 = vmatprep.subr.mxu0 0.0
        %788 = vmatpush1.xpose.msra.mxu0 0.0
        %789 = vmatprep.subr.mxu0 0.0
        %790 = vmatpush1.xpose.msra.mxu0 0.0
        %791 = vmatprep.subr.mxu0 0.0
        %792 = vmatpush1.xpose.msra.mxu0 0.0
        %793 = vmatprep.subr.mxu0 0.0
        %794 = vmatpush1.xpose.msra.mxu0 0.0
        %795 = vmatprep.subr.mxu0 0.0
        %796 = vmatpush1.xpose.msra.mxu0 0.0
        %797 = vmatprep.subr.mxu0 0.0
        %798 = vmatpush1.xpose.msra.mxu0 0.0
        %799 = vmatprep.subr.mxu0 0.0
        %800 = vmatpush1.xpose.msra.mxu0 0.0
        %801 = vmatprep.subr.mxu0 0.0
        %802 = vmatpush1.xpose.msra.mxu0 0.0
        %803 = vmatprep.subr.mxu0 0.0
        %804 = vmatpush1.xpose.msra.mxu0 0.0
        %805 = vmatprep.subr.mxu0 0.0
        %806 = vmatpush1.xpose.msra.mxu0 0.0
        %807 = vmatprep.subr.mxu0 0.0
        %808 = vmatpush1.xpose.msra.mxu0 0.0
        %809 = vmatprep.subr.mxu0 0.0
        %810 = vmatpush1.xpose.msra.mxu0 0.0
        %811 = vmatprep.subr.mxu0 0.0
        %812 = vmatpush1.xpose.msra.mxu0 0.0
        %813 = vmatprep.subr.mxu0 0.0
        %814 = vmatpush1.xpose.msra.mxu0 0.0
        %815 = vmatprep.subr.mxu0 0.0
        %816 = vmatpush1.xpose.msra.mxu0 0.0
        %817 = vmatprep.subr.mxu0 0.0
        %818 = vmatpush1.xpose.msra.mxu0 0.0
        %819 = vmatprep.subr.mxu0 0.0
        %820 = vmatpush1.xpose.msra.mxu0 0.0
        %821 = vmatprep.subr.mxu0 0.0
        %822 = vmatpush1.xpose.msra.mxu0 0.0
        %823 = vmatprep.subr.mxu0 0.0
        %824 = vmatpush1.xpose.msra.mxu0 0.0
        %825 = vmatprep.subr.mxu0 0.0
        %826 = vmatpush1.xpose.msra.mxu0 0.0
        %827 = vmatprep.mubr.f32.mxu0 0.0
        %v828 = vand.u32 %v204, 4294901760
        %829 = vmatmul.mubr.f32.gmra.mrb[0].mxu0 %v828
        %v830 = vpop.f32.mrb[0].mxu0
        %v831 = vadd.f32 %v755, %v830
        %v832 = vpop.f32.mrb[0].mxu0
        %833 = vdwg.mxu0
        %834 = vmatprep.subr.mxu0 0.0
        %v835 = vand.u32 %v204, 4294901760
        %v836 = vsub.f32 %v204, %v835
        %837 = vmatpush1.xpose.msra.mxu0 %v836
        %838 = vmatprep.subr.mxu0 0.0
        %839 = vmatpush1.xpose.msra.mxu0 0.0
        %840 = vmatprep.subr.mxu0 0.0
        %841 = vmatpush1.xpose.msra.mxu0 0.0
        %842 = vmatprep.subr.mxu0 0.0
        %843 = vmatpush1.xpose.msra.mxu0 0.0
        %844 = vmatprep.subr.mxu0 0.0
        %845 = vmatpush1.xpose.msra.mxu0 0.0
        %846 = vmatprep.subr.mxu0 0.0
        %847 = vmatpush1.xpose.msra.mxu0 0.0
        %848 = vmatprep.subr.mxu0 0.0
        %849 = vmatpush1.xpose.msra.mxu0 0.0
        %850 = vmatprep.subr.mxu0 0.0
        %851 = vmatpush1.xpose.msra.mxu0 0.0
        %852 = vmatprep.subr.mxu0 0.0
        %853 = vmatpush1.xpose.msra.mxu0 0.0
        %854 = vmatprep.subr.mxu0 0.0
        %855 = vmatpush1.xpose.msra.mxu0 0.0
        %856 = vmatprep.subr.mxu0 0.0
        %857 = vmatpush1.xpose.msra.mxu0 0.0
        %858 = vmatprep.subr.mxu0 0.0
        %859 = vmatpush1.xpose.msra.mxu0 0.0
        %860 = vmatprep.subr.mxu0 0.0
        %861 = vmatpush1.xpose.msra.mxu0 0.0
        %862 = vmatprep.subr.mxu0 0.0
        %863 = vmatpush1.xpose.msra.mxu0 0.0
        %864 = vmatprep.subr.mxu0 0.0
        %865 = vmatpush1.xpose.msra.mxu0 0.0
        %866 = vmatprep.subr.mxu0 0.0
        %867 = vmatpush1.xpose.msra.mxu0 0.0
        %868 = vmatprep.subr.mxu0 0.0
        %869 = vmatpush1.xpose.msra.mxu0 0.0
        %870 = vmatprep.subr.mxu0 0.0
        %871 = vmatpush1.xpose.msra.mxu0 0.0
        %872 = vmatprep.subr.mxu0 0.0
        %873 = vmatpush1.xpose.msra.mxu0 0.0
        %874 = vmatprep.subr.mxu0 0.0
        %875 = vmatpush1.xpose.msra.mxu0 0.0
        %876 = vmatprep.subr.mxu0 0.0
        %877 = vmatpush1.xpose.msra.mxu0 0.0
        %878 = vmatprep.subr.mxu0 0.0
        %879 = vmatpush1.xpose.msra.mxu0 0.0
        %880 = vmatprep.subr.mxu0 0.0
        %881 = vmatpush1.xpose.msra.mxu0 0.0
        %882 = vmatprep.subr.mxu0 0.0
        %883 = vmatpush1.xpose.msra.mxu0 0.0
        %884 = vmatprep.subr.mxu0 0.0
        %885 = vmatpush1.xpose.msra.mxu0 0.0
        %886 = vmatprep.subr.mxu0 0.0
        %887 = vmatpush1.xpose.msra.mxu0 0.0
        %888 = vmatprep.subr.mxu0 0.0
        %889 = vmatpush1.xpose.msra.mxu0 0.0
        %890 = vmatprep.subr.mxu0 0.0
        %891 = vmatpush1.xpose.msra.mxu0 0.0
        %892 = vmatprep.subr.mxu0 0.0
        %893 = vmatpush1.xpose.msra.mxu0 0.0
        %894 = vmatprep.subr.mxu0 0.0
        %895 = vmatpush1.xpose.msra.mxu0 0.0
        %896 = vmatprep.subr.mxu0 0.0
        %897 = vmatpush1.xpose.msra.mxu0 0.0
        %898 = vmatprep.subr.mxu0 0.0
        %899 = vmatpush1.xpose.msra.mxu0 0.0
        %900 = vmatprep.mubr.f32.mxu0 0.0
        %v901 = vand.u32 %v204, 4294901760
        %v902 = vsub.f32 %v204, %v901
        %903 = vmatmul.mubr.f32.gmra.mrb[0].mxu0 %v902
        %v904 = vpop.f32.mrb[0].mxu0
        %v905 = vadd.f32 %v831, %v904
        %v906 = vpop.f32.mrb[0].mxu0
        %907 = vdwg.mxu0
        %908 = vmatprep.subr.mxu0 0.0
        %v909 = vand.u32 %v204, 4294901760
        %910 = vmatpush1.xpose.msra.mxu0 %v909
        %911 = vmatprep.subr.mxu0 0.0
        %912 = vmatpush1.xpose.msra.mxu0 0.0
        %913 = vmatprep.subr.mxu0 0.0
        %914 = vmatpush1.xpose.msra.mxu0 0.0
        %915 = vmatprep.subr.mxu0 0.0
        %916 = vmatpush1.xpose.msra.mxu0 0.0
        %917 = vmatprep.subr.mxu0 0.0
        %918 = vmatpush1.xpose.msra.mxu0 0.0
        %919 = vmatprep.subr.mxu0 0.0
        %920 = vmatpush1.xpose.msra.mxu0 0.0
        %921 = vmatprep.subr.mxu0 0.0
        %922 = vmatpush1.xpose.msra.mxu0 0.0
        %923 = vmatprep.subr.mxu0 0.0
        %924 = vmatpush1.xpose.msra.mxu0 0.0
        %925 = vmatprep.subr.mxu0 0.0
        %926 = vmatpush1.xpose.msra.mxu0 0.0
        %927 = vmatprep.subr.mxu0 0.0
        %928 = vmatpush1.xpose.msra.mxu0 0.0
        %929 = vmatprep.subr.mxu0 0.0
        %930 = vmatpush1.xpose.msra.mxu0 0.0
        %931 = vmatprep.subr.mxu0 0.0
        %932 = vmatpush1.xpose.msra.mxu0 0.0
        %933 = vmatprep.subr.mxu0 0.0
        %934 = vmatpush1.xpose.msra.mxu0 0.0
        %935 = vmatprep.subr.mxu0 0.0
        %936 = vmatpush1.xpose.msra.mxu0 0.0
        %937 = vmatprep.subr.mxu0 0.0
        %938 = vmatpush1.xpose.msra.mxu0 0.0
        %939 = vmatprep.subr.mxu0 0.0
        %940 = vmatpush1.xpose.msra.mxu0 0.0
        %941 = vmatprep.subr.mxu0 0.0
        %942 = vmatpush1.xpose.msra.mxu0 0.0
        %943 = vmatprep.subr.mxu0 0.0
        %944 = vmatpush1.xpose.msra.mxu0 0.0
        %945 = vmatprep.subr.mxu0 0.0
        %946 = vmatpush1.xpose.msra.mxu0 0.0
        %947 = vmatprep.subr.mxu0 0.0
        %948 = vmatpush1.xpose.msra.mxu0 0.0
        %949 = vmatprep.subr.mxu0 0.0
        %950 = vmatpush1.xpose.msra.mxu0 0.0
        %951 = vmatprep.subr.mxu0 0.0
        %952 = vmatpush1.xpose.msra.mxu0 0.0
        %953 = vmatprep.subr.mxu0 0.0
        %954 = vmatpush1.xpose.msra.mxu0 0.0
        %955 = vmatprep.subr.mxu0 0.0
        %956 = vmatpush1.xpose.msra.mxu0 0.0
        %957 = vmatprep.subr.mxu0 0.0
        %958 = vmatpush1.xpose.msra.mxu0 0.0
        %959 = vmatprep.subr.mxu0 0.0
        %960 = vmatpush1.xpose.msra.mxu0 0.0
        %961 = vmatprep.subr.mxu0 0.0
        %962 = vmatpush1.xpose.msra.mxu0 0.0
        %963 = vmatprep.subr.mxu0 0.0
        %964 = vmatpush1.xpose.msra.mxu0 0.0
        %965 = vmatprep.subr.mxu0 0.0
        %966 = vmatpush1.xpose.msra.mxu0 0.0
        %967 = vmatprep.subr.mxu0 0.0
        %968 = vmatpush1.xpose.msra.mxu0 0.0
        %969 = vmatprep.subr.mxu0 0.0
        %970 = vmatpush1.xpose.msra.mxu0 0.0
        %971 = vmatprep.subr.mxu0 0.0
        %972 = vmatpush1.xpose.msra.mxu0 0.0
        %973 = vmatprep.mubr.f32.mxu0 0.0
        %v974 = vand.u32 %v204, 4294901760
        %v975 = vsub.f32 %v204, %v974
        %v976 = vand.u32 %v975, 4294901760
        %977 = vmatmul.mubr.f32.gmra.mrb[0].mxu0 %v976
        %v978 = vpop.f32.mrb[0].mxu0
        %v979 = vadd.f32 %v905, %v978
        %v980 = vpop.f32.mrb[0].mxu0
        %981 = vdwg.mxu0
        %982 = vmatprep.subr.mxu0 0.0
        %v983 = vand.u32 %v204, 4294901760
        %v984 = vsub.f32 %v204, %v983
        %v985 = vand.u32 %v984, 4294901760
        %986 = vmatpush1.xpose.msra.mxu0 %v985
        %987 = vmatprep.subr.mxu0 0.0
        %988 = vmatpush1.xpose.msra.mxu0 0.0
        %989 = vmatprep.subr.mxu0 0.0
        %990 = vmatpush1.xpose.msra.mxu0 0.0
        %991 = vmatprep.subr.mxu0 0.0
        %992 = vmatpush1.xpose.msra.mxu0 0.0
        %993 = vmatprep.subr.mxu0 0.0
        %994 = vmatpush1.xpose.msra.mxu0 0.0
        %995 = vmatprep.subr.mxu0 0.0
        %996 = vmatpush1.xpose.msra.mxu0 0.0
        %997 = vmatprep.subr.mxu0 0.0
        %998 = vmatpush1.xpose.msra.mxu0 0.0
        %999 = vmatprep.subr.mxu0 0.0
        %1000 = vmatpush1.xpose.msra.mxu0 0.0
        %1001 = vmatprep.subr.mxu0 0.0
        %1002 = vmatpush1.xpose.msra.mxu0 0.0
        %1003 = vmatprep.subr.mxu0 0.0
        %1004 = vmatpush1.xpose.msra.mxu0 0.0
        %1005 = vmatprep.subr.mxu0 0.0
        %1006 = vmatpush1.xpose.msra.mxu0 0.0
        %1007 = vmatprep.subr.mxu0 0.0
        %1008 = vmatpush1.xpose.msra.mxu0 0.0
        %1009 = vmatprep.subr.mxu0 0.0
        %1010 = vmatpush1.xpose.msra.mxu0 0.0
        %1011 = vmatprep.subr.mxu0 0.0
        %1012 = vmatpush1.xpose.msra.mxu0 0.0
        %1013 = vmatprep.subr.mxu0 0.0
        %1014 = vmatpush1.xpose.msra.mxu0 0.0
        %1015 = vmatprep.subr.mxu0 0.0
        %1016 = vmatpush1.xpose.msra.mxu0 0.0
        %1017 = vmatprep.subr.mxu0 0.0
        %1018 = vmatpush1.xpose.msra.mxu0 0.0
        %1019 = vmatprep.subr.mxu0 0.0
        %1020 = vmatpush1.xpose.msra.mxu0 0.0
        %1021 = vmatprep.subr.mxu0 0.0
        %1022 = vmatpush1.xpose.msra.mxu0 0.0
        %1023 = vmatprep.subr.mxu0 0.0
        %1024 = vmatpush1.xpose.msra.mxu0 0.0
        %1025 = vmatprep.subr.mxu0 0.0
        %1026 = vmatpush1.xpose.msra.mxu0 0.0
        %1027 = vmatprep.subr.mxu0 0.0
        %1028 = vmatpush1.xpose.msra.mxu0 0.0
        %1029 = vmatprep.subr.mxu0 0.0
        %1030 = vmatpush1.xpose.msra.mxu0 0.0
        %1031 = vmatprep.subr.mxu0 0.0
        %1032 = vmatpush1.xpose.msra.mxu0 0.0
        %1033 = vmatprep.subr.mxu0 0.0
        %1034 = vmatpush1.xpose.msra.mxu0 0.0
        %1035 = vmatprep.subr.mxu0 0.0
        %1036 = vmatpush1.xpose.msra.mxu0 0.0
        %1037 = vmatprep.subr.mxu0 0.0
        %1038 = vmatpush1.xpose.msra.mxu0 0.0
        %1039 = vmatprep.subr.mxu0 0.0
        %1040 = vmatpush1.xpose.msra.mxu0 0.0
        %1041 = vmatprep.subr.mxu0 0.0
        %1042 = vmatpush1.xpose.msra.mxu0 0.0
        %1043 = vmatprep.subr.mxu0 0.0
        %1044 = vmatpush1.xpose.msra.mxu0 0.0
        %1045 = vmatprep.subr.mxu0 0.0
        %1046 = vmatpush1.xpose.msra.mxu0 0.0
        %1047 = vmatprep.subr.mxu0 0.0
        %1048 = vmatpush1.xpose.msra.mxu0 0.0
        %1049 = vmatprep.mubr.f32.mxu0 0.0
        %v1050 = vand.u32 %v204, 4294901760
        %1051 = vmatmul.mubr.f32.gmra.mrb[0].mxu0 %v1050
        %v1052 = vpop.f32.mrb[0].mxu0
        %v1053 = vadd.f32 %v979, %v1052
        %v1054 = vpop.f32.mrb[0].mxu0
        %1055 = vdwg.mxu0
        %1056 = vmatprep.subr.mxu0 0.0
        %v1057 = vand.u32 %v204, 4294901760
        %1058 = vmatpush1.xpose.msra.mxu0 %v1057
        %1059 = vmatprep.subr.mxu0 0.0
        %1060 = vmatpush1.xpose.msra.mxu0 0.0
        %1061 = vmatprep.subr.mxu0 0.0
        %1062 = vmatpush1.xpose.msra.mxu0 0.0
        %1063 = vmatprep.subr.mxu0 0.0
        %1064 = vmatpush1.xpose.msra.mxu0 0.0
        %1065 = vmatprep.subr.mxu0 0.0
        %1066 = vmatpush1.xpose.msra.mxu0 0.0
        %1067 = vmatprep.subr.mxu0 0.0
        %1068 = vmatpush1.xpose.msra.mxu0 0.0
        %1069 = vmatprep.subr.mxu0 0.0
        %1070 = vmatpush1.xpose.msra.mxu0 0.0
        %1071 = vmatprep.subr.mxu0 0.0
        %1072 = vmatpush1.xpose.msra.mxu0 0.0
        %1073 = vmatprep.subr.mxu0 0.0
        %1074 = vmatpush1.xpose.msra.mxu0 0.0
        %1075 = vmatprep.subr.mxu0 0.0
        %1076 = vmatpush1.xpose.msra.mxu0 0.0
        %1077 = vmatprep.subr.mxu0 0.0
        %1078 = vmatpush1.xpose.msra.mxu0 0.0
        %1079 = vmatprep.subr.mxu0 0.0
        %1080 = vmatpush1.xpose.msra.mxu0 0.0
        %1081 = vmatprep.subr.mxu0 0.0
        %1082 = vmatpush1.xpose.msra.mxu0 0.0
        %1083 = vmatprep.subr.mxu0 0.0
        %1084 = vmatpush1.xpose.msra.mxu0 0.0
        %1085 = vmatprep.subr.mxu0 0.0
        %1086 = vmatpush1.xpose.msra.mxu0 0.0
        %1087 = vmatprep.subr.mxu0 0.0
        %1088 = vmatpush1.xpose.msra.mxu0 0.0
        %1089 = vmatprep.subr.mxu0 0.0
        %1090 = vmatpush1.xpose.msra.mxu0 0.0
        %1091 = vmatprep.subr.mxu0 0.0
        %1092 = vmatpush1.xpose.msra.mxu0 0.0
        %1093 = vmatprep.subr.mxu0 0.0
        %1094 = vmatpush1.xpose.msra.mxu0 0.0
        %1095 = vmatprep.subr.mxu0 0.0
        %1096 = vmatpush1.xpose.msra.mxu0 0.0
        %1097 = vmatprep.subr.mxu0 0.0
        %1098 = vmatpush1.xpose.msra.mxu0 0.0
        %1099 = vmatprep.subr.mxu0 0.0
        %1100 = vmatpush1.xpose.msra.mxu0 0.0
        %1101 = vmatprep.subr.mxu0 0.0
        %1102 = vmatpush1.xpose.msra.mxu0 0.0
        %1103 = vmatprep.subr.mxu0 0.0
        %1104 = vmatpush1.xpose.msra.mxu0 0.0
        %1105 = vmatprep.subr.mxu0 0.0
        %1106 = vmatpush1.xpose.msra.mxu0 0.0
        %1107 = vmatprep.subr.mxu0 0.0
        %1108 = vmatpush1.xpose.msra.mxu0 0.0
        %1109 = vmatprep.subr.mxu0 0.0
        %1110 = vmatpush1.xpose.msra.mxu0 0.0
        %1111 = vmatprep.subr.mxu0 0.0
        %1112 = vmatpush1.xpose.msra.mxu0 0.0
        %1113 = vmatprep.subr.mxu0 0.0
        %1114 = vmatpush1.xpose.msra.mxu0 0.0
        %1115 = vmatprep.subr.mxu0 0.0
        %1116 = vmatpush1.xpose.msra.mxu0 0.0
        %1117 = vmatprep.subr.mxu0 0.0
        %1118 = vmatpush1.xpose.msra.mxu0 0.0
        %1119 = vmatprep.subr.mxu0 0.0
        %1120 = vmatpush1.xpose.msra.mxu0 0.0
        %1121 = vmatprep.mubr.f32.mxu0 0.0
        %v1122 = vand.u32 %v204, 4294901760
        %1123 = vmatmul.mubr.f32.gmra.mrb[0].mxu0 %v1122
        %v1124 = vpop.f32.mrb[0].mxu0
        %v1125 = vadd.f32 %v1053, %v1124
        %v1126 = vpop.f32.mrb[0].mxu0
        %1127 = vdwg.mxu0
        %1128 = vmatprep.subr.mxu0 0.0
        %v1129 = vand.u32 %v205, 4294901760
        %1130 = vmatpush1.xpose.msra.mxu0 %v1129
        %1131 = vmatprep.subr.mxu0 0.0
        %1132 = vmatpush1.xpose.msra.mxu0 0.0
        %1133 = vmatprep.subr.mxu0 0.0
        %1134 = vmatpush1.xpose.msra.mxu0 0.0
        %1135 = vmatprep.subr.mxu0 0.0
        %1136 = vmatpush1.xpose.msra.mxu0 0.0
        %1137 = vmatprep.subr.mxu0 0.0
        %1138 = vmatpush1.xpose.msra.mxu0 0.0
        %1139 = vmatprep.subr.mxu0 0.0
        %1140 = vmatpush1.xpose.msra.mxu0 0.0
        %1141 = vmatprep.subr.mxu0 0.0
        %1142 = vmatpush1.xpose.msra.mxu0 0.0
        %1143 = vmatprep.subr.mxu0 0.0
        %1144 = vmatpush1.xpose.msra.mxu0 0.0
        %1145 = vmatprep.subr.mxu0 0.0
        %1146 = vmatpush1.xpose.msra.mxu0 0.0
        %1147 = vmatprep.subr.mxu0 0.0
        %1148 = vmatpush1.xpose.msra.mxu0 0.0
        %1149 = vmatprep.subr.mxu0 0.0
        %1150 = vmatpush1.xpose.msra.mxu0 0.0
        %1151 = vmatprep.subr.mxu0 0.0
        %1152 = vmatpush1.xpose.msra.mxu0 0.0
        %1153 = vmatprep.subr.mxu0 0.0
        %1154 = vmatpush1.xpose.msra.mxu0 0.0
        %1155 = vmatprep.subr.mxu0 0.0
        %1156 = vmatpush1.xpose.msra.mxu0 0.0
        %1157 = vmatprep.subr.mxu0 0.0
        %1158 = vmatpush1.xpose.msra.mxu0 0.0
        %1159 = vmatprep.subr.mxu0 0.0
        %1160 = vmatpush1.xpose.msra.mxu0 0.0
        %1161 = vmatprep.subr.mxu0 0.0
        %1162 = vmatpush1.xpose.msra.mxu0 0.0
        %1163 = vmatprep.subr.mxu0 0.0
        %1164 = vmatpush1.xpose.msra.mxu0 0.0
        %1165 = vmatprep.subr.mxu0 0.0
        %1166 = vmatpush1.xpose.msra.mxu0 0.0
        %1167 = vmatprep.subr.mxu0 0.0
        %1168 = vmatpush1.xpose.msra.mxu0 0.0
        %1169 = vmatprep.subr.mxu0 0.0
        %1170 = vmatpush1.xpose.msra.mxu0 0.0
        %1171 = vmatprep.subr.mxu0 0.0
        %1172 = vmatpush1.xpose.msra.mxu0 0.0
        %1173 = vmatprep.subr.mxu0 0.0
        %1174 = vmatpush1.xpose.msra.mxu0 0.0
        %1175 = vmatprep.subr.mxu0 0.0
        %1176 = vmatpush1.xpose.msra.mxu0 0.0
        %1177 = vmatprep.subr.mxu0 0.0
        %1178 = vmatpush1.xpose.msra.mxu0 0.0
        %1179 = vmatprep.subr.mxu0 0.0
        %1180 = vmatpush1.xpose.msra.mxu0 0.0
        %1181 = vmatprep.subr.mxu0 0.0
        %1182 = vmatpush1.xpose.msra.mxu0 0.0
        %1183 = vmatprep.subr.mxu0 0.0
        %1184 = vmatpush1.xpose.msra.mxu0 0.0
        %1185 = vmatprep.subr.mxu0 0.0
        %1186 = vmatpush1.xpose.msra.mxu0 0.0
        %1187 = vmatprep.subr.mxu0 0.0
        %1188 = vmatpush1.xpose.msra.mxu0 0.0
        %1189 = vmatprep.subr.mxu0 0.0
        %1190 = vmatpush1.xpose.msra.mxu0 0.0
        %1191 = vmatprep.subr.mxu0 0.0
        %1192 = vmatpush1.xpose.msra.mxu0 0.0
        %1193 = vmatprep.mubr.f32.mxu0 0.0
        %v1194 = vand.u32 %v205, 4294901760
        %v1195 = vsub.f32 %v205, %v1194
        %v1196 = vand.u32 %v1195, 4294901760
        %v1197 = vsub.f32 %v1195, %v1196
        %v1198 = vand.u32 %v1197, 4294901760
        %1199 = vmatmul.mubr.f32.gmra.mrb[0].mxu0 %v1198
        %v1200 = vpop.f32.mrb[0].mxu0
        %v1201 = vadd.f32 0.0, %v1200
        %v1202 = vpop.f32.mrb[0].mxu0
        %1203 = vdwg.mxu0
        %1204 = vmatprep.subr.mxu0 0.0
        %v1205 = vand.u32 %v205, 4294901760
        %v1206 = vsub.f32 %v205, %v1205
        %v1207 = vand.u32 %v1206, 4294901760
        %v1208 = vsub.f32 %v1206, %v1207
        %v1209 = vand.u32 %v1208, 4294901760
        %1210 = vmatpush1.xpose.msra.mxu0 %v1209
        %1211 = vmatprep.subr.mxu0 0.0
        %1212 = vmatpush1.xpose.msra.mxu0 0.0
        %1213 = vmatprep.subr.mxu0 0.0
        %1214 = vmatpush1.xpose.msra.mxu0 0.0
        %1215 = vmatprep.subr.mxu0 0.0
        %1216 = vmatpush1.xpose.msra.mxu0 0.0
        %1217 = vmatprep.subr.mxu0 0.0
        %1218 = vmatpush1.xpose.msra.mxu0 0.0
        %1219 = vmatprep.subr.mxu0 0.0
        %1220 = vmatpush1.xpose.msra.mxu0 0.0
        %1221 = vmatprep.subr.mxu0 0.0
        %1222 = vmatpush1.xpose.msra.mxu0 0.0
        %1223 = vmatprep.subr.mxu0 0.0
        %1224 = vmatpush1.xpose.msra.mxu0 0.0
        %1225 = vmatprep.subr.mxu0 0.0
        %1226 = vmatpush1.xpose.msra.mxu0 0.0
        %1227 = vmatprep.subr.mxu0 0.0
        %1228 = vmatpush1.xpose.msra.mxu0 0.0
        %1229 = vmatprep.subr.mxu0 0.0
        %1230 = vmatpush1.xpose.msra.mxu0 0.0
        %1231 = vmatprep.subr.mxu0 0.0
        %1232 = vmatpush1.xpose.msra.mxu0 0.0
        %1233 = vmatprep.subr.mxu0 0.0
        %1234 = vmatpush1.xpose.msra.mxu0 0.0
        %1235 = vmatprep.subr.mxu0 0.0
        %1236 = vmatpush1.xpose.msra.mxu0 0.0
        %1237 = vmatprep.subr.mxu0 0.0
        %1238 = vmatpush1.xpose.msra.mxu0 0.0
        %1239 = vmatprep.subr.mxu0 0.0
        %1240 = vmatpush1.xpose.msra.mxu0 0.0
        %1241 = vmatprep.subr.mxu0 0.0
        %1242 = vmatpush1.xpose.msra.mxu0 0.0
        %1243 = vmatprep.subr.mxu0 0.0
        %1244 = vmatpush1.xpose.msra.mxu0 0.0
        %1245 = vmatprep.subr.mxu0 0.0
        %1246 = vmatpush1.xpose.msra.mxu0 0.0
        %1247 = vmatprep.subr.mxu0 0.0
        %1248 = vmatpush1.xpose.msra.mxu0 0.0
        %1249 = vmatprep.subr.mxu0 0.0
        %1250 = vmatpush1.xpose.msra.mxu0 0.0
        %1251 = vmatprep.subr.mxu0 0.0
        %1252 = vmatpush1.xpose.msra.mxu0 0.0
        %1253 = vmatprep.subr.mxu0 0.0
        %1254 = vmatpush1.xpose.msra.mxu0 0.0
        %1255 = vmatprep.subr.mxu0 0.0
        %1256 = vmatpush1.xpose.msra.mxu0 0.0
        %1257 = vmatprep.subr.mxu0 0.0
        %1258 = vmatpush1.xpose.msra.mxu0 0.0
        %1259 = vmatprep.subr.mxu0 0.0
        %1260 = vmatpush1.xpose.msra.mxu0 0.0
        %1261 = vmatprep.subr.mxu0 0.0
        %1262 = vmatpush1.xpose.msra.mxu0 0.0
        %1263 = vmatprep.subr.mxu0 0.0
        %1264 = vmatpush1.xpose.msra.mxu0 0.0
        %1265 = vmatprep.subr.mxu0 0.0
        %1266 = vmatpush1.xpose.msra.mxu0 0.0
        %1267 = vmatprep.subr.mxu0 0.0
        %1268 = vmatpush1.xpose.msra.mxu0 0.0
        %1269 = vmatprep.subr.mxu0 0.0
        %1270 = vmatpush1.xpose.msra.mxu0 0.0
        %1271 = vmatprep.subr.mxu0 0.0
        %1272 = vmatpush1.xpose.msra.mxu0 0.0
        %1273 = vmatprep.mubr.f32.mxu0 0.0
        %v1274 = vand.u32 %v205, 4294901760
        %1275 = vmatmul.mubr.f32.gmra.mrb[0].mxu0 %v1274
        %v1276 = vpop.f32.mrb[0].mxu0
        %v1277 = vadd.f32 %v1201, %v1276
        %v1278 = vpop.f32.mrb[0].mxu0
        %1279 = vdwg.mxu0
        %1280 = vmatprep.subr.mxu0 0.0
        %v1281 = vand.u32 %v205, 4294901760
        %v1282 = vsub.f32 %v205, %v1281
        %1283 = vmatpush1.xpose.msra.mxu0 %v1282
        %1284 = vmatprep.subr.mxu0 0.0
        %1285 = vmatpush1.xpose.msra.mxu0 0.0
        %1286 = vmatprep.subr.mxu0 0.0
        %1287 = vmatpush1.xpose.msra.mxu0 0.0
        %1288 = vmatprep.subr.mxu0 0.0
        %1289 = vmatpush1.xpose.msra.mxu0 0.0
        %1290 = vmatprep.subr.mxu0 0.0
        %1291 = vmatpush1.xpose.msra.mxu0 0.0
        %1292 = vmatprep.subr.mxu0 0.0
        %1293 = vmatpush1.xpose.msra.mxu0 0.0
        %1294 = vmatprep.subr.mxu0 0.0
        %1295 = vmatpush1.xpose.msra.mxu0 0.0
        %1296 = vmatprep.subr.mxu0 0.0
        %1297 = vmatpush1.xpose.msra.mxu0 0.0
        %1298 = vmatprep.subr.mxu0 0.0
        %1299 = vmatpush1.xpose.msra.mxu0 0.0
        %1300 = vmatprep.subr.mxu0 0.0
        %1301 = vmatpush1.xpose.msra.mxu0 0.0
        %1302 = vmatprep.subr.mxu0 0.0
        %1303 = vmatpush1.xpose.msra.mxu0 0.0
        %1304 = vmatprep.subr.mxu0 0.0
        %1305 = vmatpush1.xpose.msra.mxu0 0.0
        %1306 = vmatprep.subr.mxu0 0.0
        %1307 = vmatpush1.xpose.msra.mxu0 0.0
        %1308 = vmatprep.subr.mxu0 0.0
        %1309 = vmatpush1.xpose.msra.mxu0 0.0
        %1310 = vmatprep.subr.mxu0 0.0
        %1311 = vmatpush1.xpose.msra.mxu0 0.0
        %1312 = vmatprep.subr.mxu0 0.0
        %1313 = vmatpush1.xpose.msra.mxu0 0.0
        %1314 = vmatprep.subr.mxu0 0.0
        %1315 = vmatpush1.xpose.msra.mxu0 0.0
        %1316 = vmatprep.subr.mxu0 0.0
        %1317 = vmatpush1.xpose.msra.mxu0 0.0
        %1318 = vmatprep.subr.mxu0 0.0
        %1319 = vmatpush1.xpose.msra.mxu0 0.0
        %1320 = vmatprep.subr.mxu0 0.0
        %1321 = vmatpush1.xpose.msra.mxu0 0.0
        %1322 = vmatprep.subr.mxu0 0.0
        %1323 = vmatpush1.xpose.msra.mxu0 0.0
        %1324 = vmatprep.subr.mxu0 0.0
        %1325 = vmatpush1.xpose.msra.mxu0 0.0
        %1326 = vmatprep.subr.mxu0 0.0
        %1327 = vmatpush1.xpose.msra.mxu0 0.0
        %1328 = vmatprep.subr.mxu0 0.0
        %1329 = vmatpush1.xpose.msra.mxu0 0.0
        %1330 = vmatprep.subr.mxu0 0.0
        %1331 = vmatpush1.xpose.msra.mxu0 0.0
        %1332 = vmatprep.subr.mxu0 0.0
        %1333 = vmatpush1.xpose.msra.mxu0 0.0
        %1334 = vmatprep.subr.mxu0 0.0
        %1335 = vmatpush1.xpose.msra.mxu0 0.0
        %1336 = vmatprep.subr.mxu0 0.0
        %1337 = vmatpush1.xpose.msra.mxu0 0.0
        %1338 = vmatprep.subr.mxu0 0.0
        %1339 = vmatpush1.xpose.msra.mxu0 0.0
        %1340 = vmatprep.subr.mxu0 0.0
        %1341 = vmatpush1.xpose.msra.mxu0 0.0
        %1342 = vmatprep.subr.mxu0 0.0
        %1343 = vmatpush1.xpose.msra.mxu0 0.0
        %1344 = vmatprep.subr.mxu0 0.0
        %1345 = vmatpush1.xpose.msra.mxu0 0.0
        %1346 = vmatprep.mubr.f32.mxu0 0.0
        %v1347 = vand.u32 %v205, 4294901760
        %v1348 = vsub.f32 %v205, %v1347
        %1349 = vmatmul.mubr.f32.gmra.mrb[0].mxu0 %v1348
        %v1350 = vpop.f32.mrb[0].mxu0
        %v1351 = vadd.f32 %v1277, %v1350
        %v1352 = vpop.f32.mrb[0].mxu0
        %1353 = vdwg.mxu0
        %1354 = vmatprep.subr.mxu0 0.0
        %v1355 = vand.u32 %v205, 4294901760
        %1356 = vmatpush1.xpose.msra.mxu0 %v1355
        %1357 = vmatprep.subr.mxu0 0.0
        %1358 = vmatpush1.xpose.msra.mxu0 0.0
        %1359 = vmatprep.subr.mxu0 0.0
        %1360 = vmatpush1.xpose.msra.mxu0 0.0
        %1361 = vmatprep.subr.mxu0 0.0
        %1362 = vmatpush1.xpose.msra.mxu0 0.0
        %1363 = vmatprep.subr.mxu0 0.0
        %1364 = vmatpush1.xpose.msra.mxu0 0.0
        %1365 = vmatprep.subr.mxu0 0.0
        %1366 = vmatpush1.xpose.msra.mxu0 0.0
        %1367 = vmatprep.subr.mxu0 0.0
        %1368 = vmatpush1.xpose.msra.mxu0 0.0
        %1369 = vmatprep.subr.mxu0 0.0
        %1370 = vmatpush1.xpose.msra.mxu0 0.0
        %1371 = vmatprep.subr.mxu0 0.0
        %1372 = vmatpush1.xpose.msra.mxu0 0.0
        %1373 = vmatprep.subr.mxu0 0.0
        %1374 = vmatpush1.xpose.msra.mxu0 0.0
        %1375 = vmatprep.subr.mxu0 0.0
        %1376 = vmatpush1.xpose.msra.mxu0 0.0
        %1377 = vmatprep.subr.mxu0 0.0
        %1378 = vmatpush1.xpose.msra.mxu0 0.0
        %1379 = vmatprep.subr.mxu0 0.0
        %1380 = vmatpush1.xpose.msra.mxu0 0.0
        %1381 = vmatprep.subr.mxu0 0.0
        %1382 = vmatpush1.xpose.msra.mxu0 0.0
        %1383 = vmatprep.subr.mxu0 0.0
        %1384 = vmatpush1.xpose.msra.mxu0 0.0
        %1385 = vmatprep.subr.mxu0 0.0
        %1386 = vmatpush1.xpose.msra.mxu0 0.0
        %1387 = vmatprep.subr.mxu0 0.0
        %1388 = vmatpush1.xpose.msra.mxu0 0.0
        %1389 = vmatprep.subr.mxu0 0.0
        %1390 = vmatpush1.xpose.msra.mxu0 0.0
        %1391 = vmatprep.subr.mxu0 0.0
        %1392 = vmatpush1.xpose.msra.mxu0 0.0
        %1393 = vmatprep.subr.mxu0 0.0
        %1394 = vmatpush1.xpose.msra.mxu0 0.0
        %1395 = vmatprep.subr.mxu0 0.0
        %1396 = vmatpush1.xpose.msra.mxu0 0.0
        %1397 = vmatprep.subr.mxu0 0.0
        %1398 = vmatpush1.xpose.msra.mxu0 0.0
        %1399 = vmatprep.subr.mxu0 0.0
        %1400 = vmatpush1.xpose.msra.mxu0 0.0
        %1401 = vmatprep.subr.mxu0 0.0
        %1402 = vmatpush1.xpose.msra.mxu0 0.0
        %1403 = vmatprep.subr.mxu0 0.0
        %1404 = vmatpush1.xpose.msra.mxu0 0.0
        %1405 = vmatprep.subr.mxu0 0.0
        %1406 = vmatpush1.xpose.msra.mxu0 0.0
        %1407 = vmatprep.subr.mxu0 0.0
        %1408 = vmatpush1.xpose.msra.mxu0 0.0
        %1409 = vmatprep.subr.mxu0 0.0
        %1410 = vmatpush1.xpose.msra.mxu0 0.0
        %1411 = vmatprep.subr.mxu0 0.0
        %1412 = vmatpush1.xpose.msra.mxu0 0.0
        %1413 = vmatprep.subr.mxu0 0.0
        %1414 = vmatpush1.xpose.msra.mxu0 0.0
        %1415 = vmatprep.subr.mxu0 0.0
        %1416 = vmatpush1.xpose.msra.mxu0 0.0
        %1417 = vmatprep.subr.mxu0 0.0
        %1418 = vmatpush1.xpose.msra.mxu0 0.0
        %1419 = vmatprep.mubr.f32.mxu0 0.0
        %v1420 = vand.u32 %v205, 4294901760
        %v1421 = vsub.f32 %v205, %v1420
        %v1422 = vand.u32 %v1421, 4294901760
        %1423 = vmatmul.mubr.f32.gmra.mrb[0].mxu0 %v1422
        %v1424 = vpop.f32.mrb[0].mxu0
        %v1425 = vadd.f32 %v1351, %v1424
        %v1426 = vpop.f32.mrb[0].mxu0
        %1427 = vdwg.mxu0
        %1428 = vmatprep.subr.mxu0 0.0
        %v1429 = vand.u32 %v205, 4294901760
        %v1430 = vsub.f32 %v205, %v1429
        %v1431 = vand.u32 %v1430, 4294901760
        %1432 = vmatpush1.xpose.msra.mxu0 %v1431
        %1433 = vmatprep.subr.mxu0 0.0
        %1434 = vmatpush1.xpose.msra.mxu0 0.0
        %1435 = vmatprep.subr.mxu0 0.0
        %1436 = vmatpush1.xpose.msra.mxu0 0.0
        %1437 = vmatprep.subr.mxu0 0.0
        %1438 = vmatpush1.xpose.msra.mxu0 0.0
        %1439 = vmatprep.subr.mxu0 0.0
        %1440 = vmatpush1.xpose.msra.mxu0 0.0
        %1441 = vmatprep.subr.mxu0 0.0
        %1442 = vmatpush1.xpose.msra.mxu0 0.0
        %1443 = vmatprep.subr.mxu0 0.0
        %1444 = vmatpush1.xpose.msra.mxu0 0.0
        %1445 = vmatprep.subr.mxu0 0.0
        %1446 = vmatpush1.xpose.msra.mxu0 0.0
        %1447 = vmatprep.subr.mxu0 0.0
        %1448 = vmatpush1.xpose.msra.mxu0 0.0
        %1449 = vmatprep.subr.mxu0 0.0
        %1450 = vmatpush1.xpose.msra.mxu0 0.0
        %1451 = vmatprep.subr.mxu0 0.0
        %1452 = vmatpush1.xpose.msra.mxu0 0.0
        %1453 = vmatprep.subr.mxu0 0.0
        %1454 = vmatpush1.xpose.msra.mxu0 0.0
        %1455 = vmatprep.subr.mxu0 0.0
        %1456 = vmatpush1.xpose.msra.mxu0 0.0
        %1457 = vmatprep.subr.mxu0 0.0
        %1458 = vmatpush1.xpose.msra.mxu0 0.0
        %1459 = vmatprep.subr.mxu0 0.0
        %1460 = vmatpush1.xpose.msra.mxu0 0.0
        %1461 = vmatprep.subr.mxu0 0.0
        %1462 = vmatpush1.xpose.msra.mxu0 0.0
        %1463 = vmatprep.subr.mxu0 0.0
        %1464 = vmatpush1.xpose.msra.mxu0 0.0
        %1465 = vmatprep.subr.mxu0 0.0
        %1466 = vmatpush1.xpose.msra.mxu0 0.0
        %1467 = vmatprep.subr.mxu0 0.0
        %1468 = vmatpush1.xpose.msra.mxu0 0.0
        %1469 = vmatprep.subr.mxu0 0.0
        %1470 = vmatpush1.xpose.msra.mxu0 0.0
        %1471 = vmatprep.subr.mxu0 0.0
        %1472 = vmatpush1.xpose.msra.mxu0 0.0
        %1473 = vmatprep.subr.mxu0 0.0
        %1474 = vmatpush1.xpose.msra.mxu0 0.0
        %1475 = vmatprep.subr.mxu0 0.0
        %1476 = vmatpush1.xpose.msra.mxu0 0.0
        %1477 = vmatprep.subr.mxu0 0.0
        %1478 = vmatpush1.xpose.msra.mxu0 0.0
        %1479 = vmatprep.subr.mxu0 0.0
        %1480 = vmatpush1.xpose.msra.mxu0 0.0
        %1481 = vmatprep.subr.mxu0 0.0
        %1482 = vmatpush1.xpose.msra.mxu0 0.0
        %1483 = vmatprep.subr.mxu0 0.0
        %1484 = vmatpush1.xpose.msra.mxu0 0.0
        %1485 = vmatprep.subr.mxu0 0.0
        %1486 = vmatpush1.xpose.msra.mxu0 0.0
        %1487 = vmatprep.subr.mxu0 0.0
        %1488 = vmatpush1.xpose.msra.mxu0 0.0
        %1489 = vmatprep.subr.mxu0 0.0
        %1490 = vmatpush1.xpose.msra.mxu0 0.0
        %1491 = vmatprep.subr.mxu0 0.0
        %1492 = vmatpush1.xpose.msra.mxu0 0.0
        %1493 = vmatprep.subr.mxu0 0.0
        %1494 = vmatpush1.xpose.msra.mxu0 0.0
        %1495 = vmatprep.mubr.f32.mxu0 0.0
        %v1496 = vand.u32 %v205, 4294901760
        %1497 = vmatmul.mubr.f32.gmra.mrb[0].mxu0 %v1496
        %v1498 = vpop.f32.mrb[0].mxu0
        %v1499 = vadd.f32 %v1425, %v1498
        %v1500 = vpop.f32.mrb[0].mxu0
        %1501 = vdwg.mxu0
        %1502 = vmatprep.subr.mxu0 0.0
        %v1503 = vand.u32 %v205, 4294901760
        %1504 = vmatpush1.xpose.msra.mxu0 %v1503
        %1505 = vmatprep.subr.mxu0 0.0
        %1506 = vmatpush1.xpose.msra.mxu0 0.0
        %1507 = vmatprep.subr.mxu0 0.0
        %1508 = vmatpush1.xpose.msra.mxu0 0.0
        %1509 = vmatprep.subr.mxu0 0.0
        %1510 = vmatpush1.xpose.msra.mxu0 0.0
        %1511 = vmatprep.subr.mxu0 0.0
        %1512 = vmatpush1.xpose.msra.mxu0 0.0
        %1513 = vmatprep.subr.mxu0 0.0
        %1514 = vmatpush1.xpose.msra.mxu0 0.0
        %1515 = vmatprep.subr.mxu0 0.0
        %1516 = vmatpush1.xpose.msra.mxu0 0.0
        %1517 = vmatprep.subr.mxu0 0.0
        %1518 = vmatpush1.xpose.msra.mxu0 0.0
        %1519 = vmatprep.subr.mxu0 0.0
        %1520 = vmatpush1.xpose.msra.mxu0 0.0
        %1521 = vmatprep.subr.mxu0 0.0
        %1522 = vmatpush1.xpose.msra.mxu0 0.0
        %1523 = vmatprep.subr.mxu0 0.0
        %1524 = vmatpush1.xpose.msra.mxu0 0.0
        %1525 = vmatprep.subr.mxu0 0.0
        %1526 = vmatpush1.xpose.msra.mxu0 0.0
        %1527 = vmatprep.subr.mxu0 0.0
        %1528 = vmatpush1.xpose.msra.mxu0 0.0
        %1529 = vmatprep.subr.mxu0 0.0
        %1530 = vmatpush1.xpose.msra.mxu0 0.0
        %1531 = vmatprep.subr.mxu0 0.0
        %1532 = vmatpush1.xpose.msra.mxu0 0.0
        %1533 = vmatprep.subr.mxu0 0.0
        %1534 = vmatpush1.xpose.msra.mxu0 0.0
        %1535 = vmatprep.subr.mxu0 0.0
        %1536 = vmatpush1.xpose.msra.mxu0 0.0
        %1537 = vmatprep.subr.mxu0 0.0
        %1538 = vmatpush1.xpose.msra.mxu0 0.0
        %1539 = vmatprep.subr.mxu0 0.0
        %1540 = vmatpush1.xpose.msra.mxu0 0.0
        %1541 = vmatprep.subr.mxu0 0.0
        %1542 = vmatpush1.xpose.msra.mxu0 0.0
        %1543 = vmatprep.subr.mxu0 0.0
        %1544 = vmatpush1.xpose.msra.mxu0 0.0
        %1545 = vmatprep.subr.mxu0 0.0
        %1546 = vmatpush1.xpose.msra.mxu0 0.0
        %1547 = vmatprep.subr.mxu0 0.0
        %1548 = vmatpush1.xpose.msra.mxu0 0.0
        %1549 = vmatprep.subr.mxu0 0.0
        %1550 = vmatpush1.xpose.msra.mxu0 0.0
        %1551 = vmatprep.subr.mxu0 0.0
        %1552 = vmatpush1.xpose.msra.mxu0 0.0
        %1553 = vmatprep.subr.mxu0 0.0
        %1554 = vmatpush1.xpose.msra.mxu0 0.0
        %1555 = vmatprep.subr.mxu0 0.0
        %1556 = vmatpush1.xpose.msra.mxu0 0.0
        %1557 = vmatprep.subr.mxu0 0.0
        %1558 = vmatpush1.xpose.msra.mxu0 0.0
        %1559 = vmatprep.subr.mxu0 0.0
        %1560 = vmatpush1.xpose.msra.mxu0 0.0
        %1561 = vmatprep.subr.mxu0 0.0
        %1562 = vmatpush1.xpose.msra.mxu0 0.0
        %1563 = vmatprep.subr.mxu0 0.0
        %1564 = vmatpush1.xpose.msra.mxu0 0.0
        %1565 = vmatprep.subr.mxu0 0.0
        %1566 = vmatpush1.xpose.msra.mxu0 0.0
        %1567 = vmatprep.mubr.f32.mxu0 0.0
        %v1568 = vand.u32 %v205, 4294901760
        %1569 = vmatmul.mubr.f32.gmra.mrb[0].mxu0 %v1568
        %v1570 = vpop.f32.mrb[0].mxu0
        %v1571 = vadd.f32 %v1499, %v1570
        %v1572 = vpop.f32.mrb[0].mxu0
        %1573 = vdwg.mxu0
        %1574 = vmatprep.subr.mxu0 0.0
        %v1575 = vand.u32 %v206, 4294901760
        %1576 = vmatpush1.xpose.msra.mxu0 %v1575
        %1577 = vmatprep.subr.mxu0 0.0
        %1578 = vmatpush1.xpose.msra.mxu0 0.0
        %1579 = vmatprep.subr.mxu0 0.0
        %1580 = vmatpush1.xpose.msra.mxu0 0.0
        %1581 = vmatprep.subr.mxu0 0.0
        %1582 = vmatpush1.xpose.msra.mxu0 0.0
        %1583 = vmatprep.subr.mxu0 0.0
        %1584 = vmatpush1.xpose.msra.mxu0 0.0
        %1585 = vmatprep.subr.mxu0 0.0
        %1586 = vmatpush1.xpose.msra.mxu0 0.0
        %1587 = vmatprep.subr.mxu0 0.0
        %1588 = vmatpush1.xpose.msra.mxu0 0.0
        %1589 = vmatprep.subr.mxu0 0.0
        %1590 = vmatpush1.xpose.msra.mxu0 0.0
        %1591 = vmatprep.subr.mxu0 0.0
        %1592 = vmatpush1.xpose.msra.mxu0 0.0
        %1593 = vmatprep.subr.mxu0 0.0
        %1594 = vmatpush1.xpose.msra.mxu0 0.0
        %1595 = vmatprep.subr.mxu0 0.0
        %1596 = vmatpush1.xpose.msra.mxu0 0.0
        %1597 = vmatprep.subr.mxu0 0.0
        %1598 = vmatpush1.xpose.msra.mxu0 0.0
        %1599 = vmatprep.subr.mxu0 0.0
        %1600 = vmatpush1.xpose.msra.mxu0 0.0
        %1601 = vmatprep.subr.mxu0 0.0
        %1602 = vmatpush1.xpose.msra.mxu0 0.0
        %1603 = vmatprep.subr.mxu0 0.0
        %1604 = vmatpush1.xpose.msra.mxu0 0.0
        %1605 = vmatprep.subr.mxu0 0.0
        %1606 = vmatpush1.xpose.msra.mxu0 0.0
        %1607 = vmatprep.subr.mxu0 0.0
        %1608 = vmatpush1.xpose.msra.mxu0 0.0
        %1609 = vmatprep.subr.mxu0 0.0
        %1610 = vmatpush1.xpose.msra.mxu0 0.0
        %1611 = vmatprep.subr.mxu0 0.0
        %1612 = vmatpush1.xpose.msra.mxu0 0.0
        %1613 = vmatprep.subr.mxu0 0.0
        %1614 = vmatpush1.xpose.msra.mxu0 0.0
        %1615 = vmatprep.subr.mxu0 0.0
        %1616 = vmatpush1.xpose.msra.mxu0 0.0
        %1617 = vmatprep.subr.mxu0 0.0
        %1618 = vmatpush1.xpose.msra.mxu0 0.0
        %1619 = vmatprep.subr.mxu0 0.0
        %1620 = vmatpush1.xpose.msra.mxu0 0.0
        %1621 = vmatprep.subr.mxu0 0.0
        %1622 = vmatpush1.xpose.msra.mxu0 0.0
        %1623 = vmatprep.subr.mxu0 0.0
        %1624 = vmatpush1.xpose.msra.mxu0 0.0
        %1625 = vmatprep.subr.mxu0 0.0
        %1626 = vmatpush1.xpose.msra.mxu0 0.0
        %1627 = vmatprep.subr.mxu0 0.0
        %1628 = vmatpush1.xpose.msra.mxu0 0.0
        %1629 = vmatprep.subr.mxu0 0.0
        %1630 = vmatpush1.xpose.msra.mxu0 0.0
        %1631 = vmatprep.subr.mxu0 0.0
        %1632 = vmatpush1.xpose.msra.mxu0 0.0
        %1633 = vmatprep.subr.mxu0 0.0
        %1634 = vmatpush1.xpose.msra.mxu0 0.0
        %1635 = vmatprep.subr.mxu0 0.0
        %1636 = vmatpush1.xpose.msra.mxu0 0.0
        %1637 = vmatprep.subr.mxu0 0.0
        %1638 = vmatpush1.xpose.msra.mxu0 0.0
        %1639 = vmatprep.mubr.f32.mxu0 0.0
        %v1640 = vand.u32 %v206, 4294901760
        %v1641 = vsub.f32 %v206, %v1640
        %v1642 = vand.u32 %v1641, 4294901760
        %v1643 = vsub.f32 %v1641, %v1642
        %v1644 = vand.u32 %v1643, 4294901760
        %1645 = vmatmul.mubr.f32.gmra.mrb[0].mxu0 %v1644
        %v1646 = vpop.f32.mrb[0].mxu0
        %v1647 = vadd.f32 0.0, %v1646
        %v1648 = vpop.f32.mrb[0].mxu0
        %1649 = vdwg.mxu0
        %1650 = vmatprep.subr.mxu0 0.0
        %v1651 = vand.u32 %v206, 4294901760
        %v1652 = vsub.f32 %v206, %v1651
        %v1653 = vand.u32 %v1652, 4294901760
        %v1654 = vsub.f32 %v1652, %v1653
        %v1655 = vand.u32 %v1654, 4294901760
        %1656 = vmatpush1.xpose.msra.mxu0 %v1655
        %1657 = vmatprep.subr.mxu0 0.0
        %1658 = vmatpush1.xpose.msra.mxu0 0.0
        %1659 = vmatprep.subr.mxu0 0.0
        %1660 = vmatpush1.xpose.msra.mxu0 0.0
        %1661 = vmatprep.subr.mxu0 0.0
        %1662 = vmatpush1.xpose.msra.mxu0 0.0
        %1663 = vmatprep.subr.mxu0 0.0
        %1664 = vmatpush1.xpose.msra.mxu0 0.0
        %1665 = vmatprep.subr.mxu0 0.0
        %1666 = vmatpush1.xpose.msra.mxu0 0.0
        %1667 = vmatprep.subr.mxu0 0.0
        %1668 = vmatpush1.xpose.msra.mxu0 0.0
        %1669 = vmatprep.subr.mxu0 0.0
        %1670 = vmatpush1.xpose.msra.mxu0 0.0
        %1671 = vmatprep.subr.mxu0 0.0
        %1672 = vmatpush1.xpose.msra.mxu0 0.0
        %1673 = vmatprep.subr.mxu0 0.0
        %1674 = vmatpush1.xpose.msra.mxu0 0.0
        %1675 = vmatprep.subr.mxu0 0.0
        %1676 = vmatpush1.xpose.msra.mxu0 0.0
        %1677 = vmatprep.subr.mxu0 0.0
        %1678 = vmatpush1.xpose.msra.mxu0 0.0
        %1679 = vmatprep.subr.mxu0 0.0
        %1680 = vmatpush1.xpose.msra.mxu0 0.0
        %1681 = vmatprep.subr.mxu0 0.0
        %1682 = vmatpush1.xpose.msra.mxu0 0.0
        %1683 = vmatprep.subr.mxu0 0.0
        %1684 = vmatpush1.xpose.msra.mxu0 0.0
        %1685 = vmatprep.subr.mxu0 0.0
        %1686 = vmatpush1.xpose.msra.mxu0 0.0
        %1687 = vmatprep.subr.mxu0 0.0
        %1688 = vmatpush1.xpose.msra.mxu0 0.0
        %1689 = vmatprep.subr.mxu0 0.0
        %1690 = vmatpush1.xpose.msra.mxu0 0.0
        %1691 = vmatprep.subr.mxu0 0.0
        %1692 = vmatpush1.xpose.msra.mxu0 0.0
        %1693 = vmatprep.subr.mxu0 0.0
        %1694 = vmatpush1.xpose.msra.mxu0 0.0
        %1695 = vmatprep.subr.mxu0 0.0
        %1696 = vmatpush1.xpose.msra.mxu0 0.0
        %1697 = vmatprep.subr.mxu0 0.0
        %1698 = vmatpush1.xpose.msra.mxu0 0.0
        %1699 = vmatprep.subr.mxu0 0.0
        %1700 = vmatpush1.xpose.msra.mxu0 0.0
        %1701 = vmatprep.subr.mxu0 0.0
        %1702 = vmatpush1.xpose.msra.mxu0 0.0
        %1703 = vmatprep.subr.mxu0 0.0
        %1704 = vmatpush1.xpose.msra.mxu0 0.0
        %1705 = vmatprep.subr.mxu0 0.0
        %1706 = vmatpush1.xpose.msra.mxu0 0.0
        %1707 = vmatprep.subr.mxu0 0.0
        %1708 = vmatpush1.xpose.msra.mxu0 0.0
        %1709 = vmatprep.subr.mxu0 0.0
        %1710 = vmatpush1.xpose.msra.mxu0 0.0
        %1711 = vmatprep.subr.mxu0 0.0
        %1712 = vmatpush1.xpose.msra.mxu0 0.0
        %1713 = vmatprep.subr.mxu0 0.0
        %1714 = vmatpush1.xpose.msra.mxu0 0.0
        %1715 = vmatprep.subr.mxu0 0.0
        %1716 = vmatpush1.xpose.msra.mxu0 0.0
        %1717 = vmatprep.subr.mxu0 0.0
        %1718 = vmatpush1.xpose.msra.mxu0 0.0
        %1719 = vmatprep.mubr.f32.mxu0 0.0
        %v1720 = vand.u32 %v206, 4294901760
        %1721 = vmatmul.mubr.f32.gmra.mrb[0].mxu0 %v1720
        %v1722 = vpop.f32.mrb[0].mxu0
        %v1723 = vadd.f32 %v1647, %v1722
        %v1724 = vpop.f32.mrb[0].mxu0
        %1725 = vdwg.mxu0
        %1726 = vmatprep.subr.mxu0 0.0
        %v1727 = vand.u32 %v206, 4294901760
        %v1728 = vsub.f32 %v206, %v1727
        %1729 = vmatpush1.xpose.msra.mxu0 %v1728
        %1730 = vmatprep.subr.mxu0 0.0
        %1731 = vmatpush1.xpose.msra.mxu0 0.0
        %1732 = vmatprep.subr.mxu0 0.0
        %1733 = vmatpush1.xpose.msra.mxu0 0.0
        %1734 = vmatprep.subr.mxu0 0.0
        %1735 = vmatpush1.xpose.msra.mxu0 0.0
        %1736 = vmatprep.subr.mxu0 0.0
        %1737 = vmatpush1.xpose.msra.mxu0 0.0
        %1738 = vmatprep.subr.mxu0 0.0
        %1739 = vmatpush1.xpose.msra.mxu0 0.0
        %1740 = vmatprep.subr.mxu0 0.0
        %1741 = vmatpush1.xpose.msra.mxu0 0.0
        %1742 = vmatprep.subr.mxu0 0.0
        %1743 = vmatpush1.xpose.msra.mxu0 0.0
        %1744 = vmatprep.subr.mxu0 0.0
        %1745 = vmatpush1.xpose.msra.mxu0 0.0
        %1746 = vmatprep.subr.mxu0 0.0
        %1747 = vmatpush1.xpose.msra.mxu0 0.0
        %1748 = vmatprep.subr.mxu0 0.0
        %1749 = vmatpush1.xpose.msra.mxu0 0.0
        %1750 = vmatprep.subr.mxu0 0.0
        %1751 = vmatpush1.xpose.msra.mxu0 0.0
        %1752 = vmatprep.subr.mxu0 0.0
        %1753 = vmatpush1.xpose.msra.mxu0 0.0
        %1754 = vmatprep.subr.mxu0 0.0
        %1755 = vmatpush1.xpose.msra.mxu0 0.0
        %1756 = vmatprep.subr.mxu0 0.0
        %1757 = vmatpush1.xpose.msra.mxu0 0.0
        %1758 = vmatprep.subr.mxu0 0.0
        %1759 = vmatpush1.xpose.msra.mxu0 0.0
        %1760 = vmatprep.subr.mxu0 0.0
        %1761 = vmatpush1.xpose.msra.mxu0 0.0
        %1762 = vmatprep.subr.mxu0 0.0
        %1763 = vmatpush1.xpose.msra.mxu0 0.0
        %1764 = vmatprep.subr.mxu0 0.0
        %1765 = vmatpush1.xpose.msra.mxu0 0.0
        %1766 = vmatprep.subr.mxu0 0.0
        %1767 = vmatpush1.xpose.msra.mxu0 0.0
        %1768 = vmatprep.subr.mxu0 0.0
        %1769 = vmatpush1.xpose.msra.mxu0 0.0
        %1770 = vmatprep.subr.mxu0 0.0
        %1771 = vmatpush1.xpose.msra.mxu0 0.0
        %1772 = vmatprep.subr.mxu0 0.0
        %1773 = vmatpush1.xpose.msra.mxu0 0.0
        %1774 = vmatprep.subr.mxu0 0.0
        %1775 = vmatpush1.xpose.msra.mxu0 0.0
        %1776 = vmatprep.subr.mxu0 0.0
        %1777 = vmatpush1.xpose.msra.mxu0 0.0
        %1778 = vmatprep.subr.mxu0 0.0
        %1779 = vmatpush1.xpose.msra.mxu0 0.0
        %1780 = vmatprep.subr.mxu0 0.0
        %1781 = vmatpush1.xpose.msra.mxu0 0.0
        %1782 = vmatprep.subr.mxu0 0.0
        %1783 = vmatpush1.xpose.msra.mxu0 0.0
        %1784 = vmatprep.subr.mxu0 0.0
        %1785 = vmatpush1.xpose.msra.mxu0 0.0
        %1786 = vmatprep.subr.mxu0 0.0
        %1787 = vmatpush1.xpose.msra.mxu0 0.0
        %1788 = vmatprep.subr.mxu0 0.0
        %1789 = vmatpush1.xpose.msra.mxu0 0.0
        %1790 = vmatprep.subr.mxu0 0.0
        %1791 = vmatpush1.xpose.msra.mxu0 0.0
        %1792 = vmatprep.mubr.f32.mxu0 0.0
        %v1793 = vand.u32 %v206, 4294901760
        %v1794 = vsub.f32 %v206, %v1793
        %1795 = vmatmul.mubr.f32.gmra.mrb[0].mxu0 %v1794
        %v1796 = vpop.f32.mrb[0].mxu0
        %v1797 = vadd.f32 %v1723, %v1796
        %v1798 = vpop.f32.mrb[0].mxu0
        %1799 = vdwg.mxu0
        %1800 = vmatprep.subr.mxu0 0.0
        %v1801 = vand.u32 %v206, 4294901760
        %1802 = vmatpush1.xpose.msra.mxu0 %v1801
        %1803 = vmatprep.subr.mxu0 0.0
        %1804 = vmatpush1.xpose.msra.mxu0 0.0
        %1805 = vmatprep.subr.mxu0 0.0
        %1806 = vmatpush1.xpose.msra.mxu0 0.0
        %1807 = vmatprep.subr.mxu0 0.0
        %1808 = vmatpush1.xpose.msra.mxu0 0.0
        %1809 = vmatprep.subr.mxu0 0.0
        %1810 = vmatpush1.xpose.msra.mxu0 0.0
        %1811 = vmatprep.subr.mxu0 0.0
        %1812 = vmatpush1.xpose.msra.mxu0 0.0
        %1813 = vmatprep.subr.mxu0 0.0
        %1814 = vmatpush1.xpose.msra.mxu0 0.0
        %1815 = vmatprep.subr.mxu0 0.0
        %1816 = vmatpush1.xpose.msra.mxu0 0.0
        %1817 = vmatprep.subr.mxu0 0.0
        %1818 = vmatpush1.xpose.msra.mxu0 0.0
        %1819 = vmatprep.subr.mxu0 0.0
        %1820 = vmatpush1.xpose.msra.mxu0 0.0
        %1821 = vmatprep.subr.mxu0 0.0
        %1822 = vmatpush1.xpose.msra.mxu0 0.0
        %1823 = vmatprep.subr.mxu0 0.0
        %1824 = vmatpush1.xpose.msra.mxu0 0.0
        %1825 = vmatprep.subr.mxu0 0.0
        %1826 = vmatpush1.xpose.msra.mxu0 0.0
        %1827 = vmatprep.subr.mxu0 0.0
        %1828 = vmatpush1.xpose.msra.mxu0 0.0
        %1829 = vmatprep.subr.mxu0 0.0
        %1830 = vmatpush1.xpose.msra.mxu0 0.0
        %1831 = vmatprep.subr.mxu0 0.0
        %1832 = vmatpush1.xpose.msra.mxu0 0.0
        %1833 = vmatprep.subr.mxu0 0.0
        %1834 = vmatpush1.xpose.msra.mxu0 0.0
        %1835 = vmatprep.subr.mxu0 0.0
        %1836 = vmatpush1.xpose.msra.mxu0 0.0
        %1837 = vmatprep.subr.mxu0 0.0
        %1838 = vmatpush1.xpose.msra.mxu0 0.0
        %1839 = vmatprep.subr.mxu0 0.0
        %1840 = vmatpush1.xpose.msra.mxu0 0.0
        %1841 = vmatprep.subr.mxu0 0.0
        %1842 = vmatpush1.xpose.msra.mxu0 0.0
        %1843 = vmatprep.subr.mxu0 0.0
        %1844 = vmatpush1.xpose.msra.mxu0 0.0
        %1845 = vmatprep.subr.mxu0 0.0
        %1846 = vmatpush1.xpose.msra.mxu0 0.0
        %1847 = vmatprep.subr.mxu0 0.0
        %1848 = vmatpush1.xpose.msra.mxu0 0.0
        %1849 = vmatprep.subr.mxu0 0.0
        %1850 = vmatpush1.xpose.msra.mxu0 0.0
        %1851 = vmatprep.subr.mxu0 0.0
        %1852 = vmatpush1.xpose.msra.mxu0 0.0
        %1853 = vmatprep.subr.mxu0 0.0
        %1854 = vmatpush1.xpose.msra.mxu0 0.0
        %1855 = vmatprep.subr.mxu0 0.0
        %1856 = vmatpush1.xpose.msra.mxu0 0.0
        %1857 = vmatprep.subr.mxu0 0.0
        %1858 = vmatpush1.xpose.msra.mxu0 0.0
        %1859 = vmatprep.subr.mxu0 0.0
        %1860 = vmatpush1.xpose.msra.mxu0 0.0
        %1861 = vmatprep.subr.mxu0 0.0
        %1862 = vmatpush1.xpose.msra.mxu0 0.0
        %1863 = vmatprep.subr.mxu0 0.0
        %1864 = vmatpush1.xpose.msra.mxu0 0.0
        %1865 = vmatprep.mubr.f32.mxu0 0.0
        %v1866 = vand.u32 %v206, 4294901760
        %v1867 = vsub.f32 %v206, %v1866
        %v1868 = vand.u32 %v1867, 4294901760
        %1869 = vmatmul.mubr.f32.gmra.mrb[0].mxu0 %v1868
        %v1870 = vpop.f32.mrb[0].mxu0
        %v1871 = vadd.f32 %v1797, %v1870
        %v1872 = vpop.f32.mrb[0].mxu0
        %1873 = vdwg.mxu0
        %1874 = vmatprep.subr.mxu0 0.0
        %v1875 = vand.u32 %v206, 4294901760
        %v1876 = vsub.f32 %v206, %v1875
        %v1877 = vand.u32 %v1876, 4294901760
        %1878 = vmatpush1.xpose.msra.mxu0 %v1877
        %1879 = vmatprep.subr.mxu0 0.0
        %1880 = vmatpush1.xpose.msra.mxu0 0.0
        %1881 = vmatprep.subr.mxu0 0.0
        %1882 = vmatpush1.xpose.msra.mxu0 0.0
        %1883 = vmatprep.subr.mxu0 0.0
        %1884 = vmatpush1.xpose.msra.mxu0 0.0
        %1885 = vmatprep.subr.mxu0 0.0
        %1886 = vmatpush1.xpose.msra.mxu0 0.0
        %1887 = vmatprep.subr.mxu0 0.0
        %1888 = vmatpush1.xpose.msra.mxu0 0.0
        %1889 = vmatprep.subr.mxu0 0.0
        %1890 = vmatpush1.xpose.msra.mxu0 0.0
        %1891 = vmatprep.subr.mxu0 0.0
        %1892 = vmatpush1.xpose.msra.mxu0 0.0
        %1893 = vmatprep.subr.mxu0 0.0
        %1894 = vmatpush1.xpose.msra.mxu0 0.0
        %1895 = vmatprep.subr.mxu0 0.0
        %1896 = vmatpush1.xpose.msra.mxu0 0.0
        %1897 = vmatprep.subr.mxu0 0.0
        %1898 = vmatpush1.xpose.msra.mxu0 0.0
        %1899 = vmatprep.subr.mxu0 0.0
        %1900 = vmatpush1.xpose.msra.mxu0 0.0
        %1901 = vmatprep.subr.mxu0 0.0
        %1902 = vmatpush1.xpose.msra.mxu0 0.0
        %1903 = vmatprep.subr.mxu0 0.0
        %1904 = vmatpush1.xpose.msra.mxu0 0.0
        %1905 = vmatprep.subr.mxu0 0.0
        %1906 = vmatpush1.xpose.msra.mxu0 0.0
        %1907 = vmatprep.subr.mxu0 0.0
        %1908 = vmatpush1.xpose.msra.mxu0 0.0
        %1909 = vmatprep.subr.mxu0 0.0
        %1910 = vmatpush1.xpose.msra.mxu0 0.0
        %1911 = vmatprep.subr.mxu0 0.0
        %1912 = vmatpush1.xpose.msra.mxu0 0.0
        %1913 = vmatprep.subr.mxu0 0.0
        %1914 = vmatpush1.xpose.msra.mxu0 0.0
        %1915 = vmatprep.subr.mxu0 0.0
        %1916 = vmatpush1.xpose.msra.mxu0 0.0
        %1917 = vmatprep.subr.mxu0 0.0
        %1918 = vmatpush1.xpose.msra.mxu0 0.0
        %1919 = vmatprep.subr.mxu0 0.0
        %1920 = vmatpush1.xpose.msra.mxu0 0.0
        %1921 = vmatprep.subr.mxu0 0.0
        %1922 = vmatpush1.xpose.msra.mxu0 0.0
        %1923 = vmatprep.subr.mxu0 0.0
        %1924 = vmatpush1.xpose.msra.mxu0 0.0
        %1925 = vmatprep.subr.mxu0 0.0
        %1926 = vmatpush1.xpose.msra.mxu0 0.0
        %1927 = vmatprep.subr.mxu0 0.0
        %1928 = vmatpush1.xpose.msra.mxu0 0.0
        %1929 = vmatprep.subr.mxu0 0.0
        %1930 = vmatpush1.xpose.msra.mxu0 0.0
        %1931 = vmatprep.subr.mxu0 0.0
        %1932 = vmatpush1.xpose.msra.mxu0 0.0
        %1933 = vmatprep.subr.mxu0 0.0
        %1934 = vmatpush1.xpose.msra.mxu0 0.0
        %1935 = vmatprep.subr.mxu0 0.0
        %1936 = vmatpush1.xpose.msra.mxu0 0.0
        %1937 = vmatprep.subr.mxu0 0.0
        %1938 = vmatpush1.xpose.msra.mxu0 0.0
        %1939 = vmatprep.subr.mxu0 0.0
        %1940 = vmatpush1.xpose.msra.mxu0 0.0
        %1941 = vmatprep.mubr.f32.mxu0 0.0
        %v1942 = vand.u32 %v206, 4294901760
        %1943 = vmatmul.mubr.f32.gmra.mrb[0].mxu0 %v1942
        %v1944 = vpop.f32.mrb[0].mxu0
        %v1945 = vadd.f32 %v1871, %v1944
        %v1946 = vpop.f32.mrb[0].mxu0
        %1947 = vdwg.mxu0
        %1948 = vmatprep.subr.mxu0 0.0
        %v1949 = vand.u32 %v206, 4294901760
        %1950 = vmatpush1.xpose.msra.mxu0 %v1949
        %1951 = vmatprep.subr.mxu0 0.0
        %1952 = vmatpush1.xpose.msra.mxu0 0.0
        %1953 = vmatprep.subr.mxu0 0.0
        %1954 = vmatpush1.xpose.msra.mxu0 0.0
        %1955 = vmatprep.subr.mxu0 0.0
        %1956 = vmatpush1.xpose.msra.mxu0 0.0
        %1957 = vmatprep.subr.mxu0 0.0
        %1958 = vmatpush1.xpose.msra.mxu0 0.0
        %1959 = vmatprep.subr.mxu0 0.0
        %1960 = vmatpush1.xpose.msra.mxu0 0.0
        %1961 = vmatprep.subr.mxu0 0.0
        %1962 = vmatpush1.xpose.msra.mxu0 0.0
        %1963 = vmatprep.subr.mxu0 0.0
        %1964 = vmatpush1.xpose.msra.mxu0 0.0
        %1965 = vmatprep.subr.mxu0 0.0
        %1966 = vmatpush1.xpose.msra.mxu0 0.0
        %1967 = vmatprep.subr.mxu0 0.0
        %1968 = vmatpush1.xpose.msra.mxu0 0.0
        %1969 = vmatprep.subr.mxu0 0.0
        %1970 = vmatpush1.xpose.msra.mxu0 0.0
        %1971 = vmatprep.subr.mxu0 0.0
        %1972 = vmatpush1.xpose.msra.mxu0 0.0
        %1973 = vmatprep.subr.mxu0 0.0
        %1974 = vmatpush1.xpose.msra.mxu0 0.0
        %1975 = vmatprep.subr.mxu0 0.0
        %1976 = vmatpush1.xpose.msra.mxu0 0.0
        %1977 = vmatprep.subr.mxu0 0.0
        %1978 = vmatpush1.xpose.msra.mxu0 0.0
        %1979 = vmatprep.subr.mxu0 0.0
        %1980 = vmatpush1.xpose.msra.mxu0 0.0
        %1981 = vmatprep.subr.mxu0 0.0
        %1982 = vmatpush1.xpose.msra.mxu0 0.0
        %1983 = vmatprep.subr.mxu0 0.0
        %1984 = vmatpush1.xpose.msra.mxu0 0.0
        %1985 = vmatprep.subr.mxu0 0.0
        %1986 = vmatpush1.xpose.msra.mxu0 0.0
        %1987 = vmatprep.subr.mxu0 0.0
        %1988 = vmatpush1.xpose.msra.mxu0 0.0
        %1989 = vmatprep.subr.mxu0 0.0
        %1990 = vmatpush1.xpose.msra.mxu0 0.0
        %1991 = vmatprep.subr.mxu0 0.0
        %1992 = vmatpush1.xpose.msra.mxu0 0.0
        %1993 = vmatprep.subr.mxu0 0.0
        %1994 = vmatpush1.xpose.msra.mxu0 0.0
        %1995 = vmatprep.subr.mxu0 0.0
        %1996 = vmatpush1.xpose.msra.mxu0 0.0
        %1997 = vmatprep.subr.mxu0 0.0
        %1998 = vmatpush1.xpose.msra.mxu0 0.0
        %1999 = vmatprep.subr.mxu0 0.0
        %2000 = vmatpush1.xpose.msra.mxu0 0.0
        %2001 = vmatprep.subr.mxu0 0.0
        %2002 = vmatpush1.xpose.msra.mxu0 0.0
        %2003 = vmatprep.subr.mxu0 0.0
        %2004 = vmatpush1.xpose.msra.mxu0 0.0
        %2005 = vmatprep.subr.mxu0 0.0
        %2006 = vmatpush1.xpose.msra.mxu0 0.0
        %2007 = vmatprep.subr.mxu0 0.0
        %2008 = vmatpush1.xpose.msra.mxu0 0.0
        %2009 = vmatprep.subr.mxu0 0.0
        %2010 = vmatpush1.xpose.msra.mxu0 0.0
        %2011 = vmatprep.subr.mxu0 0.0
        %2012 = vmatpush1.xpose.msra.mxu0 0.0
        %2013 = vmatprep.mubr.f32.mxu0 0.0
        %v2014 = vand.u32 %v206, 4294901760
        %2015 = vmatmul.mubr.f32.gmra.mrb[0].mxu0 %v2014
        %v2016 = vpop.f32.mrb[0].mxu0
        %v2017 = vadd.f32 %v1945, %v2016
        %v2018 = vpop.f32.mrb[0].mxu0
        %2019 = vdwg.mxu0
        %2020 = vmatprep.subr.mxu0 0.0
        %v2021 = vand.u32 %v207, 4294901760
        %2022 = vmatpush1.xpose.msra.mxu0 %v2021
        %2023 = vmatprep.subr.mxu0 0.0
        %2024 = vmatpush1.xpose.msra.mxu0 0.0
        %2025 = vmatprep.subr.mxu0 0.0
        %2026 = vmatpush1.xpose.msra.mxu0 0.0
        %2027 = vmatprep.subr.mxu0 0.0
        %2028 = vmatpush1.xpose.msra.mxu0 0.0
        %2029 = vmatprep.subr.mxu0 0.0
        %2030 = vmatpush1.xpose.msra.mxu0 0.0
        %2031 = vmatprep.subr.mxu0 0.0
        %2032 = vmatpush1.xpose.msra.mxu0 0.0
        %2033 = vmatprep.subr.mxu0 0.0
        %2034 = vmatpush1.xpose.msra.mxu0 0.0
        %2035 = vmatprep.subr.mxu0 0.0
        %2036 = vmatpush1.xpose.msra.mxu0 0.0
        %2037 = vmatprep.subr.mxu0 0.0
        %2038 = vmatpush1.xpose.msra.mxu0 0.0
        %2039 = vmatprep.subr.mxu0 0.0
        %2040 = vmatpush1.xpose.msra.mxu0 0.0
        %2041 = vmatprep.subr.mxu0 0.0
        %2042 = vmatpush1.xpose.msra.mxu0 0.0
        %2043 = vmatprep.subr.mxu0 0.0
        %2044 = vmatpush1.xpose.msra.mxu0 0.0
        %2045 = vmatprep.subr.mxu0 0.0
        %2046 = vmatpush1.xpose.msra.mxu0 0.0
        %2047 = vmatprep.subr.mxu0 0.0
        %2048 = vmatpush1.xpose.msra.mxu0 0.0
        %2049 = vmatprep.subr.mxu0 0.0
        %2050 = vmatpush1.xpose.msra.mxu0 0.0
        %2051 = vmatprep.subr.mxu0 0.0
        %2052 = vmatpush1.xpose.msra.mxu0 0.0
        %2053 = vmatprep.subr.mxu0 0.0
        %2054 = vmatpush1.xpose.msra.mxu0 0.0
        %2055 = vmatprep.subr.mxu0 0.0
        %2056 = vmatpush1.xpose.msra.mxu0 0.0
        %2057 = vmatprep.subr.mxu0 0.0
        %2058 = vmatpush1.xpose.msra.mxu0 0.0
        %2059 = vmatprep.subr.mxu0 0.0
        %2060 = vmatpush1.xpose.msra.mxu0 0.0
        %2061 = vmatprep.subr.mxu0 0.0
        %2062 = vmatpush1.xpose.msra.mxu0 0.0
        %2063 = vmatprep.subr.mxu0 0.0
        %2064 = vmatpush1.xpose.msra.mxu0 0.0
        %2065 = vmatprep.subr.mxu0 0.0
        %2066 = vmatpush1.xpose.msra.mxu0 0.0
        %2067 = vmatprep.subr.mxu0 0.0
        %2068 = vmatpush1.xpose.msra.mxu0 0.0
        %2069 = vmatprep.subr.mxu0 0.0
        %2070 = vmatpush1.xpose.msra.mxu0 0.0
        %2071 = vmatprep.subr.mxu0 0.0
        %2072 = vmatpush1.xpose.msra.mxu0 0.0
        %2073 = vmatprep.subr.mxu0 0.0
        %2074 = vmatpush1.xpose.msra.mxu0 0.0
        %2075 = vmatprep.subr.mxu0 0.0
        %2076 = vmatpush1.xpose.msra.mxu0 0.0
        %2077 = vmatprep.subr.mxu0 0.0
        %2078 = vmatpush1.xpose.msra.mxu0 0.0
        %2079 = vmatprep.subr.mxu0 0.0
        %2080 = vmatpush1.xpose.msra.mxu0 0.0
        %2081 = vmatprep.subr.mxu0 0.0
        %2082 = vmatpush1.xpose.msra.mxu0 0.0
        %2083 = vmatprep.subr.mxu0 0.0
        %2084 = vmatpush1.xpose.msra.mxu0 0.0
        %2085 = vmatprep.mubr.f32.mxu0 0.0
        %v2086 = vand.u32 %v207, 4294901760
        %v2087 = vsub.f32 %v207, %v2086
        %v2088 = vand.u32 %v2087, 4294901760
        %v2089 = vsub.f32 %v2087, %v2088
        %v2090 = vand.u32 %v2089, 4294901760
        %2091 = vmatmul.mubr.f32.gmra.mrb[0].mxu0 %v2090
        %v2092 = vpop.f32.mrb[0].mxu0
        %v2093 = vadd.f32 0.0, %v2092
        %v2094 = vpop.f32.mrb[0].mxu0
        %2095 = vdwg.mxu0
        %2096 = vmatprep.subr.mxu0 0.0
        %v2097 = vand.u32 %v207, 4294901760
        %v2098 = vsub.f32 %v207, %v2097
        %v2099 = vand.u32 %v2098, 4294901760
        %v2100 = vsub.f32 %v2098, %v2099
        %v2101 = vand.u32 %v2100, 4294901760
        %2102 = vmatpush1.xpose.msra.mxu0 %v2101
        %2103 = vmatprep.subr.mxu0 0.0
        %2104 = vmatpush1.xpose.msra.mxu0 0.0
        %2105 = vmatprep.subr.mxu0 0.0
        %2106 = vmatpush1.xpose.msra.mxu0 0.0
        %2107 = vmatprep.subr.mxu0 0.0
        %2108 = vmatpush1.xpose.msra.mxu0 0.0
        %2109 = vmatprep.subr.mxu0 0.0
        %2110 = vmatpush1.xpose.msra.mxu0 0.0
        %2111 = vmatprep.subr.mxu0 0.0
        %2112 = vmatpush1.xpose.msra.mxu0 0.0
        %2113 = vmatprep.subr.mxu0 0.0
        %2114 = vmatpush1.xpose.msra.mxu0 0.0
        %2115 = vmatprep.subr.mxu0 0.0
        %2116 = vmatpush1.xpose.msra.mxu0 0.0
        %2117 = vmatprep.subr.mxu0 0.0
        %2118 = vmatpush1.xpose.msra.mxu0 0.0
        %2119 = vmatprep.subr.mxu0 0.0
        %2120 = vmatpush1.xpose.msra.mxu0 0.0
        %2121 = vmatprep.subr.mxu0 0.0
        %2122 = vmatpush1.xpose.msra.mxu0 0.0
        %2123 = vmatprep.subr.mxu0 0.0
        %2124 = vmatpush1.xpose.msra.mxu0 0.0
        %2125 = vmatprep.subr.mxu0 0.0
        %2126 = vmatpush1.xpose.msra.mxu0 0.0
        %2127 = vmatprep.subr.mxu0 0.0
        %2128 = vmatpush1.xpose.msra.mxu0 0.0
        %2129 = vmatprep.subr.mxu0 0.0
        %2130 = vmatpush1.xpose.msra.mxu0 0.0
        %2131 = vmatprep.subr.mxu0 0.0
        %2132 = vmatpush1.xpose.msra.mxu0 0.0
        %2133 = vmatprep.subr.mxu0 0.0
        %2134 = vmatpush1.xpose.msra.mxu0 0.0
        %2135 = vmatprep.subr.mxu0 0.0
        %2136 = vmatpush1.xpose.msra.mxu0 0.0
        %2137 = vmatprep.subr.mxu0 0.0
        %2138 = vmatpush1.xpose.msra.mxu0 0.0
        %2139 = vmatprep.subr.mxu0 0.0
        %2140 = vmatpush1.xpose.msra.mxu0 0.0
        %2141 = vmatprep.subr.mxu0 0.0
        %2142 = vmatpush1.xpose.msra.mxu0 0.0
        %2143 = vmatprep.subr.mxu0 0.0
        %2144 = vmatpush1.xpose.msra.mxu0 0.0
        %2145 = vmatprep.subr.mxu0 0.0
        %2146 = vmatpush1.xpose.msra.mxu0 0.0
        %2147 = vmatprep.subr.mxu0 0.0
        %2148 = vmatpush1.xpose.msra.mxu0 0.0
        %2149 = vmatprep.subr.mxu0 0.0
        %2150 = vmatpush1.xpose.msra.mxu0 0.0
        %2151 = vmatprep.subr.mxu0 0.0
        %2152 = vmatpush1.xpose.msra.mxu0 0.0
        %2153 = vmatprep.subr.mxu0 0.0
        %2154 = vmatpush1.xpose.msra.mxu0 0.0
        %2155 = vmatprep.subr.mxu0 0.0
        %2156 = vmatpush1.xpose.msra.mxu0 0.0
        %2157 = vmatprep.subr.mxu0 0.0
        %2158 = vmatpush1.xpose.msra.mxu0 0.0
        %2159 = vmatprep.subr.mxu0 0.0
        %2160 = vmatpush1.xpose.msra.mxu0 0.0
        %2161 = vmatprep.subr.mxu0 0.0
        %2162 = vmatpush1.xpose.msra.mxu0 0.0
        %2163 = vmatprep.subr.mxu0 0.0
        %2164 = vmatpush1.xpose.msra.mxu0 0.0
        %2165 = vmatprep.mubr.f32.mxu0 0.0
        %v2166 = vand.u32 %v207, 4294901760
        %2167 = vmatmul.mubr.f32.gmra.mrb[0].mxu0 %v2166
        %v2168 = vpop.f32.mrb[0].mxu0
        %v2169 = vadd.f32 %v2093, %v2168
        %v2170 = vpop.f32.mrb[0].mxu0
        %2171 = vdwg.mxu0
        %2172 = vmatprep.subr.mxu0 0.0
        %v2173 = vand.u32 %v207, 4294901760
        %v2174 = vsub.f32 %v207, %v2173
        %2175 = vmatpush1.xpose.msra.mxu0 %v2174
        %2176 = vmatprep.subr.mxu0 0.0
        %2177 = vmatpush1.xpose.msra.mxu0 0.0
        %2178 = vmatprep.subr.mxu0 0.0
        %2179 = vmatpush1.xpose.msra.mxu0 0.0
        %2180 = vmatprep.subr.mxu0 0.0
        %2181 = vmatpush1.xpose.msra.mxu0 0.0
        %2182 = vmatprep.subr.mxu0 0.0
        %2183 = vmatpush1.xpose.msra.mxu0 0.0
        %2184 = vmatprep.subr.mxu0 0.0
        %2185 = vmatpush1.xpose.msra.mxu0 0.0
        %2186 = vmatprep.subr.mxu0 0.0
        %2187 = vmatpush1.xpose.msra.mxu0 0.0
        %2188 = vmatprep.subr.mxu0 0.0
        %2189 = vmatpush1.xpose.msra.mxu0 0.0
        %2190 = vmatprep.subr.mxu0 0.0
        %2191 = vmatpush1.xpose.msra.mxu0 0.0
        %2192 = vmatprep.subr.mxu0 0.0
        %2193 = vmatpush1.xpose.msra.mxu0 0.0
        %2194 = vmatprep.subr.mxu0 0.0
        %2195 = vmatpush1.xpose.msra.mxu0 0.0
        %2196 = vmatprep.subr.mxu0 0.0
        %2197 = vmatpush1.xpose.msra.mxu0 0.0
        %2198 = vmatprep.subr.mxu0 0.0
        %2199 = vmatpush1.xpose.msra.mxu0 0.0
        %2200 = vmatprep.subr.mxu0 0.0
        %2201 = vmatpush1.xpose.msra.mxu0 0.0
        %2202 = vmatprep.subr.mxu0 0.0
        %2203 = vmatpush1.xpose.msra.mxu0 0.0
        %2204 = vmatprep.subr.mxu0 0.0
        %2205 = vmatpush1.xpose.msra.mxu0 0.0
        %2206 = vmatprep.subr.mxu0 0.0
        %2207 = vmatpush1.xpose.msra.mxu0 0.0
        %2208 = vmatprep.subr.mxu0 0.0
        %2209 = vmatpush1.xpose.msra.mxu0 0.0
        %2210 = vmatprep.subr.mxu0 0.0
        %2211 = vmatpush1.xpose.msra.mxu0 0.0
        %2212 = vmatprep.subr.mxu0 0.0
        %2213 = vmatpush1.xpose.msra.mxu0 0.0
        %2214 = vmatprep.subr.mxu0 0.0
        %2215 = vmatpush1.xpose.msra.mxu0 0.0
        %2216 = vmatprep.subr.mxu0 0.0
        %2217 = vmatpush1.xpose.msra.mxu0 0.0
        %2218 = vmatprep.subr.mxu0 0.0
        %2219 = vmatpush1.xpose.msra.mxu0 0.0
        %2220 = vmatprep.subr.mxu0 0.0
        %2221 = vmatpush1.xpose.msra.mxu0 0.0
        %2222 = vmatprep.subr.mxu0 0.0
        %2223 = vmatpush1.xpose.msra.mxu0 0.0
        %2224 = vmatprep.subr.mxu0 0.0
        %2225 = vmatpush1.xpose.msra.mxu0 0.0
        %2226 = vmatprep.subr.mxu0 0.0
        %2227 = vmatpush1.xpose.msra.mxu0 0.0
        %2228 = vmatprep.subr.mxu0 0.0
        %2229 = vmatpush1.xpose.msra.mxu0 0.0
        %2230 = vmatprep.subr.mxu0 0.0
        %2231 = vmatpush1.xpose.msra.mxu0 0.0
        %2232 = vmatprep.subr.mxu0 0.0
        %2233 = vmatpush1.xpose.msra.mxu0 0.0
        %2234 = vmatprep.subr.mxu0 0.0
        %2235 = vmatpush1.xpose.msra.mxu0 0.0
        %2236 = vmatprep.subr.mxu0 0.0
        %2237 = vmatpush1.xpose.msra.mxu0 0.0
        %2238 = vmatprep.mubr.f32.mxu0 0.0
        %v2239 = vand.u32 %v207, 4294901760
        %v2240 = vsub.f32 %v207, %v2239
        %2241 = vmatmul.mubr.f32.gmra.mrb[0].mxu0 %v2240
        %v2242 = vpop.f32.mrb[0].mxu0
        %v2243 = vadd.f32 %v2169, %v2242
        %v2244 = vpop.f32.mrb[0].mxu0
        %2245 = vdwg.mxu0
        %2246 = vmatprep.subr.mxu0 0.0
        %v2247 = vand.u32 %v207, 4294901760
        %2248 = vmatpush1.xpose.msra.mxu0 %v2247
        %2249 = vmatprep.subr.mxu0 0.0
        %2250 = vmatpush1.xpose.msra.mxu0 0.0
        %2251 = vmatprep.subr.mxu0 0.0
        %2252 = vmatpush1.xpose.msra.mxu0 0.0
        %2253 = vmatprep.subr.mxu0 0.0
        %2254 = vmatpush1.xpose.msra.mxu0 0.0
        %2255 = vmatprep.subr.mxu0 0.0
        %2256 = vmatpush1.xpose.msra.mxu0 0.0
        %2257 = vmatprep.subr.mxu0 0.0
        %2258 = vmatpush1.xpose.msra.mxu0 0.0
        %2259 = vmatprep.subr.mxu0 0.0
        %2260 = vmatpush1.xpose.msra.mxu0 0.0
        %2261 = vmatprep.subr.mxu0 0.0
        %2262 = vmatpush1.xpose.msra.mxu0 0.0
        %2263 = vmatprep.subr.mxu0 0.0
        %2264 = vmatpush1.xpose.msra.mxu0 0.0
        %2265 = vmatprep.subr.mxu0 0.0
        %2266 = vmatpush1.xpose.msra.mxu0 0.0
        %2267 = vmatprep.subr.mxu0 0.0
        %2268 = vmatpush1.xpose.msra.mxu0 0.0
        %2269 = vmatprep.subr.mxu0 0.0
        %2270 = vmatpush1.xpose.msra.mxu0 0.0
        %2271 = vmatprep.subr.mxu0 0.0
        %2272 = vmatpush1.xpose.msra.mxu0 0.0
        %2273 = vmatprep.subr.mxu0 0.0
        %2274 = vmatpush1.xpose.msra.mxu0 0.0
        %2275 = vmatprep.subr.mxu0 0.0
        %2276 = vmatpush1.xpose.msra.mxu0 0.0
        %2277 = vmatprep.subr.mxu0 0.0
        %2278 = vmatpush1.xpose.msra.mxu0 0.0
        %2279 = vmatprep.subr.mxu0 0.0
        %2280 = vmatpush1.xpose.msra.mxu0 0.0
        %2281 = vmatprep.subr.mxu0 0.0
        %2282 = vmatpush1.xpose.msra.mxu0 0.0
        %2283 = vmatprep.subr.mxu0 0.0
        %2284 = vmatpush1.xpose.msra.mxu0 0.0
        %2285 = vmatprep.subr.mxu0 0.0
        %2286 = vmatpush1.xpose.msra.mxu0 0.0
        %2287 = vmatprep.subr.mxu0 0.0
        %2288 = vmatpush1.xpose.msra.mxu0 0.0
        %2289 = vmatprep.subr.mxu0 0.0
        %2290 = vmatpush1.xpose.msra.mxu0 0.0
        %2291 = vmatprep.subr.mxu0 0.0
        %2292 = vmatpush1.xpose.msra.mxu0 0.0
        %2293 = vmatprep.subr.mxu0 0.0
        %2294 = vmatpush1.xpose.msra.mxu0 0.0
        %2295 = vmatprep.subr.mxu0 0.0
        %2296 = vmatpush1.xpose.msra.mxu0 0.0
        %2297 = vmatprep.subr.mxu0 0.0
        %2298 = vmatpush1.xpose.msra.mxu0 0.0
        %2299 = vmatprep.subr.mxu0 0.0
        %2300 = vmatpush1.xpose.msra.mxu0 0.0
        %2301 = vmatprep.subr.mxu0 0.0
        %2302 = vmatpush1.xpose.msra.mxu0 0.0
        %2303 = vmatprep.subr.mxu0 0.0
        %2304 = vmatpush1.xpose.msra.mxu0 0.0
        %2305 = vmatprep.subr.mxu0 0.0
        %2306 = vmatpush1.xpose.msra.mxu0 0.0
        %2307 = vmatprep.subr.mxu0 0.0
        %2308 = vmatpush1.xpose.msra.mxu0 0.0
        %2309 = vmatprep.subr.mxu0 0.0
        %2310 = vmatpush1.xpose.msra.mxu0 0.0
        %2311 = vmatprep.mubr.f32.mxu0 0.0
        %v2312 = vand.u32 %v207, 4294901760
        %v2313 = vsub.f32 %v207, %v2312
        %v2314 = vand.u32 %v2313, 4294901760
        %2315 = vmatmul.mubr.f32.gmra.mrb[0].mxu0 %v2314
        %v2316 = vpop.f32.mrb[0].mxu0
        %v2317 = vadd.f32 %v2243, %v2316
        %v2318 = vpop.f32.mrb[0].mxu0
        %2319 = vdwg.mxu0
        %2320 = vmatprep.subr.mxu0 0.0
        %v2321 = vand.u32 %v207, 4294901760
        %v2322 = vsub.f32 %v207, %v2321
        %v2323 = vand.u32 %v2322, 4294901760
        %2324 = vmatpush1.xpose.msra.mxu0 %v2323
        %2325 = vmatprep.subr.mxu0 0.0
        %2326 = vmatpush1.xpose.msra.mxu0 0.0
        %2327 = vmatprep.subr.mxu0 0.0
        %2328 = vmatpush1.xpose.msra.mxu0 0.0
        %2329 = vmatprep.subr.mxu0 0.0
        %2330 = vmatpush1.xpose.msra.mxu0 0.0
        %2331 = vmatprep.subr.mxu0 0.0
        %2332 = vmatpush1.xpose.msra.mxu0 0.0
        %2333 = vmatprep.subr.mxu0 0.0
        %2334 = vmatpush1.xpose.msra.mxu0 0.0
        %2335 = vmatprep.subr.mxu0 0.0
        %2336 = vmatpush1.xpose.msra.mxu0 0.0
        %2337 = vmatprep.subr.mxu0 0.0
        %2338 = vmatpush1.xpose.msra.mxu0 0.0
        %2339 = vmatprep.subr.mxu0 0.0
        %2340 = vmatpush1.xpose.msra.mxu0 0.0
        %2341 = vmatprep.subr.mxu0 0.0
        %2342 = vmatpush1.xpose.msra.mxu0 0.0
        %2343 = vmatprep.subr.mxu0 0.0
        %2344 = vmatpush1.xpose.msra.mxu0 0.0
        %2345 = vmatprep.subr.mxu0 0.0
        %2346 = vmatpush1.xpose.msra.mxu0 0.0
        %2347 = vmatprep.subr.mxu0 0.0
        %2348 = vmatpush1.xpose.msra.mxu0 0.0
        %2349 = vmatprep.subr.mxu0 0.0
        %2350 = vmatpush1.xpose.msra.mxu0 0.0
        %2351 = vmatprep.subr.mxu0 0.0
        %2352 = vmatpush1.xpose.msra.mxu0 0.0
        %2353 = vmatprep.subr.mxu0 0.0
        %2354 = vmatpush1.xpose.msra.mxu0 0.0
        %2355 = vmatprep.subr.mxu0 0.0
        %2356 = vmatpush1.xpose.msra.mxu0 0.0
        %2357 = vmatprep.subr.mxu0 0.0
        %2358 = vmatpush1.xpose.msra.mxu0 0.0
        %2359 = vmatprep.subr.mxu0 0.0
        %2360 = vmatpush1.xpose.msra.mxu0 0.0
        %2361 = vmatprep.subr.mxu0 0.0
        %2362 = vmatpush1.xpose.msra.mxu0 0.0
        %2363 = vmatprep.subr.mxu0 0.0
        %2364 = vmatpush1.xpose.msra.mxu0 0.0
        %2365 = vmatprep.subr.mxu0 0.0
        %2366 = vmatpush1.xpose.msra.mxu0 0.0
        %2367 = vmatprep.subr.mxu0 0.0
        %2368 = vmatpush1.xpose.msra.mxu0 0.0
        %2369 = vmatprep.subr.mxu0 0.0
        %2370 = vmatpush1.xpose.msra.mxu0 0.0
        %2371 = vmatprep.subr.mxu0 0.0
        %2372 = vmatpush1.xpose.msra.mxu0 0.0
        %2373 = vmatprep.subr.mxu0 0.0
        %2374 = vmatpush1.xpose.msra.mxu0 0.0
        %2375 = vmatprep.subr.mxu0 0.0
        %2376 = vmatpush1.xpose.msra.mxu0 0.0
        %2377 = vmatprep.subr.mxu0 0.0
        %2378 = vmatpush1.xpose.msra.mxu0 0.0
        %2379 = vmatprep.subr.mxu0 0.0
        %2380 = vmatpush1.xpose.msra.mxu0 0.0
        %2381 = vmatprep.subr.mxu0 0.0
        %2382 = vmatpush1.xpose.msra.mxu0 0.0
        %2383 = vmatprep.subr.mxu0 0.0
        %2384 = vmatpush1.xpose.msra.mxu0 0.0
        %2385 = vmatprep.subr.mxu0 0.0
        %2386 = vmatpush1.xpose.msra.mxu0 0.0
        %2387 = vmatprep.mubr.f32.mxu0 0.0
        %v2388 = vand.u32 %v207, 4294901760
        %2389 = vmatmul.mubr.f32.gmra.mrb[0].mxu0 %v2388
        %v2390 = vpop.f32.mrb[0].mxu0
        %v2391 = vadd.f32 %v2317, %v2390
        %v2392 = vpop.f32.mrb[0].mxu0
        %2393 = vdwg.mxu0
        %2394 = vmatprep.subr.mxu0 0.0
        %v2395 = vand.u32 %v207, 4294901760
        %2396 = vmatpush1.xpose.msra.mxu0 %v2395
        %2397 = vmatprep.subr.mxu0 0.0
        %2398 = vmatpush1.xpose.msra.mxu0 0.0
        %2399 = vmatprep.subr.mxu0 0.0
        %2400 = vmatpush1.xpose.msra.mxu0 0.0
        %2401 = vmatprep.subr.mxu0 0.0
        %2402 = vmatpush1.xpose.msra.mxu0 0.0
        %2403 = vmatprep.subr.mxu0 0.0
        %2404 = vmatpush1.xpose.msra.mxu0 0.0
        %2405 = vmatprep.subr.mxu0 0.0
        %2406 = vmatpush1.xpose.msra.mxu0 0.0
        %2407 = vmatprep.subr.mxu0 0.0
        %2408 = vmatpush1.xpose.msra.mxu0 0.0
        %2409 = vmatprep.subr.mxu0 0.0
        %2410 = vmatpush1.xpose.msra.mxu0 0.0
        %2411 = vmatprep.subr.mxu0 0.0
        %2412 = vmatpush1.xpose.msra.mxu0 0.0
        %2413 = vmatprep.subr.mxu0 0.0
        %2414 = vmatpush1.xpose.msra.mxu0 0.0
        %2415 = vmatprep.subr.mxu0 0.0
        %2416 = vmatpush1.xpose.msra.mxu0 0.0
        %2417 = vmatprep.subr.mxu0 0.0
        %2418 = vmatpush1.xpose.msra.mxu0 0.0
        %2419 = vmatprep.subr.mxu0 0.0
        %2420 = vmatpush1.xpose.msra.mxu0 0.0
        %2421 = vmatprep.subr.mxu0 0.0
        %2422 = vmatpush1.xpose.msra.mxu0 0.0
        %2423 = vmatprep.subr.mxu0 0.0
        %2424 = vmatpush1.xpose.msra.mxu0 0.0
        %2425 = vmatprep.subr.mxu0 0.0
        %2426 = vmatpush1.xpose.msra.mxu0 0.0
        %2427 = vmatprep.subr.mxu0 0.0
        %2428 = vmatpush1.xpose.msra.mxu0 0.0
        %2429 = vmatprep.subr.mxu0 0.0
        %2430 = vmatpush1.xpose.msra.mxu0 0.0
        %2431 = vmatprep.subr.mxu0 0.0
        %2432 = vmatpush1.xpose.msra.mxu0 0.0
        %2433 = vmatprep.subr.mxu0 0.0
        %2434 = vmatpush1.xpose.msra.mxu0 0.0
        %2435 = vmatprep.subr.mxu0 0.0
        %2436 = vmatpush1.xpose.msra.mxu0 0.0
        %2437 = vmatprep.subr.mxu0 0.0
        %2438 = vmatpush1.xpose.msra.mxu0 0.0
        %2439 = vmatprep.subr.mxu0 0.0
        %2440 = vmatpush1.xpose.msra.mxu0 0.0
        %2441 = vmatprep.subr.mxu0 0.0
        %2442 = vmatpush1.xpose.msra.mxu0 0.0
        %2443 = vmatprep.subr.mxu0 0.0
        %2444 = vmatpush1.xpose.msra.mxu0 0.0
        %2445 = vmatprep.subr.mxu0 0.0
        %2446 = vmatpush1.xpose.msra.mxu0 0.0
        %2447 = vmatprep.subr.mxu0 0.0
        %2448 = vmatpush1.xpose.msra.mxu0 0.0
        %2449 = vmatprep.subr.mxu0 0.0
        %2450 = vmatpush1.xpose.msra.mxu0 0.0
        %2451 = vmatprep.subr.mxu0 0.0
        %2452 = vmatpush1.xpose.msra.mxu0 0.0
        %2453 = vmatprep.subr.mxu0 0.0
        %2454 = vmatpush1.xpose.msra.mxu0 0.0
        %2455 = vmatprep.subr.mxu0 0.0
        %2456 = vmatpush1.xpose.msra.mxu0 0.0
        %2457 = vmatprep.subr.mxu0 0.0
        %2458 = vmatpush1.xpose.msra.mxu0 0.0
        %2459 = vmatprep.mubr.f32.mxu0 0.0
        %v2460 = vand.u32 %v207, 4294901760
        %2461 = vmatmul.mubr.f32.gmra.mrb[0].mxu0 %v2460
        %v2462 = vpop.f32.mrb[0].mxu0
        %v2463 = vadd.f32 %v2391, %v2462
        %v2464 = vpop.f32.mrb[0].mxu0
        %2465 = vdwg.mxu0
        %2466 = vmatprep.subr.mxu0 0.0
        %v2467 = vand.u32 %v208, 4294901760
        %2468 = vmatpush1.xpose.msra.mxu0 %v2467
        %2469 = vmatprep.subr.mxu0 0.0
        %2470 = vmatpush1.xpose.msra.mxu0 0.0
        %2471 = vmatprep.subr.mxu0 0.0
        %2472 = vmatpush1.xpose.msra.mxu0 0.0
        %2473 = vmatprep.subr.mxu0 0.0
        %2474 = vmatpush1.xpose.msra.mxu0 0.0
        %2475 = vmatprep.subr.mxu0 0.0
        %2476 = vmatpush1.xpose.msra.mxu0 0.0
        %2477 = vmatprep.subr.mxu0 0.0
        %2478 = vmatpush1.xpose.msra.mxu0 0.0
        %2479 = vmatprep.subr.mxu0 0.0
        %2480 = vmatpush1.xpose.msra.mxu0 0.0
        %2481 = vmatprep.subr.mxu0 0.0
        %2482 = vmatpush1.xpose.msra.mxu0 0.0
        %2483 = vmatprep.subr.mxu0 0.0
        %2484 = vmatpush1.xpose.msra.mxu0 0.0
        %2485 = vmatprep.subr.mxu0 0.0
        %2486 = vmatpush1.xpose.msra.mxu0 0.0
        %2487 = vmatprep.subr.mxu0 0.0
        %2488 = vmatpush1.xpose.msra.mxu0 0.0
        %2489 = vmatprep.subr.mxu0 0.0
        %2490 = vmatpush1.xpose.msra.mxu0 0.0
        %2491 = vmatprep.subr.mxu0 0.0
        %2492 = vmatpush1.xpose.msra.mxu0 0.0
        %2493 = vmatprep.subr.mxu0 0.0
        %2494 = vmatpush1.xpose.msra.mxu0 0.0
        %2495 = vmatprep.subr.mxu0 0.0
        %2496 = vmatpush1.xpose.msra.mxu0 0.0
        %2497 = vmatprep.subr.mxu0 0.0
        %2498 = vmatpush1.xpose.msra.mxu0 0.0
        %2499 = vmatprep.subr.mxu0 0.0
        %2500 = vmatpush1.xpose.msra.mxu0 0.0
        %2501 = vmatprep.subr.mxu0 0.0
        %2502 = vmatpush1.xpose.msra.mxu0 0.0
        %2503 = vmatprep.subr.mxu0 0.0
        %2504 = vmatpush1.xpose.msra.mxu0 0.0
        %2505 = vmatprep.subr.mxu0 0.0
        %2506 = vmatpush1.xpose.msra.mxu0 0.0
        %2507 = vmatprep.subr.mxu0 0.0
        %2508 = vmatpush1.xpose.msra.mxu0 0.0
        %2509 = vmatprep.subr.mxu0 0.0
        %2510 = vmatpush1.xpose.msra.mxu0 0.0
        %2511 = vmatprep.subr.mxu0 0.0
        %2512 = vmatpush1.xpose.msra.mxu0 0.0
        %2513 = vmatprep.subr.mxu0 0.0
        %2514 = vmatpush1.xpose.msra.mxu0 0.0
        %2515 = vmatprep.subr.mxu0 0.0
        %2516 = vmatpush1.xpose.msra.mxu0 0.0
        %2517 = vmatprep.subr.mxu0 0.0
        %2518 = vmatpush1.xpose.msra.mxu0 0.0
        %2519 = vmatprep.subr.mxu0 0.0
        %2520 = vmatpush1.xpose.msra.mxu0 0.0
        %2521 = vmatprep.subr.mxu0 0.0
        %2522 = vmatpush1.xpose.msra.mxu0 0.0
        %2523 = vmatprep.subr.mxu0 0.0
        %2524 = vmatpush1.xpose.msra.mxu0 0.0
        %2525 = vmatprep.subr.mxu0 0.0
        %2526 = vmatpush1.xpose.msra.mxu0 0.0
        %2527 = vmatprep.subr.mxu0 0.0
        %2528 = vmatpush1.xpose.msra.mxu0 0.0
        %2529 = vmatprep.subr.mxu0 0.0
        %2530 = vmatpush1.xpose.msra.mxu0 0.0
        %2531 = vmatprep.mubr.f32.mxu0 0.0
        %v2532 = vand.u32 %v208, 4294901760
        %v2533 = vsub.f32 %v208, %v2532
        %v2534 = vand.u32 %v2533, 4294901760
        %v2535 = vsub.f32 %v2533, %v2534
        %v2536 = vand.u32 %v2535, 4294901760
        %2537 = vmatmul.mubr.f32.gmra.mrb[0].mxu0 %v2536
        %v2538 = vpop.f32.mrb[0].mxu0
        %v2539 = vadd.f32 0.0, %v2538
        %v2540 = vpop.f32.mrb[0].mxu0
        %2541 = vdwg.mxu0
        %2542 = vmatprep.subr.mxu0 0.0
        %v2543 = vand.u32 %v208, 4294901760
        %v2544 = vsub.f32 %v208, %v2543
        %v2545 = vand.u32 %v2544, 4294901760
        %v2546 = vsub.f32 %v2544, %v2545
        %v2547 = vand.u32 %v2546, 4294901760
        %2548 = vmatpush1.xpose.msra.mxu0 %v2547
        %2549 = vmatprep.subr.mxu0 0.0
        %2550 = vmatpush1.xpose.msra.mxu0 0.0
        %2551 = vmatprep.subr.mxu0 0.0
        %2552 = vmatpush1.xpose.msra.mxu0 0.0
        %2553 = vmatprep.subr.mxu0 0.0
        %2554 = vmatpush1.xpose.msra.mxu0 0.0
        %2555 = vmatprep.subr.mxu0 0.0
        %2556 = vmatpush1.xpose.msra.mxu0 0.0
        %2557 = vmatprep.subr.mxu0 0.0
        %2558 = vmatpush1.xpose.msra.mxu0 0.0
        %2559 = vmatprep.subr.mxu0 0.0
        %2560 = vmatpush1.xpose.msra.mxu0 0.0
        %2561 = vmatprep.subr.mxu0 0.0
        %2562 = vmatpush1.xpose.msra.mxu0 0.0
        %2563 = vmatprep.subr.mxu0 0.0
        %2564 = vmatpush1.xpose.msra.mxu0 0.0
        %2565 = vmatprep.subr.mxu0 0.0
        %2566 = vmatpush1.xpose.msra.mxu0 0.0
        %2567 = vmatprep.subr.mxu0 0.0
        %2568 = vmatpush1.xpose.msra.mxu0 0.0
        %2569 = vmatprep.subr.mxu0 0.0
        %2570 = vmatpush1.xpose.msra.mxu0 0.0
        %2571 = vmatprep.subr.mxu0 0.0
        %2572 = vmatpush1.xpose.msra.mxu0 0.0
        %2573 = vmatprep.subr.mxu0 0.0
        %2574 = vmatpush1.xpose.msra.mxu0 0.0
        %2575 = vmatprep.subr.mxu0 0.0
        %2576 = vmatpush1.xpose.msra.mxu0 0.0
        %2577 = vmatprep.subr.mxu0 0.0
        %2578 = vmatpush1.xpose.msra.mxu0 0.0
        %2579 = vmatprep.subr.mxu0 0.0
        %2580 = vmatpush1.xpose.msra.mxu0 0.0
        %2581 = vmatprep.subr.mxu0 0.0
        %2582 = vmatpush1.xpose.msra.mxu0 0.0
        %2583 = vmatprep.subr.mxu0 0.0
        %2584 = vmatpush1.xpose.msra.mxu0 0.0
        %2585 = vmatprep.subr.mxu0 0.0
        %2586 = vmatpush1.xpose.msra.mxu0 0.0
        %2587 = vmatprep.subr.mxu0 0.0
        %2588 = vmatpush1.xpose.msra.mxu0 0.0
        %2589 = vmatprep.subr.mxu0 0.0
        %2590 = vmatpush1.xpose.msra.mxu0 0.0
        %2591 = vmatprep.subr.mxu0 0.0
        %2592 = vmatpush1.xpose.msra.mxu0 0.0
        %2593 = vmatprep.subr.mxu0 0.0
        %2594 = vmatpush1.xpose.msra.mxu0 0.0
        %2595 = vmatprep.subr.mxu0 0.0
        %2596 = vmatpush1.xpose.msra.mxu0 0.0
        %2597 = vmatprep.subr.mxu0 0.0
        %2598 = vmatpush1.xpose.msra.mxu0 0.0
        %2599 = vmatprep.subr.mxu0 0.0
        %2600 = vmatpush1.xpose.msra.mxu0 0.0
        %2601 = vmatprep.subr.mxu0 0.0
        %2602 = vmatpush1.xpose.msra.mxu0 0.0
        %2603 = vmatprep.subr.mxu0 0.0
        %2604 = vmatpush1.xpose.msra.mxu0 0.0
        %2605 = vmatprep.subr.mxu0 0.0
        %2606 = vmatpush1.xpose.msra.mxu0 0.0
        %2607 = vmatprep.subr.mxu0 0.0
        %2608 = vmatpush1.xpose.msra.mxu0 0.0
        %2609 = vmatprep.subr.mxu0 0.0
        %2610 = vmatpush1.xpose.msra.mxu0 0.0
        %2611 = vmatprep.mubr.f32.mxu0 0.0
        %v2612 = vand.u32 %v208, 4294901760
        %2613 = vmatmul.mubr.f32.gmra.mrb[0].mxu0 %v2612
        %v2614 = vpop.f32.mrb[0].mxu0
        %v2615 = vadd.f32 %v2539, %v2614
        %v2616 = vpop.f32.mrb[0].mxu0
        %2617 = vdwg.mxu0
        %2618 = vmatprep.subr.mxu0 0.0
        %v2619 = vand.u32 %v208, 4294901760
        %v2620 = vsub.f32 %v208, %v2619
        %2621 = vmatpush1.xpose.msra.mxu0 %v2620
        %2622 = vmatprep.subr.mxu0 0.0
        %2623 = vmatpush1.xpose.msra.mxu0 0.0
        %2624 = vmatprep.subr.mxu0 0.0
        %2625 = vmatpush1.xpose.msra.mxu0 0.0
        %2626 = vmatprep.subr.mxu0 0.0
        %2627 = vmatpush1.xpose.msra.mxu0 0.0
        %2628 = vmatprep.subr.mxu0 0.0
        %2629 = vmatpush1.xpose.msra.mxu0 0.0
        %2630 = vmatprep.subr.mxu0 0.0
        %2631 = vmatpush1.xpose.msra.mxu0 0.0
        %2632 = vmatprep.subr.mxu0 0.0
        %2633 = vmatpush1.xpose.msra.mxu0 0.0
        %2634 = vmatprep.subr.mxu0 0.0
        %2635 = vmatpush1.xpose.msra.mxu0 0.0
        %2636 = vmatprep.subr.mxu0 0.0
        %2637 = vmatpush1.xpose.msra.mxu0 0.0
        %2638 = vmatprep.subr.mxu0 0.0
        %2639 = vmatpush1.xpose.msra.mxu0 0.0
        %2640 = vmatprep.subr.mxu0 0.0
        %2641 = vmatpush1.xpose.msra.mxu0 0.0
        %2642 = vmatprep.subr.mxu0 0.0
        %2643 = vmatpush1.xpose.msra.mxu0 0.0
        %2644 = vmatprep.subr.mxu0 0.0
        %2645 = vmatpush1.xpose.msra.mxu0 0.0
        %2646 = vmatprep.subr.mxu0 0.0
        %2647 = vmatpush1.xpose.msra.mxu0 0.0
        %2648 = vmatprep.subr.mxu0 0.0
        %2649 = vmatpush1.xpose.msra.mxu0 0.0
        %2650 = vmatprep.subr.mxu0 0.0
        %2651 = vmatpush1.xpose.msra.mxu0 0.0
        %2652 = vmatprep.subr.mxu0 0.0
        %2653 = vmatpush1.xpose.msra.mxu0 0.0
        %2654 = vmatprep.subr.mxu0 0.0
        %2655 = vmatpush1.xpose.msra.mxu0 0.0
        %2656 = vmatprep.subr.mxu0 0.0
        %2657 = vmatpush1.xpose.msra.mxu0 0.0
        %2658 = vmatprep.subr.mxu0 0.0
        %2659 = vmatpush1.xpose.msra.mxu0 0.0
        %2660 = vmatprep.subr.mxu0 0.0
        %2661 = vmatpush1.xpose.msra.mxu0 0.0
        %2662 = vmatprep.subr.mxu0 0.0
        %2663 = vmatpush1.xpose.msra.mxu0 0.0
        %2664 = vmatprep.subr.mxu0 0.0
        %2665 = vmatpush1.xpose.msra.mxu0 0.0
        %2666 = vmatprep.subr.mxu0 0.0
        %2667 = vmatpush1.xpose.msra.mxu0 0.0
        %2668 = vmatprep.subr.mxu0 0.0
        %2669 = vmatpush1.xpose.msra.mxu0 0.0
        %2670 = vmatprep.subr.mxu0 0.0
        %2671 = vmatpush1.xpose.msra.mxu0 0.0
        %2672 = vmatprep.subr.mxu0 0.0
        %2673 = vmatpush1.xpose.msra.mxu0 0.0
        %2674 = vmatprep.subr.mxu0 0.0
        %2675 = vmatpush1.xpose.msra.mxu0 0.0
        %2676 = vmatprep.subr.mxu0 0.0
        %2677 = vmatpush1.xpose.msra.mxu0 0.0
        %2678 = vmatprep.subr.mxu0 0.0
        %2679 = vmatpush1.xpose.msra.mxu0 0.0
        %2680 = vmatprep.subr.mxu0 0.0
        %2681 = vmatpush1.xpose.msra.mxu0 0.0
        %2682 = vmatprep.subr.mxu0 0.0
        %2683 = vmatpush1.xpose.msra.mxu0 0.0
        %2684 = vmatprep.mubr.f32.mxu0 0.0
        %v2685 = vand.u32 %v208, 4294901760
        %v2686 = vsub.f32 %v208, %v2685
        %2687 = vmatmul.mubr.f32.gmra.mrb[0].mxu0 %v2686
        %v2688 = vpop.f32.mrb[0].mxu0
        %v2689 = vadd.f32 %v2615, %v2688
        %v2690 = vpop.f32.mrb[0].mxu0
        %2691 = vdwg.mxu0
        %2692 = vmatprep.subr.mxu0 0.0
        %v2693 = vand.u32 %v208, 4294901760
        %2694 = vmatpush1.xpose.msra.mxu0 %v2693
        %2695 = vmatprep.subr.mxu0 0.0
        %2696 = vmatpush1.xpose.msra.mxu0 0.0
        %2697 = vmatprep.subr.mxu0 0.0
        %2698 = vmatpush1.xpose.msra.mxu0 0.0
        %2699 = vmatprep.subr.mxu0 0.0
        %2700 = vmatpush1.xpose.msra.mxu0 0.0
        %2701 = vmatprep.subr.mxu0 0.0
        %2702 = vmatpush1.xpose.msra.mxu0 0.0
        %2703 = vmatprep.subr.mxu0 0.0
        %2704 = vmatpush1.xpose.msra.mxu0 0.0
        %2705 = vmatprep.subr.mxu0 0.0
        %2706 = vmatpush1.xpose.msra.mxu0 0.0
        %2707 = vmatprep.subr.mxu0 0.0
        %2708 = vmatpush1.xpose.msra.mxu0 0.0
        %2709 = vmatprep.subr.mxu0 0.0
        %2710 = vmatpush1.xpose.msra.mxu0 0.0
        %2711 = vmatprep.subr.mxu0 0.0
        %2712 = vmatpush1.xpose.msra.mxu0 0.0
        %2713 = vmatprep.subr.mxu0 0.0
        %2714 = vmatpush1.xpose.msra.mxu0 0.0
        %2715 = vmatprep.subr.mxu0 0.0
        %2716 = vmatpush1.xpose.msra.mxu0 0.0
        %2717 = vmatprep.subr.mxu0 0.0
        %2718 = vmatpush1.xpose.msra.mxu0 0.0
        %2719 = vmatprep.subr.mxu0 0.0
        %2720 = vmatpush1.xpose.msra.mxu0 0.0
        %2721 = vmatprep.subr.mxu0 0.0
        %2722 = vmatpush1.xpose.msra.mxu0 0.0
        %2723 = vmatprep.subr.mxu0 0.0
        %2724 = vmatpush1.xpose.msra.mxu0 0.0
        %2725 = vmatprep.subr.mxu0 0.0
        %2726 = vmatpush1.xpose.msra.mxu0 0.0
        %2727 = vmatprep.subr.mxu0 0.0
        %2728 = vmatpush1.xpose.msra.mxu0 0.0
        %2729 = vmatprep.subr.mxu0 0.0
        %2730 = vmatpush1.xpose.msra.mxu0 0.0
        %2731 = vmatprep.subr.mxu0 0.0
        %2732 = vmatpush1.xpose.msra.mxu0 0.0
        %2733 = vmatprep.subr.mxu0 0.0
        %2734 = vmatpush1.xpose.msra.mxu0 0.0
        %2735 = vmatprep.subr.mxu0 0.0
        %2736 = vmatpush1.xpose.msra.mxu0 0.0
        %2737 = vmatprep.subr.mxu0 0.0
        %2738 = vmatpush1.xpose.msra.mxu0 0.0
        %2739 = vmatprep.subr.mxu0 0.0
        %2740 = vmatpush1.xpose.msra.mxu0 0.0
        %2741 = vmatprep.subr.mxu0 0.0
        %2742 = vmatpush1.xpose.msra.mxu0 0.0
        %2743 = vmatprep.subr.mxu0 0.0
        %2744 = vmatpush1.xpose.msra.mxu0 0.0
        %2745 = vmatprep.subr.mxu0 0.0
        %2746 = vmatpush1.xpose.msra.mxu0 0.0
        %2747 = vmatprep.subr.mxu0 0.0
        %2748 = vmatpush1.xpose.msra.mxu0 0.0
        %2749 = vmatprep.subr.mxu0 0.0
        %2750 = vmatpush1.xpose.msra.mxu0 0.0
        %2751 = vmatprep.subr.mxu0 0.0
        %2752 = vmatpush1.xpose.msra.mxu0 0.0
        %2753 = vmatprep.subr.mxu0 0.0
        %2754 = vmatpush1.xpose.msra.mxu0 0.0
        %2755 = vmatprep.subr.mxu0 0.0
        %2756 = vmatpush1.xpose.msra.mxu0 0.0
        %2757 = vmatprep.mubr.f32.mxu0 0.0
        %v2758 = vand.u32 %v208, 4294901760
        %v2759 = vsub.f32 %v208, %v2758
        %v2760 = vand.u32 %v2759, 4294901760
        %2761 = vmatmul.mubr.f32.gmra.mrb[0].mxu0 %v2760
        %v2762 = vpop.f32.mrb[0].mxu0
        %v2763 = vadd.f32 %v2689, %v2762
        %v2764 = vpop.f32.mrb[0].mxu0
        %2765 = vdwg.mxu0
        %2766 = vmatprep.subr.mxu0 0.0
        %v2767 = vand.u32 %v208, 4294901760
        %v2768 = vsub.f32 %v208, %v2767
        %v2769 = vand.u32 %v2768, 4294901760
        %2770 = vmatpush1.xpose.msra.mxu0 %v2769
        %2771 = vmatprep.subr.mxu0 0.0
        %2772 = vmatpush1.xpose.msra.mxu0 0.0
        %2773 = vmatprep.subr.mxu0 0.0
        %2774 = vmatpush1.xpose.msra.mxu0 0.0
        %2775 = vmatprep.subr.mxu0 0.0
        %2776 = vmatpush1.xpose.msra.mxu0 0.0
        %2777 = vmatprep.subr.mxu0 0.0
        %2778 = vmatpush1.xpose.msra.mxu0 0.0
        %2779 = vmatprep.subr.mxu0 0.0
        %2780 = vmatpush1.xpose.msra.mxu0 0.0
        %2781 = vmatprep.subr.mxu0 0.0
        %2782 = vmatpush1.xpose.msra.mxu0 0.0
        %2783 = vmatprep.subr.mxu0 0.0
        %2784 = vmatpush1.xpose.msra.mxu0 0.0
        %2785 = vmatprep.subr.mxu0 0.0
        %2786 = vmatpush1.xpose.msra.mxu0 0.0
        %2787 = vmatprep.subr.mxu0 0.0
        %2788 = vmatpush1.xpose.msra.mxu0 0.0
        %2789 = vmatprep.subr.mxu0 0.0
        %2790 = vmatpush1.xpose.msra.mxu0 0.0
        %2791 = vmatprep.subr.mxu0 0.0
        %2792 = vmatpush1.xpose.msra.mxu0 0.0
        %2793 = vmatprep.subr.mxu0 0.0
        %2794 = vmatpush1.xpose.msra.mxu0 0.0
        %2795 = vmatprep.subr.mxu0 0.0
        %2796 = vmatpush1.xpose.msra.mxu0 0.0
        %2797 = vmatprep.subr.mxu0 0.0
        %2798 = vmatpush1.xpose.msra.mxu0 0.0
        %2799 = vmatprep.subr.mxu0 0.0
        %2800 = vmatpush1.xpose.msra.mxu0 0.0
        %2801 = vmatprep.subr.mxu0 0.0
        %2802 = vmatpush1.xpose.msra.mxu0 0.0
        %2803 = vmatprep.subr.mxu0 0.0
        %2804 = vmatpush1.xpose.msra.mxu0 0.0
        %2805 = vmatprep.subr.mxu0 0.0
        %2806 = vmatpush1.xpose.msra.mxu0 0.0
        %2807 = vmatprep.subr.mxu0 0.0
        %2808 = vmatpush1.xpose.msra.mxu0 0.0
        %2809 = vmatprep.subr.mxu0 0.0
        %2810 = vmatpush1.xpose.msra.mxu0 0.0
        %2811 = vmatprep.subr.mxu0 0.0
        %2812 = vmatpush1.xpose.msra.mxu0 0.0
        %2813 = vmatprep.subr.mxu0 0.0
        %2814 = vmatpush1.xpose.msra.mxu0 0.0
        %2815 = vmatprep.subr.mxu0 0.0
        %2816 = vmatpush1.xpose.msra.mxu0 0.0
        %2817 = vmatprep.subr.mxu0 0.0
        %2818 = vmatpush1.xpose.msra.mxu0 0.0
        %2819 = vmatprep.subr.mxu0 0.0
        %2820 = vmatpush1.xpose.msra.mxu0 0.0
        %2821 = vmatprep.subr.mxu0 0.0
        %2822 = vmatpush1.xpose.msra.mxu0 0.0
        %2823 = vmatprep.subr.mxu0 0.0
        %2824 = vmatpush1.xpose.msra.mxu0 0.0
        %2825 = vmatprep.subr.mxu0 0.0
        %2826 = vmatpush1.xpose.msra.mxu0 0.0
        %2827 = vmatprep.subr.mxu0 0.0
        %2828 = vmatpush1.xpose.msra.mxu0 0.0
        %2829 = vmatprep.subr.mxu0 0.0
        %2830 = vmatpush1.xpose.msra.mxu0 0.0
        %2831 = vmatprep.subr.mxu0 0.0
        %2832 = vmatpush1.xpose.msra.mxu0 0.0
        %2833 = vmatprep.mubr.f32.mxu0 0.0
        %v2834 = vand.u32 %v208, 4294901760
        %2835 = vmatmul.mubr.f32.gmra.mrb[0].mxu0 %v2834
        %v2836 = vpop.f32.mrb[0].mxu0
        %v2837 = vadd.f32 %v2763, %v2836
        %v2838 = vpop.f32.mrb[0].mxu0
        %2839 = vdwg.mxu0
        %2840 = vmatprep.subr.mxu0 0.0
        %v2841 = vand.u32 %v208, 4294901760
        %2842 = vmatpush1.xpose.msra.mxu0 %v2841
        %2843 = vmatprep.subr.mxu0 0.0
        %2844 = vmatpush1.xpose.msra.mxu0 0.0
        %2845 = vmatprep.subr.mxu0 0.0
        %2846 = vmatpush1.xpose.msra.mxu0 0.0
        %2847 = vmatprep.subr.mxu0 0.0
        %2848 = vmatpush1.xpose.msra.mxu0 0.0
        %2849 = vmatprep.subr.mxu0 0.0
        %2850 = vmatpush1.xpose.msra.mxu0 0.0
        %2851 = vmatprep.subr.mxu0 0.0
        %2852 = vmatpush1.xpose.msra.mxu0 0.0
        %2853 = vmatprep.subr.mxu0 0.0
        %2854 = vmatpush1.xpose.msra.mxu0 0.0
        %2855 = vmatprep.subr.mxu0 0.0
        %2856 = vmatpush1.xpose.msra.mxu0 0.0
        %2857 = vmatprep.subr.mxu0 0.0
        %2858 = vmatpush1.xpose.msra.mxu0 0.0
        %2859 = vmatprep.subr.mxu0 0.0
        %2860 = vmatpush1.xpose.msra.mxu0 0.0
        %2861 = vmatprep.subr.mxu0 0.0
        %2862 = vmatpush1.xpose.msra.mxu0 0.0
        %2863 = vmatprep.subr.mxu0 0.0
        %2864 = vmatpush1.xpose.msra.mxu0 0.0
        %2865 = vmatprep.subr.mxu0 0.0
        %2866 = vmatpush1.xpose.msra.mxu0 0.0
        %2867 = vmatprep.subr.mxu0 0.0
        %2868 = vmatpush1.xpose.msra.mxu0 0.0
        %2869 = vmatprep.subr.mxu0 0.0
        %2870 = vmatpush1.xpose.msra.mxu0 0.0
        %2871 = vmatprep.subr.mxu0 0.0
        %2872 = vmatpush1.xpose.msra.mxu0 0.0
        %2873 = vmatprep.subr.mxu0 0.0
        %2874 = vmatpush1.xpose.msra.mxu0 0.0
        %2875 = vmatprep.subr.mxu0 0.0
        %2876 = vmatpush1.xpose.msra.mxu0 0.0
        %2877 = vmatprep.subr.mxu0 0.0
        %2878 = vmatpush1.xpose.msra.mxu0 0.0
        %2879 = vmatprep.subr.mxu0 0.0
        %2880 = vmatpush1.xpose.msra.mxu0 0.0
        %2881 = vmatprep.subr.mxu0 0.0
        %2882 = vmatpush1.xpose.msra.mxu0 0.0
        %2883 = vmatprep.subr.mxu0 0.0
        %2884 = vmatpush1.xpose.msra.mxu0 0.0
        %2885 = vmatprep.subr.mxu0 0.0
        %2886 = vmatpush1.xpose.msra.mxu0 0.0
        %2887 = vmatprep.subr.mxu0 0.0
        %2888 = vmatpush1.xpose.msra.mxu0 0.0
        %2889 = vmatprep.subr.mxu0 0.0
        %2890 = vmatpush1.xpose.msra.mxu0 0.0
        %2891 = vmatprep.subr.mxu0 0.0
        %2892 = vmatpush1.xpose.msra.mxu0 0.0
        %2893 = vmatprep.subr.mxu0 0.0
        %2894 = vmatpush1.xpose.msra.mxu0 0.0
        %2895 = vmatprep.subr.mxu0 0.0
        %2896 = vmatpush1.xpose.msra.mxu0 0.0
        %2897 = vmatprep.subr.mxu0 0.0
        %2898 = vmatpush1.xpose.msra.mxu0 0.0
        %2899 = vmatprep.subr.mxu0 0.0
        %2900 = vmatpush1.xpose.msra.mxu0 0.0
        %2901 = vmatprep.subr.mxu0 0.0
        %2902 = vmatpush1.xpose.msra.mxu0 0.0
        %2903 = vmatprep.subr.mxu0 0.0
        %2904 = vmatpush1.xpose.msra.mxu0 0.0
        %2905 = vmatprep.mubr.f32.mxu0 0.0
        %v2906 = vand.u32 %v208, 4294901760
        %2907 = vmatmul.mubr.f32.gmra.mrb[0].mxu0 %v2906
        %v2908 = vpop.f32.mrb[0].mxu0
        %v2909 = vadd.f32 %v2837, %v2908
        %v2910 = vpop.f32.mrb[0].mxu0
        %2911 = vdwg.mxu0
        %2912 = vmatprep.subr.mxu0 0.0
        %v2913 = vand.u32 %v209, 4294901760
        %2914 = vmatpush1.xpose.msra.mxu0 %v2913
        %2915 = vmatprep.subr.mxu0 0.0
        %2916 = vmatpush1.xpose.msra.mxu0 0.0
        %2917 = vmatprep.subr.mxu0 0.0
        %2918 = vmatpush1.xpose.msra.mxu0 0.0
        %2919 = vmatprep.subr.mxu0 0.0
        %2920 = vmatpush1.xpose.msra.mxu0 0.0
        %2921 = vmatprep.subr.mxu0 0.0
        %2922 = vmatpush1.xpose.msra.mxu0 0.0
        %2923 = vmatprep.subr.mxu0 0.0
        %2924 = vmatpush1.xpose.msra.mxu0 0.0
        %2925 = vmatprep.subr.mxu0 0.0
        %2926 = vmatpush1.xpose.msra.mxu0 0.0
        %2927 = vmatprep.subr.mxu0 0.0
        %2928 = vmatpush1.xpose.msra.mxu0 0.0
        %2929 = vmatprep.subr.mxu0 0.0
        %2930 = vmatpush1.xpose.msra.mxu0 0.0
        %2931 = vmatprep.subr.mxu0 0.0
        %2932 = vmatpush1.xpose.msra.mxu0 0.0
        %2933 = vmatprep.subr.mxu0 0.0
        %2934 = vmatpush1.xpose.msra.mxu0 0.0
        %2935 = vmatprep.subr.mxu0 0.0
        %2936 = vmatpush1.xpose.msra.mxu0 0.0
        %2937 = vmatprep.subr.mxu0 0.0
        %2938 = vmatpush1.xpose.msra.mxu0 0.0
        %2939 = vmatprep.subr.mxu0 0.0
        %2940 = vmatpush1.xpose.msra.mxu0 0.0
        %2941 = vmatprep.subr.mxu0 0.0
        %2942 = vmatpush1.xpose.msra.mxu0 0.0
        %2943 = vmatprep.subr.mxu0 0.0
        %2944 = vmatpush1.xpose.msra.mxu0 0.0
        %2945 = vmatprep.subr.mxu0 0.0
        %2946 = vmatpush1.xpose.msra.mxu0 0.0
        %2947 = vmatprep.subr.mxu0 0.0
        %2948 = vmatpush1.xpose.msra.mxu0 0.0
        %2949 = vmatprep.subr.mxu0 0.0
        %2950 = vmatpush1.xpose.msra.mxu0 0.0
        %2951 = vmatprep.subr.mxu0 0.0
        %2952 = vmatpush1.xpose.msra.mxu0 0.0
        %2953 = vmatprep.subr.mxu0 0.0
        %2954 = vmatpush1.xpose.msra.mxu0 0.0
        %2955 = vmatprep.subr.mxu0 0.0
        %2956 = vmatpush1.xpose.msra.mxu0 0.0
        %2957 = vmatprep.subr.mxu0 0.0
        %2958 = vmatpush1.xpose.msra.mxu0 0.0
        %2959 = vmatprep.subr.mxu0 0.0
        %2960 = vmatpush1.xpose.msra.mxu0 0.0
        %2961 = vmatprep.subr.mxu0 0.0
        %2962 = vmatpush1.xpose.msra.mxu0 0.0
        %2963 = vmatprep.subr.mxu0 0.0
        %2964 = vmatpush1.xpose.msra.mxu0 0.0
        %2965 = vmatprep.subr.mxu0 0.0
        %2966 = vmatpush1.xpose.msra.mxu0 0.0
        %2967 = vmatprep.subr.mxu0 0.0
        %2968 = vmatpush1.xpose.msra.mxu0 0.0
        %2969 = vmatprep.subr.mxu0 0.0
        %2970 = vmatpush1.xpose.msra.mxu0 0.0
        %2971 = vmatprep.subr.mxu0 0.0
        %2972 = vmatpush1.xpose.msra.mxu0 0.0
        %2973 = vmatprep.subr.mxu0 0.0
        %2974 = vmatpush1.xpose.msra.mxu0 0.0
        %2975 = vmatprep.subr.mxu0 0.0
        %2976 = vmatpush1.xpose.msra.mxu0 0.0
        %2977 = vmatprep.mubr.f32.mxu0 0.0
        %v2978 = vand.u32 %v209, 4294901760
        %v2979 = vsub.f32 %v209, %v2978
        %v2980 = vand.u32 %v2979, 4294901760
        %v2981 = vsub.f32 %v2979, %v2980
        %v2982 = vand.u32 %v2981, 4294901760
        %2983 = vmatmul.mubr.f32.gmra.mrb[0].mxu0 %v2982
        %v2984 = vpop.f32.mrb[0].mxu0
        %v2985 = vadd.f32 0.0, %v2984
        %v2986 = vpop.f32.mrb[0].mxu0
        %2987 = vdwg.mxu0
        %2988 = vmatprep.subr.mxu0 0.0
        %v2989 = vand.u32 %v209, 4294901760
        %v2990 = vsub.f32 %v209, %v2989
        %v2991 = vand.u32 %v2990, 4294901760
        %v2992 = vsub.f32 %v2990, %v2991
        %v2993 = vand.u32 %v2992, 4294901760
        %2994 = vmatpush1.xpose.msra.mxu0 %v2993
        %2995 = vmatprep.subr.mxu0 0.0
        %2996 = vmatpush1.xpose.msra.mxu0 0.0
        %2997 = vmatprep.subr.mxu0 0.0
        %2998 = vmatpush1.xpose.msra.mxu0 0.0
        %2999 = vmatprep.subr.mxu0 0.0
        %3000 = vmatpush1.xpose.msra.mxu0 0.0
        %3001 = vmatprep.subr.mxu0 0.0
        %3002 = vmatpush1.xpose.msra.mxu0 0.0
        %3003 = vmatprep.subr.mxu0 0.0
        %3004 = vmatpush1.xpose.msra.mxu0 0.0
        %3005 = vmatprep.subr.mxu0 0.0
        %3006 = vmatpush1.xpose.msra.mxu0 0.0
        %3007 = vmatprep.subr.mxu0 0.0
        %3008 = vmatpush1.xpose.msra.mxu0 0.0
        %3009 = vmatprep.subr.mxu0 0.0
        %3010 = vmatpush1.xpose.msra.mxu0 0.0
        %3011 = vmatprep.subr.mxu0 0.0
        %3012 = vmatpush1.xpose.msra.mxu0 0.0
        %3013 = vmatprep.subr.mxu0 0.0
        %3014 = vmatpush1.xpose.msra.mxu0 0.0
        %3015 = vmatprep.subr.mxu0 0.0
        %3016 = vmatpush1.xpose.msra.mxu0 0.0
        %3017 = vmatprep.subr.mxu0 0.0
        %3018 = vmatpush1.xpose.msra.mxu0 0.0
        %3019 = vmatprep.subr.mxu0 0.0
        %3020 = vmatpush1.xpose.msra.mxu0 0.0
        %3021 = vmatprep.subr.mxu0 0.0
        %3022 = vmatpush1.xpose.msra.mxu0 0.0
        %3023 = vmatprep.subr.mxu0 0.0
        %3024 = vmatpush1.xpose.msra.mxu0 0.0
        %3025 = vmatprep.subr.mxu0 0.0
        %3026 = vmatpush1.xpose.msra.mxu0 0.0
        %3027 = vmatprep.subr.mxu0 0.0
        %3028 = vmatpush1.xpose.msra.mxu0 0.0
        %3029 = vmatprep.subr.mxu0 0.0
        %3030 = vmatpush1.xpose.msra.mxu0 0.0
        %3031 = vmatprep.subr.mxu0 0.0
        %3032 = vmatpush1.xpose.msra.mxu0 0.0
        %3033 = vmatprep.subr.mxu0 0.0
        %3034 = vmatpush1.xpose.msra.mxu0 0.0
        %3035 = vmatprep.subr.mxu0 0.0
        %3036 = vmatpush1.xpose.msra.mxu0 0.0
        %3037 = vmatprep.subr.mxu0 0.0
        %3038 = vmatpush1.xpose.msra.mxu0 0.0
        %3039 = vmatprep.subr.mxu0 0.0
        %3040 = vmatpush1.xpose.msra.mxu0 0.0
        %3041 = vmatprep.subr.mxu0 0.0
        %3042 = vmatpush1.xpose.msra.mxu0 0.0
        %3043 = vmatprep.subr.mxu0 0.0
        %3044 = vmatpush1.xpose.msra.mxu0 0.0
        %3045 = vmatprep.subr.mxu0 0.0
        %3046 = vmatpush1.xpose.msra.mxu0 0.0
        %3047 = vmatprep.subr.mxu0 0.0
        %3048 = vmatpush1.xpose.msra.mxu0 0.0
        %3049 = vmatprep.subr.mxu0 0.0
        %3050 = vmatpush1.xpose.msra.mxu0 0.0
        %3051 = vmatprep.subr.mxu0 0.0
        %3052 = vmatpush1.xpose.msra.mxu0 0.0
        %3053 = vmatprep.subr.mxu0 0.0
        %3054 = vmatpush1.xpose.msra.mxu0 0.0
        %3055 = vmatprep.subr.mxu0 0.0
        %3056 = vmatpush1.xpose.msra.mxu0 0.0
        %3057 = vmatprep.mubr.f32.mxu0 0.0
        %v3058 = vand.u32 %v209, 4294901760
        %3059 = vmatmul.mubr.f32.gmra.mrb[0].mxu0 %v3058
        %v3060 = vpop.f32.mrb[0].mxu0
        %v3061 = vadd.f32 %v2985, %v3060
        %v3062 = vpop.f32.mrb[0].mxu0
        %3063 = vdwg.mxu0
        %3064 = vmatprep.subr.mxu0 0.0
        %v3065 = vand.u32 %v209, 4294901760
        %v3066 = vsub.f32 %v209, %v3065
        %3067 = vmatpush1.xpose.msra.mxu0 %v3066
        %3068 = vmatprep.subr.mxu0 0.0
        %3069 = vmatpush1.xpose.msra.mxu0 0.0
        %3070 = vmatprep.subr.mxu0 0.0
        %3071 = vmatpush1.xpose.msra.mxu0 0.0
        %3072 = vmatprep.subr.mxu0 0.0
        %3073 = vmatpush1.xpose.msra.mxu0 0.0
        %3074 = vmatprep.subr.mxu0 0.0
        %3075 = vmatpush1.xpose.msra.mxu0 0.0
        %3076 = vmatprep.subr.mxu0 0.0
        %3077 = vmatpush1.xpose.msra.mxu0 0.0
        %3078 = vmatprep.subr.mxu0 0.0
        %3079 = vmatpush1.xpose.msra.mxu0 0.0
        %3080 = vmatprep.subr.mxu0 0.0
        %3081 = vmatpush1.xpose.msra.mxu0 0.0
        %3082 = vmatprep.subr.mxu0 0.0
        %3083 = vmatpush1.xpose.msra.mxu0 0.0
        %3084 = vmatprep.subr.mxu0 0.0
        %3085 = vmatpush1.xpose.msra.mxu0 0.0
        %3086 = vmatprep.subr.mxu0 0.0
        %3087 = vmatpush1.xpose.msra.mxu0 0.0
        %3088 = vmatprep.subr.mxu0 0.0
        %3089 = vmatpush1.xpose.msra.mxu0 0.0
        %3090 = vmatprep.subr.mxu0 0.0
        %3091 = vmatpush1.xpose.msra.mxu0 0.0
        %3092 = vmatprep.subr.mxu0 0.0
        %3093 = vmatpush1.xpose.msra.mxu0 0.0
        %3094 = vmatprep.subr.mxu0 0.0
        %3095 = vmatpush1.xpose.msra.mxu0 0.0
        %3096 = vmatprep.subr.mxu0 0.0
        %3097 = vmatpush1.xpose.msra.mxu0 0.0
        %3098 = vmatprep.subr.mxu0 0.0
        %3099 = vmatpush1.xpose.msra.mxu0 0.0
        %3100 = vmatprep.subr.mxu0 0.0
        %3101 = vmatpush1.xpose.msra.mxu0 0.0
        %3102 = vmatprep.subr.mxu0 0.0
        %3103 = vmatpush1.xpose.msra.mxu0 0.0
        %3104 = vmatprep.subr.mxu0 0.0
        %3105 = vmatpush1.xpose.msra.mxu0 0.0
        %3106 = vmatprep.subr.mxu0 0.0
        %3107 = vmatpush1.xpose.msra.mxu0 0.0
        %3108 = vmatprep.subr.mxu0 0.0
        %3109 = vmatpush1.xpose.msra.mxu0 0.0
        %3110 = vmatprep.subr.mxu0 0.0
        %3111 = vmatpush1.xpose.msra.mxu0 0.0
        %3112 = vmatprep.subr.mxu0 0.0
        %3113 = vmatpush1.xpose.msra.mxu0 0.0
        %3114 = vmatprep.subr.mxu0 0.0
        %3115 = vmatpush1.xpose.msra.mxu0 0.0
        %3116 = vmatprep.subr.mxu0 0.0
        %3117 = vmatpush1.xpose.msra.mxu0 0.0
        %3118 = vmatprep.subr.mxu0 0.0
        %3119 = vmatpush1.xpose.msra.mxu0 0.0
        %3120 = vmatprep.subr.mxu0 0.0
        %3121 = vmatpush1.xpose.msra.mxu0 0.0
        %3122 = vmatprep.subr.mxu0 0.0
        %3123 = vmatpush1.xpose.msra.mxu0 0.0
        %3124 = vmatprep.subr.mxu0 0.0
        %3125 = vmatpush1.xpose.msra.mxu0 0.0
        %3126 = vmatprep.subr.mxu0 0.0
        %3127 = vmatpush1.xpose.msra.mxu0 0.0
        %3128 = vmatprep.subr.mxu0 0.0
        %3129 = vmatpush1.xpose.msra.mxu0 0.0
        %3130 = vmatprep.mubr.f32.mxu0 0.0
        %v3131 = vand.u32 %v209, 4294901760
        %v3132 = vsub.f32 %v209, %v3131
        %3133 = vmatmul.mubr.f32.gmra.mrb[0].mxu0 %v3132
        %v3134 = vpop.f32.mrb[0].mxu0
        %v3135 = vadd.f32 %v3061, %v3134
        %v3136 = vpop.f32.mrb[0].mxu0
        %3137 = vdwg.mxu0
        %3138 = vmatprep.subr.mxu0 0.0
        %v3139 = vand.u32 %v209, 4294901760
        %3140 = vmatpush1.xpose.msra.mxu0 %v3139
        %3141 = vmatprep.subr.mxu0 0.0
        %3142 = vmatpush1.xpose.msra.mxu0 0.0
        %3143 = vmatprep.subr.mxu0 0.0
        %3144 = vmatpush1.xpose.msra.mxu0 0.0
        %3145 = vmatprep.subr.mxu0 0.0
        %3146 = vmatpush1.xpose.msra.mxu0 0.0
        %3147 = vmatprep.subr.mxu0 0.0
        %3148 = vmatpush1.xpose.msra.mxu0 0.0
        %3149 = vmatprep.subr.mxu0 0.0
        %3150 = vmatpush1.xpose.msra.mxu0 0.0
        %3151 = vmatprep.subr.mxu0 0.0
        %3152 = vmatpush1.xpose.msra.mxu0 0.0
        %3153 = vmatprep.subr.mxu0 0.0
        %3154 = vmatpush1.xpose.msra.mxu0 0.0
        %3155 = vmatprep.subr.mxu0 0.0
        %3156 = vmatpush1.xpose.msra.mxu0 0.0
        %3157 = vmatprep.subr.mxu0 0.0
        %3158 = vmatpush1.xpose.msra.mxu0 0.0
        %3159 = vmatprep.subr.mxu0 0.0
        %3160 = vmatpush1.xpose.msra.mxu0 0.0
        %3161 = vmatprep.subr.mxu0 0.0
        %3162 = vmatpush1.xpose.msra.mxu0 0.0
        %3163 = vmatprep.subr.mxu0 0.0
        %3164 = vmatpush1.xpose.msra.mxu0 0.0
        %3165 = vmatprep.subr.mxu0 0.0
        %3166 = vmatpush1.xpose.msra.mxu0 0.0
        %3167 = vmatprep.subr.mxu0 0.0
        %3168 = vmatpush1.xpose.msra.mxu0 0.0
        %3169 = vmatprep.subr.mxu0 0.0
        %3170 = vmatpush1.xpose.msra.mxu0 0.0
        %3171 = vmatprep.subr.mxu0 0.0
        %3172 = vmatpush1.xpose.msra.mxu0 0.0
        %3173 = vmatprep.subr.mxu0 0.0
        %3174 = vmatpush1.xpose.msra.mxu0 0.0
        %3175 = vmatprep.subr.mxu0 0.0
        %3176 = vmatpush1.xpose.msra.mxu0 0.0
        %3177 = vmatprep.subr.mxu0 0.0
        %3178 = vmatpush1.xpose.msra.mxu0 0.0
        %3179 = vmatprep.subr.mxu0 0.0
        %3180 = vmatpush1.xpose.msra.mxu0 0.0
        %3181 = vmatprep.subr.mxu0 0.0
        %3182 = vmatpush1.xpose.msra.mxu0 0.0
        %3183 = vmatprep.subr.mxu0 0.0
        %3184 = vmatpush1.xpose.msra.mxu0 0.0
        %3185 = vmatprep.subr.mxu0 0.0
        %3186 = vmatpush1.xpose.msra.mxu0 0.0
        %3187 = vmatprep.subr.mxu0 0.0
        %3188 = vmatpush1.xpose.msra.mxu0 0.0
        %3189 = vmatprep.subr.mxu0 0.0
        %3190 = vmatpush1.xpose.msra.mxu0 0.0
        %3191 = vmatprep.subr.mxu0 0.0
        %3192 = vmatpush1.xpose.msra.mxu0 0.0
        %3193 = vmatprep.subr.mxu0 0.0
        %3194 = vmatpush1.xpose.msra.mxu0 0.0
        %3195 = vmatprep.subr.mxu0 0.0
        %3196 = vmatpush1.xpose.msra.mxu0 0.0
        %3197 = vmatprep.subr.mxu0 0.0
        %3198 = vmatpush1.xpose.msra.mxu0 0.0
        %3199 = vmatprep.subr.mxu0 0.0
        %3200 = vmatpush1.xpose.msra.mxu0 0.0
        %3201 = vmatprep.subr.mxu0 0.0
        %3202 = vmatpush1.xpose.msra.mxu0 0.0
        %3203 = vmatprep.mubr.f32.mxu0 0.0
        %v3204 = vand.u32 %v209, 4294901760
        %v3205 = vsub.f32 %v209, %v3204
        %v3206 = vand.u32 %v3205, 4294901760
        %3207 = vmatmul.mubr.f32.gmra.mrb[0].mxu0 %v3206
        %v3208 = vpop.f32.mrb[0].mxu0
        %v3209 = vadd.f32 %v3135, %v3208
        %v3210 = vpop.f32.mrb[0].mxu0
        %3211 = vdwg.mxu0
        %3212 = vmatprep.subr.mxu0 0.0
        %v3213 = vand.u32 %v209, 4294901760
        %v3214 = vsub.f32 %v209, %v3213
        %v3215 = vand.u32 %v3214, 4294901760
        %3216 = vmatpush1.xpose.msra.mxu0 %v3215
        %3217 = vmatprep.subr.mxu0 0.0
        %3218 = vmatpush1.xpose.msra.mxu0 0.0
        %3219 = vmatprep.subr.mxu0 0.0
        %3220 = vmatpush1.xpose.msra.mxu0 0.0
        %3221 = vmatprep.subr.mxu0 0.0
        %3222 = vmatpush1.xpose.msra.mxu0 0.0
        %3223 = vmatprep.subr.mxu0 0.0
        %3224 = vmatpush1.xpose.msra.mxu0 0.0
        %3225 = vmatprep.subr.mxu0 0.0
        %3226 = vmatpush1.xpose.msra.mxu0 0.0
        %3227 = vmatprep.subr.mxu0 0.0
        %3228 = vmatpush1.xpose.msra.mxu0 0.0
        %3229 = vmatprep.subr.mxu0 0.0
        %3230 = vmatpush1.xpose.msra.mxu0 0.0
        %3231 = vmatprep.subr.mxu0 0.0
        %3232 = vmatpush1.xpose.msra.mxu0 0.0
        %3233 = vmatprep.subr.mxu0 0.0
        %3234 = vmatpush1.xpose.msra.mxu0 0.0
        %3235 = vmatprep.subr.mxu0 0.0
        %3236 = vmatpush1.xpose.msra.mxu0 0.0
        %3237 = vmatprep.subr.mxu0 0.0
        %3238 = vmatpush1.xpose.msra.mxu0 0.0
        %3239 = vmatprep.subr.mxu0 0.0
        %3240 = vmatpush1.xpose.msra.mxu0 0.0
        %3241 = vmatprep.subr.mxu0 0.0
        %3242 = vmatpush1.xpose.msra.mxu0 0.0
        %3243 = vmatprep.subr.mxu0 0.0
        %3244 = vmatpush1.xpose.msra.mxu0 0.0
        %3245 = vmatprep.subr.mxu0 0.0
        %3246 = vmatpush1.xpose.msra.mxu0 0.0
        %3247 = vmatprep.subr.mxu0 0.0
        %3248 = vmatpush1.xpose.msra.mxu0 0.0
        %3249 = vmatprep.subr.mxu0 0.0
        %3250 = vmatpush1.xpose.msra.mxu0 0.0
        %3251 = vmatprep.subr.mxu0 0.0
        %3252 = vmatpush1.xpose.msra.mxu0 0.0
        %3253 = vmatprep.subr.mxu0 0.0
        %3254 = vmatpush1.xpose.msra.mxu0 0.0
        %3255 = vmatprep.subr.mxu0 0.0
        %3256 = vmatpush1.xpose.msra.mxu0 0.0
        %3257 = vmatprep.subr.mxu0 0.0
        %3258 = vmatpush1.xpose.msra.mxu0 0.0
        %3259 = vmatprep.subr.mxu0 0.0
        %3260 = vmatpush1.xpose.msra.mxu0 0.0
        %3261 = vmatprep.subr.mxu0 0.0
        %3262 = vmatpush1.xpose.msra.mxu0 0.0
        %3263 = vmatprep.subr.mxu0 0.0
        %3264 = vmatpush1.xpose.msra.mxu0 0.0
        %3265 = vmatprep.subr.mxu0 0.0
        %3266 = vmatpush1.xpose.msra.mxu0 0.0
        %3267 = vmatprep.subr.mxu0 0.0
        %3268 = vmatpush1.xpose.msra.mxu0 0.0
        %3269 = vmatprep.subr.mxu0 0.0
        %3270 = vmatpush1.xpose.msra.mxu0 0.0
        %3271 = vmatprep.subr.mxu0 0.0
        %3272 = vmatpush1.xpose.msra.mxu0 0.0
        %3273 = vmatprep.subr.mxu0 0.0
        %3274 = vmatpush1.xpose.msra.mxu0 0.0
        %3275 = vmatprep.subr.mxu0 0.0
        %3276 = vmatpush1.xpose.msra.mxu0 0.0
        %3277 = vmatprep.subr.mxu0 0.0
        %3278 = vmatpush1.xpose.msra.mxu0 0.0
        %3279 = vmatprep.mubr.f32.mxu0 0.0
        %v3280 = vand.u32 %v209, 4294901760
        %3281 = vmatmul.mubr.f32.gmra.mrb[0].mxu0 %v3280
        %v3282 = vpop.f32.mrb[0].mxu0
        %v3283 = vadd.f32 %v3209, %v3282
        %v3284 = vpop.f32.mrb[0].mxu0
        %3285 = vdwg.mxu0
        %3286 = vmatprep.subr.mxu0 0.0
        %v3287 = vand.u32 %v209, 4294901760
        %3288 = vmatpush1.xpose.msra.mxu0 %v3287
        %3289 = vmatprep.subr.mxu0 0.0
        %3290 = vmatpush1.xpose.msra.mxu0 0.0
        %3291 = vmatprep.subr.mxu0 0.0
        %3292 = vmatpush1.xpose.msra.mxu0 0.0
        %3293 = vmatprep.subr.mxu0 0.0
        %3294 = vmatpush1.xpose.msra.mxu0 0.0
        %3295 = vmatprep.subr.mxu0 0.0
        %3296 = vmatpush1.xpose.msra.mxu0 0.0
        %3297 = vmatprep.subr.mxu0 0.0
        %3298 = vmatpush1.xpose.msra.mxu0 0.0
        %3299 = vmatprep.subr.mxu0 0.0
        %3300 = vmatpush1.xpose.msra.mxu0 0.0
        %3301 = vmatprep.subr.mxu0 0.0
        %3302 = vmatpush1.xpose.msra.mxu0 0.0
        %3303 = vmatprep.subr.mxu0 0.0
        %3304 = vmatpush1.xpose.msra.mxu0 0.0
        %3305 = vmatprep.subr.mxu0 0.0
        %3306 = vmatpush1.xpose.msra.mxu0 0.0
        %3307 = vmatprep.subr.mxu0 0.0
        %3308 = vmatpush1.xpose.msra.mxu0 0.0
        %3309 = vmatprep.subr.mxu0 0.0
        %3310 = vmatpush1.xpose.msra.mxu0 0.0
        %3311 = vmatprep.subr.mxu0 0.0
        %3312 = vmatpush1.xpose.msra.mxu0 0.0
        %3313 = vmatprep.subr.mxu0 0.0
        %3314 = vmatpush1.xpose.msra.mxu0 0.0
        %3315 = vmatprep.subr.mxu0 0.0
        %3316 = vmatpush1.xpose.msra.mxu0 0.0
        %3317 = vmatprep.subr.mxu0 0.0
        %3318 = vmatpush1.xpose.msra.mxu0 0.0
        %3319 = vmatprep.subr.mxu0 0.0
        %3320 = vmatpush1.xpose.msra.mxu0 0.0
        %3321 = vmatprep.subr.mxu0 0.0
        %3322 = vmatpush1.xpose.msra.mxu0 0.0
        %3323 = vmatprep.subr.mxu0 0.0
        %3324 = vmatpush1.xpose.msra.mxu0 0.0
        %3325 = vmatprep.subr.mxu0 0.0
        %3326 = vmatpush1.xpose.msra.mxu0 0.0
        %3327 = vmatprep.subr.mxu0 0.0
        %3328 = vmatpush1.xpose.msra.mxu0 0.0
        %3329 = vmatprep.subr.mxu0 0.0
        %3330 = vmatpush1.xpose.msra.mxu0 0.0
        %3331 = vmatprep.subr.mxu0 0.0
        %3332 = vmatpush1.xpose.msra.mxu0 0.0
        %3333 = vmatprep.subr.mxu0 0.0
        %3334 = vmatpush1.xpose.msra.mxu0 0.0
        %3335 = vmatprep.subr.mxu0 0.0
        %3336 = vmatpush1.xpose.msra.mxu0 0.0
        %3337 = vmatprep.subr.mxu0 0.0
        %3338 = vmatpush1.xpose.msra.mxu0 0.0
        %3339 = vmatprep.subr.mxu0 0.0
        %3340 = vmatpush1.xpose.msra.mxu0 0.0
        %3341 = vmatprep.subr.mxu0 0.0
        %3342 = vmatpush1.xpose.msra.mxu0 0.0
        %3343 = vmatprep.subr.mxu0 0.0
        %3344 = vmatpush1.xpose.msra.mxu0 0.0
        %3345 = vmatprep.subr.mxu0 0.0
        %3346 = vmatpush1.xpose.msra.mxu0 0.0
        %3347 = vmatprep.subr.mxu0 0.0
        %3348 = vmatpush1.xpose.msra.mxu0 0.0
        %3349 = vmatprep.subr.mxu0 0.0
        %3350 = vmatpush1.xpose.msra.mxu0 0.0
        %3351 = vmatprep.mubr.f32.mxu0 0.0
        %v3352 = vand.u32 %v209, 4294901760
        %3353 = vmatmul.mubr.f32.gmra.mrb[0].mxu0 %v3352
        %v3354 = vpop.f32.mrb[0].mxu0
        %v3355 = vadd.f32 %v3283, %v3354
        %v3356 = vpop.f32.mrb[0].mxu0
        %3357 = vdwg.mxu0
        %3358 = vmatprep.subr.mxu0 0.0
        %v3359 = vand.u32 %v210, 4294901760
        %3360 = vmatpush1.xpose.msra.mxu0 %v3359
        %3361 = vmatprep.subr.mxu0 0.0
        %3362 = vmatpush1.xpose.msra.mxu0 0.0
        %3363 = vmatprep.subr.mxu0 0.0
        %3364 = vmatpush1.xpose.msra.mxu0 0.0
        %3365 = vmatprep.subr.mxu0 0.0
        %3366 = vmatpush1.xpose.msra.mxu0 0.0
        %3367 = vmatprep.subr.mxu0 0.0
        %3368 = vmatpush1.xpose.msra.mxu0 0.0
        %3369 = vmatprep.subr.mxu0 0.0
        %3370 = vmatpush1.xpose.msra.mxu0 0.0
        %3371 = vmatprep.subr.mxu0 0.0
        %3372 = vmatpush1.xpose.msra.mxu0 0.0
        %3373 = vmatprep.subr.mxu0 0.0
        %3374 = vmatpush1.xpose.msra.mxu0 0.0
        %3375 = vmatprep.subr.mxu0 0.0
        %3376 = vmatpush1.xpose.msra.mxu0 0.0
        %3377 = vmatprep.subr.mxu0 0.0
        %3378 = vmatpush1.xpose.msra.mxu0 0.0
        %3379 = vmatprep.subr.mxu0 0.0
        %3380 = vmatpush1.xpose.msra.mxu0 0.0
        %3381 = vmatprep.subr.mxu0 0.0
        %3382 = vmatpush1.xpose.msra.mxu0 0.0
        %3383 = vmatprep.subr.mxu0 0.0
        %3384 = vmatpush1.xpose.msra.mxu0 0.0
        %3385 = vmatprep.subr.mxu0 0.0
        %3386 = vmatpush1.xpose.msra.mxu0 0.0
        %3387 = vmatprep.subr.mxu0 0.0
        %3388 = vmatpush1.xpose.msra.mxu0 0.0
        %3389 = vmatprep.subr.mxu0 0.0
        %3390 = vmatpush1.xpose.msra.mxu0 0.0
        %3391 = vmatprep.subr.mxu0 0.0
        %3392 = vmatpush1.xpose.msra.mxu0 0.0
        %3393 = vmatprep.subr.mxu0 0.0
        %3394 = vmatpush1.xpose.msra.mxu0 0.0
        %3395 = vmatprep.subr.mxu0 0.0
        %3396 = vmatpush1.xpose.msra.mxu0 0.0
        %3397 = vmatprep.subr.mxu0 0.0
        %3398 = vmatpush1.xpose.msra.mxu0 0.0
        %3399 = vmatprep.subr.mxu0 0.0
        %3400 = vmatpush1.xpose.msra.mxu0 0.0
        %3401 = vmatprep.subr.mxu0 0.0
        %3402 = vmatpush1.xpose.msra.mxu0 0.0
        %3403 = vmatprep.subr.mxu0 0.0
        %3404 = vmatpush1.xpose.msra.mxu0 0.0
        %3405 = vmatprep.subr.mxu0 0.0
        %3406 = vmatpush1.xpose.msra.mxu0 0.0
        %3407 = vmatprep.subr.mxu0 0.0
        %3408 = vmatpush1.xpose.msra.mxu0 0.0
        %3409 = vmatprep.subr.mxu0 0.0
        %3410 = vmatpush1.xpose.msra.mxu0 0.0
        %3411 = vmatprep.subr.mxu0 0.0
        %3412 = vmatpush1.xpose.msra.mxu0 0.0
        %3413 = vmatprep.subr.mxu0 0.0
        %3414 = vmatpush1.xpose.msra.mxu0 0.0
        %3415 = vmatprep.subr.mxu0 0.0
        %3416 = vmatpush1.xpose.msra.mxu0 0.0
        %3417 = vmatprep.subr.mxu0 0.0
        %3418 = vmatpush1.xpose.msra.mxu0 0.0
        %3419 = vmatprep.subr.mxu0 0.0
        %3420 = vmatpush1.xpose.msra.mxu0 0.0
        %3421 = vmatprep.subr.mxu0 0.0
        %3422 = vmatpush1.xpose.msra.mxu0 0.0
        %3423 = vmatprep.mubr.f32.mxu0 0.0
        %v3424 = vand.u32 %v210, 4294901760
        %v3425 = vsub.f32 %v210, %v3424
        %v3426 = vand.u32 %v3425, 4294901760
        %v3427 = vsub.f32 %v3425, %v3426
        %v3428 = vand.u32 %v3427, 4294901760
        %3429 = vmatmul.mubr.f32.gmra.mrb[0].mxu0 %v3428
        %v3430 = vpop.f32.mrb[0].mxu0
        %v3431 = vadd.f32 0.0, %v3430
        %v3432 = vpop.f32.mrb[0].mxu0
        %3433 = vdwg.mxu0
        %3434 = vmatprep.subr.mxu0 0.0
        %v3435 = vand.u32 %v210, 4294901760
        %v3436 = vsub.f32 %v210, %v3435
        %v3437 = vand.u32 %v3436, 4294901760
        %v3438 = vsub.f32 %v3436, %v3437
        %v3439 = vand.u32 %v3438, 4294901760
        %3440 = vmatpush1.xpose.msra.mxu0 %v3439
        %3441 = vmatprep.subr.mxu0 0.0
        %3442 = vmatpush1.xpose.msra.mxu0 0.0
        %3443 = vmatprep.subr.mxu0 0.0
        %3444 = vmatpush1.xpose.msra.mxu0 0.0
        %3445 = vmatprep.subr.mxu0 0.0
        %3446 = vmatpush1.xpose.msra.mxu0 0.0
        %3447 = vmatprep.subr.mxu0 0.0
        %3448 = vmatpush1.xpose.msra.mxu0 0.0
        %3449 = vmatprep.subr.mxu0 0.0
        %3450 = vmatpush1.xpose.msra.mxu0 0.0
        %3451 = vmatprep.subr.mxu0 0.0
        %3452 = vmatpush1.xpose.msra.mxu0 0.0
        %3453 = vmatprep.subr.mxu0 0.0
        %3454 = vmatpush1.xpose.msra.mxu0 0.0
        %3455 = vmatprep.subr.mxu0 0.0
        %3456 = vmatpush1.xpose.msra.mxu0 0.0
        %3457 = vmatprep.subr.mxu0 0.0
        %3458 = vmatpush1.xpose.msra.mxu0 0.0
        %3459 = vmatprep.subr.mxu0 0.0
        %3460 = vmatpush1.xpose.msra.mxu0 0.0
        %3461 = vmatprep.subr.mxu0 0.0
        %3462 = vmatpush1.xpose.msra.mxu0 0.0
        %3463 = vmatprep.subr.mxu0 0.0
        %3464 = vmatpush1.xpose.msra.mxu0 0.0
        %3465 = vmatprep.subr.mxu0 0.0
        %3466 = vmatpush1.xpose.msra.mxu0 0.0
        %3467 = vmatprep.subr.mxu0 0.0
        %3468 = vmatpush1.xpose.msra.mxu0 0.0
        %3469 = vmatprep.subr.mxu0 0.0
        %3470 = vmatpush1.xpose.msra.mxu0 0.0
        %3471 = vmatprep.subr.mxu0 0.0
        %3472 = vmatpush1.xpose.msra.mxu0 0.0
        %3473 = vmatprep.subr.mxu0 0.0
        %3474 = vmatpush1.xpose.msra.mxu0 0.0
        %3475 = vmatprep.subr.mxu0 0.0
        %3476 = vmatpush1.xpose.msra.mxu0 0.0
        %3477 = vmatprep.subr.mxu0 0.0
        %3478 = vmatpush1.xpose.msra.mxu0 0.0
        %3479 = vmatprep.subr.mxu0 0.0
        %3480 = vmatpush1.xpose.msra.mxu0 0.0
        %3481 = vmatprep.subr.mxu0 0.0
        %3482 = vmatpush1.xpose.msra.mxu0 0.0
        %3483 = vmatprep.subr.mxu0 0.0
        %3484 = vmatpush1.xpose.msra.mxu0 0.0
        %3485 = vmatprep.subr.mxu0 0.0
        %3486 = vmatpush1.xpose.msra.mxu0 0.0
        %3487 = vmatprep.subr.mxu0 0.0
        %3488 = vmatpush1.xpose.msra.mxu0 0.0
        %3489 = vmatprep.subr.mxu0 0.0
        %3490 = vmatpush1.xpose.msra.mxu0 0.0
        %3491 = vmatprep.subr.mxu0 0.0
        %3492 = vmatpush1.xpose.msra.mxu0 0.0
        %3493 = vmatprep.subr.mxu0 0.0
        %3494 = vmatpush1.xpose.msra.mxu0 0.0
        %3495 = vmatprep.subr.mxu0 0.0
        %3496 = vmatpush1.xpose.msra.mxu0 0.0
        %3497 = vmatprep.subr.mxu0 0.0
        %3498 = vmatpush1.xpose.msra.mxu0 0.0
        %3499 = vmatprep.subr.mxu0 0.0
        %3500 = vmatpush1.xpose.msra.mxu0 0.0
        %3501 = vmatprep.subr.mxu0 0.0
        %3502 = vmatpush1.xpose.msra.mxu0 0.0
        %3503 = vmatprep.mubr.f32.mxu0 0.0
        %v3504 = vand.u32 %v210, 4294901760
        %3505 = vmatmul.mubr.f32.gmra.mrb[0].mxu0 %v3504
        %v3506 = vpop.f32.mrb[0].mxu0
        %v3507 = vadd.f32 %v3431, %v3506
        %v3508 = vpop.f32.mrb[0].mxu0
        %3509 = vdwg.mxu0
        %3510 = vmatprep.subr.mxu0 0.0
        %v3511 = vand.u32 %v210, 4294901760
        %v3512 = vsub.f32 %v210, %v3511
        %3513 = vmatpush1.xpose.msra.mxu0 %v3512
        %3514 = vmatprep.subr.mxu0 0.0
        %3515 = vmatpush1.xpose.msra.mxu0 0.0
        %3516 = vmatprep.subr.mxu0 0.0
        %3517 = vmatpush1.xpose.msra.mxu0 0.0
        %3518 = vmatprep.subr.mxu0 0.0
        %3519 = vmatpush1.xpose.msra.mxu0 0.0
        %3520 = vmatprep.subr.mxu0 0.0
        %3521 = vmatpush1.xpose.msra.mxu0 0.0
        %3522 = vmatprep.subr.mxu0 0.0
        %3523 = vmatpush1.xpose.msra.mxu0 0.0
        %3524 = vmatprep.subr.mxu0 0.0
        %3525 = vmatpush1.xpose.msra.mxu0 0.0
        %3526 = vmatprep.subr.mxu0 0.0
        %3527 = vmatpush1.xpose.msra.mxu0 0.0
        %3528 = vmatprep.subr.mxu0 0.0
        %3529 = vmatpush1.xpose.msra.mxu0 0.0
        %3530 = vmatprep.subr.mxu0 0.0
        %3531 = vmatpush1.xpose.msra.mxu0 0.0
        %3532 = vmatprep.subr.mxu0 0.0
        %3533 = vmatpush1.xpose.msra.mxu0 0.0
        %3534 = vmatprep.subr.mxu0 0.0
        %3535 = vmatpush1.xpose.msra.mxu0 0.0
        %3536 = vmatprep.subr.mxu0 0.0
        %3537 = vmatpush1.xpose.msra.mxu0 0.0
        %3538 = vmatprep.subr.mxu0 0.0
        %3539 = vmatpush1.xpose.msra.mxu0 0.0
        %3540 = vmatprep.subr.mxu0 0.0
        %3541 = vmatpush1.xpose.msra.mxu0 0.0
        %3542 = vmatprep.subr.mxu0 0.0
        %3543 = vmatpush1.xpose.msra.mxu0 0.0
        %3544 = vmatprep.subr.mxu0 0.0
        %3545 = vmatpush1.xpose.msra.mxu0 0.0
        %3546 = vmatprep.subr.mxu0 0.0
        %3547 = vmatpush1.xpose.msra.mxu0 0.0
        %3548 = vmatprep.subr.mxu0 0.0
        %3549 = vmatpush1.xpose.msra.mxu0 0.0
        %3550 = vmatprep.subr.mxu0 0.0
        %3551 = vmatpush1.xpose.msra.mxu0 0.0
        %3552 = vmatprep.subr.mxu0 0.0
        %3553 = vmatpush1.xpose.msra.mxu0 0.0
        %3554 = vmatprep.subr.mxu0 0.0
        %3555 = vmatpush1.xpose.msra.mxu0 0.0
        %3556 = vmatprep.subr.mxu0 0.0
        %3557 = vmatpush1.xpose.msra.mxu0 0.0
        %3558 = vmatprep.subr.mxu0 0.0
        %3559 = vmatpush1.xpose.msra.mxu0 0.0
        %3560 = vmatprep.subr.mxu0 0.0
        %3561 = vmatpush1.xpose.msra.mxu0 0.0
        %3562 = vmatprep.subr.mxu0 0.0
        %3563 = vmatpush1.xpose.msra.mxu0 0.0
        %3564 = vmatprep.subr.mxu0 0.0
        %3565 = vmatpush1.xpose.msra.mxu0 0.0
        %3566 = vmatprep.subr.mxu0 0.0
        %3567 = vmatpush1.xpose.msra.mxu0 0.0
        %3568 = vmatprep.subr.mxu0 0.0
        %3569 = vmatpush1.xpose.msra.mxu0 0.0
        %3570 = vmatprep.subr.mxu0 0.0
        %3571 = vmatpush1.xpose.msra.mxu0 0.0
        %3572 = vmatprep.subr.mxu0 0.0
        %3573 = vmatpush1.xpose.msra.mxu0 0.0
        %3574 = vmatprep.subr.mxu0 0.0
        %3575 = vmatpush1.xpose.msra.mxu0 0.0
        %3576 = vmatprep.mubr.f32.mxu0 0.0
        %v3577 = vand.u32 %v210, 4294901760
        %v3578 = vsub.f32 %v210, %v3577
        %3579 = vmatmul.mubr.f32.gmra.mrb[0].mxu0 %v3578
        %v3580 = vpop.f32.mrb[0].mxu0
        %v3581 = vadd.f32 %v3507, %v3580
        %v3582 = vpop.f32.mrb[0].mxu0
        %3583 = vdwg.mxu0
        %3584 = vmatprep.subr.mxu0 0.0
        %v3585 = vand.u32 %v210, 4294901760
        %3586 = vmatpush1.xpose.msra.mxu0 %v3585
        %3587 = vmatprep.subr.mxu0 0.0
        %3588 = vmatpush1.xpose.msra.mxu0 0.0
        %3589 = vmatprep.subr.mxu0 0.0
        %3590 = vmatpush1.xpose.msra.mxu0 0.0
        %3591 = vmatprep.subr.mxu0 0.0
        %3592 = vmatpush1.xpose.msra.mxu0 0.0
        %3593 = vmatprep.subr.mxu0 0.0
        %3594 = vmatpush1.xpose.msra.mxu0 0.0
        %3595 = vmatprep.subr.mxu0 0.0
        %3596 = vmatpush1.xpose.msra.mxu0 0.0
        %3597 = vmatprep.subr.mxu0 0.0
        %3598 = vmatpush1.xpose.msra.mxu0 0.0
        %3599 = vmatprep.subr.mxu0 0.0
        %3600 = vmatpush1.xpose.msra.mxu0 0.0
        %3601 = vmatprep.subr.mxu0 0.0
        %3602 = vmatpush1.xpose.msra.mxu0 0.0
        %3603 = vmatprep.subr.mxu0 0.0
        %3604 = vmatpush1.xpose.msra.mxu0 0.0
        %3605 = vmatprep.subr.mxu0 0.0
        %3606 = vmatpush1.xpose.msra.mxu0 0.0
        %3607 = vmatprep.subr.mxu0 0.0
        %3608 = vmatpush1.xpose.msra.mxu0 0.0
        %3609 = vmatprep.subr.mxu0 0.0
        %3610 = vmatpush1.xpose.msra.mxu0 0.0
        %3611 = vmatprep.subr.mxu0 0.0
        %3612 = vmatpush1.xpose.msra.mxu0 0.0
        %3613 = vmatprep.subr.mxu0 0.0
        %3614 = vmatpush1.xpose.msra.mxu0 0.0
        %3615 = vmatprep.subr.mxu0 0.0
        %3616 = vmatpush1.xpose.msra.mxu0 0.0
        %3617 = vmatprep.subr.mxu0 0.0
        %3618 = vmatpush1.xpose.msra.mxu0 0.0
        %3619 = vmatprep.subr.mxu0 0.0
        %3620 = vmatpush1.xpose.msra.mxu0 0.0
        %3621 = vmatprep.subr.mxu0 0.0
        %3622 = vmatpush1.xpose.msra.mxu0 0.0
        %3623 = vmatprep.subr.mxu0 0.0
        %3624 = vmatpush1.xpose.msra.mxu0 0.0
        %3625 = vmatprep.subr.mxu0 0.0
        %3626 = vmatpush1.xpose.msra.mxu0 0.0
        %3627 = vmatprep.subr.mxu0 0.0
        %3628 = vmatpush1.xpose.msra.mxu0 0.0
        %3629 = vmatprep.subr.mxu0 0.0
        %3630 = vmatpush1.xpose.msra.mxu0 0.0
        %3631 = vmatprep.subr.mxu0 0.0
        %3632 = vmatpush1.xpose.msra.mxu0 0.0
        %3633 = vmatprep.subr.mxu0 0.0
        %3634 = vmatpush1.xpose.msra.mxu0 0.0
        %3635 = vmatprep.subr.mxu0 0.0
        %3636 = vmatpush1.xpose.msra.mxu0 0.0
        %3637 = vmatprep.subr.mxu0 0.0
        %3638 = vmatpush1.xpose.msra.mxu0 0.0
        %3639 = vmatprep.subr.mxu0 0.0
        %3640 = vmatpush1.xpose.msra.mxu0 0.0
        %3641 = vmatprep.subr.mxu0 0.0
        %3642 = vmatpush1.xpose.msra.mxu0 0.0
        %3643 = vmatprep.subr.mxu0 0.0
        %3644 = vmatpush1.xpose.msra.mxu0 0.0
        %3645 = vmatprep.subr.mxu0 0.0
        %3646 = vmatpush1.xpose.msra.mxu0 0.0
        %3647 = vmatprep.subr.mxu0 0.0
        %3648 = vmatpush1.xpose.msra.mxu0 0.0
        %3649 = vmatprep.mubr.f32.mxu0 0.0
        %v3650 = vand.u32 %v210, 4294901760
        %v3651 = vsub.f32 %v210, %v3650
        %v3652 = vand.u32 %v3651, 4294901760
        %3653 = vmatmul.mubr.f32.gmra.mrb[0].mxu0 %v3652
        %v3654 = vpop.f32.mrb[0].mxu0
        %v3655 = vadd.f32 %v3581, %v3654
        %v3656 = vpop.f32.mrb[0].mxu0
        %3657 = vdwg.mxu0
        %3658 = vmatprep.subr.mxu0 0.0
        %v3659 = vand.u32 %v210, 4294901760
        %v3660 = vsub.f32 %v210, %v3659
        %v3661 = vand.u32 %v3660, 4294901760
        %3662 = vmatpush1.xpose.msra.mxu0 %v3661
        %3663 = vmatprep.subr.mxu0 0.0
        %3664 = vmatpush1.xpose.msra.mxu0 0.0
        %3665 = vmatprep.subr.mxu0 0.0
        %3666 = vmatpush1.xpose.msra.mxu0 0.0
        %3667 = vmatprep.subr.mxu0 0.0
        %3668 = vmatpush1.xpose.msra.mxu0 0.0
        %3669 = vmatprep.subr.mxu0 0.0
        %3670 = vmatpush1.xpose.msra.mxu0 0.0
        %3671 = vmatprep.subr.mxu0 0.0
        %3672 = vmatpush1.xpose.msra.mxu0 0.0
        %3673 = vmatprep.subr.mxu0 0.0
        %3674 = vmatpush1.xpose.msra.mxu0 0.0
        %3675 = vmatprep.subr.mxu0 0.0
        %3676 = vmatpush1.xpose.msra.mxu0 0.0
        %3677 = vmatprep.subr.mxu0 0.0
        %3678 = vmatpush1.xpose.msra.mxu0 0.0
        %3679 = vmatprep.subr.mxu0 0.0
        %3680 = vmatpush1.xpose.msra.mxu0 0.0
        %3681 = vmatprep.subr.mxu0 0.0
        %3682 = vmatpush1.xpose.msra.mxu0 0.0
        %3683 = vmatprep.subr.mxu0 0.0
        %3684 = vmatpush1.xpose.msra.mxu0 0.0
        %3685 = vmatprep.subr.mxu0 0.0
        %3686 = vmatpush1.xpose.msra.mxu0 0.0
        %3687 = vmatprep.subr.mxu0 0.0
        %3688 = vmatpush1.xpose.msra.mxu0 0.0
        %3689 = vmatprep.subr.mxu0 0.0
        %3690 = vmatpush1.xpose.msra.mxu0 0.0
        %3691 = vmatprep.subr.mxu0 0.0
        %3692 = vmatpush1.xpose.msra.mxu0 0.0
        %3693 = vmatprep.subr.mxu0 0.0
        %3694 = vmatpush1.xpose.msra.mxu0 0.0
        %3695 = vmatprep.subr.mxu0 0.0
        %3696 = vmatpush1.xpose.msra.mxu0 0.0
        %3697 = vmatprep.subr.mxu0 0.0
        %3698 = vmatpush1.xpose.msra.mxu0 0.0
        %3699 = vmatprep.subr.mxu0 0.0
        %3700 = vmatpush1.xpose.msra.mxu0 0.0
        %3701 = vmatprep.subr.mxu0 0.0
        %3702 = vmatpush1.xpose.msra.mxu0 0.0
        %3703 = vmatprep.subr.mxu0 0.0
        %3704 = vmatpush1.xpose.msra.mxu0 0.0
        %3705 = vmatprep.subr.mxu0 0.0
        %3706 = vmatpush1.xpose.msra.mxu0 0.0
        %3707 = vmatprep.subr.mxu0 0.0
        %3708 = vmatpush1.xpose.msra.mxu0 0.0
        %3709 = vmatprep.subr.mxu0 0.0
        %3710 = vmatpush1.xpose.msra.mxu0 0.0
        %3711 = vmatprep.subr.mxu0 0.0
        %3712 = vmatpush1.xpose.msra.mxu0 0.0
        %3713 = vmatprep.subr.mxu0 0.0
        %3714 = vmatpush1.xpose.msra.mxu0 0.0
        %3715 = vmatprep.subr.mxu0 0.0
        %3716 = vmatpush1.xpose.msra.mxu0 0.0
        %3717 = vmatprep.subr.mxu0 0.0
        %3718 = vmatpush1.xpose.msra.mxu0 0.0
        %3719 = vmatprep.subr.mxu0 0.0
        %3720 = vmatpush1.xpose.msra.mxu0 0.0
        %3721 = vmatprep.subr.mxu0 0.0
        %3722 = vmatpush1.xpose.msra.mxu0 0.0
        %3723 = vmatprep.subr.mxu0 0.0
        %3724 = vmatpush1.xpose.msra.mxu0 0.0
        %3725 = vmatprep.mubr.f32.mxu0 0.0
        %v3726 = vand.u32 %v210, 4294901760
        %3727 = vmatmul.mubr.f32.gmra.mrb[0].mxu0 %v3726
        %v3728 = vpop.f32.mrb[0].mxu0
        %v3729 = vadd.f32 %v3655, %v3728
        %v3730 = vpop.f32.mrb[0].mxu0
        %3731 = vdwg.mxu0
        %3732 = vmatprep.subr.mxu0 0.0
        %v3733 = vand.u32 %v210, 4294901760
        %3734 = vmatpush1.xpose.msra.mxu0 %v3733
        %3735 = vmatprep.subr.mxu0 0.0
        %3736 = vmatpush1.xpose.msra.mxu0 0.0
        %3737 = vmatprep.subr.mxu0 0.0
        %3738 = vmatpush1.xpose.msra.mxu0 0.0
        %3739 = vmatprep.subr.mxu0 0.0
        %3740 = vmatpush1.xpose.msra.mxu0 0.0
        %3741 = vmatprep.subr.mxu0 0.0
        %3742 = vmatpush1.xpose.msra.mxu0 0.0
        %3743 = vmatprep.subr.mxu0 0.0
        %3744 = vmatpush1.xpose.msra.mxu0 0.0
        %3745 = vmatprep.subr.mxu0 0.0
        %3746 = vmatpush1.xpose.msra.mxu0 0.0
        %3747 = vmatprep.subr.mxu0 0.0
        %3748 = vmatpush1.xpose.msra.mxu0 0.0
        %3749 = vmatprep.subr.mxu0 0.0
        %3750 = vmatpush1.xpose.msra.mxu0 0.0
        %3751 = vmatprep.subr.mxu0 0.0
        %3752 = vmatpush1.xpose.msra.mxu0 0.0
        %3753 = vmatprep.subr.mxu0 0.0
        %3754 = vmatpush1.xpose.msra.mxu0 0.0
        %3755 = vmatprep.subr.mxu0 0.0
        %3756 = vmatpush1.xpose.msra.mxu0 0.0
        %3757 = vmatprep.subr.mxu0 0.0
        %3758 = vmatpush1.xpose.msra.mxu0 0.0
        %3759 = vmatprep.subr.mxu0 0.0
        %3760 = vmatpush1.xpose.msra.mxu0 0.0
        %3761 = vmatprep.subr.mxu0 0.0
        %3762 = vmatpush1.xpose.msra.mxu0 0.0
        %3763 = vmatprep.subr.mxu0 0.0
        %3764 = vmatpush1.xpose.msra.mxu0 0.0
        %3765 = vmatprep.subr.mxu0 0.0
        %3766 = vmatpush1.xpose.msra.mxu0 0.0
        %3767 = vmatprep.subr.mxu0 0.0
        %3768 = vmatpush1.xpose.msra.mxu0 0.0
        %3769 = vmatprep.subr.mxu0 0.0
        %3770 = vmatpush1.xpose.msra.mxu0 0.0
        %3771 = vmatprep.subr.mxu0 0.0
        %3772 = vmatpush1.xpose.msra.mxu0 0.0
        %3773 = vmatprep.subr.mxu0 0.0
        %3774 = vmatpush1.xpose.msra.mxu0 0.0
        %3775 = vmatprep.subr.mxu0 0.0
        %3776 = vmatpush1.xpose.msra.mxu0 0.0
        %3777 = vmatprep.subr.mxu0 0.0
        %3778 = vmatpush1.xpose.msra.mxu0 0.0
        %3779 = vmatprep.subr.mxu0 0.0
        %3780 = vmatpush1.xpose.msra.mxu0 0.0
        %3781 = vmatprep.subr.mxu0 0.0
        %3782 = vmatpush1.xpose.msra.mxu0 0.0
        %3783 = vmatprep.subr.mxu0 0.0
        %3784 = vmatpush1.xpose.msra.mxu0 0.0
        %3785 = vmatprep.subr.mxu0 0.0
        %3786 = vmatpush1.xpose.msra.mxu0 0.0
        %3787 = vmatprep.subr.mxu0 0.0
        %3788 = vmatpush1.xpose.msra.mxu0 0.0
        %3789 = vmatprep.subr.mxu0 0.0
        %3790 = vmatpush1.xpose.msra.mxu0 0.0
        %3791 = vmatprep.subr.mxu0 0.0
        %3792 = vmatpush1.xpose.msra.mxu0 0.0
        %3793 = vmatprep.subr.mxu0 0.0
        %3794 = vmatpush1.xpose.msra.mxu0 0.0
        %3795 = vmatprep.subr.mxu0 0.0
        %3796 = vmatpush1.xpose.msra.mxu0 0.0
        %3797 = vmatprep.mubr.f32.mxu0 0.0
        %v3798 = vand.u32 %v210, 4294901760
        %3799 = vmatmul.mubr.f32.gmra.mrb[0].mxu0 %v3798
        %v3800 = vpop.f32.mrb[0].mxu0
        %v3801 = vadd.f32 %v3729, %v3800
        %v3802 = vpop.f32.mrb[0].mxu0
        %3803 = vdwg.mxu0
        %v3812 = vlaneseq
        %v3813 = vand.u32 %v3812, 127
        %v3814 = vlaneseq
        %v3815 = vshrl.u32 %v3814, 7
        %v3816 = vsub.s32 %v3813, %v3815
        %v3817 = vrot.slane %v221, %v3816
        %v3818 = vlaneseq
        %v3819 = vshrl.u32 %v3818, 7
        %v3820 = vsub.s32 %v3813, %v3819
        %v3821 = vrot.slane %v223, %v3820
        %v3822 = vlaneseq
        %v3823 = vshrl.u32 %v3822, 7
        %v3824 = vsub.s32 %v3813, %v3823
        %v3825 = vrot.slane %v225, %v3824
        %v3826 = vlaneseq
        %v3827 = vshrl.u32 %v3826, 7
        %v3828 = vsub.s32 %v3813, %v3827
        %v3829 = vrot.slane %v227, %v3828
        %v3830 = vlaneseq
        %v3831 = vshrl.u32 %v3830, 7
        %v3832 = vsub.s32 %v3813, %v3831
        %v3833 = vrot.slane %v229, %v3832
        %v3834 = vlaneseq
        %v3835 = vshrl.u32 %v3834, 7
        %v3836 = vsub.s32 %v3813, %v3835
        %v3837 = vrot.slane %v231, %v3836
        %v3838 = vlaneseq
        %v3839 = vshrl.u32 %v3838, 7
        %v3840 = vsub.s32 %v3813, %v3839
        %v3841 = vrot.slane %v233, %v3840
        %v3842 = vlaneseq
        %v3843 = vshrl.u32 %v3842, 7
        %v3844 = vsub.s32 %v3813, %v3843
        %v3845 = vrot.slane %v235, %v3844
        %vm3846 = vcmask 1041409
        %vm3847 = vcmask 1042434
        %v3848 = vsel %vm3847, %v3817, %v3817
        %vm3849 = vcmask 1043459
        %v3850 = vsel %vm3849, %v3817, %v3848
        %vm3851 = vcmask 1044484
        %v3852 = vsel %vm3851, %v3817, %v3850
        %vm3853 = vcmask 1045509
        %v3854 = vsel %vm3853, %v3817, %v3852
        %vm3855 = vcmask 1046534
        %v3856 = vsel %vm3855, %v3817, %v3854
        %vm3857 = vcmask 1047559
        %v3858 = vsel %vm3857, %v3817, %v3856
        %v3859 = vsel %vm3847, %v3821, %v3821
        %v3860 = vsel %vm3849, %v3821, %v3859
        %v3861 = vsel %vm3851, %v3821, %v3860
        %v3862 = vsel %vm3853, %v3821, %v3861
        %v3863 = vsel %vm3855, %v3821, %v3862
        %v3864 = vsel %vm3857, %v3821, %v3863
        %v3865 = vsel %vm3847, %v3825, %v3825
        %v3866 = vsel %vm3849, %v3825, %v3865
        %v3867 = vsel %vm3851, %v3825, %v3866
        %v3868 = vsel %vm3853, %v3825, %v3867
        %v3869 = vsel %vm3855, %v3825, %v3868
        %v3870 = vsel %vm3857, %v3825, %v3869
        %v3871 = vsel %vm3847, %v3829, %v3829
        %v3872 = vsel %vm3849, %v3829, %v3871
        %v3873 = vsel %vm3851, %v3829, %v3872
        %v3874 = vsel %vm3853, %v3829, %v3873
        %v3875 = vsel %vm3855, %v3829, %v3874
        %v3876 = vsel %vm3857, %v3829, %v3875
        %v3877 = vsel %vm3847, %v3833, %v3833
        %v3878 = vsel %vm3849, %v3833, %v3877
        %v3879 = vsel %vm3851, %v3833, %v3878
        %v3880 = vsel %vm3853, %v3833, %v3879
        %v3881 = vsel %vm3855, %v3833, %v3880
        %v3882 = vsel %vm3857, %v3833, %v3881
        %v3883 = vsel %vm3847, %v3837, %v3837
        %v3884 = vsel %vm3849, %v3837, %v3883
        %v3885 = vsel %vm3851, %v3837, %v3884
        %v3886 = vsel %vm3853, %v3837, %v3885
        %v3887 = vsel %vm3855, %v3837, %v3886
        %v3888 = vsel %vm3857, %v3837, %v3887
        %v3889 = vsel %vm3847, %v3841, %v3841
        %v3890 = vsel %vm3849, %v3841, %v3889
        %v3891 = vsel %vm3851, %v3841, %v3890
        %v3892 = vsel %vm3853, %v3841, %v3891
        %v3893 = vsel %vm3855, %v3841, %v3892
        %v3894 = vsel %vm3857, %v3841, %v3893
        %v3895 = vsel %vm3847, %v3845, %v3845
        %v3896 = vsel %vm3849, %v3845, %v3895
        %v3897 = vsel %vm3851, %v3845, %v3896
        %v3898 = vsel %vm3853, %v3845, %v3897
        %v3899 = vsel %vm3855, %v3845, %v3898
        %v3900 = vsel %vm3857, %v3845, %v3899
        %v3909 = vadd.f32 %v221, %v3858
        %v3910 = vadd.f32 %v223, %v3864
        %v3911 = vadd.f32 %v225, %v3870
        %v3912 = vadd.f32 %v227, %v3876
        %v3913 = vadd.f32 %v229, %v3882
        %v3914 = vadd.f32 %v231, %v3888
        %v3915 = vadd.f32 %v233, %v3894
        %v3916 = vadd.f32 %v235, %v3900
        %v3917 = vmul.f32 %v679, 2.0
        %v3918 = vmul.f32 %v1125, 2.0
        %v3919 = vmul.f32 %v1571, 2.0
        %v3920 = vmul.f32 %v2017, 2.0
        %v3921 = vmul.f32 %v2463, 2.0
        %v3922 = vmul.f32 %v2909, 2.0
        %v3923 = vmul.f32 %v3355, 2.0
        %v3924 = vmul.f32 %v3801, 2.0
        %v3925 = vsub.f32 %v3909, %v3917
        %v3926 = vsub.f32 %v3910, %v3918
        %v3927 = vsub.f32 %v3911, %v3919
        %v3928 = vsub.f32 %v3912, %v3920
        %v3929 = vsub.f32 %v3913, %v3921
        %v3930 = vsub.f32 %v3914, %v3922
        %v3931 = vsub.f32 %v3915, %v3923
        %v3932 = vsub.f32 %v3916, %v3924
        %v3933 = vmax.f32 %v3925, 0.0
        %v3934 = vmax.f32 %v3926, 0.0
        %v3935 = vmax.f32 %v3927, 0.0
        %v3936 = vmax.f32 %v3928, 0.0
        %v3937 = vmax.f32 %v3929, 0.0
        %v3938 = vmax.f32 %v3930, 0.0
        %v3939 = vmax.f32 %v3931, 0.0
        %v3940 = vmax.f32 %v3932, 0.0
        %v3941 = vrsqrt.pop %v3933
        %v3942 = vmul.f32 %v3933, %v3941
        %vm3943 = vcmp.eq.f32.partialorder %v3933, inf
        %v3944 = vsel %vm3943, %v3933, %v3942
        %vm3945 = vcmp.eq.f32.partialorder %v3933, 0.0
        %v3946 = vand.u32 %v3933, 2147483648
        %v3947 = vsel %vm3945, %v3946, %v3944
        %v3948 = vrsqrt.pop %v3934
        %v3949 = vmul.f32 %v3934, %v3948
        %vm3950 = vcmp.eq.f32.partialorder %v3934, inf
        %v3951 = vsel %vm3950, %v3934, %v3949
        %vm3952 = vcmp.eq.f32.partialorder %v3934, 0.0
        %v3953 = vand.u32 %v3934, 2147483648
        %v3954 = vsel %vm3952, %v3953, %v3951
        %v3955 = vrsqrt.pop %v3935
        %v3956 = vmul.f32 %v3935, %v3955
        %vm3957 = vcmp.eq.f32.partialorder %v3935, inf
        %v3958 = vsel %vm3957, %v3935, %v3956
        %vm3959 = vcmp.eq.f32.partialorder %v3935, 0.0
        %v3960 = vand.u32 %v3935, 2147483648
        %v3961 = vsel %vm3959, %v3960, %v3958
        %v3962 = vrsqrt.pop %v3936
        %v3963 = vmul.f32 %v3936, %v3962
        %vm3964 = vcmp.eq.f32.partialorder %v3936, inf
        %v3965 = vsel %vm3964, %v3936, %v3963
        %vm3966 = vcmp.eq.f32.partialorder %v3936, 0.0
        %v3967 = vand.u32 %v3936, 2147483648
        %v3968 = vsel %vm3966, %v3967, %v3965
        %v3969 = vrsqrt.pop %v3937
        %v3970 = vmul.f32 %v3937, %v3969
        %vm3971 = vcmp.eq.f32.partialorder %v3937, inf
        %v3972 = vsel %vm3971, %v3937, %v3970
        %vm3973 = vcmp.eq.f32.partialorder %v3937, 0.0
        %v3974 = vand.u32 %v3937, 2147483648
        %v3975 = vsel %vm3973, %v3974, %v3972
        %v3976 = vrsqrt.pop %v3938
        %v3977 = vmul.f32 %v3938, %v3976
        %vm3978 = vcmp.eq.f32.partialorder %v3938, inf
        %v3979 = vsel %vm3978, %v3938, %v3977
        %vm3980 = vcmp.eq.f32.partialorder %v3938, 0.0
        %v3981 = vand.u32 %v3938, 2147483648
        %v3982 = vsel %vm3980, %v3981, %v3979
        %v3983 = vrsqrt.pop %v3939
        %v3984 = vmul.f32 %v3939, %v3983
        %vm3985 = vcmp.eq.f32.partialorder %v3939, inf
        %v3986 = vsel %vm3985, %v3939, %v3984
        %vm3987 = vcmp.eq.f32.partialorder %v3939, 0.0
        %v3988 = vand.u32 %v3939, 2147483648
        %v3989 = vsel %vm3987, %v3988, %v3986
        %v3990 = vrsqrt.pop %v3940
        %v3991 = vmul.f32 %v3940, %v3990
        %vm3992 = vcmp.eq.f32.partialorder %v3940, inf
        %v3993 = vsel %vm3992, %v3940, %v3991
        %vm3994 = vcmp.eq.f32.partialorder %v3940, 0.0
        %v3995 = vand.u32 %v3940, 2147483648
        %v3996 = vsel %vm3994, %v3995, %v3993
        %vm3997 = vcmask 64512
        %v3998 = vsel %vm3997, %v3947, 0.0
        %v3999 = vrot.slane %v3998, 4
        %v4000 = vadd.f32 %v3998, %v3999
        %v4001 = vrot.slane %v4000, 2
        %v4002 = vadd.f32 %v4000, %v4001
        %v4003 = vrot.slane %v4002, 1
        %v4004 = vadd.f32 %v4002, %v4003
        %v4005 = vsel %vm3997, %v3954, 0.0
        %v4006 = vrot.slane %v4005, 4
        %v4007 = vadd.f32 %v4005, %v4006
        %v4008 = vrot.slane %v4007, 2
        %v4009 = vadd.f32 %v4007, %v4008
        %v4010 = vrot.slane %v4009, 1
        %v4011 = vadd.f32 %v4009, %v4010
        %v4012 = vsel %vm3997, %v3961, 0.0
        %v4013 = vrot.slane %v4012, 4
        %v4014 = vadd.f32 %v4012, %v4013
        %v4015 = vrot.slane %v4014, 2
        %v4016 = vadd.f32 %v4014, %v4015
        %v4017 = vrot.slane %v4016, 1
        %v4018 = vadd.f32 %v4016, %v4017
        %v4019 = vsel %vm3997, %v3968, 0.0
        %v4020 = vrot.slane %v4019, 4
        %v4021 = vadd.f32 %v4019, %v4020
        %v4022 = vrot.slane %v4021, 2
        %v4023 = vadd.f32 %v4021, %v4022
        %v4024 = vrot.slane %v4023, 1
        %v4025 = vadd.f32 %v4023, %v4024
        %v4026 = vsel %vm3997, %v3975, 0.0
        %v4027 = vrot.slane %v4026, 4
        %v4028 = vadd.f32 %v4026, %v4027
        %v4029 = vrot.slane %v4028, 2
        %v4030 = vadd.f32 %v4028, %v4029
        %v4031 = vrot.slane %v4030, 1
        %v4032 = vadd.f32 %v4030, %v4031
        %v4033 = vsel %vm3997, %v3982, 0.0
        %v4034 = vrot.slane %v4033, 4
        %v4035 = vadd.f32 %v4033, %v4034
        %v4036 = vrot.slane %v4035, 2
        %v4037 = vadd.f32 %v4035, %v4036
        %v4038 = vrot.slane %v4037, 1
        %v4039 = vadd.f32 %v4037, %v4038
        %v4040 = vsel %vm3997, %v3989, 0.0
        %v4041 = vrot.slane %v4040, 4
        %v4042 = vadd.f32 %v4040, %v4041
        %v4043 = vrot.slane %v4042, 2
        %v4044 = vadd.f32 %v4042, %v4043
        %v4045 = vrot.slane %v4044, 1
        %v4046 = vadd.f32 %v4044, %v4045
        %v4047 = vsel %vm3997, %v3996, 0.0
        %v4048 = vrot.slane %v4047, 4
        %v4049 = vadd.f32 %v4047, %v4048
        %v4050 = vrot.slane %v4049, 2
        %v4051 = vadd.f32 %v4049, %v4050
        %v4052 = vrot.slane %v4051, 1
        %v4053 = vadd.f32 %v4051, %v4052
        %v4062 = vsel %vm3846, %v4011, %v4004
        %v4063 = vsel %vm3847, %v4018, %v4062
        %v4064 = vsel %vm3849, %v4025, %v4063
        %v4065 = vsel %vm3851, %v4032, %v4064
        %v4066 = vsel %vm3853, %v4039, %v4065
        %v4067 = vsel %vm3855, %v4046, %v4066
        %v4068 = vsel %vm3857, %v4053, %v4067
        %v4070 = vsel %vm3997, %v4068, 0.0
        %4071 = vadd.xlane.f32.xlu0 %v4070
        %v4072 = vpop.xlane.xlu0 %4071
        %v4073 = vmul.f32 %v4072, 0.015625
        %4074 = vst.msk [vmem:[#allocation2] sm:$0xff] %vm3997, %v3947
        %4075 = vst.msk [vmem:[#allocation2 + $0x8] sm:$0xff] %vm3997, %v3954
        %4076 = vst.msk [vmem:[#allocation2 + $0x10] sm:$0xff] %vm3997, %v3961
        %4077 = vst.msk [vmem:[#allocation2 + $0x18] sm:$0xff] %vm3997, %v3968
        %4078 = vst.msk [vmem:[#allocation2 + $0x20] sm:$0xff] %vm3997, %v3975
        %4079 = vst.msk [vmem:[#allocation2 + $0x28] sm:$0xff] %vm3997, %v3982
        %4080 = vst.msk [vmem:[#allocation2 + $0x30] sm:$0xff] %vm3997, %v3989
        %4081 = vst.msk [vmem:[#allocation2 + $0x38] sm:$0xff] %vm3997, %v3996
        %v4082 = vld [vmem:[#allocation2] sm:$0xff]
        %v4083 = vld [vmem:[#allocation2 + $0x8] sm:$0xff]
        %v4084 = vld [vmem:[#allocation2 + $0x10] sm:$0xff]
        %v4085 = vld [vmem:[#allocation2 + $0x18] sm:$0xff]
        %v4086 = vld [vmem:[#allocation2 + $0x20] sm:$0xff]
        %v4087 = vld [vmem:[#allocation2 + $0x28] sm:$0xff]
        %v4088 = vld [vmem:[#allocation2 + $0x30] sm:$0xff]
        %v4089 = vld [vmem:[#allocation2 + $0x38] sm:$0xff]
        %v4090 = vld [vmem:[#allocation5] sm:$0xff]
        %v4092 = vlaneseq
        %v4093 = vshrl.u32 %v4092, 7
        %v4094 = vsub.s32 0, %v4093
        %v4095 = vrot.slane %v211, %v4094
        %v4097 = vsub.f32 %v4095, %v4090
        %vm4098 = vcmp.gt.f32.partialorder %v4090, 0.5
        %v4099 = vadd.f32 %v4082, 0.2
        %v4100 = vadd.f32 %v4083, 0.2
        %v4101 = vadd.f32 %v4084, 0.2
        %v4102 = vadd.f32 %v4085, 0.2
        %v4103 = vadd.f32 %v4086, 0.2
        %v4104 = vadd.f32 %v4087, 0.2
        %v4105 = vadd.f32 %v4088, 0.2
        %v4106 = vadd.f32 %v4089, 0.2
        %v4107 = vsel %vm4098, 1, 0
        %v4108 = vlaneseq
        %v4109 = vshrl.u32 %v4108, 7
        %v4110 = vsub.s32 0, %v4109
        %v4111 = vrot.slane %v4107, %v4110
        %vm4112 = vcmp.eq.s32.totalorder %v4111, 1
        %v4121 = vrot.slane %v4100, 7
        %v4122 = vsel %vm3846, %v4121, %v4099
        %v4123 = vrot.slane %v4101, 6
        %v4124 = vsel %vm3847, %v4123, %v4122
        %v4125 = vrot.slane %v4102, 5
        %v4126 = vsel %vm3849, %v4125, %v4124
        %v4127 = vrot.slane %v4103, 4
        %v4128 = vsel %vm3851, %v4127, %v4126
        %v4129 = vrot.slane %v4104, 3
        %v4130 = vsel %vm3853, %v4129, %v4128
        %v4131 = vrot.slane %v4105, 2
        %v4132 = vsel %vm3855, %v4131, %v4130
        %v4133 = vrot.slane %v4106, 1
        %v4134 = vsel %vm3857, %v4133, %v4132
        %v4136 = vsel %vm4112, %v4134, -1e+30
        %v4137 = vlaneseq
        %v4138 = vshrl.u32 %v4137, 7
        %v4139 = vsub.s32 0, %v4138
        %v4140 = vrot.slane %v4136, %v4139
        %4142 = vbcast.lane.b32.xlu0 %v4140, 256
        %v4143 = vpop.permute.xlu0 %4142
        %v4144 = vlaneseq
        %v4145 = vshrl.u32 %v4144, 7
        %v4146 = vsub.s32 1, %v4145
        %v4147 = vrot.slane %v4136, %v4146
        %4149 = vbcast.lane.b32.xlu0 %v4147, 256
        %v4150 = vpop.permute.xlu0 %4149
        %v4151 = vlaneseq
        %v4152 = vshrl.u32 %v4151, 7
        %v4153 = vsub.s32 2, %v4152
        %v4154 = vrot.slane %v4136, %v4153
        %4156 = vbcast.lane.b32.xlu0 %v4154, 256
        %v4157 = vpop.permute.xlu0 %4156
        %v4158 = vlaneseq
        %v4159 = vshrl.u32 %v4158, 7
        %v4160 = vsub.s32 3, %v4159
        %v4161 = vrot.slane %v4136, %v4160
        %4163 = vbcast.lane.b32.xlu0 %v4161, 256
        %v4164 = vpop.permute.xlu0 %4163
        %v4165 = vlaneseq
        %v4166 = vshrl.u32 %v4165, 7
        %v4167 = vsub.s32 4, %v4166
        %v4168 = vrot.slane %v4136, %v4167
        %4170 = vbcast.lane.b32.xlu0 %v4168, 256
        %v4171 = vpop.permute.xlu0 %4170
        %v4172 = vlaneseq
        %v4173 = vshrl.u32 %v4172, 7
        %v4174 = vsub.s32 5, %v4173
        %v4175 = vrot.slane %v4136, %v4174
        %4177 = vbcast.lane.b32.xlu0 %v4175, 256
        %v4178 = vpop.permute.xlu0 %4177
        %v4179 = vlaneseq
        %v4180 = vshrl.u32 %v4179, 7
        %v4181 = vsub.s32 6, %v4180
        %v4182 = vrot.slane %v4136, %v4181
        %4184 = vbcast.lane.b32.xlu0 %v4182, 256
        %v4185 = vpop.permute.xlu0 %4184
        %v4186 = vlaneseq
        %v4187 = vshrl.u32 %v4186, 7
        %v4188 = vsub.s32 7, %v4187
        %v4189 = vrot.slane %v4136, %v4188
        %4191 = vbcast.lane.b32.xlu0 %v4189, 256
        %v4192 = vpop.permute.xlu0 %4191
        %v4193 = vlaneseq
        %v4194 = vshrl.u32 %v4193, 7
        %v4195 = vsub.s32 0, %v4194
        %v4196 = vrot.slane %v4082, %v4195
        %v4197 = vlaneseq
        %v4198 = vshrl.u32 %v4197, 7
        %v4199 = vsub.s32 0, %v4198
        %v4200 = vrot.slane %v4083, %v4199
        %v4201 = vlaneseq
        %v4202 = vshrl.u32 %v4201, 7
        %v4203 = vsub.s32 0, %v4202
        %v4204 = vrot.slane %v4084, %v4203
        %v4205 = vlaneseq
        %v4206 = vshrl.u32 %v4205, 7
        %v4207 = vsub.s32 0, %v4206
        %v4208 = vrot.slane %v4085, %v4207
        %v4209 = vlaneseq
        %v4210 = vshrl.u32 %v4209, 7
        %v4211 = vsub.s32 0, %v4210
        %v4212 = vrot.slane %v4086, %v4211
        %v4213 = vlaneseq
        %v4214 = vshrl.u32 %v4213, 7
        %v4215 = vsub.s32 0, %v4214
        %v4216 = vrot.slane %v4087, %v4215
        %v4217 = vlaneseq
        %v4218 = vshrl.u32 %v4217, 7
        %v4219 = vsub.s32 0, %v4218
        %v4220 = vrot.slane %v4088, %v4219
        %v4221 = vlaneseq
        %v4222 = vshrl.u32 %v4221, 7
        %v4223 = vsub.s32 0, %v4222
        %v4224 = vrot.slane %v4089, %v4223
        %v4225 = vsub.f32 %v4143, %v4196
        %v4226 = vsub.f32 %v4150, %v4200
        %v4227 = vsub.f32 %v4157, %v4204
        %v4228 = vsub.f32 %v4164, %v4208
        %v4229 = vsub.f32 %v4171, %v4212
        %v4230 = vsub.f32 %v4178, %v4216
        %v4231 = vsub.f32 %v4185, %v4220
        %v4232 = vsub.f32 %v4192, %v4224
        %v4233 = vmax.f32 %v4225, 0.0
        %v4234 = vmax.f32 %v4226, 0.0
        %v4235 = vmax.f32 %v4227, 0.0
        %v4236 = vmax.f32 %v4228, 0.0
        %v4237 = vmax.f32 %v4229, 0.0
        %v4238 = vmax.f32 %v4230, 0.0
        %v4239 = vmax.f32 %v4231, 0.0
        %v4240 = vmax.f32 %v4232, 0.0
        %v4241 = vsel %vm3997, %v4233, 0.0
        %v4242 = vrot.slane %v4241, 4
        %v4243 = vadd.f32 %v4241, %v4242
        %v4244 = vrot.slane %v4243, 2
        %v4245 = vadd.f32 %v4243, %v4244
        %v4246 = vrot.slane %v4245, 1
        %v4247 = vadd.f32 %v4245, %v4246
        %v4248 = vsel %vm3997, %v4234, 0.0
        %v4249 = vrot.slane %v4248, 4
        %v4250 = vadd.f32 %v4248, %v4249
        %v4251 = vrot.slane %v4250, 2
        %v4252 = vadd.f32 %v4250, %v4251
        %v4253 = vrot.slane %v4252, 1
        %v4254 = vadd.f32 %v4252, %v4253
        %v4255 = vsel %vm3997, %v4235, 0.0
        %v4256 = vrot.slane %v4255, 4
        %v4257 = vadd.f32 %v4255, %v4256
        %v4258 = vrot.slane %v4257, 2
        %v4259 = vadd.f32 %v4257, %v4258
        %v4260 = vrot.slane %v4259, 1
        %v4261 = vadd.f32 %v4259, %v4260
        %v4262 = vsel %vm3997, %v4236, 0.0
        %v4263 = vrot.slane %v4262, 4
        %v4264 = vadd.f32 %v4262, %v4263
        %v4265 = vrot.slane %v4264, 2
        %v4266 = vadd.f32 %v4264, %v4265
        %v4267 = vrot.slane %v4266, 1
        %v4268 = vadd.f32 %v4266, %v4267
        %v4269 = vsel %vm3997, %v4237, 0.0
        %v4270 = vrot.slane %v4269, 4
        %v4271 = vadd.f32 %v4269, %v4270
        %v4272 = vrot.slane %v4271, 2
        %v4273 = vadd.f32 %v4271, %v4272
        %v4274 = vrot.slane %v4273, 1
        %v4275 = vadd.f32 %v4273, %v4274
        %v4276 = vsel %vm3997, %v4238, 0.0
        %v4277 = vrot.slane %v4276, 4
        %v4278 = vadd.f32 %v4276, %v4277
        %v4279 = vrot.slane %v4278, 2
        %v4280 = vadd.f32 %v4278, %v4279
        %v4281 = vrot.slane %v4280, 1
        %v4282 = vadd.f32 %v4280, %v4281
        %v4283 = vsel %vm3997, %v4239, 0.0
        %v4284 = vrot.slane %v4283, 4
        %v4285 = vadd.f32 %v4283, %v4284
        %v4286 = vrot.slane %v4285, 2
        %v4287 = vadd.f32 %v4285, %v4286
        %v4288 = vrot.slane %v4287, 1
        %v4289 = vadd.f32 %v4287, %v4288
        %v4290 = vsel %vm3997, %v4240, 0.0
        %v4291 = vrot.slane %v4290, 4
        %v4292 = vadd.f32 %v4290, %v4291
        %v4293 = vrot.slane %v4292, 2
        %v4294 = vadd.f32 %v4292, %v4293
        %v4295 = vrot.slane %v4294, 1
        %v4296 = vadd.f32 %v4294, %v4295
        %vm4297 = vcmp.gt.f32.partialorder %v4233, 0.0
        %vm4298 = vcmp.gt.f32.partialorder %v4234, 0.0
        %vm4299 = vcmp.gt.f32.partialorder %v4235, 0.0
        %vm4300 = vcmp.gt.f32.partialorder %v4236, 0.0
        %vm4301 = vcmp.gt.f32.partialorder %v4237, 0.0
        %vm4302 = vcmp.gt.f32.partialorder %v4238, 0.0
        %vm4303 = vcmp.gt.f32.partialorder %v4239, 0.0
        %vm4304 = vcmp.gt.f32.partialorder %v4240, 0.0
        %v4305 = vsel %vm4297, 1, 0
        %v4306 = vsel %vm4298, 1, 0
        %v4307 = vsel %vm4299, 1, 0
        %v4308 = vsel %vm4300, 1, 0
        %v4309 = vsel %vm4301, 1, 0
        %v4310 = vsel %vm4302, 1, 0
        %v4311 = vsel %vm4303, 1, 0
        %v4312 = vsel %vm4304, 1, 0
        %v4313 = vcvt.s32.f32 %v4305
        %v4314 = vcvt.s32.f32 %v4306
        %v4315 = vcvt.s32.f32 %v4307
        %v4316 = vcvt.s32.f32 %v4308
        %v4317 = vcvt.s32.f32 %v4309
        %v4318 = vcvt.s32.f32 %v4310
        %v4319 = vcvt.s32.f32 %v4311
        %v4320 = vcvt.s32.f32 %v4312
        %v4321 = vsel %vm3997, %v4313, 0.0
        %v4322 = vrot.slane %v4321, 4
        %v4323 = vadd.f32 %v4321, %v4322
        %v4324 = vrot.slane %v4323, 2
        %v4325 = vadd.f32 %v4323, %v4324
        %v4326 = vrot.slane %v4325, 1
        %v4327 = vadd.f32 %v4325, %v4326
        %v4328 = vsel %vm3997, %v4314, 0.0
        %v4329 = vrot.slane %v4328, 4
        %v4330 = vadd.f32 %v4328, %v4329
        %v4331 = vrot.slane %v4330, 2
        %v4332 = vadd.f32 %v4330, %v4331
        %v4333 = vrot.slane %v4332, 1
        %v4334 = vadd.f32 %v4332, %v4333
        %v4335 = vsel %vm3997, %v4315, 0.0
        %v4336 = vrot.slane %v4335, 4
        %v4337 = vadd.f32 %v4335, %v4336
        %v4338 = vrot.slane %v4337, 2
        %v4339 = vadd.f32 %v4337, %v4338
        %v4340 = vrot.slane %v4339, 1
        %v4341 = vadd.f32 %v4339, %v4340
        %v4342 = vsel %vm3997, %v4316, 0.0
        %v4343 = vrot.slane %v4342, 4
        %v4344 = vadd.f32 %v4342, %v4343
        %v4345 = vrot.slane %v4344, 2
        %v4346 = vadd.f32 %v4344, %v4345
        %v4347 = vrot.slane %v4346, 1
        %v4348 = vadd.f32 %v4346, %v4347
        %v4349 = vsel %vm3997, %v4317, 0.0
        %v4350 = vrot.slane %v4349, 4
        %v4351 = vadd.f32 %v4349, %v4350
        %v4352 = vrot.slane %v4351, 2
        %v4353 = vadd.f32 %v4351, %v4352
        %v4354 = vrot.slane %v4353, 1
        %v4355 = vadd.f32 %v4353, %v4354
        %v4356 = vsel %vm3997, %v4318, 0.0
        %v4357 = vrot.slane %v4356, 4
        %v4358 = vadd.f32 %v4356, %v4357
        %v4359 = vrot.slane %v4358, 2
        %v4360 = vadd.f32 %v4358, %v4359
        %v4361 = vrot.slane %v4360, 1
        %v4362 = vadd.f32 %v4360, %v4361
        %v4363 = vsel %vm3997, %v4319, 0.0
        %v4364 = vrot.slane %v4363, 4
        %v4365 = vadd.f32 %v4363, %v4364
        %v4366 = vrot.slane %v4365, 2
        %v4367 = vadd.f32 %v4365, %v4366
        %v4368 = vrot.slane %v4367, 1
        %v4369 = vadd.f32 %v4367, %v4368
        %v4370 = vsel %vm3997, %v4320, 0.0
        %v4371 = vrot.slane %v4370, 4
        %v4372 = vadd.f32 %v4370, %v4371
        %v4373 = vrot.slane %v4372, 2
        %v4374 = vadd.f32 %v4372, %v4373
        %v4375 = vrot.slane %v4374, 1
        %v4376 = vadd.f32 %v4374, %v4375
        %v4377 = vsel %vm3997, %v4233, -inf
        %v4378 = vrot.slane %v4377, 4
        %v4379 = vmax.f32 %v4377, %v4378
        %v4380 = vrot.slane %v4379, 2
        %v4381 = vmax.f32 %v4379, %v4380
        %v4382 = vrot.slane %v4381, 1
        %v4383 = vmax.f32 %v4381, %v4382
        %v4384 = vsel %vm3997, %v4234, -inf
        %v4385 = vrot.slane %v4384, 4
        %v4386 = vmax.f32 %v4384, %v4385
        %v4387 = vrot.slane %v4386, 2
        %v4388 = vmax.f32 %v4386, %v4387
        %v4389 = vrot.slane %v4388, 1
        %v4390 = vmax.f32 %v4388, %v4389
        %v4391 = vsel %vm3997, %v4235, -inf
        %v4392 = vrot.slane %v4391, 4
        %v4393 = vmax.f32 %v4391, %v4392
        %v4394 = vrot.slane %v4393, 2
        %v4395 = vmax.f32 %v4393, %v4394
        %v4396 = vrot.slane %v4395, 1
        %v4397 = vmax.f32 %v4395, %v4396
        %v4398 = vsel %vm3997, %v4236, -inf
        %v4399 = vrot.slane %v4398, 4
        %v4400 = vmax.f32 %v4398, %v4399
        %v4401 = vrot.slane %v4400, 2
        %v4402 = vmax.f32 %v4400, %v4401
        %v4403 = vrot.slane %v4402, 1
        %v4404 = vmax.f32 %v4402, %v4403
        %v4405 = vsel %vm3997, %v4237, -inf
        %v4406 = vrot.slane %v4405, 4
        %v4407 = vmax.f32 %v4405, %v4406
        %v4408 = vrot.slane %v4407, 2
        %v4409 = vmax.f32 %v4407, %v4408
        %v4410 = vrot.slane %v4409, 1
        %v4411 = vmax.f32 %v4409, %v4410
        %v4412 = vsel %vm3997, %v4238, -inf
        %v4413 = vrot.slane %v4412, 4
        %v4414 = vmax.f32 %v4412, %v4413
        %v4415 = vrot.slane %v4414, 2
        %v4416 = vmax.f32 %v4414, %v4415
        %v4417 = vrot.slane %v4416, 1
        %v4418 = vmax.f32 %v4416, %v4417
        %v4419 = vsel %vm3997, %v4239, -inf
        %v4420 = vrot.slane %v4419, 4
        %v4421 = vmax.f32 %v4419, %v4420
        %v4422 = vrot.slane %v4421, 2
        %v4423 = vmax.f32 %v4421, %v4422
        %v4424 = vrot.slane %v4423, 1
        %v4425 = vmax.f32 %v4423, %v4424
        %v4426 = vsel %vm3997, %v4240, -inf
        %v4427 = vrot.slane %v4426, 4
        %v4428 = vmax.f32 %v4426, %v4427
        %v4429 = vrot.slane %v4428, 2
        %v4430 = vmax.f32 %v4428, %v4429
        %v4431 = vrot.slane %v4430, 1
        %v4432 = vmax.f32 %v4430, %v4431
        %v4433 = vlaneseq
        %v4434 = vshrl.u32 %v4433, 7
        %v4435 = vsub.s32 0, %v4434
        %v4436 = vrot.slane %v4097, %v4435
        %v4437 = vmul.f32 %v4247, %v4436
        %v4438 = vmul.f32 %v4254, %v4436
        %v4439 = vmul.f32 %v4261, %v4436
        %v4440 = vmul.f32 %v4268, %v4436
        %v4441 = vmul.f32 %v4275, %v4436
        %v4442 = vmul.f32 %v4282, %v4436
        %v4443 = vmul.f32 %v4289, %v4436
        %v4444 = vmul.f32 %v4296, %v4436
        %v4445 = vadd.f32 %v4437, 0.0
        %v4446 = vadd.f32 %v4438, 0.0
        %v4447 = vadd.f32 %v4439, 0.0
        %v4448 = vadd.f32 %v4440, 0.0
        %v4449 = vadd.f32 %v4441, 0.0
        %v4450 = vadd.f32 %v4442, 0.0
        %v4451 = vadd.f32 %v4443, 0.0
        %v4452 = vadd.f32 %v4444, 0.0
        %v4453 = vmul.f32 %v4327, %v4436
        %v4454 = vmul.f32 %v4334, %v4436
        %v4455 = vmul.f32 %v4341, %v4436
        %v4456 = vmul.f32 %v4348, %v4436
        %v4457 = vmul.f32 %v4355, %v4436
        %v4458 = vmul.f32 %v4362, %v4436
        %v4459 = vmul.f32 %v4369, %v4436
        %v4460 = vmul.f32 %v4376, %v4436
        %v4461 = vadd.f32 %v4453, 0.0
        %v4462 = vadd.f32 %v4454, 0.0
        %v4463 = vadd.f32 %v4455, 0.0
        %v4464 = vadd.f32 %v4456, 0.0
        %v4465 = vadd.f32 %v4457, 0.0
        %v4466 = vadd.f32 %v4458, 0.0
        %v4467 = vadd.f32 %v4459, 0.0
        %v4468 = vadd.f32 %v4460, 0.0
        %v4469 = vmul.f32 %v4383, %v4436
        %v4470 = vmul.f32 %v4390, %v4436
        %v4471 = vmul.f32 %v4397, %v4436
        %v4472 = vmul.f32 %v4404, %v4436
        %v4473 = vmul.f32 %v4411, %v4436
        %v4474 = vmul.f32 %v4418, %v4436
        %v4475 = vmul.f32 %v4425, %v4436
        %v4476 = vmul.f32 %v4432, %v4436
        %v4477 = vmax.f32 %v4469, 0.0
        %v4478 = vmax.f32 %v4470, 0.0
        %v4479 = vmax.f32 %v4471, 0.0
        %v4480 = vmax.f32 %v4472, 0.0
        %v4481 = vmax.f32 %v4473, 0.0
        %v4482 = vmax.f32 %v4474, 0.0
        %v4483 = vmax.f32 %v4475, 0.0
        %v4484 = vmax.f32 %v4476, 0.0
        %v4485 = vlaneseq
        %v4486 = vshrl.u32 %v4485, 7
        %v4487 = vsub.s32 1, %v4486
        %v4488 = vrot.slane %v4107, %v4487
        %vm4489 = vcmp.eq.s32.totalorder %v4488, 1
        %v4490 = vrot.slane %v4099, 1
        %v4491 = vsel %vm3846, %v4100, %v4490
        %v4492 = vrot.slane %v4101, 7
        %v4493 = vsel %vm3847, %v4492, %v4491
        %v4494 = vrot.slane %v4102, 6
        %v4495 = vsel %vm3849, %v4494, %v4493
        %v4496 = vrot.slane %v4103, 5
        %v4497 = vsel %vm3851, %v4496, %v4495
        %v4498 = vrot.slane %v4104, 4
        %v4499 = vsel %vm3853, %v4498, %v4497
        %v4500 = vrot.slane %v4105, 3
        %v4501 = vsel %vm3855, %v4500, %v4499
        %v4502 = vrot.slane %v4106, 2
        %v4503 = vsel %vm3857, %v4502, %v4501
        %v4505 = vsel %vm4489, %v4503, -1e+30
        %v4506 = vlaneseq
        %v4507 = vshrl.u32 %v4506, 7
        %v4508 = vsub.s32 0, %v4507
        %v4509 = vrot.slane %v4505, %v4508
        %4511 = vbcast.lane.b32.xlu0 %v4509, 256
        %v4512 = vpop.permute.xlu0 %4511
        %v4513 = vlaneseq
        %v4514 = vshrl.u32 %v4513, 7
        %v4515 = vsub.s32 1, %v4514
        %v4516 = vrot.slane %v4505, %v4515
        %4518 = vbcast.lane.b32.xlu0 %v4516, 256
        %v4519 = vpop.permute.xlu0 %4518
        %v4520 = vlaneseq
        %v4521 = vshrl.u32 %v4520, 7
        %v4522 = vsub.s32 2, %v4521
        %v4523 = vrot.slane %v4505, %v4522
        %4525 = vbcast.lane.b32.xlu0 %v4523, 256
        %v4526 = vpop.permute.xlu0 %4525
        %v4527 = vlaneseq
        %v4528 = vshrl.u32 %v4527, 7
        %v4529 = vsub.s32 3, %v4528
        %v4530 = vrot.slane %v4505, %v4529
        %4532 = vbcast.lane.b32.xlu0 %v4530, 256
        %v4533 = vpop.permute.xlu0 %4532
        %v4534 = vlaneseq
        %v4535 = vshrl.u32 %v4534, 7
        %v4536 = vsub.s32 4, %v4535
        %v4537 = vrot.slane %v4505, %v4536
        %4539 = vbcast.lane.b32.xlu0 %v4537, 256
        %v4540 = vpop.permute.xlu0 %4539
        %v4541 = vlaneseq
        %v4542 = vshrl.u32 %v4541, 7
        %v4543 = vsub.s32 5, %v4542
        %v4544 = vrot.slane %v4505, %v4543
        %4546 = vbcast.lane.b32.xlu0 %v4544, 256
        %v4547 = vpop.permute.xlu0 %4546
        %v4548 = vlaneseq
        %v4549 = vshrl.u32 %v4548, 7
        %v4550 = vsub.s32 6, %v4549
        %v4551 = vrot.slane %v4505, %v4550
        %4553 = vbcast.lane.b32.xlu0 %v4551, 256
        %v4554 = vpop.permute.xlu0 %4553
        %v4555 = vlaneseq
        %v4556 = vshrl.u32 %v4555, 7
        %v4557 = vsub.s32 7, %v4556
        %v4558 = vrot.slane %v4505, %v4557
        %4560 = vbcast.lane.b32.xlu0 %v4558, 256
        %v4561 = vpop.permute.xlu0 %4560
        %v4562 = vlaneseq
        %v4563 = vshrl.u32 %v4562, 7
        %v4564 = vsub.s32 1, %v4563
        %v4565 = vrot.slane %v4082, %v4564
        %v4566 = vlaneseq
        %v4567 = vshrl.u32 %v4566, 7
        %v4568 = vsub.s32 1, %v4567
        %v4569 = vrot.slane %v4083, %v4568
        %v4570 = vlaneseq
        %v4571 = vshrl.u32 %v4570, 7
        %v4572 = vsub.s32 1, %v4571
        %v4573 = vrot.slane %v4084, %v4572
        %v4574 = vlaneseq
        %v4575 = vshrl.u32 %v4574, 7
        %v4576 = vsub.s32 1, %v4575
        %v4577 = vrot.slane %v4085, %v4576
        %v4578 = vlaneseq
        %v4579 = vshrl.u32 %v4578, 7
        %v4580 = vsub.s32 1, %v4579
        %v4581 = vrot.slane %v4086, %v4580
        %v4582 = vlaneseq
        %v4583 = vshrl.u32 %v4582, 7
        %v4584 = vsub.s32 1, %v4583
        %v4585 = vrot.slane %v4087, %v4584
        %v4586 = vlaneseq
        %v4587 = vshrl.u32 %v4586, 7
        %v4588 = vsub.s32 1, %v4587
        %v4589 = vrot.slane %v4088, %v4588
        %v4590 = vlaneseq
        %v4591 = vshrl.u32 %v4590, 7
        %v4592 = vsub.s32 1, %v4591
        %v4593 = vrot.slane %v4089, %v4592
        %v4594 = vsub.f32 %v4512, %v4565
        %v4595 = vsub.f32 %v4519, %v4569
        %v4596 = vsub.f32 %v4526, %v4573
        %v4597 = vsub.f32 %v4533, %v4577
        %v4598 = vsub.f32 %v4540, %v4581
        %v4599 = vsub.f32 %v4547, %v4585
        %v4600 = vsub.f32 %v4554, %v4589
        %v4601 = vsub.f32 %v4561, %v4593
        %v4602 = vmax.f32 %v4594, 0.0
        %v4603 = vmax.f32 %v4595, 0.0
        %v4604 = vmax.f32 %v4596, 0.0
        %v4605 = vmax.f32 %v4597, 0.0
        %v4606 = vmax.f32 %v4598, 0.0
        %v4607 = vmax.f32 %v4599, 0.0
        %v4608 = vmax.f32 %v4600, 0.0
        %v4609 = vmax.f32 %v4601, 0.0
        %v4610 = vsel %vm3997, %v4602, 0.0
        %v4611 = vrot.slane %v4610, 4
        %v4612 = vadd.f32 %v4610, %v4611
        %v4613 = vrot.slane %v4612, 2
        %v4614 = vadd.f32 %v4612, %v4613
        %v4615 = vrot.slane %v4614, 1
        %v4616 = vadd.f32 %v4614, %v4615
        %v4617 = vsel %vm3997, %v4603, 0.0
        %v4618 = vrot.slane %v4617, 4
        %v4619 = vadd.f32 %v4617, %v4618
        %v4620 = vrot.slane %v4619, 2
        %v4621 = vadd.f32 %v4619, %v4620
        %v4622 = vrot.slane %v4621, 1
        %v4623 = vadd.f32 %v4621, %v4622
        %v4624 = vsel %vm3997, %v4604, 0.0
        %v4625 = vrot.slane %v4624, 4
        %v4626 = vadd.f32 %v4624, %v4625
        %v4627 = vrot.slane %v4626, 2
        %v4628 = vadd.f32 %v4626, %v4627
        %v4629 = vrot.slane %v4628, 1
        %v4630 = vadd.f32 %v4628, %v4629
        %v4631 = vsel %vm3997, %v4605, 0.0
        %v4632 = vrot.slane %v4631, 4
        %v4633 = vadd.f32 %v4631, %v4632
        %v4634 = vrot.slane %v4633, 2
        %v4635 = vadd.f32 %v4633, %v4634
        %v4636 = vrot.slane %v4635, 1
        %v4637 = vadd.f32 %v4635, %v4636
        %v4638 = vsel %vm3997, %v4606, 0.0
        %v4639 = vrot.slane %v4638, 4
        %v4640 = vadd.f32 %v4638, %v4639
        %v4641 = vrot.slane %v4640, 2
        %v4642 = vadd.f32 %v4640, %v4641
        %v4643 = vrot.slane %v4642, 1
        %v4644 = vadd.f32 %v4642, %v4643
        %v4645 = vsel %vm3997, %v4607, 0.0
        %v4646 = vrot.slane %v4645, 4
        %v4647 = vadd.f32 %v4645, %v4646
        %v4648 = vrot.slane %v4647, 2
        %v4649 = vadd.f32 %v4647, %v4648
        %v4650 = vrot.slane %v4649, 1
        %v4651 = vadd.f32 %v4649, %v4650
        %v4652 = vsel %vm3997, %v4608, 0.0
        %v4653 = vrot.slane %v4652, 4
        %v4654 = vadd.f32 %v4652, %v4653
        %v4655 = vrot.slane %v4654, 2
        %v4656 = vadd.f32 %v4654, %v4655
        %v4657 = vrot.slane %v4656, 1
        %v4658 = vadd.f32 %v4656, %v4657
        %v4659 = vsel %vm3997, %v4609, 0.0
        %v4660 = vrot.slane %v4659, 4
        %v4661 = vadd.f32 %v4659, %v4660
        %v4662 = vrot.slane %v4661, 2
        %v4663 = vadd.f32 %v4661, %v4662
        %v4664 = vrot.slane %v4663, 1
        %v4665 = vadd.f32 %v4663, %v4664
        %vm4666 = vcmp.gt.f32.partialorder %v4602, 0.0
        %vm4667 = vcmp.gt.f32.partialorder %v4603, 0.0
        %vm4668 = vcmp.gt.f32.partialorder %v4604, 0.0
        %vm4669 = vcmp.gt.f32.partialorder %v4605, 0.0
        %vm4670 = vcmp.gt.f32.partialorder %v4606, 0.0
        %vm4671 = vcmp.gt.f32.partialorder %v4607, 0.0
        %vm4672 = vcmp.gt.f32.partialorder %v4608, 0.0
        %vm4673 = vcmp.gt.f32.partialorder %v4609, 0.0
        %v4674 = vsel %vm4666, 1, 0
        %v4675 = vsel %vm4667, 1, 0
        %v4676 = vsel %vm4668, 1, 0
        %v4677 = vsel %vm4669, 1, 0
        %v4678 = vsel %vm4670, 1, 0
        %v4679 = vsel %vm4671, 1, 0
        %v4680 = vsel %vm4672, 1, 0
        %v4681 = vsel %vm4673, 1, 0
        %v4682 = vcvt.s32.f32 %v4674
        %v4683 = vcvt.s32.f32 %v4675
        %v4684 = vcvt.s32.f32 %v4676
        %v4685 = vcvt.s32.f32 %v4677
        %v4686 = vcvt.s32.f32 %v4678
        %v4687 = vcvt.s32.f32 %v4679
        %v4688 = vcvt.s32.f32 %v4680
        %v4689 = vcvt.s32.f32 %v4681
        %v4690 = vsel %vm3997, %v4682, 0.0
        %v4691 = vrot.slane %v4690, 4
        %v4692 = vadd.f32 %v4690, %v4691
        %v4693 = vrot.slane %v4692, 2
        %v4694 = vadd.f32 %v4692, %v4693
        %v4695 = vrot.slane %v4694, 1
        %v4696 = vadd.f32 %v4694, %v4695
        %v4697 = vsel %vm3997, %v4683, 0.0
        %v4698 = vrot.slane %v4697, 4
        %v4699 = vadd.f32 %v4697, %v4698
        %v4700 = vrot.slane %v4699, 2
        %v4701 = vadd.f32 %v4699, %v4700
        %v4702 = vrot.slane %v4701, 1
        %v4703 = vadd.f32 %v4701, %v4702
        %v4704 = vsel %vm3997, %v4684, 0.0
        %v4705 = vrot.slane %v4704, 4
        %v4706 = vadd.f32 %v4704, %v4705
        %v4707 = vrot.slane %v4706, 2
        %v4708 = vadd.f32 %v4706, %v4707
        %v4709 = vrot.slane %v4708, 1
        %v4710 = vadd.f32 %v4708, %v4709
        %v4711 = vsel %vm3997, %v4685, 0.0
        %v4712 = vrot.slane %v4711, 4
        %v4713 = vadd.f32 %v4711, %v4712
        %v4714 = vrot.slane %v4713, 2
        %v4715 = vadd.f32 %v4713, %v4714
        %v4716 = vrot.slane %v4715, 1
        %v4717 = vadd.f32 %v4715, %v4716
        %v4718 = vsel %vm3997, %v4686, 0.0
        %v4719 = vrot.slane %v4718, 4
        %v4720 = vadd.f32 %v4718, %v4719
        %v4721 = vrot.slane %v4720, 2
        %v4722 = vadd.f32 %v4720, %v4721
        %v4723 = vrot.slane %v4722, 1
        %v4724 = vadd.f32 %v4722, %v4723
        %v4725 = vsel %vm3997, %v4687, 0.0
        %v4726 = vrot.slane %v4725, 4
        %v4727 = vadd.f32 %v4725, %v4726
        %v4728 = vrot.slane %v4727, 2
        %v4729 = vadd.f32 %v4727, %v4728
        %v4730 = vrot.slane %v4729, 1
        %v4731 = vadd.f32 %v4729, %v4730
        %v4732 = vsel %vm3997, %v4688, 0.0
        %v4733 = vrot.slane %v4732, 4
        %v4734 = vadd.f32 %v4732, %v4733
        %v4735 = vrot.slane %v4734, 2
        %v4736 = vadd.f32 %v4734, %v4735
        %v4737 = vrot.slane %v4736, 1
        %v4738 = vadd.f32 %v4736, %v4737
        %v4739 = vsel %vm3997, %v4689, 0.0
        %v4740 = vrot.slane %v4739, 4
        %v4741 = vadd.f32 %v4739, %v4740
        %v4742 = vrot.slane %v4741, 2
        %v4743 = vadd.f32 %v4741, %v4742
        %v4744 = vrot.slane %v4743, 1
        %v4745 = vadd.f32 %v4743, %v4744
        %v4746 = vsel %vm3997, %v4602, -inf
        %v4747 = vrot.slane %v4746, 4
        %v4748 = vmax.f32 %v4746, %v4747
        %v4749 = vrot.slane %v4748, 2
        %v4750 = vmax.f32 %v4748, %v4749
        %v4751 = vrot.slane %v4750, 1
        %v4752 = vmax.f32 %v4750, %v4751
        %v4753 = vsel %vm3997, %v4603, -inf
        %v4754 = vrot.slane %v4753, 4
        %v4755 = vmax.f32 %v4753, %v4754
        %v4756 = vrot.slane %v4755, 2
        %v4757 = vmax.f32 %v4755, %v4756
        %v4758 = vrot.slane %v4757, 1
        %v4759 = vmax.f32 %v4757, %v4758
        %v4760 = vsel %vm3997, %v4604, -inf
        %v4761 = vrot.slane %v4760, 4
        %v4762 = vmax.f32 %v4760, %v4761
        %v4763 = vrot.slane %v4762, 2
        %v4764 = vmax.f32 %v4762, %v4763
        %v4765 = vrot.slane %v4764, 1
        %v4766 = vmax.f32 %v4764, %v4765
        %v4767 = vsel %vm3997, %v4605, -inf
        %v4768 = vrot.slane %v4767, 4
        %v4769 = vmax.f32 %v4767, %v4768
        %v4770 = vrot.slane %v4769, 2
        %v4771 = vmax.f32 %v4769, %v4770
        %v4772 = vrot.slane %v4771, 1
        %v4773 = vmax.f32 %v4771, %v4772
        %v4774 = vsel %vm3997, %v4606, -inf
        %v4775 = vrot.slane %v4774, 4
        %v4776 = vmax.f32 %v4774, %v4775
        %v4777 = vrot.slane %v4776, 2
        %v4778 = vmax.f32 %v4776, %v4777
        %v4779 = vrot.slane %v4778, 1
        %v4780 = vmax.f32 %v4778, %v4779
        %v4781 = vsel %vm3997, %v4607, -inf
        %v4782 = vrot.slane %v4781, 4
        %v4783 = vmax.f32 %v4781, %v4782
        %v4784 = vrot.slane %v4783, 2
        %v4785 = vmax.f32 %v4783, %v4784
        %v4786 = vrot.slane %v4785, 1
        %v4787 = vmax.f32 %v4785, %v4786
        %v4788 = vsel %vm3997, %v4608, -inf
        %v4789 = vrot.slane %v4788, 4
        %v4790 = vmax.f32 %v4788, %v4789
        %v4791 = vrot.slane %v4790, 2
        %v4792 = vmax.f32 %v4790, %v4791
        %v4793 = vrot.slane %v4792, 1
        %v4794 = vmax.f32 %v4792, %v4793
        %v4795 = vsel %vm3997, %v4609, -inf
        %v4796 = vrot.slane %v4795, 4
        %v4797 = vmax.f32 %v4795, %v4796
        %v4798 = vrot.slane %v4797, 2
        %v4799 = vmax.f32 %v4797, %v4798
        %v4800 = vrot.slane %v4799, 1
        %v4801 = vmax.f32 %v4799, %v4800
        %v4802 = vlaneseq
        %v4803 = vshrl.u32 %v4802, 7
        %v4804 = vsub.s32 1, %v4803
        %v4805 = vrot.slane %v4097, %v4804
        %v4806 = vmul.f32 %v4616, %v4805
        %v4807 = vmul.f32 %v4623, %v4805
        %v4808 = vmul.f32 %v4630, %v4805
        %v4809 = vmul.f32 %v4637, %v4805
        %v4810 = vmul.f32 %v4644, %v4805
        %v4811 = vmul.f32 %v4651, %v4805
        %v4812 = vmul.f32 %v4658, %v4805
        %v4813 = vmul.f32 %v4665, %v4805
        %v4814 = vadd.f32 %v4445, %v4806
        %v4815 = vadd.f32 %v4446, %v4807
        %v4816 = vadd.f32 %v4447, %v4808
        %v4817 = vadd.f32 %v4448, %v4809
        %v4818 = vadd.f32 %v4449, %v4810
        %v4819 = vadd.f32 %v4450, %v4811
        %v4820 = vadd.f32 %v4451, %v4812
        %v4821 = vadd.f32 %v4452, %v4813
        %v4822 = vmul.f32 %v4696, %v4805
        %v4823 = vmul.f32 %v4703, %v4805
        %v4824 = vmul.f32 %v4710, %v4805
        %v4825 = vmul.f32 %v4717, %v4805
        %v4826 = vmul.f32 %v4724, %v4805
        %v4827 = vmul.f32 %v4731, %v4805
        %v4828 = vmul.f32 %v4738, %v4805
        %v4829 = vmul.f32 %v4745, %v4805
        %v4830 = vadd.f32 %v4461, %v4822
        %v4831 = vadd.f32 %v4462, %v4823
        %v4832 = vadd.f32 %v4463, %v4824
        %v4833 = vadd.f32 %v4464, %v4825
        %v4834 = vadd.f32 %v4465, %v4826
        %v4835 = vadd.f32 %v4466, %v4827
        %v4836 = vadd.f32 %v4467, %v4828
        %v4837 = vadd.f32 %v4468, %v4829
        %v4838 = vmul.f32 %v4752, %v4805
        %v4839 = vmul.f32 %v4759, %v4805
        %v4840 = vmul.f32 %v4766, %v4805
        %v4841 = vmul.f32 %v4773, %v4805
        %v4842 = vmul.f32 %v4780, %v4805
        %v4843 = vmul.f32 %v4787, %v4805
        %v4844 = vmul.f32 %v4794, %v4805
        %v4845 = vmul.f32 %v4801, %v4805
        %v4846 = vmax.f32 %v4477, %v4838
        %v4847 = vmax.f32 %v4478, %v4839
        %v4848 = vmax.f32 %v4479, %v4840
        %v4849 = vmax.f32 %v4480, %v4841
        %v4850 = vmax.f32 %v4481, %v4842
        %v4851 = vmax.f32 %v4482, %v4843
        %v4852 = vmax.f32 %v4483, %v4844
        %v4853 = vmax.f32 %v4484, %v4845
        %v4854 = vlaneseq
        %v4855 = vshrl.u32 %v4854, 7
        %v4856 = vsub.s32 2, %v4855
        %v4857 = vrot.slane %v4107, %v4856
        %vm4858 = vcmp.eq.s32.totalorder %v4857, 1
        %v4859 = vrot.slane %v4099, 2
        %v4860 = vrot.slane %v4100, 1
        %v4861 = vsel %vm3846, %v4860, %v4859
        %v4862 = vsel %vm3847, %v4101, %v4861
        %v4863 = vrot.slane %v4102, 7
        %v4864 = vsel %vm3849, %v4863, %v4862
        %v4865 = vrot.slane %v4103, 6
        %v4866 = vsel %vm3851, %v4865, %v4864
        %v4867 = vrot.slane %v4104, 5
        %v4868 = vsel %vm3853, %v4867, %v4866
        %v4869 = vrot.slane %v4105, 4
        %v4870 = vsel %vm3855, %v4869, %v4868
        %v4871 = vrot.slane %v4106, 3
        %v4872 = vsel %vm3857, %v4871, %v4870
        %v4874 = vsel %vm4858, %v4872, -1e+30
        %v4875 = vlaneseq
        %v4876 = vshrl.u32 %v4875, 7
        %v4877 = vsub.s32 0, %v4876
        %v4878 = vrot.slane %v4874, %v4877
        %4880 = vbcast.lane.b32.xlu0 %v4878, 256
        %v4881 = vpop.permute.xlu0 %4880
        %v4882 = vlaneseq
        %v4883 = vshrl.u32 %v4882, 7
        %v4884 = vsub.s32 1, %v4883
        %v4885 = vrot.slane %v4874, %v4884
        %4887 = vbcast.lane.b32.xlu0 %v4885, 256
        %v4888 = vpop.permute.xlu0 %4887
        %v4889 = vlaneseq
        %v4890 = vshrl.u32 %v4889, 7
        %v4891 = vsub.s32 2, %v4890
        %v4892 = vrot.slane %v4874, %v4891
        %4894 = vbcast.lane.b32.xlu0 %v4892, 256
        %v4895 = vpop.permute.xlu0 %4894
        %v4896 = vlaneseq
        %v4897 = vshrl.u32 %v4896, 7
        %v4898 = vsub.s32 3, %v4897
        %v4899 = vrot.slane %v4874, %v4898
        %4901 = vbcast.lane.b32.xlu0 %v4899, 256
        %v4902 = vpop.permute.xlu0 %4901
        %v4903 = vlaneseq
        %v4904 = vshrl.u32 %v4903, 7
        %v4905 = vsub.s32 4, %v4904
        %v4906 = vrot.slane %v4874, %v4905
        %4908 = vbcast.lane.b32.xlu0 %v4906, 256
        %v4909 = vpop.permute.xlu0 %4908
        %v4910 = vlaneseq
        %v4911 = vshrl.u32 %v4910, 7
        %v4912 = vsub.s32 5, %v4911
        %v4913 = vrot.slane %v4874, %v4912
        %4915 = vbcast.lane.b32.xlu0 %v4913, 256
        %v4916 = vpop.permute.xlu0 %4915
        %v4917 = vlaneseq
        %v4918 = vshrl.u32 %v4917, 7
        %v4919 = vsub.s32 6, %v4918
        %v4920 = vrot.slane %v4874, %v4919
        %4922 = vbcast.lane.b32.xlu0 %v4920, 256
        %v4923 = vpop.permute.xlu0 %4922
        %v4924 = vlaneseq
        %v4925 = vshrl.u32 %v4924, 7
        %v4926 = vsub.s32 7, %v4925
        %v4927 = vrot.slane %v4874, %v4926
        %4929 = vbcast.lane.b32.xlu0 %v4927, 256
        %v4930 = vpop.permute.xlu0 %4929
        %v4931 = vlaneseq
        %v4932 = vshrl.u32 %v4931, 7
        %v4933 = vsub.s32 2, %v4932
        %v4934 = vrot.slane %v4082, %v4933
        %v4935 = vlaneseq
        %v4936 = vshrl.u32 %v4935, 7
        %v4937 = vsub.s32 2, %v4936
        %v4938 = vrot.slane %v4083, %v4937
        %v4939 = vlaneseq
        %v4940 = vshrl.u32 %v4939, 7
        %v4941 = vsub.s32 2, %v4940
        %v4942 = vrot.slane %v4084, %v4941
        %v4943 = vlaneseq
        %v4944 = vshrl.u32 %v4943, 7
        %v4945 = vsub.s32 2, %v4944
        %v4946 = vrot.slane %v4085, %v4945
        %v4947 = vlaneseq
        %v4948 = vshrl.u32 %v4947, 7
        %v4949 = vsub.s32 2, %v4948
        %v4950 = vrot.slane %v4086, %v4949
        %v4951 = vlaneseq
        %v4952 = vshrl.u32 %v4951, 7
        %v4953 = vsub.s32 2, %v4952
        %v4954 = vrot.slane %v4087, %v4953
        %v4955 = vlaneseq
        %v4956 = vshrl.u32 %v4955, 7
        %v4957 = vsub.s32 2, %v4956
        %v4958 = vrot.slane %v4088, %v4957
        %v4959 = vlaneseq
        %v4960 = vshrl.u32 %v4959, 7
        %v4961 = vsub.s32 2, %v4960
        %v4962 = vrot.slane %v4089, %v4961
        %v4963 = vsub.f32 %v4881, %v4934
        %v4964 = vsub.f32 %v4888, %v4938
        %v4965 = vsub.f32 %v4895, %v4942
        %v4966 = vsub.f32 %v4902, %v4946
        %v4967 = vsub.f32 %v4909, %v4950
        %v4968 = vsub.f32 %v4916, %v4954
        %v4969 = vsub.f32 %v4923, %v4958
        %v4970 = vsub.f32 %v4930, %v4962
        %v4971 = vmax.f32 %v4963, 0.0
        %v4972 = vmax.f32 %v4964, 0.0
        %v4973 = vmax.f32 %v4965, 0.0
        %v4974 = vmax.f32 %v4966, 0.0
        %v4975 = vmax.f32 %v4967, 0.0
        %v4976 = vmax.f32 %v4968, 0.0
        %v4977 = vmax.f32 %v4969, 0.0
        %v4978 = vmax.f32 %v4970, 0.0
        %v4979 = vsel %vm3997, %v4971, 0.0
        %v4980 = vrot.slane %v4979, 4
        %v4981 = vadd.f32 %v4979, %v4980
        %v4982 = vrot.slane %v4981, 2
        %v4983 = vadd.f32 %v4981, %v4982
        %v4984 = vrot.slane %v4983, 1
        %v4985 = vadd.f32 %v4983, %v4984
        %v4986 = vsel %vm3997, %v4972, 0.0
        %v4987 = vrot.slane %v4986, 4
        %v4988 = vadd.f32 %v4986, %v4987
        %v4989 = vrot.slane %v4988, 2
        %v4990 = vadd.f32 %v4988, %v4989
        %v4991 = vrot.slane %v4990, 1
        %v4992 = vadd.f32 %v4990, %v4991
        %v4993 = vsel %vm3997, %v4973, 0.0
        %v4994 = vrot.slane %v4993, 4
        %v4995 = vadd.f32 %v4993, %v4994
        %v4996 = vrot.slane %v4995, 2
        %v4997 = vadd.f32 %v4995, %v4996
        %v4998 = vrot.slane %v4997, 1
        %v4999 = vadd.f32 %v4997, %v4998
        %v5000 = vsel %vm3997, %v4974, 0.0
        %v5001 = vrot.slane %v5000, 4
        %v5002 = vadd.f32 %v5000, %v5001
        %v5003 = vrot.slane %v5002, 2
        %v5004 = vadd.f32 %v5002, %v5003
        %v5005 = vrot.slane %v5004, 1
        %v5006 = vadd.f32 %v5004, %v5005
        %v5007 = vsel %vm3997, %v4975, 0.0
        %v5008 = vrot.slane %v5007, 4
        %v5009 = vadd.f32 %v5007, %v5008
        %v5010 = vrot.slane %v5009, 2
        %v5011 = vadd.f32 %v5009, %v5010
        %v5012 = vrot.slane %v5011, 1
        %v5013 = vadd.f32 %v5011, %v5012
        %v5014 = vsel %vm3997, %v4976, 0.0
        %v5015 = vrot.slane %v5014, 4
        %v5016 = vadd.f32 %v5014, %v5015
        %v5017 = vrot.slane %v5016, 2
        %v5018 = vadd.f32 %v5016, %v5017
        %v5019 = vrot.slane %v5018, 1
        %v5020 = vadd.f32 %v5018, %v5019
        %v5021 = vsel %vm3997, %v4977, 0.0
        %v5022 = vrot.slane %v5021, 4
        %v5023 = vadd.f32 %v5021, %v5022
        %v5024 = vrot.slane %v5023, 2
        %v5025 = vadd.f32 %v5023, %v5024
        %v5026 = vrot.slane %v5025, 1
        %v5027 = vadd.f32 %v5025, %v5026
        %v5028 = vsel %vm3997, %v4978, 0.0
        %v5029 = vrot.slane %v5028, 4
        %v5030 = vadd.f32 %v5028, %v5029
        %v5031 = vrot.slane %v5030, 2
        %v5032 = vadd.f32 %v5030, %v5031
        %v5033 = vrot.slane %v5032, 1
        %v5034 = vadd.f32 %v5032, %v5033
        %vm5035 = vcmp.gt.f32.partialorder %v4971, 0.0
        %vm5036 = vcmp.gt.f32.partialorder %v4972, 0.0
        %vm5037 = vcmp.gt.f32.partialorder %v4973, 0.0
        %vm5038 = vcmp.gt.f32.partialorder %v4974, 0.0
        %vm5039 = vcmp.gt.f32.partialorder %v4975, 0.0
        %vm5040 = vcmp.gt.f32.partialorder %v4976, 0.0
        %vm5041 = vcmp.gt.f32.partialorder %v4977, 0.0
        %vm5042 = vcmp.gt.f32.partialorder %v4978, 0.0
        %v5043 = vsel %vm5035, 1, 0
        %v5044 = vsel %vm5036, 1, 0
        %v5045 = vsel %vm5037, 1, 0
        %v5046 = vsel %vm5038, 1, 0
        %v5047 = vsel %vm5039, 1, 0
        %v5048 = vsel %vm5040, 1, 0
        %v5049 = vsel %vm5041, 1, 0
        %v5050 = vsel %vm5042, 1, 0
        %v5051 = vcvt.s32.f32 %v5043
        %v5052 = vcvt.s32.f32 %v5044
        %v5053 = vcvt.s32.f32 %v5045
        %v5054 = vcvt.s32.f32 %v5046
        %v5055 = vcvt.s32.f32 %v5047
        %v5056 = vcvt.s32.f32 %v5048
        %v5057 = vcvt.s32.f32 %v5049
        %v5058 = vcvt.s32.f32 %v5050
        %v5059 = vsel %vm3997, %v5051, 0.0
        %v5060 = vrot.slane %v5059, 4
        %v5061 = vadd.f32 %v5059, %v5060
        %v5062 = vrot.slane %v5061, 2
        %v5063 = vadd.f32 %v5061, %v5062
        %v5064 = vrot.slane %v5063, 1
        %v5065 = vadd.f32 %v5063, %v5064
        %v5066 = vsel %vm3997, %v5052, 0.0
        %v5067 = vrot.slane %v5066, 4
        %v5068 = vadd.f32 %v5066, %v5067
        %v5069 = vrot.slane %v5068, 2
        %v5070 = vadd.f32 %v5068, %v5069
        %v5071 = vrot.slane %v5070, 1
        %v5072 = vadd.f32 %v5070, %v5071
        %v5073 = vsel %vm3997, %v5053, 0.0
        %v5074 = vrot.slane %v5073, 4
        %v5075 = vadd.f32 %v5073, %v5074
        %v5076 = vrot.slane %v5075, 2
        %v5077 = vadd.f32 %v5075, %v5076
        %v5078 = vrot.slane %v5077, 1
        %v5079 = vadd.f32 %v5077, %v5078
        %v5080 = vsel %vm3997, %v5054, 0.0
        %v5081 = vrot.slane %v5080, 4
        %v5082 = vadd.f32 %v5080, %v5081
        %v5083 = vrot.slane %v5082, 2
        %v5084 = vadd.f32 %v5082, %v5083
        %v5085 = vrot.slane %v5084, 1
        %v5086 = vadd.f32 %v5084, %v5085
        %v5087 = vsel %vm3997, %v5055, 0.0
        %v5088 = vrot.slane %v5087, 4
        %v5089 = vadd.f32 %v5087, %v5088
        %v5090 = vrot.slane %v5089, 2
        %v5091 = vadd.f32 %v5089, %v5090
        %v5092 = vrot.slane %v5091, 1
        %v5093 = vadd.f32 %v5091, %v5092
        %v5094 = vsel %vm3997, %v5056, 0.0
        %v5095 = vrot.slane %v5094, 4
        %v5096 = vadd.f32 %v5094, %v5095
        %v5097 = vrot.slane %v5096, 2
        %v5098 = vadd.f32 %v5096, %v5097
        %v5099 = vrot.slane %v5098, 1
        %v5100 = vadd.f32 %v5098, %v5099
        %v5101 = vsel %vm3997, %v5057, 0.0
        %v5102 = vrot.slane %v5101, 4
        %v5103 = vadd.f32 %v5101, %v5102
        %v5104 = vrot.slane %v5103, 2
        %v5105 = vadd.f32 %v5103, %v5104
        %v5106 = vrot.slane %v5105, 1
        %v5107 = vadd.f32 %v5105, %v5106
        %v5108 = vsel %vm3997, %v5058, 0.0
        %v5109 = vrot.slane %v5108, 4
        %v5110 = vadd.f32 %v5108, %v5109
        %v5111 = vrot.slane %v5110, 2
        %v5112 = vadd.f32 %v5110, %v5111
        %v5113 = vrot.slane %v5112, 1
        %v5114 = vadd.f32 %v5112, %v5113
        %v5115 = vsel %vm3997, %v4971, -inf
        %v5116 = vrot.slane %v5115, 4
        %v5117 = vmax.f32 %v5115, %v5116
        %v5118 = vrot.slane %v5117, 2
        %v5119 = vmax.f32 %v5117, %v5118
        %v5120 = vrot.slane %v5119, 1
        %v5121 = vmax.f32 %v5119, %v5120
        %v5122 = vsel %vm3997, %v4972, -inf
        %v5123 = vrot.slane %v5122, 4
        %v5124 = vmax.f32 %v5122, %v5123
        %v5125 = vrot.slane %v5124, 2
        %v5126 = vmax.f32 %v5124, %v5125
        %v5127 = vrot.slane %v5126, 1
        %v5128 = vmax.f32 %v5126, %v5127
        %v5129 = vsel %vm3997, %v4973, -inf
        %v5130 = vrot.slane %v5129, 4
        %v5131 = vmax.f32 %v5129, %v5130
        %v5132 = vrot.slane %v5131, 2
        %v5133 = vmax.f32 %v5131, %v5132
        %v5134 = vrot.slane %v5133, 1
        %v5135 = vmax.f32 %v5133, %v5134
        %v5136 = vsel %vm3997, %v4974, -inf
        %v5137 = vrot.slane %v5136, 4
        %v5138 = vmax.f32 %v5136, %v5137
        %v5139 = vrot.slane %v5138, 2
        %v5140 = vmax.f32 %v5138, %v5139
        %v5141 = vrot.slane %v5140, 1
        %v5142 = vmax.f32 %v5140, %v5141
        %v5143 = vsel %vm3997, %v4975, -inf
        %v5144 = vrot.slane %v5143, 4
        %v5145 = vmax.f32 %v5143, %v5144
        %v5146 = vrot.slane %v5145, 2
        %v5147 = vmax.f32 %v5145, %v5146
        %v5148 = vrot.slane %v5147, 1
        %v5149 = vmax.f32 %v5147, %v5148
        %v5150 = vsel %vm3997, %v4976, -inf
        %v5151 = vrot.slane %v5150, 4
        %v5152 = vmax.f32 %v5150, %v5151
        %v5153 = vrot.slane %v5152, 2
        %v5154 = vmax.f32 %v5152, %v5153
        %v5155 = vrot.slane %v5154, 1
        %v5156 = vmax.f32 %v5154, %v5155
        %v5157 = vsel %vm3997, %v4977, -inf
        %v5158 = vrot.slane %v5157, 4
        %v5159 = vmax.f32 %v5157, %v5158
        %v5160 = vrot.slane %v5159, 2
        %v5161 = vmax.f32 %v5159, %v5160
        %v5162 = vrot.slane %v5161, 1
        %v5163 = vmax.f32 %v5161, %v5162
        %v5164 = vsel %vm3997, %v4978, -inf
        %v5165 = vrot.slane %v5164, 4
        %v5166 = vmax.f32 %v5164, %v5165
        %v5167 = vrot.slane %v5166, 2
        %v5168 = vmax.f32 %v5166, %v5167
        %v5169 = vrot.slane %v5168, 1
        %v5170 = vmax.f32 %v5168, %v5169
        %v5171 = vlaneseq
        %v5172 = vshrl.u32 %v5171, 7
        %v5173 = vsub.s32 2, %v5172
        %v5174 = vrot.slane %v4097, %v5173
        %v5175 = vmul.f32 %v4985, %v5174
        %v5176 = vmul.f32 %v4992, %v5174
        %v5177 = vmul.f32 %v4999, %v5174
        %v5178 = vmul.f32 %v5006, %v5174
        %v5179 = vmul.f32 %v5013, %v5174
        %v5180 = vmul.f32 %v5020, %v5174
        %v5181 = vmul.f32 %v5027, %v5174
        %v5182 = vmul.f32 %v5034, %v5174
        %v5183 = vadd.f32 %v4814, %v5175
        %v5184 = vadd.f32 %v4815, %v5176
        %v5185 = vadd.f32 %v4816, %v5177
        %v5186 = vadd.f32 %v4817, %v5178
        %v5187 = vadd.f32 %v4818, %v5179
        %v5188 = vadd.f32 %v4819, %v5180
        %v5189 = vadd.f32 %v4820, %v5181
        %v5190 = vadd.f32 %v4821, %v5182
        %v5191 = vmul.f32 %v5065, %v5174
        %v5192 = vmul.f32 %v5072, %v5174
        %v5193 = vmul.f32 %v5079, %v5174
        %v5194 = vmul.f32 %v5086, %v5174
        %v5195 = vmul.f32 %v5093, %v5174
        %v5196 = vmul.f32 %v5100, %v5174
        %v5197 = vmul.f32 %v5107, %v5174
        %v5198 = vmul.f32 %v5114, %v5174
        %v5199 = vadd.f32 %v4830, %v5191
        %v5200 = vadd.f32 %v4831, %v5192
        %v5201 = vadd.f32 %v4832, %v5193
        %v5202 = vadd.f32 %v4833, %v5194
        %v5203 = vadd.f32 %v4834, %v5195
        %v5204 = vadd.f32 %v4835, %v5196
        %v5205 = vadd.f32 %v4836, %v5197
        %v5206 = vadd.f32 %v4837, %v5198
        %v5207 = vmul.f32 %v5121, %v5174
        %v5208 = vmul.f32 %v5128, %v5174
        %v5209 = vmul.f32 %v5135, %v5174
        %v5210 = vmul.f32 %v5142, %v5174
        %v5211 = vmul.f32 %v5149, %v5174
        %v5212 = vmul.f32 %v5156, %v5174
        %v5213 = vmul.f32 %v5163, %v5174
        %v5214 = vmul.f32 %v5170, %v5174
        %v5215 = vmax.f32 %v4846, %v5207
        %v5216 = vmax.f32 %v4847, %v5208
        %v5217 = vmax.f32 %v4848, %v5209
        %v5218 = vmax.f32 %v4849, %v5210
        %v5219 = vmax.f32 %v4850, %v5211
        %v5220 = vmax.f32 %v4851, %v5212
        %v5221 = vmax.f32 %v4852, %v5213
        %v5222 = vmax.f32 %v4853, %v5214
        %v5223 = vlaneseq
        %v5224 = vshrl.u32 %v5223, 7
        %v5225 = vsub.s32 3, %v5224
        %v5226 = vrot.slane %v4107, %v5225
        %vm5227 = vcmp.eq.s32.totalorder %v5226, 1
        %v5228 = vrot.slane %v4099, 3
        %v5229 = vrot.slane %v4100, 2
        %v5230 = vsel %vm3846, %v5229, %v5228
        %v5231 = vrot.slane %v4101, 1
        %v5232 = vsel %vm3847, %v5231, %v5230
        %v5233 = vsel %vm3849, %v4102, %v5232
        %v5234 = vrot.slane %v4103, 7
        %v5235 = vsel %vm3851, %v5234, %v5233
        %v5236 = vrot.slane %v4104, 6
        %v5237 = vsel %vm3853, %v5236, %v5235
        %v5238 = vrot.slane %v4105, 5
        %v5239 = vsel %vm3855, %v5238, %v5237
        %v5240 = vrot.slane %v4106, 4
        %v5241 = vsel %vm3857, %v5240, %v5239
        %v5243 = vsel %vm5227, %v5241, -1e+30
        %v5244 = vlaneseq
        %v5245 = vshrl.u32 %v5244, 7
        %v5246 = vsub.s32 0, %v5245
        %v5247 = vrot.slane %v5243, %v5246
        %5249 = vbcast.lane.b32.xlu0 %v5247, 256
        %v5250 = vpop.permute.xlu0 %5249
        %v5251 = vlaneseq
        %v5252 = vshrl.u32 %v5251, 7
        %v5253 = vsub.s32 1, %v5252
        %v5254 = vrot.slane %v5243, %v5253
        %5256 = vbcast.lane.b32.xlu0 %v5254, 256
        %v5257 = vpop.permute.xlu0 %5256
        %v5258 = vlaneseq
        %v5259 = vshrl.u32 %v5258, 7
        %v5260 = vsub.s32 2, %v5259
        %v5261 = vrot.slane %v5243, %v5260
        %5263 = vbcast.lane.b32.xlu0 %v5261, 256
        %v5264 = vpop.permute.xlu0 %5263
        %v5265 = vlaneseq
        %v5266 = vshrl.u32 %v5265, 7
        %v5267 = vsub.s32 3, %v5266
        %v5268 = vrot.slane %v5243, %v5267
        %5270 = vbcast.lane.b32.xlu0 %v5268, 256
        %v5271 = vpop.permute.xlu0 %5270
        %v5272 = vlaneseq
        %v5273 = vshrl.u32 %v5272, 7
        %v5274 = vsub.s32 4, %v5273
        %v5275 = vrot.slane %v5243, %v5274
        %5277 = vbcast.lane.b32.xlu0 %v5275, 256
        %v5278 = vpop.permute.xlu0 %5277
        %v5279 = vlaneseq
        %v5280 = vshrl.u32 %v5279, 7
        %v5281 = vsub.s32 5, %v5280
        %v5282 = vrot.slane %v5243, %v5281
        %5284 = vbcast.lane.b32.xlu0 %v5282, 256
        %v5285 = vpop.permute.xlu0 %5284
        %v5286 = vlaneseq
        %v5287 = vshrl.u32 %v5286, 7
        %v5288 = vsub.s32 6, %v5287
        %v5289 = vrot.slane %v5243, %v5288
        %5291 = vbcast.lane.b32.xlu0 %v5289, 256
        %v5292 = vpop.permute.xlu0 %5291
        %v5293 = vlaneseq
        %v5294 = vshrl.u32 %v5293, 7
        %v5295 = vsub.s32 7, %v5294
        %v5296 = vrot.slane %v5243, %v5295
        %5298 = vbcast.lane.b32.xlu0 %v5296, 256
        %v5299 = vpop.permute.xlu0 %5298
        %v5300 = vlaneseq
        %v5301 = vshrl.u32 %v5300, 7
        %v5302 = vsub.s32 3, %v5301
        %v5303 = vrot.slane %v4082, %v5302
        %v5304 = vlaneseq
        %v5305 = vshrl.u32 %v5304, 7
        %v5306 = vsub.s32 3, %v5305
        %v5307 = vrot.slane %v4083, %v5306
        %v5308 = vlaneseq
        %v5309 = vshrl.u32 %v5308, 7
        %v5310 = vsub.s32 3, %v5309
        %v5311 = vrot.slane %v4084, %v5310
        %v5312 = vlaneseq
        %v5313 = vshrl.u32 %v5312, 7
        %v5314 = vsub.s32 3, %v5313
        %v5315 = vrot.slane %v4085, %v5314
        %v5316 = vlaneseq
        %v5317 = vshrl.u32 %v5316, 7
        %v5318 = vsub.s32 3, %v5317
        %v5319 = vrot.slane %v4086, %v5318
        %v5320 = vlaneseq
        %v5321 = vshrl.u32 %v5320, 7
        %v5322 = vsub.s32 3, %v5321
        %v5323 = vrot.slane %v4087, %v5322
        %v5324 = vlaneseq
        %v5325 = vshrl.u32 %v5324, 7
        %v5326 = vsub.s32 3, %v5325
        %v5327 = vrot.slane %v4088, %v5326
        %v5328 = vlaneseq
        %v5329 = vshrl.u32 %v5328, 7
        %v5330 = vsub.s32 3, %v5329
        %v5331 = vrot.slane %v4089, %v5330
        %v5332 = vsub.f32 %v5250, %v5303
        %v5333 = vsub.f32 %v5257, %v5307
        %v5334 = vsub.f32 %v5264, %v5311
        %v5335 = vsub.f32 %v5271, %v5315
        %v5336 = vsub.f32 %v5278, %v5319
        %v5337 = vsub.f32 %v5285, %v5323
        %v5338 = vsub.f32 %v5292, %v5327
        %v5339 = vsub.f32 %v5299, %v5331
        %v5340 = vmax.f32 %v5332, 0.0
        %v5341 = vmax.f32 %v5333, 0.0
        %v5342 = vmax.f32 %v5334, 0.0
        %v5343 = vmax.f32 %v5335, 0.0
        %v5344 = vmax.f32 %v5336, 0.0
        %v5345 = vmax.f32 %v5337, 0.0
        %v5346 = vmax.f32 %v5338, 0.0
        %v5347 = vmax.f32 %v5339, 0.0
        %v5348 = vsel %vm3997, %v5340, 0.0
        %v5349 = vrot.slane %v5348, 4
        %v5350 = vadd.f32 %v5348, %v5349
        %v5351 = vrot.slane %v5350, 2
        %v5352 = vadd.f32 %v5350, %v5351
        %v5353 = vrot.slane %v5352, 1
        %v5354 = vadd.f32 %v5352, %v5353
        %v5355 = vsel %vm3997, %v5341, 0.0
        %v5356 = vrot.slane %v5355, 4
        %v5357 = vadd.f32 %v5355, %v5356
        %v5358 = vrot.slane %v5357, 2
        %v5359 = vadd.f32 %v5357, %v5358
        %v5360 = vrot.slane %v5359, 1
        %v5361 = vadd.f32 %v5359, %v5360
        %v5362 = vsel %vm3997, %v5342, 0.0
        %v5363 = vrot.slane %v5362, 4
        %v5364 = vadd.f32 %v5362, %v5363
        %v5365 = vrot.slane %v5364, 2
        %v5366 = vadd.f32 %v5364, %v5365
        %v5367 = vrot.slane %v5366, 1
        %v5368 = vadd.f32 %v5366, %v5367
        %v5369 = vsel %vm3997, %v5343, 0.0
        %v5370 = vrot.slane %v5369, 4
        %v5371 = vadd.f32 %v5369, %v5370
        %v5372 = vrot.slane %v5371, 2
        %v5373 = vadd.f32 %v5371, %v5372
        %v5374 = vrot.slane %v5373, 1
        %v5375 = vadd.f32 %v5373, %v5374
        %v5376 = vsel %vm3997, %v5344, 0.0
        %v5377 = vrot.slane %v5376, 4
        %v5378 = vadd.f32 %v5376, %v5377
        %v5379 = vrot.slane %v5378, 2
        %v5380 = vadd.f32 %v5378, %v5379
        %v5381 = vrot.slane %v5380, 1
        %v5382 = vadd.f32 %v5380, %v5381
        %v5383 = vsel %vm3997, %v5345, 0.0
        %v5384 = vrot.slane %v5383, 4
        %v5385 = vadd.f32 %v5383, %v5384
        %v5386 = vrot.slane %v5385, 2
        %v5387 = vadd.f32 %v5385, %v5386
        %v5388 = vrot.slane %v5387, 1
        %v5389 = vadd.f32 %v5387, %v5388
        %v5390 = vsel %vm3997, %v5346, 0.0
        %v5391 = vrot.slane %v5390, 4
        %v5392 = vadd.f32 %v5390, %v5391
        %v5393 = vrot.slane %v5392, 2
        %v5394 = vadd.f32 %v5392, %v5393
        %v5395 = vrot.slane %v5394, 1
        %v5396 = vadd.f32 %v5394, %v5395
        %v5397 = vsel %vm3997, %v5347, 0.0
        %v5398 = vrot.slane %v5397, 4
        %v5399 = vadd.f32 %v5397, %v5398
        %v5400 = vrot.slane %v5399, 2
        %v5401 = vadd.f32 %v5399, %v5400
        %v5402 = vrot.slane %v5401, 1
        %v5403 = vadd.f32 %v5401, %v5402
        %vm5404 = vcmp.gt.f32.partialorder %v5340, 0.0
        %vm5405 = vcmp.gt.f32.partialorder %v5341, 0.0
        %vm5406 = vcmp.gt.f32.partialorder %v5342, 0.0
        %vm5407 = vcmp.gt.f32.partialorder %v5343, 0.0
        %vm5408 = vcmp.gt.f32.partialorder %v5344, 0.0
        %vm5409 = vcmp.gt.f32.partialorder %v5345, 0.0
        %vm5410 = vcmp.gt.f32.partialorder %v5346, 0.0
        %vm5411 = vcmp.gt.f32.partialorder %v5347, 0.0
        %v5412 = vsel %vm5404, 1, 0
        %v5413 = vsel %vm5405, 1, 0
        %v5414 = vsel %vm5406, 1, 0
        %v5415 = vsel %vm5407, 1, 0
        %v5416 = vsel %vm5408, 1, 0
        %v5417 = vsel %vm5409, 1, 0
        %v5418 = vsel %vm5410, 1, 0
        %v5419 = vsel %vm5411, 1, 0
        %v5420 = vcvt.s32.f32 %v5412
        %v5421 = vcvt.s32.f32 %v5413
        %v5422 = vcvt.s32.f32 %v5414
        %v5423 = vcvt.s32.f32 %v5415
        %v5424 = vcvt.s32.f32 %v5416
        %v5425 = vcvt.s32.f32 %v5417
        %v5426 = vcvt.s32.f32 %v5418
        %v5427 = vcvt.s32.f32 %v5419
        %v5428 = vsel %vm3997, %v5420, 0.0
        %v5429 = vrot.slane %v5428, 4
        %v5430 = vadd.f32 %v5428, %v5429
        %v5431 = vrot.slane %v5430, 2
        %v5432 = vadd.f32 %v5430, %v5431
        %v5433 = vrot.slane %v5432, 1
        %v5434 = vadd.f32 %v5432, %v5433
        %v5435 = vsel %vm3997, %v5421, 0.0
        %v5436 = vrot.slane %v5435, 4
        %v5437 = vadd.f32 %v5435, %v5436
        %v5438 = vrot.slane %v5437, 2
        %v5439 = vadd.f32 %v5437, %v5438
        %v5440 = vrot.slane %v5439, 1
        %v5441 = vadd.f32 %v5439, %v5440
        %v5442 = vsel %vm3997, %v5422, 0.0
        %v5443 = vrot.slane %v5442, 4
        %v5444 = vadd.f32 %v5442, %v5443
        %v5445 = vrot.slane %v5444, 2
        %v5446 = vadd.f32 %v5444, %v5445
        %v5447 = vrot.slane %v5446, 1
        %v5448 = vadd.f32 %v5446, %v5447
        %v5449 = vsel %vm3997, %v5423, 0.0
        %v5450 = vrot.slane %v5449, 4
        %v5451 = vadd.f32 %v5449, %v5450
        %v5452 = vrot.slane %v5451, 2
        %v5453 = vadd.f32 %v5451, %v5452
        %v5454 = vrot.slane %v5453, 1
        %v5455 = vadd.f32 %v5453, %v5454
        %v5456 = vsel %vm3997, %v5424, 0.0
        %v5457 = vrot.slane %v5456, 4
        %v5458 = vadd.f32 %v5456, %v5457
        %v5459 = vrot.slane %v5458, 2
        %v5460 = vadd.f32 %v5458, %v5459
        %v5461 = vrot.slane %v5460, 1
        %v5462 = vadd.f32 %v5460, %v5461
        %v5463 = vsel %vm3997, %v5425, 0.0
        %v5464 = vrot.slane %v5463, 4
        %v5465 = vadd.f32 %v5463, %v5464
        %v5466 = vrot.slane %v5465, 2
        %v5467 = vadd.f32 %v5465, %v5466
        %v5468 = vrot.slane %v5467, 1
        %v5469 = vadd.f32 %v5467, %v5468
        %v5470 = vsel %vm3997, %v5426, 0.0
        %v5471 = vrot.slane %v5470, 4
        %v5472 = vadd.f32 %v5470, %v5471
        %v5473 = vrot.slane %v5472, 2
        %v5474 = vadd.f32 %v5472, %v5473
        %v5475 = vrot.slane %v5474, 1
        %v5476 = vadd.f32 %v5474, %v5475
        %v5477 = vsel %vm3997, %v5427, 0.0
        %v5478 = vrot.slane %v5477, 4
        %v5479 = vadd.f32 %v5477, %v5478
        %v5480 = vrot.slane %v5479, 2
        %v5481 = vadd.f32 %v5479, %v5480
        %v5482 = vrot.slane %v5481, 1
        %v5483 = vadd.f32 %v5481, %v5482
        %v5484 = vsel %vm3997, %v5340, -inf
        %v5485 = vrot.slane %v5484, 4
        %v5486 = vmax.f32 %v5484, %v5485
        %v5487 = vrot.slane %v5486, 2
        %v5488 = vmax.f32 %v5486, %v5487
        %v5489 = vrot.slane %v5488, 1
        %v5490 = vmax.f32 %v5488, %v5489
        %v5491 = vsel %vm3997, %v5341, -inf
        %v5492 = vrot.slane %v5491, 4
        %v5493 = vmax.f32 %v5491, %v5492
        %v5494 = vrot.slane %v5493, 2
        %v5495 = vmax.f32 %v5493, %v5494
        %v5496 = vrot.slane %v5495, 1
        %v5497 = vmax.f32 %v5495, %v5496
        %v5498 = vsel %vm3997, %v5342, -inf
        %v5499 = vrot.slane %v5498, 4
        %v5500 = vmax.f32 %v5498, %v5499
        %v5501 = vrot.slane %v5500, 2
        %v5502 = vmax.f32 %v5500, %v5501
        %v5503 = vrot.slane %v5502, 1
        %v5504 = vmax.f32 %v5502, %v5503
        %v5505 = vsel %vm3997, %v5343, -inf
        %v5506 = vrot.slane %v5505, 4
        %v5507 = vmax.f32 %v5505, %v5506
        %v5508 = vrot.slane %v5507, 2
        %v5509 = vmax.f32 %v5507, %v5508
        %v5510 = vrot.slane %v5509, 1
        %v5511 = vmax.f32 %v5509, %v5510
        %v5512 = vsel %vm3997, %v5344, -inf
        %v5513 = vrot.slane %v5512, 4
        %v5514 = vmax.f32 %v5512, %v5513
        %v5515 = vrot.slane %v5514, 2
        %v5516 = vmax.f32 %v5514, %v5515
        %v5517 = vrot.slane %v5516, 1
        %v5518 = vmax.f32 %v5516, %v5517
        %v5519 = vsel %vm3997, %v5345, -inf
        %v5520 = vrot.slane %v5519, 4
        %v5521 = vmax.f32 %v5519, %v5520
        %v5522 = vrot.slane %v5521, 2
        %v5523 = vmax.f32 %v5521, %v5522
        %v5524 = vrot.slane %v5523, 1
        %v5525 = vmax.f32 %v5523, %v5524
        %v5526 = vsel %vm3997, %v5346, -inf
        %v5527 = vrot.slane %v5526, 4
        %v5528 = vmax.f32 %v5526, %v5527
        %v5529 = vrot.slane %v5528, 2
        %v5530 = vmax.f32 %v5528, %v5529
        %v5531 = vrot.slane %v5530, 1
        %v5532 = vmax.f32 %v5530, %v5531
        %v5533 = vsel %vm3997, %v5347, -inf
        %v5534 = vrot.slane %v5533, 4
        %v5535 = vmax.f32 %v5533, %v5534
        %v5536 = vrot.slane %v5535, 2
        %v5537 = vmax.f32 %v5535, %v5536
        %v5538 = vrot.slane %v5537, 1
        %v5539 = vmax.f32 %v5537, %v5538
        %v5540 = vlaneseq
        %v5541 = vshrl.u32 %v5540, 7
        %v5542 = vsub.s32 3, %v5541
        %v5543 = vrot.slane %v4097, %v5542
        %v5544 = vmul.f32 %v5354, %v5543
        %v5545 = vmul.f32 %v5361, %v5543
        %v5546 = vmul.f32 %v5368, %v5543
        %v5547 = vmul.f32 %v5375, %v5543
        %v5548 = vmul.f32 %v5382, %v5543
        %v5549 = vmul.f32 %v5389, %v5543
        %v5550 = vmul.f32 %v5396, %v5543
        %v5551 = vmul.f32 %v5403, %v5543
        %v5552 = vadd.f32 %v5183, %v5544
        %v5553 = vadd.f32 %v5184, %v5545
        %v5554 = vadd.f32 %v5185, %v5546
        %v5555 = vadd.f32 %v5186, %v5547
        %v5556 = vadd.f32 %v5187, %v5548
        %v5557 = vadd.f32 %v5188, %v5549
        %v5558 = vadd.f32 %v5189, %v5550
        %v5559 = vadd.f32 %v5190, %v5551
        %v5560 = vmul.f32 %v5434, %v5543
        %v5561 = vmul.f32 %v5441, %v5543
        %v5562 = vmul.f32 %v5448, %v5543
        %v5563 = vmul.f32 %v5455, %v5543
        %v5564 = vmul.f32 %v5462, %v5543
        %v5565 = vmul.f32 %v5469, %v5543
        %v5566 = vmul.f32 %v5476, %v5543
        %v5567 = vmul.f32 %v5483, %v5543
        %v5568 = vadd.f32 %v5199, %v5560
        %v5569 = vadd.f32 %v5200, %v5561
        %v5570 = vadd.f32 %v5201, %v5562
        %v5571 = vadd.f32 %v5202, %v5563
        %v5572 = vadd.f32 %v5203, %v5564
        %v5573 = vadd.f32 %v5204, %v5565
        %v5574 = vadd.f32 %v5205, %v5566
        %v5575 = vadd.f32 %v5206, %v5567
        %v5576 = vmul.f32 %v5490, %v5543
        %v5577 = vmul.f32 %v5497, %v5543
        %v5578 = vmul.f32 %v5504, %v5543
        %v5579 = vmul.f32 %v5511, %v5543
        %v5580 = vmul.f32 %v5518, %v5543
        %v5581 = vmul.f32 %v5525, %v5543
        %v5582 = vmul.f32 %v5532, %v5543
        %v5583 = vmul.f32 %v5539, %v5543
        %v5584 = vmax.f32 %v5215, %v5576
        %v5585 = vmax.f32 %v5216, %v5577
        %v5586 = vmax.f32 %v5217, %v5578
        %v5587 = vmax.f32 %v5218, %v5579
        %v5588 = vmax.f32 %v5219, %v5580
        %v5589 = vmax.f32 %v5220, %v5581
        %v5590 = vmax.f32 %v5221, %v5582
        %v5591 = vmax.f32 %v5222, %v5583
        %v5592 = vlaneseq
        %v5593 = vshrl.u32 %v5592, 7
        %v5594 = vsub.s32 4, %v5593
        %v5595 = vrot.slane %v4107, %v5594
        %vm5596 = vcmp.eq.s32.totalorder %v5595, 1
        %v5597 = vrot.slane %v4099, 4
        %v5598 = vrot.slane %v4100, 3
        %v5599 = vsel %vm3846, %v5598, %v5597
        %v5600 = vrot.slane %v4101, 2
        %v5601 = vsel %vm3847, %v5600, %v5599
        %v5602 = vrot.slane %v4102, 1
        %v5603 = vsel %vm3849, %v5602, %v5601
        %v5604 = vsel %vm3851, %v4103, %v5603
        %v5605 = vrot.slane %v4104, 7
        %v5606 = vsel %vm3853, %v5605, %v5604
        %v5607 = vrot.slane %v4105, 6
        %v5608 = vsel %vm3855, %v5607, %v5606
        %v5609 = vrot.slane %v4106, 5
        %v5610 = vsel %vm3857, %v5609, %v5608
        %v5612 = vsel %vm5596, %v5610, -1e+30
        %v5613 = vlaneseq
        %v5614 = vshrl.u32 %v5613, 7
        %v5615 = vsub.s32 0, %v5614
        %v5616 = vrot.slane %v5612, %v5615
        %5618 = vbcast.lane.b32.xlu0 %v5616, 256
        %v5619 = vpop.permute.xlu0 %5618
        %v5620 = vlaneseq
        %v5621 = vshrl.u32 %v5620, 7
        %v5622 = vsub.s32 1, %v5621
        %v5623 = vrot.slane %v5612, %v5622
        %5625 = vbcast.lane.b32.xlu0 %v5623, 256
        %v5626 = vpop.permute.xlu0 %5625
        %v5627 = vlaneseq
        %v5628 = vshrl.u32 %v5627, 7
        %v5629 = vsub.s32 2, %v5628
        %v5630 = vrot.slane %v5612, %v5629
        %5632 = vbcast.lane.b32.xlu0 %v5630, 256
        %v5633 = vpop.permute.xlu0 %5632
        %v5634 = vlaneseq
        %v5635 = vshrl.u32 %v5634, 7
        %v5636 = vsub.s32 3, %v5635
        %v5637 = vrot.slane %v5612, %v5636
        %5639 = vbcast.lane.b32.xlu0 %v5637, 256
        %v5640 = vpop.permute.xlu0 %5639
        %v5641 = vlaneseq
        %v5642 = vshrl.u32 %v5641, 7
        %v5643 = vsub.s32 4, %v5642
        %v5644 = vrot.slane %v5612, %v5643
        %5646 = vbcast.lane.b32.xlu0 %v5644, 256
        %v5647 = vpop.permute.xlu0 %5646
        %v5648 = vlaneseq
        %v5649 = vshrl.u32 %v5648, 7
        %v5650 = vsub.s32 5, %v5649
        %v5651 = vrot.slane %v5612, %v5650
        %5653 = vbcast.lane.b32.xlu0 %v5651, 256
        %v5654 = vpop.permute.xlu0 %5653
        %v5655 = vlaneseq
        %v5656 = vshrl.u32 %v5655, 7
        %v5657 = vsub.s32 6, %v5656
        %v5658 = vrot.slane %v5612, %v5657
        %5660 = vbcast.lane.b32.xlu0 %v5658, 256
        %v5661 = vpop.permute.xlu0 %5660
        %v5662 = vlaneseq
        %v5663 = vshrl.u32 %v5662, 7
        %v5664 = vsub.s32 7, %v5663
        %v5665 = vrot.slane %v5612, %v5664
        %5667 = vbcast.lane.b32.xlu0 %v5665, 256
        %v5668 = vpop.permute.xlu0 %5667
        %v5669 = vlaneseq
        %v5670 = vshrl.u32 %v5669, 7
        %v5671 = vsub.s32 4, %v5670
        %v5672 = vrot.slane %v4082, %v5671
        %v5673 = vlaneseq
        %v5674 = vshrl.u32 %v5673, 7
        %v5675 = vsub.s32 4, %v5674
        %v5676 = vrot.slane %v4083, %v5675
        %v5677 = vlaneseq
        %v5678 = vshrl.u32 %v5677, 7
        %v5679 = vsub.s32 4, %v5678
        %v5680 = vrot.slane %v4084, %v5679
        %v5681 = vlaneseq
        %v5682 = vshrl.u32 %v5681, 7
        %v5683 = vsub.s32 4, %v5682
        %v5684 = vrot.slane %v4085, %v5683
        %v5685 = vlaneseq
        %v5686 = vshrl.u32 %v5685, 7
        %v5687 = vsub.s32 4, %v5686
        %v5688 = vrot.slane %v4086, %v5687
        %v5689 = vlaneseq
        %v5690 = vshrl.u32 %v5689, 7
        %v5691 = vsub.s32 4, %v5690
        %v5692 = vrot.slane %v4087, %v5691
        %v5693 = vlaneseq
        %v5694 = vshrl.u32 %v5693, 7
        %v5695 = vsub.s32 4, %v5694
        %v5696 = vrot.slane %v4088, %v5695
        %v5697 = vlaneseq
        %v5698 = vshrl.u32 %v5697, 7
        %v5699 = vsub.s32 4, %v5698
        %v5700 = vrot.slane %v4089, %v5699
        %v5701 = vsub.f32 %v5619, %v5672
        %v5702 = vsub.f32 %v5626, %v5676
        %v5703 = vsub.f32 %v5633, %v5680
        %v5704 = vsub.f32 %v5640, %v5684
        %v5705 = vsub.f32 %v5647, %v5688
        %v5706 = vsub.f32 %v5654, %v5692
        %v5707 = vsub.f32 %v5661, %v5696
        %v5708 = vsub.f32 %v5668, %v5700
        %v5709 = vmax.f32 %v5701, 0.0
        %v5710 = vmax.f32 %v5702, 0.0
        %v5711 = vmax.f32 %v5703, 0.0
        %v5712 = vmax.f32 %v5704, 0.0
        %v5713 = vmax.f32 %v5705, 0.0
        %v5714 = vmax.f32 %v5706, 0.0
        %v5715 = vmax.f32 %v5707, 0.0
        %v5716 = vmax.f32 %v5708, 0.0
        %v5717 = vsel %vm3997, %v5709, 0.0
        %v5718 = vrot.slane %v5717, 4
        %v5719 = vadd.f32 %v5717, %v5718
        %v5720 = vrot.slane %v5719, 2
        %v5721 = vadd.f32 %v5719, %v5720
        %v5722 = vrot.slane %v5721, 1
        %v5723 = vadd.f32 %v5721, %v5722
        %v5724 = vsel %vm3997, %v5710, 0.0
        %v5725 = vrot.slane %v5724, 4
        %v5726 = vadd.f32 %v5724, %v5725
        %v5727 = vrot.slane %v5726, 2
        %v5728 = vadd.f32 %v5726, %v5727
        %v5729 = vrot.slane %v5728, 1
        %v5730 = vadd.f32 %v5728, %v5729
        %v5731 = vsel %vm3997, %v5711, 0.0
        %v5732 = vrot.slane %v5731, 4
        %v5733 = vadd.f32 %v5731, %v5732
        %v5734 = vrot.slane %v5733, 2
        %v5735 = vadd.f32 %v5733, %v5734
        %v5736 = vrot.slane %v5735, 1
        %v5737 = vadd.f32 %v5735, %v5736
        %v5738 = vsel %vm3997, %v5712, 0.0
        %v5739 = vrot.slane %v5738, 4
        %v5740 = vadd.f32 %v5738, %v5739
        %v5741 = vrot.slane %v5740, 2
        %v5742 = vadd.f32 %v5740, %v5741
        %v5743 = vrot.slane %v5742, 1
        %v5744 = vadd.f32 %v5742, %v5743
        %v5745 = vsel %vm3997, %v5713, 0.0
        %v5746 = vrot.slane %v5745, 4
        %v5747 = vadd.f32 %v5745, %v5746
        %v5748 = vrot.slane %v5747, 2
        %v5749 = vadd.f32 %v5747, %v5748
        %v5750 = vrot.slane %v5749, 1
        %v5751 = vadd.f32 %v5749, %v5750
        %v5752 = vsel %vm3997, %v5714, 0.0
        %v5753 = vrot.slane %v5752, 4
        %v5754 = vadd.f32 %v5752, %v5753
        %v5755 = vrot.slane %v5754, 2
        %v5756 = vadd.f32 %v5754, %v5755
        %v5757 = vrot.slane %v5756, 1
        %v5758 = vadd.f32 %v5756, %v5757
        %v5759 = vsel %vm3997, %v5715, 0.0
        %v5760 = vrot.slane %v5759, 4
        %v5761 = vadd.f32 %v5759, %v5760
        %v5762 = vrot.slane %v5761, 2
        %v5763 = vadd.f32 %v5761, %v5762
        %v5764 = vrot.slane %v5763, 1
        %v5765 = vadd.f32 %v5763, %v5764
        %v5766 = vsel %vm3997, %v5716, 0.0
        %v5767 = vrot.slane %v5766, 4
        %v5768 = vadd.f32 %v5766, %v5767
        %v5769 = vrot.slane %v5768, 2
        %v5770 = vadd.f32 %v5768, %v5769
        %v5771 = vrot.slane %v5770, 1
        %v5772 = vadd.f32 %v5770, %v5771
        %vm5773 = vcmp.gt.f32.partialorder %v5709, 0.0
        %vm5774 = vcmp.gt.f32.partialorder %v5710, 0.0
        %vm5775 = vcmp.gt.f32.partialorder %v5711, 0.0
        %vm5776 = vcmp.gt.f32.partialorder %v5712, 0.0
        %vm5777 = vcmp.gt.f32.partialorder %v5713, 0.0
        %vm5778 = vcmp.gt.f32.partialorder %v5714, 0.0
        %vm5779 = vcmp.gt.f32.partialorder %v5715, 0.0
        %vm5780 = vcmp.gt.f32.partialorder %v5716, 0.0
        %v5781 = vsel %vm5773, 1, 0
        %v5782 = vsel %vm5774, 1, 0
        %v5783 = vsel %vm5775, 1, 0
        %v5784 = vsel %vm5776, 1, 0
        %v5785 = vsel %vm5777, 1, 0
        %v5786 = vsel %vm5778, 1, 0
        %v5787 = vsel %vm5779, 1, 0
        %v5788 = vsel %vm5780, 1, 0
        %v5789 = vcvt.s32.f32 %v5781
        %v5790 = vcvt.s32.f32 %v5782
        %v5791 = vcvt.s32.f32 %v5783
        %v5792 = vcvt.s32.f32 %v5784
        %v5793 = vcvt.s32.f32 %v5785
        %v5794 = vcvt.s32.f32 %v5786
        %v5795 = vcvt.s32.f32 %v5787
        %v5796 = vcvt.s32.f32 %v5788
        %v5797 = vsel %vm3997, %v5789, 0.0
        %v5798 = vrot.slane %v5797, 4
        %v5799 = vadd.f32 %v5797, %v5798
        %v5800 = vrot.slane %v5799, 2
        %v5801 = vadd.f32 %v5799, %v5800
        %v5802 = vrot.slane %v5801, 1
        %v5803 = vadd.f32 %v5801, %v5802
        %v5804 = vsel %vm3997, %v5790, 0.0
        %v5805 = vrot.slane %v5804, 4
        %v5806 = vadd.f32 %v5804, %v5805
        %v5807 = vrot.slane %v5806, 2
        %v5808 = vadd.f32 %v5806, %v5807
        %v5809 = vrot.slane %v5808, 1
        %v5810 = vadd.f32 %v5808, %v5809
        %v5811 = vsel %vm3997, %v5791, 0.0
        %v5812 = vrot.slane %v5811, 4
        %v5813 = vadd.f32 %v5811, %v5812
        %v5814 = vrot.slane %v5813, 2
        %v5815 = vadd.f32 %v5813, %v5814
        %v5816 = vrot.slane %v5815, 1
        %v5817 = vadd.f32 %v5815, %v5816
        %v5818 = vsel %vm3997, %v5792, 0.0
        %v5819 = vrot.slane %v5818, 4
        %v5820 = vadd.f32 %v5818, %v5819
        %v5821 = vrot.slane %v5820, 2
        %v5822 = vadd.f32 %v5820, %v5821
        %v5823 = vrot.slane %v5822, 1
        %v5824 = vadd.f32 %v5822, %v5823
        %v5825 = vsel %vm3997, %v5793, 0.0
        %v5826 = vrot.slane %v5825, 4
        %v5827 = vadd.f32 %v5825, %v5826
        %v5828 = vrot.slane %v5827, 2
        %v5829 = vadd.f32 %v5827, %v5828
        %v5830 = vrot.slane %v5829, 1
        %v5831 = vadd.f32 %v5829, %v5830
        %v5832 = vsel %vm3997, %v5794, 0.0
        %v5833 = vrot.slane %v5832, 4
        %v5834 = vadd.f32 %v5832, %v5833
        %v5835 = vrot.slane %v5834, 2
        %v5836 = vadd.f32 %v5834, %v5835
        %v5837 = vrot.slane %v5836, 1
        %v5838 = vadd.f32 %v5836, %v5837
        %v5839 = vsel %vm3997, %v5795, 0.0
        %v5840 = vrot.slane %v5839, 4
        %v5841 = vadd.f32 %v5839, %v5840
        %v5842 = vrot.slane %v5841, 2
        %v5843 = vadd.f32 %v5841, %v5842
        %v5844 = vrot.slane %v5843, 1
        %v5845 = vadd.f32 %v5843, %v5844
        %v5846 = vsel %vm3997, %v5796, 0.0
        %v5847 = vrot.slane %v5846, 4
        %v5848 = vadd.f32 %v5846, %v5847
        %v5849 = vrot.slane %v5848, 2
        %v5850 = vadd.f32 %v5848, %v5849
        %v5851 = vrot.slane %v5850, 1
        %v5852 = vadd.f32 %v5850, %v5851
        %v5853 = vsel %vm3997, %v5709, -inf
        %v5854 = vrot.slane %v5853, 4
        %v5855 = vmax.f32 %v5853, %v5854
        %v5856 = vrot.slane %v5855, 2
        %v5857 = vmax.f32 %v5855, %v5856
        %v5858 = vrot.slane %v5857, 1
        %v5859 = vmax.f32 %v5857, %v5858
        %v5860 = vsel %vm3997, %v5710, -inf
        %v5861 = vrot.slane %v5860, 4
        %v5862 = vmax.f32 %v5860, %v5861
        %v5863 = vrot.slane %v5862, 2
        %v5864 = vmax.f32 %v5862, %v5863
        %v5865 = vrot.slane %v5864, 1
        %v5866 = vmax.f32 %v5864, %v5865
        %v5867 = vsel %vm3997, %v5711, -inf
        %v5868 = vrot.slane %v5867, 4
        %v5869 = vmax.f32 %v5867, %v5868
        %v5870 = vrot.slane %v5869, 2
        %v5871 = vmax.f32 %v5869, %v5870
        %v5872 = vrot.slane %v5871, 1
        %v5873 = vmax.f32 %v5871, %v5872
        %v5874 = vsel %vm3997, %v5712, -inf
        %v5875 = vrot.slane %v5874, 4
        %v5876 = vmax.f32 %v5874, %v5875
        %v5877 = vrot.slane %v5876, 2
        %v5878 = vmax.f32 %v5876, %v5877
        %v5879 = vrot.slane %v5878, 1
        %v5880 = vmax.f32 %v5878, %v5879
        %v5881 = vsel %vm3997, %v5713, -inf
        %v5882 = vrot.slane %v5881, 4
        %v5883 = vmax.f32 %v5881, %v5882
        %v5884 = vrot.slane %v5883, 2
        %v5885 = vmax.f32 %v5883, %v5884
        %v5886 = vrot.slane %v5885, 1
        %v5887 = vmax.f32 %v5885, %v5886
        %v5888 = vsel %vm3997, %v5714, -inf
        %v5889 = vrot.slane %v5888, 4
        %v5890 = vmax.f32 %v5888, %v5889
        %v5891 = vrot.slane %v5890, 2
        %v5892 = vmax.f32 %v5890, %v5891
        %v5893 = vrot.slane %v5892, 1
        %v5894 = vmax.f32 %v5892, %v5893
        %v5895 = vsel %vm3997, %v5715, -inf
        %v5896 = vrot.slane %v5895, 4
        %v5897 = vmax.f32 %v5895, %v5896
        %v5898 = vrot.slane %v5897, 2
        %v5899 = vmax.f32 %v5897, %v5898
        %v5900 = vrot.slane %v5899, 1
        %v5901 = vmax.f32 %v5899, %v5900
        %v5902 = vsel %vm3997, %v5716, -inf
        %v5903 = vrot.slane %v5902, 4
        %v5904 = vmax.f32 %v5902, %v5903
        %v5905 = vrot.slane %v5904, 2
        %v5906 = vmax.f32 %v5904, %v5905
        %v5907 = vrot.slane %v5906, 1
        %v5908 = vmax.f32 %v5906, %v5907
        %v5909 = vlaneseq
        %v5910 = vshrl.u32 %v5909, 7
        %v5911 = vsub.s32 4, %v5910
        %v5912 = vrot.slane %v4097, %v5911
        %v5913 = vmul.f32 %v5723, %v5912
        %v5914 = vmul.f32 %v5730, %v5912
        %v5915 = vmul.f32 %v5737, %v5912
        %v5916 = vmul.f32 %v5744, %v5912
        %v5917 = vmul.f32 %v5751, %v5912
        %v5918 = vmul.f32 %v5758, %v5912
        %v5919 = vmul.f32 %v5765, %v5912
        %v5920 = vmul.f32 %v5772, %v5912
        %v5921 = vadd.f32 %v5552, %v5913
        %v5922 = vadd.f32 %v5553, %v5914
        %v5923 = vadd.f32 %v5554, %v5915
        %v5924 = vadd.f32 %v5555, %v5916
        %v5925 = vadd.f32 %v5556, %v5917
        %v5926 = vadd.f32 %v5557, %v5918
        %v5927 = vadd.f32 %v5558, %v5919
        %v5928 = vadd.f32 %v5559, %v5920
        %v5929 = vmul.f32 %v5803, %v5912
        %v5930 = vmul.f32 %v5810, %v5912
        %v5931 = vmul.f32 %v5817, %v5912
        %v5932 = vmul.f32 %v5824, %v5912
        %v5933 = vmul.f32 %v5831, %v5912
        %v5934 = vmul.f32 %v5838, %v5912
        %v5935 = vmul.f32 %v5845, %v5912
        %v5936 = vmul.f32 %v5852, %v5912
        %v5937 = vadd.f32 %v5568, %v5929
        %v5938 = vadd.f32 %v5569, %v5930
        %v5939 = vadd.f32 %v5570, %v5931
        %v5940 = vadd.f32 %v5571, %v5932
        %v5941 = vadd.f32 %v5572, %v5933
        %v5942 = vadd.f32 %v5573, %v5934
        %v5943 = vadd.f32 %v5574, %v5935
        %v5944 = vadd.f32 %v5575, %v5936
        %v5945 = vmul.f32 %v5859, %v5912
        %v5946 = vmul.f32 %v5866, %v5912
        %v5947 = vmul.f32 %v5873, %v5912
        %v5948 = vmul.f32 %v5880, %v5912
        %v5949 = vmul.f32 %v5887, %v5912
        %v5950 = vmul.f32 %v5894, %v5912
        %v5951 = vmul.f32 %v5901, %v5912
        %v5952 = vmul.f32 %v5908, %v5912
        %v5953 = vmax.f32 %v5584, %v5945
        %v5954 = vmax.f32 %v5585, %v5946
        %v5955 = vmax.f32 %v5586, %v5947
        %v5956 = vmax.f32 %v5587, %v5948
        %v5957 = vmax.f32 %v5588, %v5949
        %v5958 = vmax.f32 %v5589, %v5950
        %v5959 = vmax.f32 %v5590, %v5951
        %v5960 = vmax.f32 %v5591, %v5952
        %v5961 = vlaneseq
        %v5962 = vshrl.u32 %v5961, 7
        %v5963 = vsub.s32 5, %v5962
        %v5964 = vrot.slane %v4107, %v5963
        %vm5965 = vcmp.eq.s32.totalorder %v5964, 1
        %v5966 = vrot.slane %v4099, 5
        %v5967 = vrot.slane %v4100, 4
        %v5968 = vsel %vm3846, %v5967, %v5966
        %v5969 = vrot.slane %v4101, 3
        %v5970 = vsel %vm3847, %v5969, %v5968
        %v5971 = vrot.slane %v4102, 2
        %v5972 = vsel %vm3849, %v5971, %v5970
        %v5973 = vrot.slane %v4103, 1
        %v5974 = vsel %vm3851, %v5973, %v5972
        %v5975 = vsel %vm3853, %v4104, %v5974
        %v5976 = vrot.slane %v4105, 7
        %v5977 = vsel %vm3855, %v5976, %v5975
        %v5978 = vrot.slane %v4106, 6
        %v5979 = vsel %vm3857, %v5978, %v5977
        %v5981 = vsel %vm5965, %v5979, -1e+30
        %v5982 = vlaneseq
        %v5983 = vshrl.u32 %v5982, 7
        %v5984 = vsub.s32 0, %v5983
        %v5985 = vrot.slane %v5981, %v5984
        %5987 = vbcast.lane.b32.xlu0 %v5985, 256
        %v5988 = vpop.permute.xlu0 %5987
        %v5989 = vlaneseq
        %v5990 = vshrl.u32 %v5989, 7
        %v5991 = vsub.s32 1, %v5990
        %v5992 = vrot.slane %v5981, %v5991
        %5994 = vbcast.lane.b32.xlu0 %v5992, 256
        %v5995 = vpop.permute.xlu0 %5994
        %v5996 = vlaneseq
        %v5997 = vshrl.u32 %v5996, 7
        %v5998 = vsub.s32 2, %v5997
        %v5999 = vrot.slane %v5981, %v5998
        %6001 = vbcast.lane.b32.xlu0 %v5999, 256
        %v6002 = vpop.permute.xlu0 %6001
        %v6003 = vlaneseq
        %v6004 = vshrl.u32 %v6003, 7
        %v6005 = vsub.s32 3, %v6004
        %v6006 = vrot.slane %v5981, %v6005
        %6008 = vbcast.lane.b32.xlu0 %v6006, 256
        %v6009 = vpop.permute.xlu0 %6008
        %v6010 = vlaneseq
        %v6011 = vshrl.u32 %v6010, 7
        %v6012 = vsub.s32 4, %v6011
        %v6013 = vrot.slane %v5981, %v6012
        %6015 = vbcast.lane.b32.xlu0 %v6013, 256
        %v6016 = vpop.permute.xlu0 %6015
        %v6017 = vlaneseq
        %v6018 = vshrl.u32 %v6017, 7
        %v6019 = vsub.s32 5, %v6018
        %v6020 = vrot.slane %v5981, %v6019
        %6022 = vbcast.lane.b32.xlu0 %v6020, 256
        %v6023 = vpop.permute.xlu0 %6022
        %v6024 = vlaneseq
        %v6025 = vshrl.u32 %v6024, 7
        %v6026 = vsub.s32 6, %v6025
        %v6027 = vrot.slane %v5981, %v6026
        %6029 = vbcast.lane.b32.xlu0 %v6027, 256
        %v6030 = vpop.permute.xlu0 %6029
        %v6031 = vlaneseq
        %v6032 = vshrl.u32 %v6031, 7
        %v6033 = vsub.s32 7, %v6032
        %v6034 = vrot.slane %v5981, %v6033
        %6036 = vbcast.lane.b32.xlu0 %v6034, 256
        %v6037 = vpop.permute.xlu0 %6036
        %v6038 = vlaneseq
        %v6039 = vshrl.u32 %v6038, 7
        %v6040 = vsub.s32 5, %v6039
        %v6041 = vrot.slane %v4082, %v6040
        %v6042 = vlaneseq
        %v6043 = vshrl.u32 %v6042, 7
        %v6044 = vsub.s32 5, %v6043
        %v6045 = vrot.slane %v4083, %v6044
        %v6046 = vlaneseq
        %v6047 = vshrl.u32 %v6046, 7
        %v6048 = vsub.s32 5, %v6047
        %v6049 = vrot.slane %v4084, %v6048
        %v6050 = vlaneseq
        %v6051 = vshrl.u32 %v6050, 7
        %v6052 = vsub.s32 5, %v6051
        %v6053 = vrot.slane %v4085, %v6052
        %v6054 = vlaneseq
        %v6055 = vshrl.u32 %v6054, 7
        %v6056 = vsub.s32 5, %v6055
        %v6057 = vrot.slane %v4086, %v6056
        %v6058 = vlaneseq
        %v6059 = vshrl.u32 %v6058, 7
        %v6060 = vsub.s32 5, %v6059
        %v6061 = vrot.slane %v4087, %v6060
        %v6062 = vlaneseq
        %v6063 = vshrl.u32 %v6062, 7
        %v6064 = vsub.s32 5, %v6063
        %v6065 = vrot.slane %v4088, %v6064
        %v6066 = vlaneseq
        %v6067 = vshrl.u32 %v6066, 7
        %v6068 = vsub.s32 5, %v6067
        %v6069 = vrot.slane %v4089, %v6068
        %v6070 = vsub.f32 %v5988, %v6041
        %v6071 = vsub.f32 %v5995, %v6045
        %v6072 = vsub.f32 %v6002, %v6049
        %v6073 = vsub.f32 %v6009, %v6053
        %v6074 = vsub.f32 %v6016, %v6057
        %v6075 = vsub.f32 %v6023, %v6061
        %v6076 = vsub.f32 %v6030, %v6065
        %v6077 = vsub.f32 %v6037, %v6069
        %v6078 = vmax.f32 %v6070, 0.0
        %v6079 = vmax.f32 %v6071, 0.0
        %v6080 = vmax.f32 %v6072, 0.0
        %v6081 = vmax.f32 %v6073, 0.0
        %v6082 = vmax.f32 %v6074, 0.0
        %v6083 = vmax.f32 %v6075, 0.0
        %v6084 = vmax.f32 %v6076, 0.0
        %v6085 = vmax.f32 %v6077, 0.0
        %v6086 = vsel %vm3997, %v6078, 0.0
        %v6087 = vrot.slane %v6086, 4
        %v6088 = vadd.f32 %v6086, %v6087
        %v6089 = vrot.slane %v6088, 2
        %v6090 = vadd.f32 %v6088, %v6089
        %v6091 = vrot.slane %v6090, 1
        %v6092 = vadd.f32 %v6090, %v6091
        %v6093 = vsel %vm3997, %v6079, 0.0
        %v6094 = vrot.slane %v6093, 4
        %v6095 = vadd.f32 %v6093, %v6094
        %v6096 = vrot.slane %v6095, 2
        %v6097 = vadd.f32 %v6095, %v6096
        %v6098 = vrot.slane %v6097, 1
        %v6099 = vadd.f32 %v6097, %v6098
        %v6100 = vsel %vm3997, %v6080, 0.0
        %v6101 = vrot.slane %v6100, 4
        %v6102 = vadd.f32 %v6100, %v6101
        %v6103 = vrot.slane %v6102, 2
        %v6104 = vadd.f32 %v6102, %v6103
        %v6105 = vrot.slane %v6104, 1
        %v6106 = vadd.f32 %v6104, %v6105
        %v6107 = vsel %vm3997, %v6081, 0.0
        %v6108 = vrot.slane %v6107, 4
        %v6109 = vadd.f32 %v6107, %v6108
        %v6110 = vrot.slane %v6109, 2
        %v6111 = vadd.f32 %v6109, %v6110
        %v6112 = vrot.slane %v6111, 1
        %v6113 = vadd.f32 %v6111, %v6112
        %v6114 = vsel %vm3997, %v6082, 0.0
        %v6115 = vrot.slane %v6114, 4
        %v6116 = vadd.f32 %v6114, %v6115
        %v6117 = vrot.slane %v6116, 2
        %v6118 = vadd.f32 %v6116, %v6117
        %v6119 = vrot.slane %v6118, 1
        %v6120 = vadd.f32 %v6118, %v6119
        %v6121 = vsel %vm3997, %v6083, 0.0
        %v6122 = vrot.slane %v6121, 4
        %v6123 = vadd.f32 %v6121, %v6122
        %v6124 = vrot.slane %v6123, 2
        %v6125 = vadd.f32 %v6123, %v6124
        %v6126 = vrot.slane %v6125, 1
        %v6127 = vadd.f32 %v6125, %v6126
        %v6128 = vsel %vm3997, %v6084, 0.0
        %v6129 = vrot.slane %v6128, 4
        %v6130 = vadd.f32 %v6128, %v6129
        %v6131 = vrot.slane %v6130, 2
        %v6132 = vadd.f32 %v6130, %v6131
        %v6133 = vrot.slane %v6132, 1
        %v6134 = vadd.f32 %v6132, %v6133
        %v6135 = vsel %vm3997, %v6085, 0.0
        %v6136 = vrot.slane %v6135, 4
        %v6137 = vadd.f32 %v6135, %v6136
        %v6138 = vrot.slane %v6137, 2
        %v6139 = vadd.f32 %v6137, %v6138
        %v6140 = vrot.slane %v6139, 1
        %v6141 = vadd.f32 %v6139, %v6140
        %vm6142 = vcmp.gt.f32.partialorder %v6078, 0.0
        %vm6143 = vcmp.gt.f32.partialorder %v6079, 0.0
        %vm6144 = vcmp.gt.f32.partialorder %v6080, 0.0
        %vm6145 = vcmp.gt.f32.partialorder %v6081, 0.0
        %vm6146 = vcmp.gt.f32.partialorder %v6082, 0.0
        %vm6147 = vcmp.gt.f32.partialorder %v6083, 0.0
        %vm6148 = vcmp.gt.f32.partialorder %v6084, 0.0
        %vm6149 = vcmp.gt.f32.partialorder %v6085, 0.0
        %v6150 = vsel %vm6142, 1, 0
        %v6151 = vsel %vm6143, 1, 0
        %v6152 = vsel %vm6144, 1, 0
        %v6153 = vsel %vm6145, 1, 0
        %v6154 = vsel %vm6146, 1, 0
        %v6155 = vsel %vm6147, 1, 0
        %v6156 = vsel %vm6148, 1, 0
        %v6157 = vsel %vm6149, 1, 0
        %v6158 = vcvt.s32.f32 %v6150
        %v6159 = vcvt.s32.f32 %v6151
        %v6160 = vcvt.s32.f32 %v6152
        %v6161 = vcvt.s32.f32 %v6153
        %v6162 = vcvt.s32.f32 %v6154
        %v6163 = vcvt.s32.f32 %v6155
        %v6164 = vcvt.s32.f32 %v6156
        %v6165 = vcvt.s32.f32 %v6157
        %v6166 = vsel %vm3997, %v6158, 0.0
        %v6167 = vrot.slane %v6166, 4
        %v6168 = vadd.f32 %v6166, %v6167
        %v6169 = vrot.slane %v6168, 2
        %v6170 = vadd.f32 %v6168, %v6169
        %v6171 = vrot.slane %v6170, 1
        %v6172 = vadd.f32 %v6170, %v6171
        %v6173 = vsel %vm3997, %v6159, 0.0
        %v6174 = vrot.slane %v6173, 4
        %v6175 = vadd.f32 %v6173, %v6174
        %v6176 = vrot.slane %v6175, 2
        %v6177 = vadd.f32 %v6175, %v6176
        %v6178 = vrot.slane %v6177, 1
        %v6179 = vadd.f32 %v6177, %v6178
        %v6180 = vsel %vm3997, %v6160, 0.0
        %v6181 = vrot.slane %v6180, 4
        %v6182 = vadd.f32 %v6180, %v6181
        %v6183 = vrot.slane %v6182, 2
        %v6184 = vadd.f32 %v6182, %v6183
        %v6185 = vrot.slane %v6184, 1
        %v6186 = vadd.f32 %v6184, %v6185
        %v6187 = vsel %vm3997, %v6161, 0.0
        %v6188 = vrot.slane %v6187, 4
        %v6189 = vadd.f32 %v6187, %v6188
        %v6190 = vrot.slane %v6189, 2
        %v6191 = vadd.f32 %v6189, %v6190
        %v6192 = vrot.slane %v6191, 1
        %v6193 = vadd.f32 %v6191, %v6192
        %v6194 = vsel %vm3997, %v6162, 0.0
        %v6195 = vrot.slane %v6194, 4
        %v6196 = vadd.f32 %v6194, %v6195
        %v6197 = vrot.slane %v6196, 2
        %v6198 = vadd.f32 %v6196, %v6197
        %v6199 = vrot.slane %v6198, 1
        %v6200 = vadd.f32 %v6198, %v6199
        %v6201 = vsel %vm3997, %v6163, 0.0
        %v6202 = vrot.slane %v6201, 4
        %v6203 = vadd.f32 %v6201, %v6202
        %v6204 = vrot.slane %v6203, 2
        %v6205 = vadd.f32 %v6203, %v6204
        %v6206 = vrot.slane %v6205, 1
        %v6207 = vadd.f32 %v6205, %v6206
        %v6208 = vsel %vm3997, %v6164, 0.0
        %v6209 = vrot.slane %v6208, 4
        %v6210 = vadd.f32 %v6208, %v6209
        %v6211 = vrot.slane %v6210, 2
        %v6212 = vadd.f32 %v6210, %v6211
        %v6213 = vrot.slane %v6212, 1
        %v6214 = vadd.f32 %v6212, %v6213
        %v6215 = vsel %vm3997, %v6165, 0.0
        %v6216 = vrot.slane %v6215, 4
        %v6217 = vadd.f32 %v6215, %v6216
        %v6218 = vrot.slane %v6217, 2
        %v6219 = vadd.f32 %v6217, %v6218
        %v6220 = vrot.slane %v6219, 1
        %v6221 = vadd.f32 %v6219, %v6220
        %v6222 = vsel %vm3997, %v6078, -inf
        %v6223 = vrot.slane %v6222, 4
        %v6224 = vmax.f32 %v6222, %v6223
        %v6225 = vrot.slane %v6224, 2
        %v6226 = vmax.f32 %v6224, %v6225
        %v6227 = vrot.slane %v6226, 1
        %v6228 = vmax.f32 %v6226, %v6227
        %v6229 = vsel %vm3997, %v6079, -inf
        %v6230 = vrot.slane %v6229, 4
        %v6231 = vmax.f32 %v6229, %v6230
        %v6232 = vrot.slane %v6231, 2
        %v6233 = vmax.f32 %v6231, %v6232
        %v6234 = vrot.slane %v6233, 1
        %v6235 = vmax.f32 %v6233, %v6234
        %v6236 = vsel %vm3997, %v6080, -inf
        %v6237 = vrot.slane %v6236, 4
        %v6238 = vmax.f32 %v6236, %v6237
        %v6239 = vrot.slane %v6238, 2
        %v6240 = vmax.f32 %v6238, %v6239
        %v6241 = vrot.slane %v6240, 1
        %v6242 = vmax.f32 %v6240, %v6241
        %v6243 = vsel %vm3997, %v6081, -inf
        %v6244 = vrot.slane %v6243, 4
        %v6245 = vmax.f32 %v6243, %v6244
        %v6246 = vrot.slane %v6245, 2
        %v6247 = vmax.f32 %v6245, %v6246
        %v6248 = vrot.slane %v6247, 1
        %v6249 = vmax.f32 %v6247, %v6248
        %v6250 = vsel %vm3997, %v6082, -inf
        %v6251 = vrot.slane %v6250, 4
        %v6252 = vmax.f32 %v6250, %v6251
        %v6253 = vrot.slane %v6252, 2
        %v6254 = vmax.f32 %v6252, %v6253
        %v6255 = vrot.slane %v6254, 1
        %v6256 = vmax.f32 %v6254, %v6255
        %v6257 = vsel %vm3997, %v6083, -inf
        %v6258 = vrot.slane %v6257, 4
        %v6259 = vmax.f32 %v6257, %v6258
        %v6260 = vrot.slane %v6259, 2
        %v6261 = vmax.f32 %v6259, %v6260
        %v6262 = vrot.slane %v6261, 1
        %v6263 = vmax.f32 %v6261, %v6262
        %v6264 = vsel %vm3997, %v6084, -inf
        %v6265 = vrot.slane %v6264, 4
        %v6266 = vmax.f32 %v6264, %v6265
        %v6267 = vrot.slane %v6266, 2
        %v6268 = vmax.f32 %v6266, %v6267
        %v6269 = vrot.slane %v6268, 1
        %v6270 = vmax.f32 %v6268, %v6269
        %v6271 = vsel %vm3997, %v6085, -inf
        %v6272 = vrot.slane %v6271, 4
        %v6273 = vmax.f32 %v6271, %v6272
        %v6274 = vrot.slane %v6273, 2
        %v6275 = vmax.f32 %v6273, %v6274
        %v6276 = vrot.slane %v6275, 1
        %v6277 = vmax.f32 %v6275, %v6276
        %v6278 = vlaneseq
        %v6279 = vshrl.u32 %v6278, 7
        %v6280 = vsub.s32 5, %v6279
        %v6281 = vrot.slane %v4097, %v6280
        %v6282 = vmul.f32 %v6092, %v6281
        %v6283 = vmul.f32 %v6099, %v6281
        %v6284 = vmul.f32 %v6106, %v6281
        %v6285 = vmul.f32 %v6113, %v6281
        %v6286 = vmul.f32 %v6120, %v6281
        %v6287 = vmul.f32 %v6127, %v6281
        %v6288 = vmul.f32 %v6134, %v6281
        %v6289 = vmul.f32 %v6141, %v6281
        %v6290 = vadd.f32 %v5921, %v6282
        %v6291 = vadd.f32 %v5922, %v6283
        %v6292 = vadd.f32 %v5923, %v6284
        %v6293 = vadd.f32 %v5924, %v6285
        %v6294 = vadd.f32 %v5925, %v6286
        %v6295 = vadd.f32 %v5926, %v6287
        %v6296 = vadd.f32 %v5927, %v6288
        %v6297 = vadd.f32 %v5928, %v6289
        %v6298 = vmul.f32 %v6172, %v6281
        %v6299 = vmul.f32 %v6179, %v6281
        %v6300 = vmul.f32 %v6186, %v6281
        %v6301 = vmul.f32 %v6193, %v6281
        %v6302 = vmul.f32 %v6200, %v6281
        %v6303 = vmul.f32 %v6207, %v6281
        %v6304 = vmul.f32 %v6214, %v6281
        %v6305 = vmul.f32 %v6221, %v6281
        %v6306 = vadd.f32 %v5937, %v6298
        %v6307 = vadd.f32 %v5938, %v6299
        %v6308 = vadd.f32 %v5939, %v6300
        %v6309 = vadd.f32 %v5940, %v6301
        %v6310 = vadd.f32 %v5941, %v6302
        %v6311 = vadd.f32 %v5942, %v6303
        %v6312 = vadd.f32 %v5943, %v6304
        %v6313 = vadd.f32 %v5944, %v6305
        %v6314 = vmul.f32 %v6228, %v6281
        %v6315 = vmul.f32 %v6235, %v6281
        %v6316 = vmul.f32 %v6242, %v6281
        %v6317 = vmul.f32 %v6249, %v6281
        %v6318 = vmul.f32 %v6256, %v6281
        %v6319 = vmul.f32 %v6263, %v6281
        %v6320 = vmul.f32 %v6270, %v6281
        %v6321 = vmul.f32 %v6277, %v6281
        %v6322 = vmax.f32 %v5953, %v6314
        %v6323 = vmax.f32 %v5954, %v6315
        %v6324 = vmax.f32 %v5955, %v6316
        %v6325 = vmax.f32 %v5956, %v6317
        %v6326 = vmax.f32 %v5957, %v6318
        %v6327 = vmax.f32 %v5958, %v6319
        %v6328 = vmax.f32 %v5959, %v6320
        %v6329 = vmax.f32 %v5960, %v6321
        %v6330 = vlaneseq
        %v6331 = vshrl.u32 %v6330, 7
        %v6332 = vsub.s32 6, %v6331
        %v6333 = vrot.slane %v4107, %v6332
        %vm6334 = vcmp.eq.s32.totalorder %v6333, 1
        %v6335 = vrot.slane %v4099, 6
        %v6336 = vrot.slane %v4100, 5
        %v6337 = vsel %vm3846, %v6336, %v6335
        %v6338 = vrot.slane %v4101, 4
        %v6339 = vsel %vm3847, %v6338, %v6337
        %v6340 = vrot.slane %v4102, 3
        %v6341 = vsel %vm3849, %v6340, %v6339
        %v6342 = vrot.slane %v4103, 2
        %v6343 = vsel %vm3851, %v6342, %v6341
        %v6344 = vrot.slane %v4104, 1
        %v6345 = vsel %vm3853, %v6344, %v6343
        %v6346 = vsel %vm3855, %v4105, %v6345
        %v6347 = vrot.slane %v4106, 7
        %v6348 = vsel %vm3857, %v6347, %v6346
        %v6350 = vsel %vm6334, %v6348, -1e+30
        %v6351 = vlaneseq
        %v6352 = vshrl.u32 %v6351, 7
        %v6353 = vsub.s32 0, %v6352
        %v6354 = vrot.slane %v6350, %v6353
        %6356 = vbcast.lane.b32.xlu0 %v6354, 256
        %v6357 = vpop.permute.xlu0 %6356
        %v6358 = vlaneseq
        %v6359 = vshrl.u32 %v6358, 7
        %v6360 = vsub.s32 1, %v6359
        %v6361 = vrot.slane %v6350, %v6360
        %6363 = vbcast.lane.b32.xlu0 %v6361, 256
        %v6364 = vpop.permute.xlu0 %6363
        %v6365 = vlaneseq
        %v6366 = vshrl.u32 %v6365, 7
        %v6367 = vsub.s32 2, %v6366
        %v6368 = vrot.slane %v6350, %v6367
        %6370 = vbcast.lane.b32.xlu0 %v6368, 256
        %v6371 = vpop.permute.xlu0 %6370
        %v6372 = vlaneseq
        %v6373 = vshrl.u32 %v6372, 7
        %v6374 = vsub.s32 3, %v6373
        %v6375 = vrot.slane %v6350, %v6374
        %6377 = vbcast.lane.b32.xlu0 %v6375, 256
        %v6378 = vpop.permute.xlu0 %6377
        %v6379 = vlaneseq
        %v6380 = vshrl.u32 %v6379, 7
        %v6381 = vsub.s32 4, %v6380
        %v6382 = vrot.slane %v6350, %v6381
        %6384 = vbcast.lane.b32.xlu0 %v6382, 256
        %v6385 = vpop.permute.xlu0 %6384
        %v6386 = vlaneseq
        %v6387 = vshrl.u32 %v6386, 7
        %v6388 = vsub.s32 5, %v6387
        %v6389 = vrot.slane %v6350, %v6388
        %6391 = vbcast.lane.b32.xlu0 %v6389, 256
        %v6392 = vpop.permute.xlu0 %6391
        %v6393 = vlaneseq
        %v6394 = vshrl.u32 %v6393, 7
        %v6395 = vsub.s32 6, %v6394
        %v6396 = vrot.slane %v6350, %v6395
        %6398 = vbcast.lane.b32.xlu0 %v6396, 256
        %v6399 = vpop.permute.xlu0 %6398
        %v6400 = vlaneseq
        %v6401 = vshrl.u32 %v6400, 7
        %v6402 = vsub.s32 7, %v6401
        %v6403 = vrot.slane %v6350, %v6402
        %6405 = vbcast.lane.b32.xlu0 %v6403, 256
        %v6406 = vpop.permute.xlu0 %6405
        %v6407 = vlaneseq
        %v6408 = vshrl.u32 %v6407, 7
        %v6409 = vsub.s32 6, %v6408
        %v6410 = vrot.slane %v4082, %v6409
        %v6411 = vlaneseq
        %v6412 = vshrl.u32 %v6411, 7
        %v6413 = vsub.s32 6, %v6412
        %v6414 = vrot.slane %v4083, %v6413
        %v6415 = vlaneseq
        %v6416 = vshrl.u32 %v6415, 7
        %v6417 = vsub.s32 6, %v6416
        %v6418 = vrot.slane %v4084, %v6417
        %v6419 = vlaneseq
        %v6420 = vshrl.u32 %v6419, 7
        %v6421 = vsub.s32 6, %v6420
        %v6422 = vrot.slane %v4085, %v6421
        %v6423 = vlaneseq
        %v6424 = vshrl.u32 %v6423, 7
        %v6425 = vsub.s32 6, %v6424
        %v6426 = vrot.slane %v4086, %v6425
        %v6427 = vlaneseq
        %v6428 = vshrl.u32 %v6427, 7
        %v6429 = vsub.s32 6, %v6428
        %v6430 = vrot.slane %v4087, %v6429
        %v6431 = vlaneseq
        %v6432 = vshrl.u32 %v6431, 7
        %v6433 = vsub.s32 6, %v6432
        %v6434 = vrot.slane %v4088, %v6433
        %v6435 = vlaneseq
        %v6436 = vshrl.u32 %v6435, 7
        %v6437 = vsub.s32 6, %v6436
        %v6438 = vrot.slane %v4089, %v6437
        %v6439 = vsub.f32 %v6357, %v6410
        %v6440 = vsub.f32 %v6364, %v6414
        %v6441 = vsub.f32 %v6371, %v6418
        %v6442 = vsub.f32 %v6378, %v6422
        %v6443 = vsub.f32 %v6385, %v6426
        %v6444 = vsub.f32 %v6392, %v6430
        %v6445 = vsub.f32 %v6399, %v6434
        %v6446 = vsub.f32 %v6406, %v6438
        %v6447 = vmax.f32 %v6439, 0.0
        %v6448 = vmax.f32 %v6440, 0.0
        %v6449 = vmax.f32 %v6441, 0.0
        %v6450 = vmax.f32 %v6442, 0.0
        %v6451 = vmax.f32 %v6443, 0.0
        %v6452 = vmax.f32 %v6444, 0.0
        %v6453 = vmax.f32 %v6445, 0.0
        %v6454 = vmax.f32 %v6446, 0.0
        %v6455 = vsel %vm3997, %v6447, 0.0
        %v6456 = vrot.slane %v6455, 4
        %v6457 = vadd.f32 %v6455, %v6456
        %v6458 = vrot.slane %v6457, 2
        %v6459 = vadd.f32 %v6457, %v6458
        %v6460 = vrot.slane %v6459, 1
        %v6461 = vadd.f32 %v6459, %v6460
        %v6462 = vsel %vm3997, %v6448, 0.0
        %v6463 = vrot.slane %v6462, 4
        %v6464 = vadd.f32 %v6462, %v6463
        %v6465 = vrot.slane %v6464, 2
        %v6466 = vadd.f32 %v6464, %v6465
        %v6467 = vrot.slane %v6466, 1
        %v6468 = vadd.f32 %v6466, %v6467
        %v6469 = vsel %vm3997, %v6449, 0.0
        %v6470 = vrot.slane %v6469, 4
        %v6471 = vadd.f32 %v6469, %v6470
        %v6472 = vrot.slane %v6471, 2
        %v6473 = vadd.f32 %v6471, %v6472
        %v6474 = vrot.slane %v6473, 1
        %v6475 = vadd.f32 %v6473, %v6474
        %v6476 = vsel %vm3997, %v6450, 0.0
        %v6477 = vrot.slane %v6476, 4
        %v6478 = vadd.f32 %v6476, %v6477
        %v6479 = vrot.slane %v6478, 2
        %v6480 = vadd.f32 %v6478, %v6479
        %v6481 = vrot.slane %v6480, 1
        %v6482 = vadd.f32 %v6480, %v6481
        %v6483 = vsel %vm3997, %v6451, 0.0
        %v6484 = vrot.slane %v6483, 4
        %v6485 = vadd.f32 %v6483, %v6484
        %v6486 = vrot.slane %v6485, 2
        %v6487 = vadd.f32 %v6485, %v6486
        %v6488 = vrot.slane %v6487, 1
        %v6489 = vadd.f32 %v6487, %v6488
        %v6490 = vsel %vm3997, %v6452, 0.0
        %v6491 = vrot.slane %v6490, 4
        %v6492 = vadd.f32 %v6490, %v6491
        %v6493 = vrot.slane %v6492, 2
        %v6494 = vadd.f32 %v6492, %v6493
        %v6495 = vrot.slane %v6494, 1
        %v6496 = vadd.f32 %v6494, %v6495
        %v6497 = vsel %vm3997, %v6453, 0.0
        %v6498 = vrot.slane %v6497, 4
        %v6499 = vadd.f32 %v6497, %v6498
        %v6500 = vrot.slane %v6499, 2
        %v6501 = vadd.f32 %v6499, %v6500
        %v6502 = vrot.slane %v6501, 1
        %v6503 = vadd.f32 %v6501, %v6502
        %v6504 = vsel %vm3997, %v6454, 0.0
        %v6505 = vrot.slane %v6504, 4
        %v6506 = vadd.f32 %v6504, %v6505
        %v6507 = vrot.slane %v6506, 2
        %v6508 = vadd.f32 %v6506, %v6507
        %v6509 = vrot.slane %v6508, 1
        %v6510 = vadd.f32 %v6508, %v6509
        %vm6511 = vcmp.gt.f32.partialorder %v6447, 0.0
        %vm6512 = vcmp.gt.f32.partialorder %v6448, 0.0
        %vm6513 = vcmp.gt.f32.partialorder %v6449, 0.0
        %vm6514 = vcmp.gt.f32.partialorder %v6450, 0.0
        %vm6515 = vcmp.gt.f32.partialorder %v6451, 0.0
        %vm6516 = vcmp.gt.f32.partialorder %v6452, 0.0
        %vm6517 = vcmp.gt.f32.partialorder %v6453, 0.0
        %vm6518 = vcmp.gt.f32.partialorder %v6454, 0.0
        %v6519 = vsel %vm6511, 1, 0
        %v6520 = vsel %vm6512, 1, 0
        %v6521 = vsel %vm6513, 1, 0
        %v6522 = vsel %vm6514, 1, 0
        %v6523 = vsel %vm6515, 1, 0
        %v6524 = vsel %vm6516, 1, 0
        %v6525 = vsel %vm6517, 1, 0
        %v6526 = vsel %vm6518, 1, 0
        %v6527 = vcvt.s32.f32 %v6519
        %v6528 = vcvt.s32.f32 %v6520
        %v6529 = vcvt.s32.f32 %v6521
        %v6530 = vcvt.s32.f32 %v6522
        %v6531 = vcvt.s32.f32 %v6523
        %v6532 = vcvt.s32.f32 %v6524
        %v6533 = vcvt.s32.f32 %v6525
        %v6534 = vcvt.s32.f32 %v6526
        %v6535 = vsel %vm3997, %v6527, 0.0
        %v6536 = vrot.slane %v6535, 4
        %v6537 = vadd.f32 %v6535, %v6536
        %v6538 = vrot.slane %v6537, 2
        %v6539 = vadd.f32 %v6537, %v6538
        %v6540 = vrot.slane %v6539, 1
        %v6541 = vadd.f32 %v6539, %v6540
        %v6542 = vsel %vm3997, %v6528, 0.0
        %v6543 = vrot.slane %v6542, 4
        %v6544 = vadd.f32 %v6542, %v6543
        %v6545 = vrot.slane %v6544, 2
        %v6546 = vadd.f32 %v6544, %v6545
        %v6547 = vrot.slane %v6546, 1
        %v6548 = vadd.f32 %v6546, %v6547
        %v6549 = vsel %vm3997, %v6529, 0.0
        %v6550 = vrot.slane %v6549, 4
        %v6551 = vadd.f32 %v6549, %v6550
        %v6552 = vrot.slane %v6551, 2
        %v6553 = vadd.f32 %v6551, %v6552
        %v6554 = vrot.slane %v6553, 1
        %v6555 = vadd.f32 %v6553, %v6554
        %v6556 = vsel %vm3997, %v6530, 0.0
        %v6557 = vrot.slane %v6556, 4
        %v6558 = vadd.f32 %v6556, %v6557
        %v6559 = vrot.slane %v6558, 2
        %v6560 = vadd.f32 %v6558, %v6559
        %v6561 = vrot.slane %v6560, 1
        %v6562 = vadd.f32 %v6560, %v6561
        %v6563 = vsel %vm3997, %v6531, 0.0
        %v6564 = vrot.slane %v6563, 4
        %v6565 = vadd.f32 %v6563, %v6564
        %v6566 = vrot.slane %v6565, 2
        %v6567 = vadd.f32 %v6565, %v6566
        %v6568 = vrot.slane %v6567, 1
        %v6569 = vadd.f32 %v6567, %v6568
        %v6570 = vsel %vm3997, %v6532, 0.0
        %v6571 = vrot.slane %v6570, 4
        %v6572 = vadd.f32 %v6570, %v6571
        %v6573 = vrot.slane %v6572, 2
        %v6574 = vadd.f32 %v6572, %v6573
        %v6575 = vrot.slane %v6574, 1
        %v6576 = vadd.f32 %v6574, %v6575
        %v6577 = vsel %vm3997, %v6533, 0.0
        %v6578 = vrot.slane %v6577, 4
        %v6579 = vadd.f32 %v6577, %v6578
        %v6580 = vrot.slane %v6579, 2
        %v6581 = vadd.f32 %v6579, %v6580
        %v6582 = vrot.slane %v6581, 1
        %v6583 = vadd.f32 %v6581, %v6582
        %v6584 = vsel %vm3997, %v6534, 0.0
        %v6585 = vrot.slane %v6584, 4
        %v6586 = vadd.f32 %v6584, %v6585
        %v6587 = vrot.slane %v6586, 2
        %v6588 = vadd.f32 %v6586, %v6587
        %v6589 = vrot.slane %v6588, 1
        %v6590 = vadd.f32 %v6588, %v6589
        %v6591 = vsel %vm3997, %v6447, -inf
        %v6592 = vrot.slane %v6591, 4
        %v6593 = vmax.f32 %v6591, %v6592
        %v6594 = vrot.slane %v6593, 2
        %v6595 = vmax.f32 %v6593, %v6594
        %v6596 = vrot.slane %v6595, 1
        %v6597 = vmax.f32 %v6595, %v6596
        %v6598 = vsel %vm3997, %v6448, -inf
        %v6599 = vrot.slane %v6598, 4
        %v6600 = vmax.f32 %v6598, %v6599
        %v6601 = vrot.slane %v6600, 2
        %v6602 = vmax.f32 %v6600, %v6601
        %v6603 = vrot.slane %v6602, 1
        %v6604 = vmax.f32 %v6602, %v6603
        %v6605 = vsel %vm3997, %v6449, -inf
        %v6606 = vrot.slane %v6605, 4
        %v6607 = vmax.f32 %v6605, %v6606
        %v6608 = vrot.slane %v6607, 2
        %v6609 = vmax.f32 %v6607, %v6608
        %v6610 = vrot.slane %v6609, 1
        %v6611 = vmax.f32 %v6609, %v6610
        %v6612 = vsel %vm3997, %v6450, -inf
        %v6613 = vrot.slane %v6612, 4
        %v6614 = vmax.f32 %v6612, %v6613
        %v6615 = vrot.slane %v6614, 2
        %v6616 = vmax.f32 %v6614, %v6615
        %v6617 = vrot.slane %v6616, 1
        %v6618 = vmax.f32 %v6616, %v6617
        %v6619 = vsel %vm3997, %v6451, -inf
        %v6620 = vrot.slane %v6619, 4
        %v6621 = vmax.f32 %v6619, %v6620
        %v6622 = vrot.slane %v6621, 2
        %v6623 = vmax.f32 %v6621, %v6622
        %v6624 = vrot.slane %v6623, 1
        %v6625 = vmax.f32 %v6623, %v6624
        %v6626 = vsel %vm3997, %v6452, -inf
        %v6627 = vrot.slane %v6626, 4
        %v6628 = vmax.f32 %v6626, %v6627
        %v6629 = vrot.slane %v6628, 2
        %v6630 = vmax.f32 %v6628, %v6629
        %v6631 = vrot.slane %v6630, 1
        %v6632 = vmax.f32 %v6630, %v6631
        %v6633 = vsel %vm3997, %v6453, -inf
        %v6634 = vrot.slane %v6633, 4
        %v6635 = vmax.f32 %v6633, %v6634
        %v6636 = vrot.slane %v6635, 2
        %v6637 = vmax.f32 %v6635, %v6636
        %v6638 = vrot.slane %v6637, 1
        %v6639 = vmax.f32 %v6637, %v6638
        %v6640 = vsel %vm3997, %v6454, -inf
        %v6641 = vrot.slane %v6640, 4
        %v6642 = vmax.f32 %v6640, %v6641
        %v6643 = vrot.slane %v6642, 2
        %v6644 = vmax.f32 %v6642, %v6643
        %v6645 = vrot.slane %v6644, 1
        %v6646 = vmax.f32 %v6644, %v6645
        %v6647 = vlaneseq
        %v6648 = vshrl.u32 %v6647, 7
        %v6649 = vsub.s32 6, %v6648
        %v6650 = vrot.slane %v4097, %v6649
        %v6651 = vmul.f32 %v6461, %v6650
        %v6652 = vmul.f32 %v6468, %v6650
        %v6653 = vmul.f32 %v6475, %v6650
        %v6654 = vmul.f32 %v6482, %v6650
        %v6655 = vmul.f32 %v6489, %v6650
        %v6656 = vmul.f32 %v6496, %v6650
        %v6657 = vmul.f32 %v6503, %v6650
        %v6658 = vmul.f32 %v6510, %v6650
        %v6659 = vadd.f32 %v6290, %v6651
        %v6660 = vadd.f32 %v6291, %v6652
        %v6661 = vadd.f32 %v6292, %v6653
        %v6662 = vadd.f32 %v6293, %v6654
        %v6663 = vadd.f32 %v6294, %v6655
        %v6664 = vadd.f32 %v6295, %v6656
        %v6665 = vadd.f32 %v6296, %v6657
        %v6666 = vadd.f32 %v6297, %v6658
        %v6667 = vmul.f32 %v6541, %v6650
        %v6668 = vmul.f32 %v6548, %v6650
        %v6669 = vmul.f32 %v6555, %v6650
        %v6670 = vmul.f32 %v6562, %v6650
        %v6671 = vmul.f32 %v6569, %v6650
        %v6672 = vmul.f32 %v6576, %v6650
        %v6673 = vmul.f32 %v6583, %v6650
        %v6674 = vmul.f32 %v6590, %v6650
        %v6675 = vadd.f32 %v6306, %v6667
        %v6676 = vadd.f32 %v6307, %v6668
        %v6677 = vadd.f32 %v6308, %v6669
        %v6678 = vadd.f32 %v6309, %v6670
        %v6679 = vadd.f32 %v6310, %v6671
        %v6680 = vadd.f32 %v6311, %v6672
        %v6681 = vadd.f32 %v6312, %v6673
        %v6682 = vadd.f32 %v6313, %v6674
        %v6683 = vmul.f32 %v6597, %v6650
        %v6684 = vmul.f32 %v6604, %v6650
        %v6685 = vmul.f32 %v6611, %v6650
        %v6686 = vmul.f32 %v6618, %v6650
        %v6687 = vmul.f32 %v6625, %v6650
        %v6688 = vmul.f32 %v6632, %v6650
        %v6689 = vmul.f32 %v6639, %v6650
        %v6690 = vmul.f32 %v6646, %v6650
        %v6691 = vmax.f32 %v6322, %v6683
        %v6692 = vmax.f32 %v6323, %v6684
        %v6693 = vmax.f32 %v6324, %v6685
        %v6694 = vmax.f32 %v6325, %v6686
        %v6695 = vmax.f32 %v6326, %v6687
        %v6696 = vmax.f32 %v6327, %v6688
        %v6697 = vmax.f32 %v6328, %v6689
        %v6698 = vmax.f32 %v6329, %v6690
        %v6699 = vlaneseq
        %v6700 = vshrl.u32 %v6699, 7
        %v6701 = vsub.s32 7, %v6700
        %v6702 = vrot.slane %v4107, %v6701
        %vm6703 = vcmp.eq.s32.totalorder %v6702, 1
        %v6704 = vrot.slane %v4099, 7
        %v6705 = vrot.slane %v4100, 6
        %v6706 = vsel %vm3846, %v6705, %v6704
        %v6707 = vrot.slane %v4101, 5
        %v6708 = vsel %vm3847, %v6707, %v6706
        %v6709 = vrot.slane %v4102, 4
        %v6710 = vsel %vm3849, %v6709, %v6708
        %v6711 = vrot.slane %v4103, 3
        %v6712 = vsel %vm3851, %v6711, %v6710
        %v6713 = vrot.slane %v4104, 2
        %v6714 = vsel %vm3853, %v6713, %v6712
        %v6715 = vrot.slane %v4105, 1
        %v6716 = vsel %vm3855, %v6715, %v6714
        %v6717 = vsel %vm3857, %v4106, %v6716
        %v6719 = vsel %vm6703, %v6717, -1e+30
        %v6720 = vlaneseq
        %v6721 = vshrl.u32 %v6720, 7
        %v6722 = vsub.s32 0, %v6721
        %v6723 = vrot.slane %v6719, %v6722
        %6725 = vbcast.lane.b32.xlu0 %v6723, 256
        %v6726 = vpop.permute.xlu0 %6725
        %v6727 = vlaneseq
        %v6728 = vshrl.u32 %v6727, 7
        %v6729 = vsub.s32 1, %v6728
        %v6730 = vrot.slane %v6719, %v6729
        %6732 = vbcast.lane.b32.xlu0 %v6730, 256
        %v6733 = vpop.permute.xlu0 %6732
        %v6734 = vlaneseq
        %v6735 = vshrl.u32 %v6734, 7
        %v6736 = vsub.s32 2, %v6735
        %v6737 = vrot.slane %v6719, %v6736
        %6739 = vbcast.lane.b32.xlu0 %v6737, 256
        %v6740 = vpop.permute.xlu0 %6739
        %v6741 = vlaneseq
        %v6742 = vshrl.u32 %v6741, 7
        %v6743 = vsub.s32 3, %v6742
        %v6744 = vrot.slane %v6719, %v6743
        %6746 = vbcast.lane.b32.xlu0 %v6744, 256
        %v6747 = vpop.permute.xlu0 %6746
        %v6748 = vlaneseq
        %v6749 = vshrl.u32 %v6748, 7
        %v6750 = vsub.s32 4, %v6749
        %v6751 = vrot.slane %v6719, %v6750
        %6753 = vbcast.lane.b32.xlu0 %v6751, 256
        %v6754 = vpop.permute.xlu0 %6753
        %v6755 = vlaneseq
        %v6756 = vshrl.u32 %v6755, 7
        %v6757 = vsub.s32 5, %v6756
        %v6758 = vrot.slane %v6719, %v6757
        %6760 = vbcast.lane.b32.xlu0 %v6758, 256
        %v6761 = vpop.permute.xlu0 %6760
        %v6762 = vlaneseq
        %v6763 = vshrl.u32 %v6762, 7
        %v6764 = vsub.s32 6, %v6763
        %v6765 = vrot.slane %v6719, %v6764
        %6767 = vbcast.lane.b32.xlu0 %v6765, 256
        %v6768 = vpop.permute.xlu0 %6767
        %v6769 = vlaneseq
        %v6770 = vshrl.u32 %v6769, 7
        %v6771 = vsub.s32 7, %v6770
        %v6772 = vrot.slane %v6719, %v6771
        %6774 = vbcast.lane.b32.xlu0 %v6772, 256
        %v6775 = vpop.permute.xlu0 %6774
        %v6776 = vlaneseq
        %v6777 = vshrl.u32 %v6776, 7
        %v6778 = vsub.s32 7, %v6777
        %v6779 = vrot.slane %v4082, %v6778
        %v6780 = vlaneseq
        %v6781 = vshrl.u32 %v6780, 7
        %v6782 = vsub.s32 7, %v6781
        %v6783 = vrot.slane %v4083, %v6782
        %v6784 = vlaneseq
        %v6785 = vshrl.u32 %v6784, 7
        %v6786 = vsub.s32 7, %v6785
        %v6787 = vrot.slane %v4084, %v6786
        %v6788 = vlaneseq
        %v6789 = vshrl.u32 %v6788, 7
        %v6790 = vsub.s32 7, %v6789
        %v6791 = vrot.slane %v4085, %v6790
        %v6792 = vlaneseq
        %v6793 = vshrl.u32 %v6792, 7
        %v6794 = vsub.s32 7, %v6793
        %v6795 = vrot.slane %v4086, %v6794
        %v6796 = vlaneseq
        %v6797 = vshrl.u32 %v6796, 7
        %v6798 = vsub.s32 7, %v6797
        %v6799 = vrot.slane %v4087, %v6798
        %v6800 = vlaneseq
        %v6801 = vshrl.u32 %v6800, 7
        %v6802 = vsub.s32 7, %v6801
        %v6803 = vrot.slane %v4088, %v6802
        %v6804 = vlaneseq
        %v6805 = vshrl.u32 %v6804, 7
        %v6806 = vsub.s32 7, %v6805
        %v6807 = vrot.slane %v4089, %v6806
        %v6808 = vsub.f32 %v6726, %v6779
        %v6809 = vsub.f32 %v6733, %v6783
        %v6810 = vsub.f32 %v6740, %v6787
        %v6811 = vsub.f32 %v6747, %v6791
        %v6812 = vsub.f32 %v6754, %v6795
        %v6813 = vsub.f32 %v6761, %v6799
        %v6814 = vsub.f32 %v6768, %v6803
        %v6815 = vsub.f32 %v6775, %v6807
        %v6816 = vmax.f32 %v6808, 0.0
        %v6817 = vmax.f32 %v6809, 0.0
        %v6818 = vmax.f32 %v6810, 0.0
        %v6819 = vmax.f32 %v6811, 0.0
        %v6820 = vmax.f32 %v6812, 0.0
        %v6821 = vmax.f32 %v6813, 0.0
        %v6822 = vmax.f32 %v6814, 0.0
        %v6823 = vmax.f32 %v6815, 0.0
        %v6824 = vsel %vm3997, %v6816, 0.0
        %v6825 = vrot.slane %v6824, 4
        %v6826 = vadd.f32 %v6824, %v6825
        %v6827 = vrot.slane %v6826, 2
        %v6828 = vadd.f32 %v6826, %v6827
        %v6829 = vrot.slane %v6828, 1
        %v6830 = vadd.f32 %v6828, %v6829
        %v6831 = vsel %vm3997, %v6817, 0.0
        %v6832 = vrot.slane %v6831, 4
        %v6833 = vadd.f32 %v6831, %v6832
        %v6834 = vrot.slane %v6833, 2
        %v6835 = vadd.f32 %v6833, %v6834
        %v6836 = vrot.slane %v6835, 1
        %v6837 = vadd.f32 %v6835, %v6836
        %v6838 = vsel %vm3997, %v6818, 0.0
        %v6839 = vrot.slane %v6838, 4
        %v6840 = vadd.f32 %v6838, %v6839
        %v6841 = vrot.slane %v6840, 2
        %v6842 = vadd.f32 %v6840, %v6841
        %v6843 = vrot.slane %v6842, 1
        %v6844 = vadd.f32 %v6842, %v6843
        %v6845 = vsel %vm3997, %v6819, 0.0
        %v6846 = vrot.slane %v6845, 4
        %v6847 = vadd.f32 %v6845, %v6846
        %v6848 = vrot.slane %v6847, 2
        %v6849 = vadd.f32 %v6847, %v6848
        %v6850 = vrot.slane %v6849, 1
        %v6851 = vadd.f32 %v6849, %v6850
        %v6852 = vsel %vm3997, %v6820, 0.0
        %v6853 = vrot.slane %v6852, 4
        %v6854 = vadd.f32 %v6852, %v6853
        %v6855 = vrot.slane %v6854, 2
        %v6856 = vadd.f32 %v6854, %v6855
        %v6857 = vrot.slane %v6856, 1
        %v6858 = vadd.f32 %v6856, %v6857
        %v6859 = vsel %vm3997, %v6821, 0.0
        %v6860 = vrot.slane %v6859, 4
        %v6861 = vadd.f32 %v6859, %v6860
        %v6862 = vrot.slane %v6861, 2
        %v6863 = vadd.f32 %v6861, %v6862
        %v6864 = vrot.slane %v6863, 1
        %v6865 = vadd.f32 %v6863, %v6864
        %v6866 = vsel %vm3997, %v6822, 0.0
        %v6867 = vrot.slane %v6866, 4
        %v6868 = vadd.f32 %v6866, %v6867
        %v6869 = vrot.slane %v6868, 2
        %v6870 = vadd.f32 %v6868, %v6869
        %v6871 = vrot.slane %v6870, 1
        %v6872 = vadd.f32 %v6870, %v6871
        %v6873 = vsel %vm3997, %v6823, 0.0
        %v6874 = vrot.slane %v6873, 4
        %v6875 = vadd.f32 %v6873, %v6874
        %v6876 = vrot.slane %v6875, 2
        %v6877 = vadd.f32 %v6875, %v6876
        %v6878 = vrot.slane %v6877, 1
        %v6879 = vadd.f32 %v6877, %v6878
        %vm6880 = vcmp.gt.f32.partialorder %v6816, 0.0
        %vm6881 = vcmp.gt.f32.partialorder %v6817, 0.0
        %vm6882 = vcmp.gt.f32.partialorder %v6818, 0.0
        %vm6883 = vcmp.gt.f32.partialorder %v6819, 0.0
        %vm6884 = vcmp.gt.f32.partialorder %v6820, 0.0
        %vm6885 = vcmp.gt.f32.partialorder %v6821, 0.0
        %vm6886 = vcmp.gt.f32.partialorder %v6822, 0.0
        %vm6887 = vcmp.gt.f32.partialorder %v6823, 0.0
        %v6888 = vsel %vm6880, 1, 0
        %v6889 = vsel %vm6881, 1, 0
        %v6890 = vsel %vm6882, 1, 0
        %v6891 = vsel %vm6883, 1, 0
        %v6892 = vsel %vm6884, 1, 0
        %v6893 = vsel %vm6885, 1, 0
        %v6894 = vsel %vm6886, 1, 0
        %v6895 = vsel %vm6887, 1, 0
        %v6896 = vcvt.s32.f32 %v6888
        %v6897 = vcvt.s32.f32 %v6889
        %v6898 = vcvt.s32.f32 %v6890
        %v6899 = vcvt.s32.f32 %v6891
        %v6900 = vcvt.s32.f32 %v6892
        %v6901 = vcvt.s32.f32 %v6893
        %v6902 = vcvt.s32.f32 %v6894
        %v6903 = vcvt.s32.f32 %v6895
        %v6904 = vsel %vm3997, %v6896, 0.0
        %v6905 = vrot.slane %v6904, 4
        %v6906 = vadd.f32 %v6904, %v6905
        %v6907 = vrot.slane %v6906, 2
        %v6908 = vadd.f32 %v6906, %v6907
        %v6909 = vrot.slane %v6908, 1
        %v6910 = vadd.f32 %v6908, %v6909
        %v6911 = vsel %vm3997, %v6897, 0.0
        %v6912 = vrot.slane %v6911, 4
        %v6913 = vadd.f32 %v6911, %v6912
        %v6914 = vrot.slane %v6913, 2
        %v6915 = vadd.f32 %v6913, %v6914
        %v6916 = vrot.slane %v6915, 1
        %v6917 = vadd.f32 %v6915, %v6916
        %v6918 = vsel %vm3997, %v6898, 0.0
        %v6919 = vrot.slane %v6918, 4
        %v6920 = vadd.f32 %v6918, %v6919
        %v6921 = vrot.slane %v6920, 2
        %v6922 = vadd.f32 %v6920, %v6921
        %v6923 = vrot.slane %v6922, 1
        %v6924 = vadd.f32 %v6922, %v6923
        %v6925 = vsel %vm3997, %v6899, 0.0
        %v6926 = vrot.slane %v6925, 4
        %v6927 = vadd.f32 %v6925, %v6926
        %v6928 = vrot.slane %v6927, 2
        %v6929 = vadd.f32 %v6927, %v6928
        %v6930 = vrot.slane %v6929, 1
        %v6931 = vadd.f32 %v6929, %v6930
        %v6932 = vsel %vm3997, %v6900, 0.0
        %v6933 = vrot.slane %v6932, 4
        %v6934 = vadd.f32 %v6932, %v6933
        %v6935 = vrot.slane %v6934, 2
        %v6936 = vadd.f32 %v6934, %v6935
        %v6937 = vrot.slane %v6936, 1
        %v6938 = vadd.f32 %v6936, %v6937
        %v6939 = vsel %vm3997, %v6901, 0.0
        %v6940 = vrot.slane %v6939, 4
        %v6941 = vadd.f32 %v6939, %v6940
        %v6942 = vrot.slane %v6941, 2
        %v6943 = vadd.f32 %v6941, %v6942
        %v6944 = vrot.slane %v6943, 1
        %v6945 = vadd.f32 %v6943, %v6944
        %v6946 = vsel %vm3997, %v6902, 0.0
        %v6947 = vrot.slane %v6946, 4
        %v6948 = vadd.f32 %v6946, %v6947
        %v6949 = vrot.slane %v6948, 2
        %v6950 = vadd.f32 %v6948, %v6949
        %v6951 = vrot.slane %v6950, 1
        %v6952 = vadd.f32 %v6950, %v6951
        %v6953 = vsel %vm3997, %v6903, 0.0
        %v6954 = vrot.slane %v6953, 4
        %v6955 = vadd.f32 %v6953, %v6954
        %v6956 = vrot.slane %v6955, 2
        %v6957 = vadd.f32 %v6955, %v6956
        %v6958 = vrot.slane %v6957, 1
        %v6959 = vadd.f32 %v6957, %v6958
        %v6960 = vsel %vm3997, %v6816, -inf
        %v6961 = vrot.slane %v6960, 4
        %v6962 = vmax.f32 %v6960, %v6961
        %v6963 = vrot.slane %v6962, 2
        %v6964 = vmax.f32 %v6962, %v6963
        %v6965 = vrot.slane %v6964, 1
        %v6966 = vmax.f32 %v6964, %v6965
        %v6967 = vsel %vm3997, %v6817, -inf
        %v6968 = vrot.slane %v6967, 4
        %v6969 = vmax.f32 %v6967, %v6968
        %v6970 = vrot.slane %v6969, 2
        %v6971 = vmax.f32 %v6969, %v6970
        %v6972 = vrot.slane %v6971, 1
        %v6973 = vmax.f32 %v6971, %v6972
        %v6974 = vsel %vm3997, %v6818, -inf
        %v6975 = vrot.slane %v6974, 4
        %v6976 = vmax.f32 %v6974, %v6975
        %v6977 = vrot.slane %v6976, 2
        %v6978 = vmax.f32 %v6976, %v6977
        %v6979 = vrot.slane %v6978, 1
        %v6980 = vmax.f32 %v6978, %v6979
        %v6981 = vsel %vm3997, %v6819, -inf
        %v6982 = vrot.slane %v6981, 4
        %v6983 = vmax.f32 %v6981, %v6982
        %v6984 = vrot.slane %v6983, 2
        %v6985 = vmax.f32 %v6983, %v6984
        %v6986 = vrot.slane %v6985, 1
        %v6987 = vmax.f32 %v6985, %v6986
        %v6988 = vsel %vm3997, %v6820, -inf
        %v6989 = vrot.slane %v6988, 4
        %v6990 = vmax.f32 %v6988, %v6989
        %v6991 = vrot.slane %v6990, 2
        %v6992 = vmax.f32 %v6990, %v6991
        %v6993 = vrot.slane %v6992, 1
        %v6994 = vmax.f32 %v6992, %v6993
        %v6995 = vsel %vm3997, %v6821, -inf
        %v6996 = vrot.slane %v6995, 4
        %v6997 = vmax.f32 %v6995, %v6996
        %v6998 = vrot.slane %v6997, 2
        %v6999 = vmax.f32 %v6997, %v6998
        %v7000 = vrot.slane %v6999, 1
        %v7001 = vmax.f32 %v6999, %v7000
        %v7002 = vsel %vm3997, %v6822, -inf
        %v7003 = vrot.slane %v7002, 4
        %v7004 = vmax.f32 %v7002, %v7003
        %v7005 = vrot.slane %v7004, 2
        %v7006 = vmax.f32 %v7004, %v7005
        %v7007 = vrot.slane %v7006, 1
        %v7008 = vmax.f32 %v7006, %v7007
        %v7009 = vsel %vm3997, %v6823, -inf
        %v7010 = vrot.slane %v7009, 4
        %v7011 = vmax.f32 %v7009, %v7010
        %v7012 = vrot.slane %v7011, 2
        %v7013 = vmax.f32 %v7011, %v7012
        %v7014 = vrot.slane %v7013, 1
        %v7015 = vmax.f32 %v7013, %v7014
        %v7016 = vlaneseq
        %v7017 = vshrl.u32 %v7016, 7
        %v7018 = vsub.s32 7, %v7017
        %v7019 = vrot.slane %v4097, %v7018
        %v7020 = vmul.f32 %v6830, %v7019
        %v7021 = vmul.f32 %v6837, %v7019
        %v7022 = vmul.f32 %v6844, %v7019
        %v7023 = vmul.f32 %v6851, %v7019
        %v7024 = vmul.f32 %v6858, %v7019
        %v7025 = vmul.f32 %v6865, %v7019
        %v7026 = vmul.f32 %v6872, %v7019
        %v7027 = vmul.f32 %v6879, %v7019
        %v7028 = vadd.f32 %v6659, %v7020
        %v7029 = vadd.f32 %v6660, %v7021
        %v7030 = vadd.f32 %v6661, %v7022
        %v7031 = vadd.f32 %v6662, %v7023
        %v7032 = vadd.f32 %v6663, %v7024
        %v7033 = vadd.f32 %v6664, %v7025
        %v7034 = vadd.f32 %v6665, %v7026
        %v7035 = vadd.f32 %v6666, %v7027
        %v7036 = vmul.f32 %v6910, %v7019
        %v7037 = vmul.f32 %v6917, %v7019
        %v7038 = vmul.f32 %v6924, %v7019
        %v7039 = vmul.f32 %v6931, %v7019
        %v7040 = vmul.f32 %v6938, %v7019
        %v7041 = vmul.f32 %v6945, %v7019
        %v7042 = vmul.f32 %v6952, %v7019
        %v7043 = vmul.f32 %v6959, %v7019
        %v7044 = vadd.f32 %v6675, %v7036
        %v7045 = vadd.f32 %v6676, %v7037
        %v7046 = vadd.f32 %v6677, %v7038
        %v7047 = vadd.f32 %v6678, %v7039
        %v7048 = vadd.f32 %v6679, %v7040
        %v7049 = vadd.f32 %v6680, %v7041
        %v7050 = vadd.f32 %v6681, %v7042
        %v7051 = vadd.f32 %v6682, %v7043
        %v7052 = vmul.f32 %v6966, %v7019
        %v7053 = vmul.f32 %v6973, %v7019
        %v7054 = vmul.f32 %v6980, %v7019
        %v7055 = vmul.f32 %v6987, %v7019
        %v7056 = vmul.f32 %v6994, %v7019
        %v7057 = vmul.f32 %v7001, %v7019
        %v7058 = vmul.f32 %v7008, %v7019
        %v7059 = vmul.f32 %v7015, %v7019
        %v7060 = vmax.f32 %v6691, %v7052
        %v7061 = vmax.f32 %v6692, %v7053
        %v7062 = vmax.f32 %v6693, %v7054
        %v7063 = vmax.f32 %v6694, %v7055
        %v7064 = vmax.f32 %v6695, %v7056
        %v7065 = vmax.f32 %v6696, %v7057
        %v7066 = vmax.f32 %v6697, %v7058
        %v7067 = vmax.f32 %v6698, %v7059
        %v7076 = vrot.slane %v7029, 7
        %v7077 = vsel %vm3846, %v7076, %v7028
        %v7078 = vrot.slane %v7030, 6
        %v7079 = vsel %vm3847, %v7078, %v7077
        %v7080 = vrot.slane %v7031, 5
        %v7081 = vsel %vm3849, %v7080, %v7079
        %v7082 = vrot.slane %v7032, 4
        %v7083 = vsel %vm3851, %v7082, %v7081
        %v7084 = vrot.slane %v7033, 3
        %v7085 = vsel %vm3853, %v7084, %v7083
        %v7086 = vrot.slane %v7034, 2
        %v7087 = vsel %vm3855, %v7086, %v7085
        %v7088 = vrot.slane %v7035, 1
        %v7089 = vsel %vm3857, %v7088, %v7087
        %v7091 = vsel %vm3997, %v7089, 0.0
        %7092 = vadd.xlane.f32.xlu0 %v7091
        %v7093 = vpop.xlane.xlu0 %7092
        %v7094 = vcvt.f32.s32.to.zero.pseudo %v7044
        %v7095 = vcvt.f32.s32.to.zero.pseudo %v7045
        %v7096 = vcvt.f32.s32.to.zero.pseudo %v7046
        %v7097 = vcvt.f32.s32.to.zero.pseudo %v7047
        %v7098 = vcvt.f32.s32.to.zero.pseudo %v7048
        %v7099 = vcvt.f32.s32.to.zero.pseudo %v7049
        %v7100 = vcvt.f32.s32.to.zero.pseudo %v7050
        %v7101 = vcvt.f32.s32.to.zero.pseudo %v7051
        %v7102 = vrot.slane %v7095, 7
        %v7103 = vsel %vm3846, %v7102, %v7094
        %v7104 = vrot.slane %v7096, 6
        %v7105 = vsel %vm3847, %v7104, %v7103
        %v7106 = vrot.slane %v7097, 5
        %v7107 = vsel %vm3849, %v7106, %v7105
        %v7108 = vrot.slane %v7098, 4
        %v7109 = vsel %vm3851, %v7108, %v7107
        %v7110 = vrot.slane %v7099, 3
        %v7111 = vsel %vm3853, %v7110, %v7109
        %v7112 = vrot.slane %v7100, 2
        %v7113 = vsel %vm3855, %v7112, %v7111
        %v7114 = vrot.slane %v7101, 1
        %v7115 = vsel %vm3857, %v7114, %v7113
        %v7116 = vsel %vm3997, %v7115, 0
        %v7117 = vand.u32 %v7116, 65535
        %v7118 = vshrl.u32 %v7116, 16
        %v7119 = vcvt.s32.f32 %v7117
        %v7120 = vcvt.s32.f32 %v7118
        %7121 = vadd.xlane.f32.xlu0 %v7119
        %v7122 = vpop.xlane.xlu0 %7121
        %7123 = vadd.xlane.f32.xlu0 %v7120
        %v7124 = vpop.xlane.xlu0 %7123
        %v7125 = vcvt.f32.s32 %v7122
        %v7126 = vcvt.f32.s32 %v7124
        %v7127 = vshll.u32 %v7126, 16
        %v7128 = vadd.s32 %v7127, %v7125
        %v7129 = vcvt.s32.f32 %v7128
        %v7138 = vrot.slane %v7061, 7
        %v7139 = vsel %vm3846, %v7138, %v7060
        %v7140 = vrot.slane %v7062, 6
        %v7141 = vsel %vm3847, %v7140, %v7139
        %v7142 = vrot.slane %v7063, 5
        %v7143 = vsel %vm3849, %v7142, %v7141
        %v7144 = vrot.slane %v7064, 4
        %v7145 = vsel %vm3851, %v7144, %v7143
        %v7146 = vrot.slane %v7065, 3
        %v7147 = vsel %vm3853, %v7146, %v7145
        %v7148 = vrot.slane %v7066, 2
        %v7149 = vsel %vm3855, %v7148, %v7147
        %v7150 = vrot.slane %v7067, 1
        %v7151 = vsel %vm3857, %v7150, %v7149
        %v7153 = vsel %vm3997, %v7151, -inf
        %7154 = vmax.xlane.f32.xlu0 %v7153
        %v7155 = vpop.xlane.xlu0 %7154
        %v7156 = vadd.f32 %v7129, 1e-09
        %v7157 = vrcp.pop %v7156
        %v7158 = vmul.f32 %v7093, %v7157
        %vm7159 = vcmp.eq.f32.partialorder %v7129, 0.0
        %v7160 = vsel %vm7159, 0.0, %v7158
        %vm7161 = vcmask 7168
        %v7162 = vsel %vm7161, %v7160, %v7155
        %vm7163 = vcmask 15360
        %v7164 = vsel %vm7163, %v7162, %v7129
        %vm7165 = vcmask 23552
        %v7166 = vsel %vm7165, %v7164, %v4073
        %vm7167 = vcmask 31744
        %7168 = vst.msk [vmem:[%s202] sm:$0xff] %vm7167, %v7166
        %p7169 = scmp.lt.s32.totalorder %s18, 1
        %s7170 = scalar_select %p7169, %s18, 1
        %s7171 = smul.addr %s7170, 8
        %s7172 = scalar_lea.vmem %s3, %s7171
        // Predicated region
        $region41: #{tpu_custom_call.1} parent=31 // pred_check
          %p7173 = pneg %p104
        $region42: #{tpu_custom_call.1} parent=31 // pred_check_branch
          %7175 = sbr.rel (%p7173) target = $region44
        $region43: #{tpu_custom_call.1} parent=31 // pred_region
          _
        $region44: #{tpu_custom_call.1} parent=31 // pred_fallthru
          _
      $region32: #{tpu_custom_call.1} parent=5 // pred_fallthru
        _
      %p7176 = scmp.le.s32.totalorder 2, %s13
      // Predicated region
      $region45: #{tpu_custom_call.1} parent=5 // pred_check
        %p7177 = pneg %p7176
      $region46: #{tpu_custom_call.1} parent=5 // pred_check_branch
        %7179 = sbr.rel (%p7177) target = $region48
      $region47: #{tpu_custom_call.1} parent=5 // pred_region
        %s7180 = ssub.s32 %s13, 2
        // Predicated region
        $region49: #{tpu_custom_call.1} parent=47 // pred_check
          %p7181 = pneg %p110
        $region50: #{tpu_custom_call.1} parent=47 // pred_check_branch
          %7183 = sbr.rel (%p7181) target = $region52
        $region51: #{tpu_custom_call.1} parent=47 // pred_region
          %p7184 = scmp.lt.s32.totalorder %s19, 1
          %s7185 = scalar_select %p7184, %s19, 1
          %s7186 = smul.addr %s7185, 8
          %s7187 = scalar_lea.vmem %s3, %s7186
        $region52: #{tpu_custom_call.1} parent=47 // pred_fallthru
          _
      $region48: #{tpu_custom_call.1} parent=5 // pred_fallthru
        _
    $region6: #{tpu_custom_call.1} parent=1 // loop_footer
      %s17 = sadd.s32 1, %s13
    $region7: #{tpu_custom_call.1} parent=1 // loop_footer_branch
      %12 = sbr.rel target = $region3
    $region8: #{tpu_custom_call.1} parent=1 // loop_exit
      _
    %7188 = vsyncpa [#allocation4], 1
    %s7189 = scalar_lea.sflag [#allocation4], 1
    %7190 = vsyncpa %s7189, 1
    %7191 = vsyncpa [#allocation6], 1

</llo_original>
